<compile_context>
chip_gen: v7x
topology: tpu7x:2x2x1
jax: 0.10.0
libtpu: 0.0.40
codegen_flags: <defaults>
</compile_context>

<pallas_src>
import jax
import jax.numpy as jnp
from jax.experimental import pallas as pl
from jax.experimental.pallas import tpu as pltpu

EPS = 1e-5    # torch.nn.InstanceNorm2d default eps
LANE = 128    # TPU lane width


def resblock_kernel(x_ref, w1_ref, g1_ref, bt1_ref, w2_ref, g2_ref, bt2_ref,
                    out_ref, pad_ref):
    B, H, W, C = x_ref.shape
    Cp = pad_ref.shape[-1]
    HW = H * W

    # Zero the whole padded scratch once per grid step: provides the 1-pixel zero halo
    # for both convs and keeps the unused channel lanes [C:Cp] of the interior at
    # exactly zero, so padded lanes never feed garbage into the dots.  (Not gated on
    # program_id==0: scratch is per-TensorCore under megacore sharding.)
    pad_ref[...] = jnp.zeros(pad_ref.shape, pad_ref.dtype)

    def conv3x3(w_ref):
        # "same" 3x3 conv as 9 accumulating MXU dots (bf16 x bf16 -> f32 accumulate).
        # The LHS for tap (ky, kx) is the shifted HxW window of the zero-padded input
        # scratch -- no im2col patch buffer, no window stores.
        acc = jnp.zeros((B * HW, Cp), jnp.float32)
        for ky in range(3):
            for kx in range(3):
                k = ky * 3 + kx
                lhs = pad_ref[:, ky:ky + H, kx:kx + W, :]           # (B, H, W, Cp)
                lhs = lhs.reshape(B * HW, Cp).astype(jnp.bfloat16)
                acc = acc + jnp.dot(lhs, w_ref[k * Cp:(k + 1) * Cp, :],
                                    preferred_element_type=jnp.float32)
        # NOTE: the conv bias is intentionally omitted -- the InstanceNorm that follows
        # subtracts the per-(image, channel) mean, which cancels it exactly.
        return acc.reshape(B, HW, Cp)

    def inorm(y, g_ref, bt_ref, relu):
        # InstanceNorm2d(affine=True), biased variance (as torch); affine folded into
        # one fused scale/shift pass, with the following ReLU fused when requested.
        mean = jnp.mean(y, axis=1, keepdims=True)                   # (B, 1, Cp)
        var = jnp.mean(y * y, axis=1, keepdims=True) - mean * mean
        var = jnp.maximum(var, 0.0)
        scale = g_ref[...] * jax.lax.rsqrt(var + EPS)               # (B, 1, Cp)
        shift = bt_ref[...] - mean * scale
        out = y * scale + shift
        return jnp.maximum(out, 0.0) if relu else out

    # conv1 input: only the real C channels of x; padded lanes stay zero (memset above).
    pad_ref[:, 1:H + 1, 1:W + 1, 0:C] = x_ref[...]
    z = inorm(conv3x3(w1_ref), g1_ref, bt1_ref, relu=True)          # (B, HW, Cp)

    # conv2 input: full Cp lanes (the padded lanes of z are exactly zero).
    pad_ref[:, 1:H + 1, 1:W + 1, :] = z.reshape(B, H, W, Cp)
    y = inorm(conv3x3(w2_ref), g2_ref, bt2_ref, relu=False)         # (B, HW, Cp)

    # Residual add (re-read x_ref here -> short live range) + final ReLU; only the
    # real C channels are written back to HBM.
    res = y.reshape(B, H, W, Cp)[..., 0:C] + x_ref[...]
    out_ref[...] = jnp.maximum(res, 0.0).astype(out_ref.dtype)


def _round_up(v, m):
    return (v + m - 1) // m * m


def resblock_pallas(x, params, *, block_n=1):
    """x: (N, H, W, C) NHWC. params: (w1_hwio, b1, g1, bt1, w2_hwio, b2, g2, bt2)."""
    w1, b1, g1, bt1, w2, b2, g2, bt2 = params
    del b1, b2   # conv bias is exactly cancelled by the following InstanceNorm
    N, H, W, C = x.shape
    assert N % block_n == 0, "block_n must divide the batch"

    # Channel padding to the 128-lane width only exists for the (tiny) weights and the
    # in-VMEM scratch; activations move through HBM with their original C channels.
    Cp = _round_up(C, LANE)
    pc = Cp - C

    def prep_w(w):   # HWIO (3,3,C,C) -> pad channels -> (9*Cp, Cp), bf16 for the MXU
        w = jnp.pad(w, ((0, 0), (0, 0), (0, pc), (0, pc)))
        return w.reshape(9 * Cp, Cp).astype(jnp.bfloat16)

    def prep_v(v):   # (1, C) -> (1, Cp)
        return jnp.pad(v, ((0, 0), (0, pc)))

    w1f, w2f = prep_w(w1), prep_w(w2)
    g1p, bt1p, g2p, bt2p = prep_v(g1), prep_v(bt1), prep_v(g2), prep_v(bt2)

    img_spec = pl.BlockSpec((block_n, H, W, C), lambda i: (i, 0, 0, 0))
    w_spec = pl.BlockSpec((9 * Cp, Cp), lambda i: (0, 0))
    v_spec = pl.BlockSpec((1, Cp), lambda i: (0, 0))

    return pl.pallas_call(
        resblock_kernel,
        out_shape=jax.ShapeDtypeStruct((N, H, W, C), x.dtype),
        grid=(N // block_n,),
        in_specs=[img_spec, w_spec, v_spec, v_spec, w_spec, v_spec, v_spec],
        out_specs=img_spec,
        scratch_shapes=[
            # zero-padded (H+2, W+2) input scratch, channels padded to the lane width
            pltpu.VMEM((block_n, H + 2, W + 2, Cp), jnp.float32),
        ],
        compiler_params=pltpu.CompilerParams(
            # batch axis is independent -> shards across v7x's two TensorCores;
            # on single-core v5e/v6e prefer a larger block_n for bigger batches.
            dimension_semantics=("parallel",),
            vmem_limit_bytes=32 * 1024 * 1024,
        ),
    )(x, w1f, g1p, bt1p, w2f, g2p, bt2p)


def resblock_ref(x, params):
    """Pure-JAX reference (NHWC) matching the PyTorch forward semantics."""
    w1, b1, g1, bt1, w2, b2, g2, bt2 = params

    def conv(y, w, b):
        out = jax.lax.conv_general_dilated(
            y, w, window_strides=(1, 1), padding="SAME",
            dimension_numbers=("NHWC", "HWIO", "NHWC"))
        return out + b.reshape(1, 1, 1, -1)

    def inorm(y, g, bt):
        m = jnp.mean(y, axis=(1, 2), keepdims=True)
        v = jnp.mean((y - m) ** 2, axis=(1, 2), keepdims=True)
        return (y - m) * jax.lax.rsqrt(v + EPS) * g.reshape(1, 1, 1, -1) \
            + bt.reshape(1, 1, 1, -1)

    y = jax.nn.relu(inorm(conv(x, w1, b1), g1, bt1))
    y = inorm(conv(y, w2, b2), g2, bt2)
    return jax.nn.relu(y + x)


if __name__ == "__main__":
    N, H, W, C = 2, 16, 16, 4   # PyTorch NCHW equivalent: (2, 4, 16, 16)

    key = jax.random.PRNGKey(0)
    ks = jax.random.split(key, 9)
    fan_in = 3 * 3 * C
    w1 = jax.random.normal(ks[0], (3, 3, C, C), jnp.float32) / jnp.sqrt(fan_in)
    b1 = 0.1 * jax.random.normal(ks[1], (1, C), jnp.float32)
    g1 = 1.0 + 0.1 * jax.random.normal(ks[2], (1, C), jnp.float32)
    bt1 = 0.1 * jax.random.normal(ks[3], (1, C), jnp.float32)
    w2 = jax.random.normal(ks[4], (3, 3, C, C), jnp.float32) / jnp.sqrt(fan_in)
    b2 = 0.1 * jax.random.normal(ks[5], (1, C), jnp.float32)
    g2 = 1.0 + 0.1 * jax.random.normal(ks[6], (1, C), jnp.float32)
    bt2 = 0.1 * jax.random.normal(ks[7], (1, C), jnp.float32)
    params = (w1, b1, g1, bt1, w2, b2, g2, bt2)

    x = jax.random.normal(ks[8], (N, H, W, C), jnp.float32)

    # block_n=1 keeps grid=(2,) "parallel" so both v7x TensorCores get work;
    # for larger N on v5e/v6e, raise block_n to amortize per-grid-step overhead.
    out = jax.block_until_ready(resblock_pallas(x, params, block_n=1))
    ref = jax.block_until_ready(resblock_ref(x, params))

    assert out.shape == (N, H, W, C)
    assert bool(jnp.all(jnp.isfinite(out)))
    err = float(jnp.max(jnp.abs(out - ref)))
    # bf16 matmul inputs with f32 accumulation: expected max abs error ~1e-2 vs the
    # all-f32 reference; 5e-2 leaves margin while still catching real bugs.
    assert err < 5e-2, f"mismatch vs JAX reference: max abs err = {err}"

    print("KERNEL_OK")
</pallas_src>

<mosaic_0001>
module attributes {stable_mosaic.version = 11 : i64} {
  func.func @resblock_kernel(%arg0: i32, %arg1: memref<1x16x16x4xf32, #tpu.memory_space<vmem>>, %arg2: memref<1152x128xbf16, #tpu.memory_space<vmem>>, %arg3: memref<1x128xf32, #tpu.memory_space<vmem>>, %arg4: memref<1x128xf32, #tpu.memory_space<vmem>>, %arg5: memref<1152x128xbf16, #tpu.memory_space<vmem>>, %arg6: memref<1x128xf32, #tpu.memory_space<vmem>>, %arg7: memref<1x128xf32, #tpu.memory_space<vmem>>, %arg8: memref<1x16x16x4xf32, #tpu.memory_space<vmem>>, %arg9: memref<1x18x18x128xf32, #tpu.memory_space<vmem>>) attributes {dimension_semantics = [#tpu.dimension_semantics<parallel>], iteration_bounds = array<i64: 2>, scalar_prefetch = 0 : i64, scratch_operands = 1 : i64, tpu.core_type = #tpu.core_type<tc>, window_params = [{transform_indices = @transform_0, window_bounds = array<i64: 1, 16, 16, 4>}, {pipeline_mode = #tpu.pipeline_mode<synchronous>, transform_indices = @transform_1, window_bounds = array<i64: 1152, 128>}, {pipeline_mode = #tpu.pipeline_mode<synchronous>, transform_indices = @transform_2, window_bounds = array<i64: 1, 128>}, {pipeline_mode = #tpu.pipeline_mode<synchronous>, transform_indices = @transform_3, window_bounds = array<i64: 1, 128>}, {pipeline_mode = #tpu.pipeline_mode<synchronous>, transform_indices = @transform_4, window_bounds = array<i64: 1152, 128>}, {pipeline_mode = #tpu.pipeline_mode<synchronous>, transform_indices = @transform_5, window_bounds = array<i64: 1, 128>}, {pipeline_mode = #tpu.pipeline_mode<synchronous>, transform_indices = @transform_6, window_bounds = array<i64: 1, 128>}, {transform_indices = @transform_7, window_bounds = array<i64: 1, 16, 16, 4>}]} {
    %cst = arith.constant 0.000000e+00 : f32
    %0 = vector.broadcast %cst : f32 to vector<1x18x18x128xf32>
    %c0 = arith.constant 0 : index
    %c0_0 = arith.constant 0 : index
    %c0_1 = arith.constant 0 : index
    %c0_2 = arith.constant 0 : index
    %1 = vector.load %arg9[%c0, %c0_0, %c0_1, %c0_2] : memref<1x18x18x128xf32, #tpu.memory_space<vmem>>, vector<1x18x18x128xf32>
    tpu.vector_store %arg9[%c0, %c0_0, %c0_1, %c0_2], %0 {strides = array<i32>} : memref<1x18x18x128xf32, #tpu.memory_space<vmem>>, vector<1x18x18x128xf32>,
    %c0_3 = arith.constant 0 : index
    %c0_4 = arith.constant 0 : index
    %c0_5 = arith.constant 0 : index
    %c0_6 = arith.constant 0 : index
    %2 = vector.load %arg1[%c0_3, %c0_4, %c0_5, %c0_6] : memref<1x16x16x4xf32, #tpu.memory_space<vmem>>, vector<1x16x16x4xf32>
    %c0_7 = arith.constant 0 : index
    %c1 = arith.constant 1 : index
    %c1_8 = arith.constant 1 : index
    %c0_9 = arith.constant 0 : index
    %3 = vector.load %arg9[%c0_7, %c1, %c1_8, %c0_9] : memref<1x18x18x128xf32, #tpu.memory_space<vmem>>, vector<1x16x16x4xf32>
    tpu.vector_store %arg9[%c0_7, %c1, %c1_8, %c0_9], %2 {strides = array<i32>} : memref<1x18x18x128xf32, #tpu.memory_space<vmem>>, vector<1x16x16x4xf32>,
    %cst_10 = arith.constant 0.000000e+00 : f32
    %4 = vector.broadcast %cst_10 : f32 to vector<256x128xf32>
    %c0_11 = arith.constant 0 : index
    %c0_12 = arith.constant 0 : index
    %c0_13 = arith.constant 0 : index
    %c0_14 = arith.constant 0 : index
    %5 = vector.load %arg9[%c0_11, %c0_12, %c0_13, %c0_14] : memref<1x18x18x128xf32, #tpu.memory_space<vmem>>, vector<1x16x16x128xf32>
    %6 = vector.shape_cast %5 : vector<1x16x16x128xf32> to vector<256x128xf32>
    %7 = arith.truncf %6 : vector<256x128xf32> to vector<256x128xbf16>
    %c0_15 = arith.constant 0 : index
    %c0_16 = arith.constant 0 : index
    %8 = vector.load %arg2[%c0_15, %c0_16] : memref<1152x128xbf16, #tpu.memory_space<vmem>>, vector<128x128xbf16>
    %cst_17 = arith.constant dense<0.000000e+00> : vector<256x128xf32>
    %9 = tpu.matmul %7, %8, %cst_17 {dimension_numbers = #tpu.dot_dimension_numbers<[1], [0], [0], [1], [0, 0, 1, 1], [], []>} : vector<256x128xbf16>, vector<128x128xbf16>, vector<256x128xf32> -> vector<256x128xf32>
    %10 = arith.addf %4, %9 : vector<256x128xf32>
    %c0_18 = arith.constant 0 : index
    %c0_19 = arith.constant 0 : index
    %c1_20 = arith.constant 1 : index
    %c0_21 = arith.constant 0 : index
    %11 = vector.load %arg9[%c0_18, %c0_19, %c1_20, %c0_21] : memref<1x18x18x128xf32, #tpu.memory_space<vmem>>, vector<1x16x16x128xf32>
    %12 = vector.shape_cast %11 : vector<1x16x16x128xf32> to vector<256x128xf32>
    %13 = arith.truncf %12 : vector<256x128xf32> to vector<256x128xbf16>
    %c128 = arith.constant 128 : index
    %c0_22 = arith.constant 0 : index
    %14 = vector.load %arg2[%c128, %c0_22] : memref<1152x128xbf16, #tpu.memory_space<vmem>>, vector<128x128xbf16>
    %cst_23 = arith.constant dense<0.000000e+00> : vector<256x128xf32>
    %15 = tpu.matmul %13, %14, %cst_23 {dimension_numbers = #tpu.dot_dimension_numbers<[1], [0], [0], [1], [0, 0, 1, 1], [], []>} : vector<256x128xbf16>, vector<128x128xbf16>, vector<256x128xf32> -> vector<256x128xf32>
    %16 = arith.addf %10, %15 : vector<256x128xf32>
    %c0_24 = arith.constant 0 : index
    %c0_25 = arith.constant 0 : index
    %c2 = arith.constant 2 : index
    %c0_26 = arith.constant 0 : index
    %17 = vector.load %arg9[%c0_24, %c0_25, %c2, %c0_26] : memref<1x18x18x128xf32, #tpu.memory_space<vmem>>, vector<1x16x16x128xf32>
    %18 = vector.shape_cast %17 : vector<1x16x16x128xf32> to vector<256x128xf32>
    %19 = arith.truncf %18 : vector<256x128xf32> to vector<256x128xbf16>
    %c256 = arith.constant 256 : index
    %c0_27 = arith.constant 0 : index
    %20 = vector.load %arg2[%c256, %c0_27] : memref<1152x128xbf16, #tpu.memory_space<vmem>>, vector<128x128xbf16>
    %cst_28 = arith.constant dense<0.000000e+00> : vector<256x128xf32>
    %21 = tpu.matmul %19, %20, %cst_28 {dimension_numbers = #tpu.dot_dimension_numbers<[1], [0], [0], [1], [0, 0, 1, 1], [], []>} : vector<256x128xbf16>, vector<128x128xbf16>, vector<256x128xf32> -> vector<256x128xf32>
    %22 = arith.addf %16, %21 : vector<256x128xf32>
    %c0_29 = arith.constant 0 : index
    %c1_30 = arith.constant 1 : index
    %c0_31 = arith.constant 0 : index
    %c0_32 = arith.constant 0 : index
    %23 = vector.load %arg9[%c0_29, %c1_30, %c0_31, %c0_32] : memref<1x18x18x128xf32, #tpu.memory_space<vmem>>, vector<1x16x16x128xf32>
    %24 = vector.shape_cast %23 : vector<1x16x16x128xf32> to vector<256x128xf32>
    %25 = arith.truncf %24 : vector<256x128xf32> to vector<256x128xbf16>
    %c384 = arith.constant 384 : index
    %c0_33 = arith.constant 0 : index
    %26 = vector.load %arg2[%c384, %c0_33] : memref<1152x128xbf16, #tpu.memory_space<vmem>>, vector<128x128xbf16>
    %cst_34 = arith.constant dense<0.000000e+00> : vector<256x128xf32>
    %27 = tpu.matmul %25, %26, %cst_34 {dimension_numbers = #tpu.dot_dimension_numbers<[1], [0], [0], [1], [0, 0, 1, 1], [], []>} : vector<256x128xbf16>, vector<128x128xbf16>, vector<256x128xf32> -> vector<256x128xf32>
    %28 = arith.addf %22, %27 : vector<256x128xf32>
    %c0_35 = arith.constant 0 : index
    %c1_36 = arith.constant 1 : index
    %c1_37 = arith.constant 1 : index
    %c0_38 = arith.constant 0 : index
    %29 = vector.load %arg9[%c0_35, %c1_36, %c1_37, %c0_38] : memref<1x18x18x128xf32, #tpu.memory_space<vmem>>, vector<1x16x16x128xf32>
    %30 = vector.shape_cast %29 : vector<1x16x16x128xf32> to vector<256x128xf32>
    %31 = arith.truncf %30 : vector<256x128xf32> to vector<256x128xbf16>
    %c512 = arith.constant 512 : index
    %c0_39 = arith.constant 0 : index
    %32 = vector.load %arg2[%c512, %c0_39] : memref<1152x128xbf16, #tpu.memory_space<vmem>>, vector<128x128xbf16>
    %cst_40 = arith.constant dense<0.000000e+00> : vector<256x128xf32>
    %33 = tpu.matmul %31, %32, %cst_40 {dimension_numbers = #tpu.dot_dimension_numbers<[1], [0], [0], [1], [0, 0, 1, 1], [], []>} : vector<256x128xbf16>, vector<128x128xbf16>, vector<256x128xf32> -> vector<256x128xf32>
    %34 = arith.addf %28, %33 : vector<256x128xf32>
    %c0_41 = arith.constant 0 : index
    %c1_42 = arith.constant 1 : index
    %c2_43 = arith.constant 2 : index
    %c0_44 = arith.constant 0 : index
    %35 = vector.load %arg9[%c0_41, %c1_42, %c2_43, %c0_44] : memref<1x18x18x128xf32, #tpu.memory_space<vmem>>, vector<1x16x16x128xf32>
    %36 = vector.shape_cast %35 : vector<1x16x16x128xf32> to vector<256x128xf32>
    %37 = arith.truncf %36 : vector<256x128xf32> to vector<256x128xbf16>
    %c640 = arith.constant 640 : index
    %c0_45 = arith.constant 0 : index
    %38 = vector.load %arg2[%c640, %c0_45] : memref<1152x128xbf16, #tpu.memory_space<vmem>>, vector<128x128xbf16>
    %cst_46 = arith.constant dense<0.000000e+00> : vector<256x128xf32>
    %39 = tpu.matmul %37, %38, %cst_46 {dimension_numbers = #tpu.dot_dimension_numbers<[1], [0], [0], [1], [0, 0, 1, 1], [], []>} : vector<256x128xbf16>, vector<128x128xbf16>, vector<256x128xf32> -> vector<256x128xf32>
    %40 = arith.addf %34, %39 : vector<256x128xf32>
    %c0_47 = arith.constant 0 : index
    %c2_48 = arith.constant 2 : index
    %c0_49 = arith.constant 0 : index
    %c0_50 = arith.constant 0 : index
    %41 = vector.load %arg9[%c0_47, %c2_48, %c0_49, %c0_50] : memref<1x18x18x128xf32, #tpu.memory_space<vmem>>, vector<1x16x16x128xf32>
    %42 = vector.shape_cast %41 : vector<1x16x16x128xf32> to vector<256x128xf32>
    %43 = arith.truncf %42 : vector<256x128xf32> to vector<256x128xbf16>
    %c768 = arith.constant 768 : index
    %c0_51 = arith.constant 0 : index
    %44 = vector.load %arg2[%c768, %c0_51] : memref<1152x128xbf16, #tpu.memory_space<vmem>>, vector<128x128xbf16>
    %cst_52 = arith.constant dense<0.000000e+00> : vector<256x128xf32>
    %45 = tpu.matmul %43, %44, %cst_52 {dimension_numbers = #tpu.dot_dimension_numbers<[1], [0], [0], [1], [0, 0, 1, 1], [], []>} : vector<256x128xbf16>, vector<128x128xbf16>, vector<256x128xf32> -> vector<256x128xf32>
    %46 = arith.addf %40, %45 : vector<256x128xf32>
    %c0_53 = arith.constant 0 : index
    %c2_54 = arith.constant 2 : index
    %c1_55 = arith.constant 1 : index
    %c0_56 = arith.constant 0 : index
    %47 = vector.load %arg9[%c0_53, %c2_54, %c1_55, %c0_56] : memref<1x18x18x128xf32, #tpu.memory_space<vmem>>, vector<1x16x16x128xf32>
    %48 = vector.shape_cast %47 : vector<1x16x16x128xf32> to vector<256x128xf32>
    %49 = arith.truncf %48 : vector<256x128xf32> to vector<256x128xbf16>
    %c896 = arith.constant 896 : index
    %c0_57 = arith.constant 0 : index
    %50 = vector.load %arg2[%c896, %c0_57] : memref<1152x128xbf16, #tpu.memory_space<vmem>>, vector<128x128xbf16>
    %cst_58 = arith.constant dense<0.000000e+00> : vector<256x128xf32>
    %51 = tpu.matmul %49, %50, %cst_58 {dimension_numbers = #tpu.dot_dimension_numbers<[1], [0], [0], [1], [0, 0, 1, 1], [], []>} : vector<256x128xbf16>, vector<128x128xbf16>, vector<256x128xf32> -> vector<256x128xf32>
    %52 = arith.addf %46, %51 : vector<256x128xf32>
    %c0_59 = arith.constant 0 : index
    %c2_60 = arith.constant 2 : index
    %c2_61 = arith.constant 2 : index
    %c0_62 = arith.constant 0 : index
    %53 = vector.load %arg9[%c0_59, %c2_60, %c2_61, %c0_62] : memref<1x18x18x128xf32, #tpu.memory_space<vmem>>, vector<1x16x16x128xf32>
    %54 = vector.shape_cast %53 : vector<1x16x16x128xf32> to vector<256x128xf32>
    %55 = arith.truncf %54 : vector<256x128xf32> to vector<256x128xbf16>
    %c1024 = arith.constant 1024 : index
    %c0_63 = arith.constant 0 : index
    %56 = vector.load %arg2[%c1024, %c0_63] : memref<1152x128xbf16, #tpu.memory_space<vmem>>, vector<128x128xbf16>
    %cst_64 = arith.constant dense<0.000000e+00> : vector<256x128xf32>
    %57 = tpu.matmul %55, %56, %cst_64 {dimension_numbers = #tpu.dot_dimension_numbers<[1], [0], [0], [1], [0, 0, 1, 1], [], []>} : vector<256x128xbf16>, vector<128x128xbf16>, vector<256x128xf32> -> vector<256x128xf32>
    %58 = arith.addf %52, %57 : vector<256x128xf32>
    %59 = vector.shape_cast %58 : vector<256x128xf32> to vector<1x256x128xf32>
    %cst_65 = arith.constant dense<0.000000e+00> : vector<1x128xf32>
    %60 = vector.multi_reduction <add>, %59, %cst_65 [1] : vector<1x256x128xf32> to vector<1x128xf32>
    %61 = vector.shape_cast %60 : vector<1x128xf32> to vector<1x1x128xf32>
    %cst_66 = arith.constant 2.560000e+02 : f32
    %62 = vector.broadcast %cst_66 : f32 to vector<1x1x128xf32>
    %63 = arith.divf %61, %62 : vector<1x1x128xf32>
    %64 = arith.mulf %59, %59 : vector<1x256x128xf32>
    %cst_67 = arith.constant dense<0.000000e+00> : vector<1x128xf32>
    %65 = vector.multi_reduction <add>, %64, %cst_67 [1] : vector<1x256x128xf32> to vector<1x128xf32>
    %66 = vector.shape_cast %65 : vector<1x128xf32> to vector<1x1x128xf32>
    %cst_68 = arith.constant 2.560000e+02 : f32
    %67 = vector.broadcast %cst_68 : f32 to vector<1x1x128xf32>
    %68 = arith.divf %66, %67 : vector<1x1x128xf32>
    %69 = arith.mulf %63, %63 : vector<1x1x128xf32>
    %70 = arith.subf %68, %69 : vector<1x1x128xf32>
    %cst_69 = arith.constant 0.000000e+00 : f32
    %71 = vector.broadcast %cst_69 : f32 to vector<1x1x128xf32>
    %72 = arith.maximumf %70, %71 : vector<1x1x128xf32>
    %c0_70 = arith.constant 0 : index
    %c0_71 = arith.constant 0 : index
    %73 = vector.load %arg3[%c0_70, %c0_71] : memref<1x128xf32, #tpu.memory_space<vmem>>, vector<1x128xf32>
    %cst_72 = arith.constant 9.99999974E-6 : f32
    %74 = vector.broadcast %cst_72 : f32 to vector<1x1x128xf32>
    %75 = arith.addf %72, %74 : vector<1x1x128xf32>
    %76 = math.rsqrt %75 : vector<1x1x128xf32>
    %77 = vector.shape_cast %73 : vector<1x128xf32> to vector<1x1x128xf32>
    %78 = arith.mulf %77, %76 : vector<1x1x128xf32>
    %c0_73 = arith.constant 0 : index
    %c0_74 = arith.constant 0 : index
    %79 = vector.load %arg4[%c0_73, %c0_74] : memref<1x128xf32, #tpu.memory_space<vmem>>, vector<1x128xf32>
    %80 = arith.mulf %63, %78 : vector<1x1x128xf32>
    %81 = vector.shape_cast %79 : vector<1x128xf32> to vector<1x1x128xf32>
    %82 = arith.subf %81, %80 : vector<1x1x128xf32>
    %83 = vector.broadcast %78 : vector<1x1x128xf32> to vector<1x256x128xf32>
    %84 = arith.mulf %59, %83 : vector<1x256x128xf32>
    %85 = vector.broadcast %82 : vector<1x1x128xf32> to vector<1x256x128xf32>
    %86 = arith.addf %84, %85 : vector<1x256x128xf32>
    %cst_75 = arith.constant 0.000000e+00 : f32
    %87 = vector.broadcast %cst_75 : f32 to vector<1x256x128xf32>
    %88 = arith.maximumf %86, %87 : vector<1x256x128xf32>
    %89 = vector.shape_cast %88 : vector<1x256x128xf32> to vector<1x16x16x128xf32>
    %c0_76 = arith.constant 0 : index
    %c1_77 = arith.constant 1 : index
    %c1_78 = arith.constant 1 : index
    %c0_79 = arith.constant 0 : index
    %90 = vector.load %arg9[%c0_76, %c1_77, %c1_78, %c0_79] : memref<1x18x18x128xf32, #tpu.memory_space<vmem>>, vector<1x16x16x128xf32>
    tpu.vector_store %arg9[%c0_76, %c1_77, %c1_78, %c0_79], %89 {strides = array<i32>} : memref<1x18x18x128xf32, #tpu.memory_space<vmem>>, vector<1x16x16x128xf32>,
    %cst_80 = arith.constant 0.000000e+00 : f32
    %91 = vector.broadcast %cst_80 : f32 to vector<256x128xf32>
    %c0_81 = arith.constant 0 : index
    %c0_82 = arith.constant 0 : index
    %c0_83 = arith.constant 0 : index
    %c0_84 = arith.constant 0 : index
    %92 = vector.load %arg9[%c0_81, %c0_82, %c0_83, %c0_84] : memref<1x18x18x128xf32, #tpu.memory_space<vmem>>, vector<1x16x16x128xf32>
    %93 = vector.shape_cast %92 : vector<1x16x16x128xf32> to vector<256x128xf32>
    %94 = arith.truncf %93 : vector<256x128xf32> to vector<256x128xbf16>
    %c0_85 = arith.constant 0 : index
    %c0_86 = arith.constant 0 : index
    %95 = vector.load %arg5[%c0_85, %c0_86] : memref<1152x128xbf16, #tpu.memory_space<vmem>>, vector<128x128xbf16>
    %cst_87 = arith.constant dense<0.000000e+00> : vector<256x128xf32>
    %96 = tpu.matmul %94, %95, %cst_87 {dimension_numbers = #tpu.dot_dimension_numbers<[1], [0], [0], [1], [0, 0, 1, 1], [], []>} : vector<256x128xbf16>, vector<128x128xbf16>, vector<256x128xf32> -> vector<256x128xf32>
    %97 = arith.addf %91, %96 : vector<256x128xf32>
    %c0_88 = arith.constant 0 : index
    %c0_89 = arith.constant 0 : index
    %c1_90 = arith.constant 1 : index
    %c0_91 = arith.constant 0 : index
    %98 = vector.load %arg9[%c0_88, %c0_89, %c1_90, %c0_91] : memref<1x18x18x128xf32, #tpu.memory_space<vmem>>, vector<1x16x16x128xf32>
    %99 = vector.shape_cast %98 : vector<1x16x16x128xf32> to vector<256x128xf32>
    %100 = arith.truncf %99 : vector<256x128xf32> to vector<256x128xbf16>
    %c128_92 = arith.constant 128 : index
    %c0_93 = arith.constant 0 : index
    %101 = vector.load %arg5[%c128_92, %c0_93] : memref<1152x128xbf16, #tpu.memory_space<vmem>>, vector<128x128xbf16>
    %cst_94 = arith.constant dense<0.000000e+00> : vector<256x128xf32>
    %102 = tpu.matmul %100, %101, %cst_94 {dimension_numbers = #tpu.dot_dimension_numbers<[1], [0], [0], [1], [0, 0, 1, 1], [], []>} : vector<256x128xbf16>, vector<128x128xbf16>, vector<256x128xf32> -> vector<256x128xf32>
    %103 = arith.addf %97, %102 : vector<256x128xf32>
    %c0_95 = arith.constant 0 : index
    %c0_96 = arith.constant 0 : index
    %c2_97 = arith.constant 2 : index
    %c0_98 = arith.constant 0 : index
    %104 = vector.load %arg9[%c0_95, %c0_96, %c2_97, %c0_98] : memref<1x18x18x128xf32, #tpu.memory_space<vmem>>, vector<1x16x16x128xf32>
    %105 = vector.shape_cast %104 : vector<1x16x16x128xf32> to vector<256x128xf32>
    %106 = arith.truncf %105 : vector<256x128xf32> to vector<256x128xbf16>
    %c256_99 = arith.constant 256 : index
    %c0_100 = arith.constant 0 : index
    %107 = vector.load %arg5[%c256_99, %c0_100] : memref<1152x128xbf16, #tpu.memory_space<vmem>>, vector<128x128xbf16>
    %cst_101 = arith.constant dense<0.000000e+00> : vector<256x128xf32>
    %108 = tpu.matmul %106, %107, %cst_101 {dimension_numbers = #tpu.dot_dimension_numbers<[1], [0], [0], [1], [0, 0, 1, 1], [], []>} : vector<256x128xbf16>, vector<128x128xbf16>, vector<256x128xf32> -> vector<256x128xf32>
    %109 = arith.addf %103, %108 : vector<256x128xf32>
    %c0_102 = arith.constant 0 : index
    %c1_103 = arith.constant 1 : index
    %c0_104 = arith.constant 0 : index
    %c0_105 = arith.constant 0 : index
    %110 = vector.load %arg9[%c0_102, %c1_103, %c0_104, %c0_105] : memref<1x18x18x128xf32, #tpu.memory_space<vmem>>, vector<1x16x16x128xf32>
    %111 = vector.shape_cast %110 : vector<1x16x16x128xf32> to vector<256x128xf32>
    %112 = arith.truncf %111 : vector<256x128xf32> to vector<256x128xbf16>
    %c384_106 = arith.constant 384 : index
    %c0_107 = arith.constant 0 : index
    %113 = vector.load %arg5[%c384_106, %c0_107] : memref<1152x128xbf16, #tpu.memory_space<vmem>>, vector<128x128xbf16>
    %cst_108 = arith.constant dense<0.000000e+00> : vector<256x128xf32>
    %114 = tpu.matmul %112, %113, %cst_108 {dimension_numbers = #tpu.dot_dimension_numbers<[1], [0], [0], [1], [0, 0, 1, 1], [], []>} : vector<256x128xbf16>, vector<128x128xbf16>, vector<256x128xf32> -> vector<256x128xf32>
    %115 = arith.addf %109, %114 : vector<256x128xf32>
    %c0_109 = arith.constant 0 : index
    %c1_110 = arith.constant 1 : index
    %c1_111 = arith.constant 1 : index
    %c0_112 = arith.constant 0 : index
    %116 = vector.load %arg9[%c0_109, %c1_110, %c1_111, %c0_112] : memref<1x18x18x128xf32, #tpu.memory_space<vmem>>, vector<1x16x16x128xf32>
    %117 = vector.shape_cast %116 : vector<1x16x16x128xf32> to vector<256x128xf32>
    %118 = arith.truncf %117 : vector<256x128xf32> to vector<256x128xbf16>
    %c512_113 = arith.constant 512 : index
    %c0_114 = arith.constant 0 : index
    %119 = vector.load %arg5[%c512_113, %c0_114] : memref<1152x128xbf16, #tpu.memory_space<vmem>>, vector<128x128xbf16>
    %cst_115 = arith.constant dense<0.000000e+00> : vector<256x128xf32>
    %120 = tpu.matmul %118, %119, %cst_115 {dimension_numbers = #tpu.dot_dimension_numbers<[1], [0], [0], [1], [0, 0, 1, 1], [], []>} : vector<256x128xbf16>, vector<128x128xbf16>, vector<256x128xf32> -> vector<256x128xf32>
    %121 = arith.addf %115, %120 : vector<256x128xf32>
    %c0_116 = arith.constant 0 : index
    %c1_117 = arith.constant 1 : index
    %c2_118 = arith.constant 2 : index
    %c0_119 = arith.constant 0 : index
    %122 = vector.load %arg9[%c0_116, %c1_117, %c2_118, %c0_119] : memref<1x18x18x128xf32, #tpu.memory_space<vmem>>, vector<1x16x16x128xf32>
    %123 = vector.shape_cast %122 : vector<1x16x16x128xf32> to vector<256x128xf32>
    %124 = arith.truncf %123 : vector<256x128xf32> to vector<256x128xbf16>
    %c640_120 = arith.constant 640 : index
    %c0_121 = arith.constant 0 : index
    %125 = vector.load %arg5[%c640_120, %c0_121] : memref<1152x128xbf16, #tpu.memory_space<vmem>>, vector<128x128xbf16>
    %cst_122 = arith.constant dense<0.000000e+00> : vector<256x128xf32>
    %126 = tpu.matmul %124, %125, %cst_122 {dimension_numbers = #tpu.dot_dimension_numbers<[1], [0], [0], [1], [0, 0, 1, 1], [], []>} : vector<256x128xbf16>, vector<128x128xbf16>, vector<256x128xf32> -> vector<256x128xf32>
    %127 = arith.addf %121, %126 : vector<256x128xf32>
    %c0_123 = arith.constant 0 : index
    %c2_124 = arith.constant 2 : index
    %c0_125 = arith.constant 0 : index
    %c0_126 = arith.constant 0 : index
    %128 = vector.load %arg9[%c0_123, %c2_124, %c0_125, %c0_126] : memref<1x18x18x128xf32, #tpu.memory_space<vmem>>, vector<1x16x16x128xf32>
    %129 = vector.shape_cast %128 : vector<1x16x16x128xf32> to vector<256x128xf32>
    %130 = arith.truncf %129 : vector<256x128xf32> to vector<256x128xbf16>
    %c768_127 = arith.constant 768 : index
    %c0_128 = arith.constant 0 : index
    %131 = vector.load %arg5[%c768_127, %c0_128] : memref<1152x128xbf16, #tpu.memory_space<vmem>>, vector<128x128xbf16>
    %cst_129 = arith.constant dense<0.000000e+00> : vector<256x128xf32>
    %132 = tpu.matmul %130, %131, %cst_129 {dimension_numbers = #tpu.dot_dimension_numbers<[1], [0], [0], [1], [0, 0, 1, 1], [], []>} : vector<256x128xbf16>, vector<128x128xbf16>, vector<256x128xf32> -> vector<256x128xf32>
    %133 = arith.addf %127, %132 : vector<256x128xf32>
    %c0_130 = arith.constant 0 : index
    %c2_131 = arith.constant 2 : index
    %c1_132 = arith.constant 1 : index
    %c0_133 = arith.constant 0 : index
    %134 = vector.load %arg9[%c0_130, %c2_131, %c1_132, %c0_133] : memref<1x18x18x128xf32, #tpu.memory_space<vmem>>, vector<1x16x16x128xf32>
    %135 = vector.shape_cast %134 : vector<1x16x16x128xf32> to vector<256x128xf32>
    %136 = arith.truncf %135 : vector<256x128xf32> to vector<256x128xbf16>
    %c896_134 = arith.constant 896 : index
    %c0_135 = arith.constant 0 : index
    %137 = vector.load %arg5[%c896_134, %c0_135] : memref<1152x128xbf16, #tpu.memory_space<vmem>>, vector<128x128xbf16>
    %cst_136 = arith.constant dense<0.000000e+00> : vector<256x128xf32>
    %138 = tpu.matmul %136, %137, %cst_136 {dimension_numbers = #tpu.dot_dimension_numbers<[1], [0], [0], [1], [0, 0, 1, 1], [], []>} : vector<256x128xbf16>, vector<128x128xbf16>, vector<256x128xf32> -> vector<256x128xf32>
    %139 = arith.addf %133, %138 : vector<256x128xf32>
    %c0_137 = arith.constant 0 : index
    %c2_138 = arith.constant 2 : index
    %c2_139 = arith.constant 2 : index
    %c0_140 = arith.constant 0 : index
    %140 = vector.load %arg9[%c0_137, %c2_138, %c2_139, %c0_140] : memref<1x18x18x128xf32, #tpu.memory_space<vmem>>, vector<1x16x16x128xf32>
    %141 = vector.shape_cast %140 : vector<1x16x16x128xf32> to vector<256x128xf32>
    %142 = arith.truncf %141 : vector<256x128xf32> to vector<256x128xbf16>
    %c1024_141 = arith.constant 1024 : index
    %c0_142 = arith.constant 0 : index
    %143 = vector.load %arg5[%c1024_141, %c0_142] : memref<1152x128xbf16, #tpu.memory_space<vmem>>, vector<128x128xbf16>
    %cst_143 = arith.constant dense<0.000000e+00> : vector<256x128xf32>
    %144 = tpu.matmul %142, %143, %cst_143 {dimension_numbers = #tpu.dot_dimension_numbers<[1], [0], [0], [1], [0, 0, 1, 1], [], []>} : vector<256x128xbf16>, vector<128x128xbf16>, vector<256x128xf32> -> vector<256x128xf32>
    %145 = arith.addf %139, %144 : vector<256x128xf32>
    %146 = vector.shape_cast %145 : vector<256x128xf32> to vector<1x256x128xf32>
    %cst_144 = arith.constant dense<0.000000e+00> : vector<1x128xf32>
    %147 = vector.multi_reduction <add>, %146, %cst_144 [1] : vector<1x256x128xf32> to vector<1x128xf32>
    %148 = vector.shape_cast %147 : vector<1x128xf32> to vector<1x1x128xf32>
    %cst_145 = arith.constant 2.560000e+02 : f32
    %149 = vector.broadcast %cst_145 : f32 to vector<1x1x128xf32>
    %150 = arith.divf %148, %149 : vector<1x1x128xf32>
    %151 = arith.mulf %146, %146 : vector<1x256x128xf32>
    %cst_146 = arith.constant dense<0.000000e+00> : vector<1x128xf32>
    %152 = vector.multi_reduction <add>, %151, %cst_146 [1] : vector<1x256x128xf32> to vector<1x128xf32>
    %153 = vector.shape_cast %152 : vector<1x128xf32> to vector<1x1x128xf32>
    %cst_147 = arith.constant 2.560000e+02 : f32
    %154 = vector.broadcast %cst_147 : f32 to vector<1x1x128xf32>
    %155 = arith.divf %153, %154 : vector<1x1x128xf32>
    %156 = arith.mulf %150, %150 : vector<1x1x128xf32>
    %157 = arith.subf %155, %156 : vector<1x1x128xf32>
    %cst_148 = arith.constant 0.000000e+00 : f32
    %158 = vector.broadcast %cst_148 : f32 to vector<1x1x128xf32>
    %159 = arith.maximumf %157, %158 : vector<1x1x128xf32>
    %c0_149 = arith.constant 0 : index
    %c0_150 = arith.constant 0 : index
    %160 = vector.load %arg6[%c0_149, %c0_150] : memref<1x128xf32, #tpu.memory_space<vmem>>, vector<1x128xf32>
    %cst_151 = arith.constant 9.99999974E-6 : f32
    %161 = vector.broadcast %cst_151 : f32 to vector<1x1x128xf32>
    %162 = arith.addf %159, %161 : vector<1x1x128xf32>
    %163 = math.rsqrt %162 : vector<1x1x128xf32>
    %164 = vector.shape_cast %160 : vector<1x128xf32> to vector<1x1x128xf32>
    %165 = arith.mulf %164, %163 : vector<1x1x128xf32>
    %c0_152 = arith.constant 0 : index
    %c0_153 = arith.constant 0 : index
    %166 = vector.load %arg7[%c0_152, %c0_153] : memref<1x128xf32, #tpu.memory_space<vmem>>, vector<1x128xf32>
    %167 = arith.mulf %150, %165 : vector<1x1x128xf32>
    %168 = vector.shape_cast %166 : vector<1x128xf32> to vector<1x1x128xf32>
    %169 = arith.subf %168, %167 : vector<1x1x128xf32>
    %170 = vector.broadcast %165 : vector<1x1x128xf32> to vector<1x256x128xf32>
    %171 = arith.mulf %146, %170 : vector<1x256x128xf32>
    %172 = vector.broadcast %169 : vector<1x1x128xf32> to vector<1x256x128xf32>
    %173 = arith.addf %171, %172 : vector<1x256x128xf32>
    %174 = vector.shape_cast %173 : vector<1x256x128xf32> to vector<1x16x16x128xf32>
    %175 = vector.extract_strided_slice %174 {offsets = [0, 0, 0, 0], sizes = [1, 16, 16, 4], strides = [1, 1, 1, 1]} : vector<1x16x16x128xf32> to vector<1x16x16x4xf32>
    %c0_154 = arith.constant 0 : index
    %c0_155 = arith.constant 0 : index
    %c0_156 = arith.constant 0 : index
    %c0_157 = arith.constant 0 : index
    %176 = vector.load %arg1[%c0_154, %c0_155, %c0_156, %c0_157] : memref<1x16x16x4xf32, #tpu.memory_space<vmem>>, vector<1x16x16x4xf32>
    %177 = arith.addf %175, %176 : vector<1x16x16x4xf32>
    %cst_158 = arith.constant 0.000000e+00 : f32
    %178 = vector.broadcast %cst_158 : f32 to vector<1x16x16x4xf32>
    %179 = arith.maximumf %177, %178 : vector<1x16x16x4xf32>
    %c0_159 = arith.constant 0 : index
    %c0_160 = arith.constant 0 : index
    %c0_161 = arith.constant 0 : index
    %c0_162 = arith.constant 0 : index
    %180 = vector.load %arg8[%c0_159, %c0_160, %c0_161, %c0_162] : memref<1x16x16x4xf32, #tpu.memory_space<vmem>>, vector<1x16x16x4xf32>
    tpu.vector_store %arg8[%c0_159, %c0_160, %c0_161, %c0_162], %179 {strides = array<i32>} : memref<1x16x16x4xf32, #tpu.memory_space<vmem>>, vector<1x16x16x4xf32>,
    return
  }
  func.func @transform_0(%arg0: i32) -> (i32, i32, i32, i32) {
    %c0_i32 = arith.constant 0 : i32
    %c0_i32_0 = arith.constant 0 : i32
    %c0_i32_1 = arith.constant 0 : i32
    %c0_i32_2 = arith.constant 0 : i32
    return %arg0, %c0_i32, %c0_i32_0, %c0_i32_1 : i32, i32, i32, i32
  }
  func.func @transform_1(%arg0: i32) -> (i32, i32) {
    %c0_i32 = arith.constant 0 : i32
    %c0_i32_0 = arith.constant 0 : i32
    %c0_i32_1 = arith.constant 0 : i32
    return %c0_i32, %c0_i32_0 : i32, i32
  }
  func.func @transform_2(%arg0: i32) -> (i32, i32) {
    %c0_i32 = arith.constant 0 : i32
    %c0_i32_0 = arith.constant 0 : i32
    %c0_i32_1 = arith.constant 0 : i32
    return %c0_i32, %c0_i32_0 : i32, i32
  }
  func.func @transform_3(%arg0: i32) -> (i32, i32) {
    %c0_i32 = arith.constant 0 : i32
    %c0_i32_0 = arith.constant 0 : i32
    %c0_i32_1 = arith.constant 0 : i32
    return %c0_i32, %c0_i32_0 : i32, i32
  }
  func.func @transform_4(%arg0: i32) -> (i32, i32) {
    %c0_i32 = arith.constant 0 : i32
    %c0_i32_0 = arith.constant 0 : i32
    %c0_i32_1 = arith.constant 0 : i32
    return %c0_i32, %c0_i32_0 : i32, i32
  }
  func.func @transform_5(%arg0: i32) -> (i32, i32) {
    %c0_i32 = arith.constant 0 : i32
    %c0_i32_0 = arith.constant 0 : i32
    %c0_i32_1 = arith.constant 0 : i32
    return %c0_i32, %c0_i32_0 : i32, i32
  }
  func.func @transform_6(%arg0: i32) -> (i32, i32) {
    %c0_i32 = arith.constant 0 : i32
    %c0_i32_0 = arith.constant 0 : i32
    %c0_i32_1 = arith.constant 0 : i32
    return %c0_i32, %c0_i32_0 : i32, i32
  }
  func.func @transform_7(%arg0: i32) -> (i32, i32, i32, i32) {
    %c0_i32 = arith.constant 0 : i32
    %c0_i32_0 = arith.constant 0 : i32
    %c0_i32_1 = arith.constant 0 : i32
    %c0_i32_2 = arith.constant 0 : i32
    return %arg0, %c0_i32, %c0_i32_0, %c0_i32_1 : i32, i32, i32, i32
  }
}

</mosaic_0001>

<llo_original>
// kernel: tpu_custom_call.1
$region0: #{tpu_custom_call.1}
  #allocation0 [shape = 'u32[]', space=smem, size = 0x4, offset = 0x4, fixed_abs, tag = 'smem constant byte address 0x4 - core index']
  #allocation1 [shape = 'u32[144,128]{1,0:T(1,128)}', space=vmem, size = 0x12000, scoped, tag = 'internal scratch']
  #allocation2 [shape = 'f32[1,18,18,128]{3,2,1,0:T(8,128)}', space=vmem, size = 0x36000, scoped, tag = 'scratch operand']
  %s0 = inlined_call_operand.vmem [shape: f32[2,16,16,4], index: 0, kind: input, shape index: {}]
  %s1 = inlined_call_operand.vmem [shape: bf16[1152,128], index: 1, kind: input, shape index: {}]
  %s2 = inlined_call_operand.vmem [shape: f32[1,128], index: 2, kind: input, shape index: {}]
  %s3 = inlined_call_operand.vmem [shape: f32[1,128], index: 3, kind: input, shape index: {}]
  %s4 = inlined_call_operand.hbm [shape: bf16[1152,128], index: 4, kind: input, shape index: {}]
  %s5 = inlined_call_operand.vmem [shape: f32[1,128], index: 5, kind: input, shape index: {}]
  %s6 = inlined_call_operand.vmem [shape: f32[1,128], index: 6, kind: input, shape index: {}]
  %s7 = inlined_call_operand.vmem [shape: f32[2,16,16,4], index: 7, kind: output, shape index: {}]
  %s8 = sld [smem:[#allocation0]]
  $region65: #{tpu_custom_call.1} parent=0
    _
  %s10 = ssub.s32 1, %s8
  %s11 = scalar_select 0, %s10, %s8
  $region1: #{tpu_custom_call.1} parent=0
    #allocation3 [shape = 'u8[294912]{0}', space=vmem, size = 0x48000, scoped, tag = 'input window, operand 4, single buffered']
    #allocation4 [shape = 's32[2]{0}', space=sflag, size = 0x8, scoped, tag = 'scoped memory for tpu_custom_call.1']
    %12 = vsyncpa [#allocation4], 0
    loop: start=0, step=1, limit=4
    $region2: #{tpu_custom_call.1} parent=1 // loop_pre_header
      _
    $region3: #{tpu_custom_call.1} parent=1 // loop_header
      %s14 = sphi 0, %s18
      %p15 = scmp.ge.s32.totalorder %s14, 4
      %s24 = sphi 0, %s26
      %s27 = sphi 0, %s24
      %s28 = sphi 0, %s27
      %s44 = sphi 0, %s28
      %s48 = sphi 0, %s48
      %s50 = sphi 0, %s48
      %s51 = sphi 0, %s50
      %s65 = sphi 0, %s51
      %s69 = sphi 0, %s69
      %s71 = sphi 0, %s69
      %s72 = sphi 0, %s71
      %s86 = sphi 0, %s72
      %s90 = sphi 0, %s90
      %s92 = sphi 0, %s90
      %s93 = sphi 0, %s92
      %s107 = sphi 0, %s93
      %s111 = sphi 0, %s111
      %s113 = sphi 0, %s111
      %s114 = sphi 0, %s113
      %s128 = sphi 0, %s114
      %s132 = sphi 0, %s132
      %s134 = sphi 0, %s132
      %s135 = sphi 0, %s134
      %s149 = sphi 0, %s135
      %s153 = sphi 0, %s153
      %s155 = sphi 0, %s153
      %s156 = sphi 0, %s155
      %s170 = sphi 0, %s156
      %s176 = sphi 0, %s178
      %s179 = sphi 0, %s176
      %s180 = sphi 0, %s179
      %s196 = sphi 0, %s180
    $region4: #{tpu_custom_call.1} parent=1 // loop_header_branch
      %17 = sbr.rel (%p15) target = $region8
    $region5: #{tpu_custom_call.1} parent=1 // loop_body
      %s19 = ssub.s32 %s14, 1
      %s20 = ssub.s32 %s14, 2
      %s21 = sadd.s32 %s14, 1
      %s22 = ssub.s32 %s14, %s21
      %p23 = scmp.eq.s32.totalorder %s22, 0
      %s25 = sadd.s32 %s24, 1
      %s26 = scalar_select %p23, %s24, %s25
      %p29 = pneg %p23
      %p30 = scmp.eq.s32.totalorder %s14, 1
      %p31 = por %p29, %p30
      %p32 = scmp.ne.s32.totalorder %s24, %s27
      %p33 = scmp.eq.s32.totalorder %s14, 0
      %p34 = por %p32, %p33
      %p35 = scmp.ne.s32.totalorder %s24, %s27
      %p36 = scmp.eq.s32.totalorder %s19, 1
      %p37 = por %p35, %p36
      %p38 = scmp.ne.s32.totalorder %s27, %s28
      %p39 = scmp.eq.s32.totalorder %s19, 0
      %p40 = por %p38, %p39
      %p41 = scmp.ne.s32.totalorder %s27, %s28
      %p42 = scmp.eq.s32.totalorder %s20, 1
      %p43 = por %p41, %p42
      %p45 = scmp.ne.s32.totalorder %s28, %s44
      %p46 = scmp.eq.s32.totalorder %s20, 0
      %p47 = por %p45, %p46
      %s49 = sadd.s32 %s48, 1
      %p52 = scmp.eq.s32.totalorder %s14, 1
      %p53 = scmp.ne.s32.totalorder %s48, %s50
      %p54 = scmp.eq.s32.totalorder %s14, 0
      %p55 = por %p53, %p54
      %p56 = scmp.ne.s32.totalorder %s48, %s50
      %p57 = scmp.eq.s32.totalorder %s19, 1
      %p58 = por %p56, %p57
      %p59 = scmp.ne.s32.totalorder %s50, %s51
      %p60 = scmp.eq.s32.totalorder %s19, 0
      %p61 = por %p59, %p60
      %p62 = scmp.ne.s32.totalorder %s50, %s51
      %p63 = scmp.eq.s32.totalorder %s20, 1
      %p64 = por %p62, %p63
      %p66 = scmp.ne.s32.totalorder %s51, %s65
      %p67 = scmp.eq.s32.totalorder %s20, 0
      %p68 = por %p66, %p67
      %s70 = sadd.s32 %s69, 1
      %p73 = scmp.eq.s32.totalorder %s14, 1
      %p74 = scmp.ne.s32.totalorder %s69, %s71
      %p75 = scmp.eq.s32.totalorder %s14, 0
      %p76 = por %p74, %p75
      %p77 = scmp.ne.s32.totalorder %s69, %s71
      %p78 = scmp.eq.s32.totalorder %s19, 1
      %p79 = por %p77, %p78
      %p80 = scmp.ne.s32.totalorder %s71, %s72
      %p81 = scmp.eq.s32.totalorder %s19, 0
      %p82 = por %p80, %p81
      %p83 = scmp.ne.s32.totalorder %s71, %s72
      %p84 = scmp.eq.s32.totalorder %s20, 1
      %p85 = por %p83, %p84
      %p87 = scmp.ne.s32.totalorder %s72, %s86
      %p88 = scmp.eq.s32.totalorder %s20, 0
      %p89 = por %p87, %p88
      %s91 = sadd.s32 %s90, 1
      %p94 = scmp.eq.s32.totalorder %s14, 1
      %p95 = scmp.ne.s32.totalorder %s90, %s92
      %p96 = scmp.eq.s32.totalorder %s14, 0
      %p97 = por %p95, %p96
      %p98 = scmp.ne.s32.totalorder %s90, %s92
      %p99 = scmp.eq.s32.totalorder %s19, 1
      %p100 = por %p98, %p99
      %p101 = scmp.ne.s32.totalorder %s92, %s93
      %p102 = scmp.eq.s32.totalorder %s19, 0
      %p103 = por %p101, %p102
      %p104 = scmp.ne.s32.totalorder %s92, %s93
      %p105 = scmp.eq.s32.totalorder %s20, 1
      %p106 = por %p104, %p105
      %p108 = scmp.ne.s32.totalorder %s93, %s107
      %p109 = scmp.eq.s32.totalorder %s20, 0
      %p110 = por %p108, %p109
      %s112 = sadd.s32 %s111, 1
      %p115 = scmp.eq.s32.totalorder %s14, 1
      %p116 = scmp.ne.s32.totalorder %s111, %s113
      %p117 = scmp.eq.s32.totalorder %s14, 0
      %p118 = por %p116, %p117
      %p119 = scmp.ne.s32.totalorder %s111, %s113
      %p120 = scmp.eq.s32.totalorder %s19, 1
      %p121 = por %p119, %p120
      %p122 = scmp.ne.s32.totalorder %s113, %s114
      %p123 = scmp.eq.s32.totalorder %s19, 0
      %p124 = por %p122, %p123
      %p125 = scmp.ne.s32.totalorder %s113, %s114
      %p126 = scmp.eq.s32.totalorder %s20, 1
      %p127 = por %p125, %p126
      %p129 = scmp.ne.s32.totalorder %s114, %s128
      %p130 = scmp.eq.s32.totalorder %s20, 0
      %p131 = por %p129, %p130
      %s133 = sadd.s32 %s132, 1
      %p136 = scmp.eq.s32.totalorder %s14, 1
      %p137 = scmp.ne.s32.totalorder %s132, %s134
      %p138 = scmp.eq.s32.totalorder %s14, 0
      %p139 = por %p137, %p138
      %p140 = scmp.ne.s32.totalorder %s132, %s134
      %p141 = scmp.eq.s32.totalorder %s19, 1
      %p142 = por %p140, %p141
      %p143 = scmp.ne.s32.totalorder %s134, %s135
      %p144 = scmp.eq.s32.totalorder %s19, 0
      %p145 = por %p143, %p144
      %p146 = scmp.ne.s32.totalorder %s134, %s135
      %p147 = scmp.eq.s32.totalorder %s20, 1
      %p148 = por %p146, %p147
      %p150 = scmp.ne.s32.totalorder %s135, %s149
      %p151 = scmp.eq.s32.totalorder %s20, 0
      %p152 = por %p150, %p151
      %s154 = sadd.s32 %s153, 1
      %p157 = scmp.eq.s32.totalorder %s14, 1
      %p158 = scmp.ne.s32.totalorder %s153, %s155
      %p159 = scmp.eq.s32.totalorder %s14, 0
      %p160 = por %p158, %p159
      %p161 = scmp.ne.s32.totalorder %s153, %s155
      %p162 = scmp.eq.s32.totalorder %s19, 1
      %p163 = por %p161, %p162
      %p164 = scmp.ne.s32.totalorder %s155, %s156
      %p165 = scmp.eq.s32.totalorder %s19, 0
      %p166 = por %p164, %p165
      %p167 = scmp.ne.s32.totalorder %s155, %s156
      %p168 = scmp.eq.s32.totalorder %s20, 1
      %p169 = por %p167, %p168
      %p171 = scmp.ne.s32.totalorder %s156, %s170
      %p172 = scmp.eq.s32.totalorder %s20, 0
      %p173 = por %p171, %p172
      %s174 = ssub.s32 %s14, %s21
      %p175 = scmp.eq.s32.totalorder %s174, 0
      %s177 = sadd.s32 %s176, 1
      %s178 = scalar_select %p175, %s176, %s177
      %p181 = pneg %p175
      %p182 = scmp.eq.s32.totalorder %s14, 1
      %p183 = por %p181, %p182
      %p184 = scmp.ne.s32.totalorder %s176, %s179
      %p185 = scmp.eq.s32.totalorder %s14, 0
      %p186 = por %p184, %p185
      %p187 = scmp.ne.s32.totalorder %s176, %s179
      %p188 = scmp.eq.s32.totalorder %s19, 1
      %p189 = por %p187, %p188
      %p190 = scmp.ne.s32.totalorder %s179, %s180
      %p191 = scmp.eq.s32.totalorder %s19, 0
      %p192 = por %p190, %p191
      %p193 = scmp.ne.s32.totalorder %s179, %s180
      %p194 = scmp.eq.s32.totalorder %s20, 1
      %p195 = por %p193, %p194
      %p197 = scmp.ne.s32.totalorder %s180, %s196
      %p198 = scmp.eq.s32.totalorder %s20, 0
      %p199 = por %p197, %p198
      %p200 = scmp.le.s32.totalorder 1, %s14
      %p201 = scmp.lt.s32.totalorder %s14, 3
      %p202 = pnand %p200, %p201
      %p203 = pneg %p202
      // Predicated region
      $region9: #{tpu_custom_call.1} parent=5 // pred_check
        _
      $region10: #{tpu_custom_call.1} parent=5 // pred_check_branch
        %205 = sbr.rel (%p202) target = $region12
      $region11: #{tpu_custom_call.1} parent=5 // pred_region
        %s206 = ssub.s32 %s14, 1
        // Predicated region
        $region13: #{tpu_custom_call.1} parent=11 // pred_check
          %p207 = pneg %p61
        $region14: #{tpu_custom_call.1} parent=11 // pred_check_branch
          %209 = sbr.rel (%p207) target = $region16
        $region15: #{tpu_custom_call.1} parent=11 // pred_region
          _
        $region16: #{tpu_custom_call.1} parent=11 // pred_fallthru
          _
        // Predicated region
        $region17: #{tpu_custom_call.1} parent=11 // pred_check
          %p210 = pneg %p82
        $region18: #{tpu_custom_call.1} parent=11 // pred_check_branch
          %212 = sbr.rel (%p210) target = $region20
        $region19: #{tpu_custom_call.1} parent=11 // pred_region
          _
        $region20: #{tpu_custom_call.1} parent=11 // pred_fallthru
          _
        // Predicated region
        $region21: #{tpu_custom_call.1} parent=11 // pred_check
          %p213 = pneg %p103
        $region22: #{tpu_custom_call.1} parent=11 // pred_check_branch
          %215 = sbr.rel (%p213) target = $region24
        $region23: #{tpu_custom_call.1} parent=11 // pred_region
          _
        $region24: #{tpu_custom_call.1} parent=11 // pred_fallthru
          _
        // Predicated region
        $region25: #{tpu_custom_call.1} parent=11 // pred_check
          %p216 = pneg %p124
        $region26: #{tpu_custom_call.1} parent=11 // pred_check_branch
          %218 = sbr.rel (%p216) target = $region28
        $region27: #{tpu_custom_call.1} parent=11 // pred_region
          %s220 = ssub.s32 9216, 9216
          %221 = vsyncadd [#allocation4], %s220
          %s222 = sshll.u32 [#allocation3], 4
          %s223 = int_to_ptr.vmem [resolvable:$true] %s222
          %228 = dma.hbm_to_vmem [thread:$0]  %s4, 9216, %s223, [#allocation4], 64, 64, 4
        $region28: #{tpu_custom_call.1} parent=11 // pred_fallthru
          _
        // Predicated region
        $region29: #{tpu_custom_call.1} parent=11 // pred_check
          %p229 = pneg %p145
        $region30: #{tpu_custom_call.1} parent=11 // pred_check_branch
          %231 = sbr.rel (%p229) target = $region32
        $region31: #{tpu_custom_call.1} parent=11 // pred_region
          _
        $region32: #{tpu_custom_call.1} parent=11 // pred_fallthru
          _
        // Predicated region
        $region33: #{tpu_custom_call.1} parent=11 // pred_check
          %p232 = pneg %p166
        $region34: #{tpu_custom_call.1} parent=11 // pred_check_branch
          %234 = sbr.rel (%p232) target = $region36
        $region35: #{tpu_custom_call.1} parent=11 // pred_region
          _
        $region36: #{tpu_custom_call.1} parent=11 // pred_fallthru
          _
      $region12: #{tpu_custom_call.1} parent=5 // pred_fallthru
        _
      %p235 = scmp.lt.s32.totalorder %s14, 2
      // Predicated region
      $region37: #{tpu_custom_call.1} parent=5 // pred_check
        %p236 = pneg %p235
      $region38: #{tpu_custom_call.1} parent=5 // pred_check_branch
        %238 = sbr.rel (%p236) target = $region40
      $region39: #{tpu_custom_call.1} parent=5 // pred_region
        // Predicated region
        $region41: #{tpu_custom_call.1} parent=39 // pred_check
          %p239 = pneg %p34
        $region42: #{tpu_custom_call.1} parent=39 // pred_check_branch
          %241 = sbr.rel (%p239) target = $region44
        $region43: #{tpu_custom_call.1} parent=39 // pred_region
          %p242 = scmp.lt.s32.totalorder %s14, 1
          %s243 = scalar_select %p242, %s14, 1
          %s244 = smul.addr %s243, 32
          %s245 = smul.addr %s244, 8
          %s246 = scalar_lea.vmem %s0, %s245
        $region44: #{tpu_custom_call.1} parent=39 // pred_fallthru
          _
      $region40: #{tpu_custom_call.1} parent=5 // pred_fallthru
        _
      %p247 = scmp.le.s32.totalorder 1, %s14
      %p248 = scmp.lt.s32.totalorder %s14, 3
      %p249 = pnand %p247, %p248
      %p250 = pneg %p249
      // Predicated region
      $region45: #{tpu_custom_call.1} parent=5 // pred_check
        _
      $region46: #{tpu_custom_call.1} parent=5 // pred_check_branch
        %252 = sbr.rel (%p249) target = $region48
      $region47: #{tpu_custom_call.1} parent=5 // pred_region
        %s253 = ssub.s32 %s14, 1
        // Predicated region
        $region49: #{tpu_custom_call.1} parent=47 // pred_check
          %p254 = pneg %p124
        $region50: #{tpu_custom_call.1} parent=47 // pred_check_branch
          %256 = sbr.rel (%p254) target = $region52
        $region51: #{tpu_custom_call.1} parent=47 // pred_region
          %257 = dma.done [#allocation4], 9216
        $region52: #{tpu_custom_call.1} parent=47 // pred_fallthru
          _
        %p258 = scmp.lt.s32.totalorder %s19, 1
        %s259 = scalar_select %p258, %s19, 1
        %s260 = smul.addr %s259, 32
        %s261 = smul.addr %s260, 8
        %s262 = scalar_lea.vmem %s0, %s261
        %p263 = pneg %p40
        %p264 = pneg %p37
        %p265 = pneg %p61
        %p266 = pneg %p58
        %p267 = pneg %p82
        %p268 = pneg %p79
        %p269 = pneg %p103
        %p270 = pneg %p100
        %p271 = pneg %p124
        %p272 = pneg %p121
        %p273 = pneg %p145
        %p274 = pneg %p142
        %p275 = pneg %p166
        %p276 = pneg %p163
        %p277 = pneg %p192
        %p278 = pneg %p189
        %p279 = scmp.lt.s32.totalorder %s19, 1
        %s280 = scalar_select %p279, %s19, 1
        %s281 = smul.addr %s280, 32
        %s282 = smul.addr %s281, 8
        %s283 = scalar_lea.vmem %s7, %s282
        %p284 = scmp.lt.s32.totalorder %s19, 1
        %s285 = scalar_select %p284, %s19, 1
        %s286 = smul.addr %s285, 32
        %s287 = smul.addr %s286, 8
        %s288 = scalar_lea.vmem %s0, %s287
        %p289 = scmp.lt.s32.totalorder %s19, 1
        %s290 = scalar_select %p289, %s19, 1
        %s291 = smul.addr %s290, 32
        %s292 = smul.addr %s291, 8
        %s293 = scalar_lea.vmem %s7, %s292
        %295 = vst [vmem:[#allocation2] sm:$0xff] 0.0
        %296 = vst [vmem:[#allocation2 + $0x8] sm:$0xff] 0.0
        %297 = vst [vmem:[#allocation2 + $0x10] sm:$0x3] 0.0
        %298 = vst [vmem:[#allocation2 + $0x18] sm:$0xff] 0.0
        %299 = vst [vmem:[#allocation2 + $0x20] sm:$0xff] 0.0
        %300 = vst [vmem:[#allocation2 + $0x28] sm:$0x3] 0.0
        %301 = vst [vmem:[#allocation2 + $0x30] sm:$0xff] 0.0
        %302 = vst [vmem:[#allocation2 + $0x38] sm:$0xff] 0.0
        %303 = vst [vmem:[#allocation2 + $0x40] sm:$0x3] 0.0
        %304 = vst [vmem:[#allocation2 + $0x48] sm:$0xff] 0.0
        %305 = vst [vmem:[#allocation2 + $0x50] sm:$0xff] 0.0
        %306 = vst [vmem:[#allocation2 + $0x58] sm:$0x3] 0.0
        %307 = vst [vmem:[#allocation2 + $0x60] sm:$0xff] 0.0
        %308 = vst [vmem:[#allocation2 + $0x68] sm:$0xff] 0.0
        %309 = vst [vmem:[#allocation2 + $0x70] sm:$0x3] 0.0
        %310 = vst [vmem:[#allocation2 + $0x78] sm:$0xff] 0.0
        %311 = vst [vmem:[#allocation2 + $0x80] sm:$0xff] 0.0
        %312 = vst [vmem:[#allocation2 + $0x88] sm:$0x3] 0.0
        %313 = vst [vmem:[#allocation2 + $0x90] sm:$0xff] 0.0
        %314 = vst [vmem:[#allocation2 + $0x98] sm:$0xff] 0.0
        %315 = vst [vmem:[#allocation2 + $0xa0] sm:$0x3] 0.0
        %316 = vst [vmem:[#allocation2 + $0xa8] sm:$0xff] 0.0
        %317 = vst [vmem:[#allocation2 + $0xb0] sm:$0xff] 0.0
        %318 = vst [vmem:[#allocation2 + $0xb8] sm:$0x3] 0.0
        %319 = vst [vmem:[#allocation2 + $0xc0] sm:$0xff] 0.0
        %320 = vst [vmem:[#allocation2 + $0xc8] sm:$0xff] 0.0
        %321 = vst [vmem:[#allocation2 + $0xd0] sm:$0x3] 0.0
        %322 = vst [vmem:[#allocation2 + $0xd8] sm:$0xff] 0.0
        %323 = vst [vmem:[#allocation2 + $0xe0] sm:$0xff] 0.0
        %324 = vst [vmem:[#allocation2 + $0xe8] sm:$0x3] 0.0
        %325 = vst [vmem:[#allocation2 + $0xf0] sm:$0xff] 0.0
        %326 = vst [vmem:[#allocation2 + $0xf8] sm:$0xff] 0.0
        %327 = vst [vmem:[#allocation2 + $0x100] sm:$0x3] 0.0
        %328 = vst [vmem:[#allocation2 + $0x108] sm:$0xff] 0.0
        %329 = vst [vmem:[#allocation2 + $0x110] sm:$0xff] 0.0
        %330 = vst [vmem:[#allocation2 + $0x118] sm:$0x3] 0.0
        %331 = vst [vmem:[#allocation2 + $0x120] sm:$0xff] 0.0
        %332 = vst [vmem:[#allocation2 + $0x128] sm:$0xff] 0.0
        %333 = vst [vmem:[#allocation2 + $0x130] sm:$0x3] 0.0
        %334 = vst [vmem:[#allocation2 + $0x138] sm:$0xff] 0.0
        %335 = vst [vmem:[#allocation2 + $0x140] sm:$0xff] 0.0
        %336 = vst [vmem:[#allocation2 + $0x148] sm:$0x3] 0.0
        %337 = vst [vmem:[#allocation2 + $0x150] sm:$0xff] 0.0
        %338 = vst [vmem:[#allocation2 + $0x158] sm:$0xff] 0.0
        %339 = vst [vmem:[#allocation2 + $0x160] sm:$0x3] 0.0
        %340 = vst [vmem:[#allocation2 + $0x168] sm:$0xff] 0.0
        %341 = vst [vmem:[#allocation2 + $0x170] sm:$0xff] 0.0
        %342 = vst [vmem:[#allocation2 + $0x178] sm:$0x3] 0.0
        %343 = vst [vmem:[#allocation2 + $0x180] sm:$0xff] 0.0
        %344 = vst [vmem:[#allocation2 + $0x188] sm:$0xff] 0.0
        %345 = vst [vmem:[#allocation2 + $0x190] sm:$0x3] 0.0
        %346 = vst [vmem:[#allocation2 + $0x198] sm:$0xff] 0.0
        %347 = vst [vmem:[#allocation2 + $0x1a0] sm:$0xff] 0.0
        %348 = vst [vmem:[#allocation2 + $0x1a8] sm:$0x3] 0.0
        %v349 = vld [vmem:[%s288] sm:$0xff]
        %v350 = vld [vmem:[%s288 + $0x8] sm:$0xff]
        %v351 = vld [vmem:[%s288 + $0x10] sm:$0xff]
        %v352 = vld [vmem:[%s288 + $0x18] sm:$0xff]
        %v353 = vld [vmem:[%s288 + $0x20] sm:$0xff]
        %v354 = vld [vmem:[%s288 + $0x28] sm:$0xff]
        %v355 = vld [vmem:[%s288 + $0x30] sm:$0xff]
        %v356 = vld [vmem:[%s288 + $0x38] sm:$0xff]
        %v357 = vld [vmem:[%s288 + $0x40] sm:$0xff]
        %v358 = vld [vmem:[%s288 + $0x48] sm:$0xff]
        %v359 = vld [vmem:[%s288 + $0x50] sm:$0xff]
        %v360 = vld [vmem:[%s288 + $0x58] sm:$0xff]
        %v361 = vld [vmem:[%s288 + $0x60] sm:$0xff]
        %v362 = vld [vmem:[%s288 + $0x68] sm:$0xff]
        %v363 = vld [vmem:[%s288 + $0x70] sm:$0xff]
        %v364 = vld [vmem:[%s288 + $0x78] sm:$0xff]
        %v365 = vld [vmem:[%s288 + $0x80] sm:$0xff]
        %v366 = vld [vmem:[%s288 + $0x88] sm:$0xff]
        %v367 = vld [vmem:[%s288 + $0x90] sm:$0xff]
        %v368 = vld [vmem:[%s288 + $0x98] sm:$0xff]
        %v369 = vld [vmem:[%s288 + $0xa0] sm:$0xff]
        %v370 = vld [vmem:[%s288 + $0xa8] sm:$0xff]
        %v371 = vld [vmem:[%s288 + $0xb0] sm:$0xff]
        %v372 = vld [vmem:[%s288 + $0xb8] sm:$0xff]
        %v373 = vld [vmem:[%s288 + $0xc0] sm:$0xff]
        %v374 = vld [vmem:[%s288 + $0xc8] sm:$0xff]
        %v375 = vld [vmem:[%s288 + $0xd0] sm:$0xff]
        %v376 = vld [vmem:[%s288 + $0xd8] sm:$0xff]
        %v377 = vld [vmem:[%s288 + $0xe0] sm:$0xff]
        %v378 = vld [vmem:[%s288 + $0xe8] sm:$0xff]
        %v379 = vld [vmem:[%s288 + $0xf0] sm:$0xff]
        %v380 = vld [vmem:[%s288 + $0xf8] sm:$0xff]
        %s381 = scalar_lea.vmem [#allocation2], 24
        %vm382 = vcmask 31744
        %383 = vst.msk [vmem:[%s381 + $0x1] sm:$0xff] %vm382, %v349
        %384 = vst.msk [vmem:[%s381 + $0x9] sm:$0xff] %vm382, %v350
        %385 = vst.msk [vmem:[%s381 + $0x19] sm:$0xff] %vm382, %v351
        %386 = vst.msk [vmem:[%s381 + $0x21] sm:$0xff] %vm382, %v352
        %387 = vst.msk [vmem:[%s381 + $0x31] sm:$0xff] %vm382, %v353
        %388 = vst.msk [vmem:[%s381 + $0x39] sm:$0xff] %vm382, %v354
        %389 = vst.msk [vmem:[%s381 + $0x49] sm:$0xff] %vm382, %v355
        %390 = vst.msk [vmem:[%s381 + $0x51] sm:$0xff] %vm382, %v356
        %391 = vst.msk [vmem:[%s381 + $0x61] sm:$0xff] %vm382, %v357
        %392 = vst.msk [vmem:[%s381 + $0x69] sm:$0xff] %vm382, %v358
        %393 = vst.msk [vmem:[%s381 + $0x79] sm:$0xff] %vm382, %v359
        %394 = vst.msk [vmem:[%s381 + $0x81] sm:$0xff] %vm382, %v360
        %395 = vst.msk [vmem:[%s381 + $0x91] sm:$0xff] %vm382, %v361
        %396 = vst.msk [vmem:[%s381 + $0x99] sm:$0xff] %vm382, %v362
        %397 = vst.msk [vmem:[%s381 + $0xa9] sm:$0xff] %vm382, %v363
        %398 = vst.msk [vmem:[%s381 + $0xb1] sm:$0xff] %vm382, %v364
        %399 = vst.msk [vmem:[%s381 + $0xc1] sm:$0xff] %vm382, %v365
        %400 = vst.msk [vmem:[%s381 + $0xc9] sm:$0xff] %vm382, %v366
        %401 = vst.msk [vmem:[%s381 + $0xd9] sm:$0xff] %vm382, %v367
        %402 = vst.msk [vmem:[%s381 + $0xe1] sm:$0xff] %vm382, %v368
        %403 = vst.msk [vmem:[%s381 + $0xf1] sm:$0xff] %vm382, %v369
        %404 = vst.msk [vmem:[%s381 + $0xf9] sm:$0xff] %vm382, %v370
        %405 = vst.msk [vmem:[%s381 + $0x109] sm:$0xff] %vm382, %v371
        %406 = vst.msk [vmem:[%s381 + $0x111] sm:$0xff] %vm382, %v372
        %407 = vst.msk [vmem:[%s381 + $0x121] sm:$0xff] %vm382, %v373
        %408 = vst.msk [vmem:[%s381 + $0x129] sm:$0xff] %vm382, %v374
        %409 = vst.msk [vmem:[%s381 + $0x139] sm:$0xff] %vm382, %v375
        %410 = vst.msk [vmem:[%s381 + $0x141] sm:$0xff] %vm382, %v376
        %411 = vst.msk [vmem:[%s381 + $0x151] sm:$0xff] %vm382, %v377
        %412 = vst.msk [vmem:[%s381 + $0x159] sm:$0xff] %vm382, %v378
        %413 = vst.msk [vmem:[%s381 + $0x169] sm:$0xff] %vm382, %v379
        %414 = vst.msk [vmem:[%s381 + $0x171] sm:$0xff] %vm382, %v380
        %v415 = vld [vmem:[#allocation2] sm:$0xff]
        %v416 = vld [vmem:[#allocation2 + $0x8] sm:$0xff]
        %v417 = vld [vmem:[#allocation2 + $0x18] sm:$0xff]
        %v418 = vld [vmem:[#allocation2 + $0x20] sm:$0xff]
        %v419 = vld [vmem:[#allocation2 + $0x30] sm:$0xff]
        %v420 = vld [vmem:[#allocation2 + $0x38] sm:$0xff]
        %v421 = vld [vmem:[#allocation2 + $0x48] sm:$0xff]
        %v422 = vld [vmem:[#allocation2 + $0x50] sm:$0xff]
        %v423 = vld [vmem:[#allocation2 + $0x60] sm:$0xff]
        %v424 = vld [vmem:[#allocation2 + $0x68] sm:$0xff]
        %v425 = vld [vmem:[#allocation2 + $0x78] sm:$0xff]
        %v426 = vld [vmem:[#allocation2 + $0x80] sm:$0xff]
        %v427 = vld [vmem:[#allocation2 + $0x90] sm:$0xff]
        %v428 = vld [vmem:[#allocation2 + $0x98] sm:$0xff]
        %v429 = vld [vmem:[#allocation2 + $0xa8] sm:$0xff]
        %v430 = vld [vmem:[#allocation2 + $0xb0] sm:$0xff]
        %v431 = vld [vmem:[#allocation2 + $0xc0] sm:$0xff]
        %v432 = vld [vmem:[#allocation2 + $0xc8] sm:$0xff]
        %v433 = vld [vmem:[#allocation2 + $0xd8] sm:$0xff]
        %v434 = vld [vmem:[#allocation2 + $0xe0] sm:$0xff]
        %v435 = vld [vmem:[#allocation2 + $0xf0] sm:$0xff]
        %v436 = vld [vmem:[#allocation2 + $0xf8] sm:$0xff]
        %v437 = vld [vmem:[#allocation2 + $0x108] sm:$0xff]
        %v438 = vld [vmem:[#allocation2 + $0x110] sm:$0xff]
        %v439 = vld [vmem:[#allocation2 + $0x120] sm:$0xff]
        %v440 = vld [vmem:[#allocation2 + $0x128] sm:$0xff]
        %v441 = vld [vmem:[#allocation2 + $0x138] sm:$0xff]
        %v442 = vld [vmem:[#allocation2 + $0x140] sm:$0xff]
        %v443 = vld [vmem:[#allocation2 + $0x150] sm:$0xff]
        %v444 = vld [vmem:[#allocation2 + $0x158] sm:$0xff]
        %v445 = vld [vmem:[#allocation2 + $0x168] sm:$0xff]
        %v446 = vld [vmem:[#allocation2 + $0x170] sm:$0xff]
        %v447 = vpack.c.bf16 %v416, %v415
        %v448 = vpack.c.bf16 %v418, %v417
        %v449 = vpack.c.bf16 %v420, %v419
        %v450 = vpack.c.bf16 %v422, %v421
        %v451 = vpack.c.bf16 %v424, %v423
        %v452 = vpack.c.bf16 %v426, %v425
        %v453 = vpack.c.bf16 %v428, %v427
        %v454 = vpack.c.bf16 %v430, %v429
        %v455 = vpack.c.bf16 %v432, %v431
        %v456 = vpack.c.bf16 %v434, %v433
        %v457 = vpack.c.bf16 %v436, %v435
        %v458 = vpack.c.bf16 %v438, %v437
        %v459 = vpack.c.bf16 %v440, %v439
        %v460 = vpack.c.bf16 %v442, %v441
        %v461 = vpack.c.bf16 %v444, %v443
        %v462 = vpack.c.bf16 %v446, %v445
        %v463 = vld [vmem:[%s1] sm:$0xf]
        %v464 = vld [vmem:[%s1 + $0x4] sm:$0xf]
        %v465 = vld [vmem:[%s1 + $0x8] sm:$0xf]
        %v466 = vld [vmem:[%s1 + $0xc] sm:$0xf]
        %v467 = vld [vmem:[%s1 + $0x10] sm:$0xf]
        %v468 = vld [vmem:[%s1 + $0x14] sm:$0xf]
        %v469 = vld [vmem:[%s1 + $0x18] sm:$0xf]
        %v470 = vld [vmem:[%s1 + $0x1c] sm:$0xf]
        %v471 = vld [vmem:[%s1 + $0x20] sm:$0xf]
        %v472 = vld [vmem:[%s1 + $0x24] sm:$0xf]
        %v473 = vld [vmem:[%s1 + $0x28] sm:$0xf]
        %v474 = vld [vmem:[%s1 + $0x2c] sm:$0xf]
        %v475 = vld [vmem:[%s1 + $0x30] sm:$0xf]
        %v476 = vld [vmem:[%s1 + $0x34] sm:$0xf]
        %v477 = vld [vmem:[%s1 + $0x38] sm:$0xf]
        %v478 = vld [vmem:[%s1 + $0x3c] sm:$0xf]
        %v479 = vld [vmem:[#allocation2 + $0x1] sm:$0xff]
        %v480 = vld [vmem:[#allocation2 + $0x9] sm:$0xff]
        %v481 = vld [vmem:[#allocation2 + $0x19] sm:$0xff]
        %v482 = vld [vmem:[#allocation2 + $0x21] sm:$0xff]
        %v483 = vld [vmem:[#allocation2 + $0x31] sm:$0xff]
        %v484 = vld [vmem:[#allocation2 + $0x39] sm:$0xff]
        %v485 = vld [vmem:[#allocation2 + $0x49] sm:$0xff]
        %v486 = vld [vmem:[#allocation2 + $0x51] sm:$0xff]
        %v487 = vld [vmem:[#allocation2 + $0x61] sm:$0xff]
        %v488 = vld [vmem:[#allocation2 + $0x69] sm:$0xff]
        %v489 = vld [vmem:[#allocation2 + $0x79] sm:$0xff]
        %v490 = vld [vmem:[#allocation2 + $0x81] sm:$0xff]
        %v491 = vld [vmem:[#allocation2 + $0x91] sm:$0xff]
        %v492 = vld [vmem:[#allocation2 + $0x99] sm:$0xff]
        %v493 = vld [vmem:[#allocation2 + $0xa9] sm:$0xff]
        %v494 = vld [vmem:[#allocation2 + $0xb1] sm:$0xff]
        %v495 = vld [vmem:[#allocation2 + $0xc1] sm:$0xff]
        %v496 = vld [vmem:[#allocation2 + $0xc9] sm:$0xff]
        %v497 = vld [vmem:[#allocation2 + $0xd9] sm:$0xff]
        %v498 = vld [vmem:[#allocation2 + $0xe1] sm:$0xff]
        %v499 = vld [vmem:[#allocation2 + $0xf1] sm:$0xff]
        %v500 = vld [vmem:[#allocation2 + $0xf9] sm:$0xff]
        %v501 = vld [vmem:[#allocation2 + $0x109] sm:$0xff]
        %v502 = vld [vmem:[#allocation2 + $0x111] sm:$0xff]
        %v503 = vld [vmem:[#allocation2 + $0x121] sm:$0xff]
        %v504 = vld [vmem:[#allocation2 + $0x129] sm:$0xff]
        %v505 = vld [vmem:[#allocation2 + $0x139] sm:$0xff]
        %v506 = vld [vmem:[#allocation2 + $0x141] sm:$0xff]
        %v507 = vld [vmem:[#allocation2 + $0x151] sm:$0xff]
        %v508 = vld [vmem:[#allocation2 + $0x159] sm:$0xff]
        %v509 = vld [vmem:[#allocation2 + $0x169] sm:$0xff]
        %v510 = vld [vmem:[#allocation2 + $0x171] sm:$0xff]
        %v511 = vpack.c.bf16 %v480, %v479
        %v512 = vpack.c.bf16 %v482, %v481
        %v513 = vpack.c.bf16 %v484, %v483
        %v514 = vpack.c.bf16 %v486, %v485
        %v515 = vpack.c.bf16 %v488, %v487
        %v516 = vpack.c.bf16 %v490, %v489
        %v517 = vpack.c.bf16 %v492, %v491
        %v518 = vpack.c.bf16 %v494, %v493
        %v519 = vpack.c.bf16 %v496, %v495
        %v520 = vpack.c.bf16 %v498, %v497
        %v521 = vpack.c.bf16 %v500, %v499
        %v522 = vpack.c.bf16 %v502, %v501
        %v523 = vpack.c.bf16 %v504, %v503
        %v524 = vpack.c.bf16 %v506, %v505
        %v525 = vpack.c.bf16 %v508, %v507
        %v526 = vpack.c.bf16 %v510, %v509
        %v527 = vld [vmem:[%s1 + $0x40] sm:$0xf]
        %v528 = vld [vmem:[%s1 + $0x44] sm:$0xf]
        %v529 = vld [vmem:[%s1 + $0x48] sm:$0xf]
        %v530 = vld [vmem:[%s1 + $0x4c] sm:$0xf]
        %v531 = vld [vmem:[%s1 + $0x50] sm:$0xf]
        %v532 = vld [vmem:[%s1 + $0x54] sm:$0xf]
        %v533 = vld [vmem:[%s1 + $0x58] sm:$0xf]
        %v534 = vld [vmem:[%s1 + $0x5c] sm:$0xf]
        %v535 = vld [vmem:[%s1 + $0x60] sm:$0xf]
        %v536 = vld [vmem:[%s1 + $0x64] sm:$0xf]
        %v537 = vld [vmem:[%s1 + $0x68] sm:$0xf]
        %v538 = vld [vmem:[%s1 + $0x6c] sm:$0xf]
        %v539 = vld [vmem:[%s1 + $0x70] sm:$0xf]
        %v540 = vld [vmem:[%s1 + $0x74] sm:$0xf]
        %v541 = vld [vmem:[%s1 + $0x78] sm:$0xf]
        %v542 = vld [vmem:[%s1 + $0x7c] sm:$0xf]
        %v559 = vunpack.c.l.b16 %v527
        %v560 = vunpack.c.l.b16 %v528
        %v561 = vunpack.c.l.b16 %v529
        %v562 = vunpack.c.l.b16 %v530
        %v563 = vunpack.c.l.b16 %v531
        %v564 = vunpack.c.l.b16 %v532
        %v565 = vunpack.c.l.b16 %v533
        %v566 = vunpack.c.l.b16 %v534
        %v567 = vunpack.c.l.b16 %v535
        %v568 = vunpack.c.l.b16 %v536
        %v569 = vunpack.c.l.b16 %v537
        %v570 = vunpack.c.l.b16 %v538
        %v571 = vunpack.c.l.b16 %v539
        %v572 = vunpack.c.l.b16 %v540
        %v573 = vunpack.c.l.b16 %v541
        %v574 = vunpack.c.l.b16 %v542
        %v575 = vpack.c.b16 %v560, %v559
        %v576 = vpack.c.b16 %v562, %v561
        %v577 = vpack.c.b16 %v564, %v563
        %v578 = vpack.c.b16 %v566, %v565
        %v579 = vpack.c.b16 %v568, %v567
        %v580 = vpack.c.b16 %v570, %v569
        %v581 = vpack.c.b16 %v572, %v571
        %v582 = vpack.c.b16 %v574, %v573
        %591 = vmatprep.subr.bf16.mxu0 0
        %592 = vmatpush1.bf16.msra.mxu0 %v575
        %593 = vmatprep.subr.bf16.mxu0 0
        %594 = vmatpush1.bf16.msra.mxu0 %v576
        %595 = vmatprep.subr.bf16.mxu0 0
        %596 = vmatpush1.bf16.msra.mxu0 %v577
        %597 = vmatprep.subr.bf16.mxu0 0
        %598 = vmatpush1.bf16.msra.mxu0 %v578
        %599 = vmatprep.subr.bf16.mxu0 0
        %600 = vmatpush1.bf16.msra.mxu0 %v579
        %601 = vmatprep.subr.bf16.mxu0 0
        %602 = vmatpush1.bf16.msra.mxu0 %v580
        %603 = vmatprep.subr.bf16.mxu0 0
        %604 = vmatpush1.bf16.msra.mxu0 %v581
        %605 = vmatprep.subr.bf16.mxu0 0
        %606 = vmatpush1.bf16.msra.mxu0 %v582
        %607 = vmatprep.subr.bf16.mxu0 0
        %608 = vmatpush1.bf16.msra.mxu0 0
        %609 = vmatprep.subr.bf16.mxu0 0
        %610 = vmatpush1.bf16.msra.mxu0 0
        %611 = vmatprep.subr.bf16.mxu0 0
        %612 = vmatpush1.bf16.msra.mxu0 0
        %613 = vmatprep.subr.bf16.mxu0 0
        %614 = vmatpush1.bf16.msra.mxu0 0
        %615 = vmatprep.subr.bf16.mxu0 0
        %616 = vmatpush1.bf16.msra.mxu0 0
        %617 = vmatprep.subr.bf16.mxu0 0
        %618 = vmatpush1.bf16.msra.mxu0 0
        %619 = vmatprep.subr.bf16.mxu0 0
        %620 = vmatpush1.bf16.msra.mxu0 0
        %621 = vmatprep.subr.bf16.mxu0 0
        %622 = vmatpush1.bf16.msra.mxu0 0
        %623 = vmatprep.mubr.bf16.mxu0 0
        %624 = vmatmul.mubr.bf16.gmra.mrb[0].mxu0 %v511
        %v625 = vpop.f32.mrb[0].mxu0
        %v626 = vadd.f32 0.0, %v625
        %v627 = vpop.f32.mrb[0].mxu0
        %v628 = vpop.f32.mrb[0].mxu0
        %v629 = vadd.f32 0.0, %v628
        %v630 = vpop.f32.mrb[0].mxu0
        %631 = vmatprep.mubr.bf16.mxu0 0
        %632 = vmatmul.mubr.bf16.gmra.mrb[0].mxu0 %v512
        %v633 = vpop.f32.mrb[0].mxu0
        %v634 = vadd.f32 0.0, %v633
        %v635 = vpop.f32.mrb[0].mxu0
        %v636 = vpop.f32.mrb[0].mxu0
        %v637 = vadd.f32 0.0, %v636
        %v638 = vpop.f32.mrb[0].mxu0
        %639 = vmatprep.mubr.bf16.mxu0 0
        %640 = vmatmul.mubr.bf16.gmra.mrb[0].mxu0 %v513
        %v641 = vpop.f32.mrb[0].mxu0
        %v642 = vadd.f32 0.0, %v641
        %v643 = vpop.f32.mrb[0].mxu0
        %v644 = vpop.f32.mrb[0].mxu0
        %v645 = vadd.f32 0.0, %v644
        %v646 = vpop.f32.mrb[0].mxu0
        %647 = vmatprep.mubr.bf16.mxu0 0
        %648 = vmatmul.mubr.bf16.gmra.mrb[0].mxu0 %v514
        %v649 = vpop.f32.mrb[0].mxu0
        %v650 = vadd.f32 0.0, %v649
        %v651 = vpop.f32.mrb[0].mxu0
        %v652 = vpop.f32.mrb[0].mxu0
        %v653 = vadd.f32 0.0, %v652
        %v654 = vpop.f32.mrb[0].mxu0
        %655 = vmatprep.mubr.bf16.mxu0 0
        %656 = vmatmul.mubr.bf16.gmra.mrb[0].mxu0 %v515
        %v657 = vpop.f32.mrb[0].mxu0
        %v658 = vadd.f32 0.0, %v657
        %v659 = vpop.f32.mrb[0].mxu0
        %v660 = vpop.f32.mrb[0].mxu0
        %v661 = vadd.f32 0.0, %v660
        %v662 = vpop.f32.mrb[0].mxu0
        %663 = vmatprep.mubr.bf16.mxu0 0
        %664 = vmatmul.mubr.bf16.gmra.mrb[0].mxu0 %v516
        %v665 = vpop.f32.mrb[0].mxu0
        %v666 = vadd.f32 0.0, %v665
        %v667 = vpop.f32.mrb[0].mxu0
        %v668 = vpop.f32.mrb[0].mxu0
        %v669 = vadd.f32 0.0, %v668
        %v670 = vpop.f32.mrb[0].mxu0
        %671 = vmatprep.mubr.bf16.mxu0 0
        %672 = vmatmul.mubr.bf16.gmra.mrb[0].mxu0 %v517
        %v673 = vpop.f32.mrb[0].mxu0
        %v674 = vadd.f32 0.0, %v673
        %v675 = vpop.f32.mrb[0].mxu0
        %v676 = vpop.f32.mrb[0].mxu0
        %v677 = vadd.f32 0.0, %v676
        %v678 = vpop.f32.mrb[0].mxu0
        %679 = vmatprep.mubr.bf16.mxu0 0
        %680 = vmatmul.mubr.bf16.gmra.mrb[0].mxu0 %v518
        %v681 = vpop.f32.mrb[0].mxu0
        %v682 = vadd.f32 0.0, %v681
        %v683 = vpop.f32.mrb[0].mxu0
        %v684 = vpop.f32.mrb[0].mxu0
        %v685 = vadd.f32 0.0, %v684
        %v686 = vpop.f32.mrb[0].mxu0
        %687 = vmatprep.mubr.bf16.mxu0 0
        %688 = vmatmul.mubr.bf16.gmra.mrb[0].mxu0 %v519
        %v689 = vpop.f32.mrb[0].mxu0
        %v690 = vadd.f32 0.0, %v689
        %v691 = vpop.f32.mrb[0].mxu0
        %v692 = vpop.f32.mrb[0].mxu0
        %v693 = vadd.f32 0.0, %v692
        %v694 = vpop.f32.mrb[0].mxu0
        %695 = vmatprep.mubr.bf16.mxu0 0
        %696 = vmatmul.mubr.bf16.gmra.mrb[0].mxu0 %v520
        %v697 = vpop.f32.mrb[0].mxu0
        %v698 = vadd.f32 0.0, %v697
        %v699 = vpop.f32.mrb[0].mxu0
        %v700 = vpop.f32.mrb[0].mxu0
        %v701 = vadd.f32 0.0, %v700
        %v702 = vpop.f32.mrb[0].mxu0
        %703 = vmatprep.mubr.bf16.mxu0 0
        %704 = vmatmul.mubr.bf16.gmra.mrb[0].mxu0 %v521
        %v705 = vpop.f32.mrb[0].mxu0
        %v706 = vadd.f32 0.0, %v705
        %v707 = vpop.f32.mrb[0].mxu0
        %v708 = vpop.f32.mrb[0].mxu0
        %v709 = vadd.f32 0.0, %v708
        %v710 = vpop.f32.mrb[0].mxu0
        %711 = vmatprep.mubr.bf16.mxu0 0
        %712 = vmatmul.mubr.bf16.gmra.mrb[0].mxu0 %v522
        %v713 = vpop.f32.mrb[0].mxu0
        %v714 = vadd.f32 0.0, %v713
        %v715 = vpop.f32.mrb[0].mxu0
        %v716 = vpop.f32.mrb[0].mxu0
        %v717 = vadd.f32 0.0, %v716
        %v718 = vpop.f32.mrb[0].mxu0
        %719 = vmatprep.mubr.bf16.mxu0 0
        %720 = vmatmul.mubr.bf16.gmra.mrb[0].mxu0 %v523
        %v721 = vpop.f32.mrb[0].mxu0
        %v722 = vadd.f32 0.0, %v721
        %v723 = vpop.f32.mrb[0].mxu0
        %v724 = vpop.f32.mrb[0].mxu0
        %v725 = vadd.f32 0.0, %v724
        %v726 = vpop.f32.mrb[0].mxu0
        %727 = vmatprep.mubr.bf16.mxu0 0
        %728 = vmatmul.mubr.bf16.gmra.mrb[0].mxu0 %v524
        %v729 = vpop.f32.mrb[0].mxu0
        %v730 = vadd.f32 0.0, %v729
        %v731 = vpop.f32.mrb[0].mxu0
        %v732 = vpop.f32.mrb[0].mxu0
        %v733 = vadd.f32 0.0, %v732
        %v734 = vpop.f32.mrb[0].mxu0
        %735 = vmatprep.mubr.bf16.mxu0 0
        %736 = vmatmul.mubr.bf16.gmra.mrb[0].mxu0 %v525
        %v737 = vpop.f32.mrb[0].mxu0
        %v738 = vadd.f32 0.0, %v737
        %v739 = vpop.f32.mrb[0].mxu0
        %v740 = vpop.f32.mrb[0].mxu0
        %v741 = vadd.f32 0.0, %v740
        %v742 = vpop.f32.mrb[0].mxu0
        %743 = vmatprep.mubr.bf16.mxu0 0
        %744 = vmatmul.mubr.bf16.gmra.mrb[0].mxu0 %v526
        %v745 = vpop.f32.mrb[0].mxu0
        %v746 = vadd.f32 0.0, %v745
        %v747 = vpop.f32.mrb[0].mxu0
        %v748 = vpop.f32.mrb[0].mxu0
        %v749 = vadd.f32 0.0, %v748
        %v750 = vpop.f32.mrb[0].mxu0
        %751 = vdwg.mxu0
        %v768 = vunpack.c.l.b16 %v463
        %v769 = vunpack.c.l.b16 %v464
        %v770 = vunpack.c.l.b16 %v465
        %v771 = vunpack.c.l.b16 %v466
        %v772 = vunpack.c.l.b16 %v467
        %v773 = vunpack.c.l.b16 %v468
        %v774 = vunpack.c.l.b16 %v469
        %v775 = vunpack.c.l.b16 %v470
        %v776 = vunpack.c.l.b16 %v471
        %v777 = vunpack.c.l.b16 %v472
        %v778 = vunpack.c.l.b16 %v473
        %v779 = vunpack.c.l.b16 %v474
        %v780 = vunpack.c.l.b16 %v475
        %v781 = vunpack.c.l.b16 %v476
        %v782 = vunpack.c.l.b16 %v477
        %v783 = vunpack.c.l.b16 %v478
        %v784 = vpack.c.b16 %v769, %v768
        %v785 = vpack.c.b16 %v771, %v770
        %v786 = vpack.c.b16 %v773, %v772
        %v787 = vpack.c.b16 %v775, %v774
        %v788 = vpack.c.b16 %v777, %v776
        %v789 = vpack.c.b16 %v779, %v778
        %v790 = vpack.c.b16 %v781, %v780
        %v791 = vpack.c.b16 %v783, %v782
        %800 = vmatprep.subr.bf16.mxu0 0
        %801 = vmatpush1.bf16.msra.mxu0 %v784
        %802 = vmatprep.subr.bf16.mxu0 0
        %803 = vmatpush1.bf16.msra.mxu0 %v785
        %804 = vmatprep.subr.bf16.mxu0 0
        %805 = vmatpush1.bf16.msra.mxu0 %v786
        %806 = vmatprep.subr.bf16.mxu0 0
        %807 = vmatpush1.bf16.msra.mxu0 %v787
        %808 = vmatprep.subr.bf16.mxu0 0
        %809 = vmatpush1.bf16.msra.mxu0 %v788
        %810 = vmatprep.subr.bf16.mxu0 0
        %811 = vmatpush1.bf16.msra.mxu0 %v789
        %812 = vmatprep.subr.bf16.mxu0 0
        %813 = vmatpush1.bf16.msra.mxu0 %v790
        %814 = vmatprep.subr.bf16.mxu0 0
        %815 = vmatpush1.bf16.msra.mxu0 %v791
        %816 = vmatprep.subr.bf16.mxu0 0
        %817 = vmatpush1.bf16.msra.mxu0 0
        %818 = vmatprep.subr.bf16.mxu0 0
        %819 = vmatpush1.bf16.msra.mxu0 0
        %820 = vmatprep.subr.bf16.mxu0 0
        %821 = vmatpush1.bf16.msra.mxu0 0
        %822 = vmatprep.subr.bf16.mxu0 0
        %823 = vmatpush1.bf16.msra.mxu0 0
        %824 = vmatprep.subr.bf16.mxu0 0
        %825 = vmatpush1.bf16.msra.mxu0 0
        %826 = vmatprep.subr.bf16.mxu0 0
        %827 = vmatpush1.bf16.msra.mxu0 0
        %828 = vmatprep.subr.bf16.mxu0 0
        %829 = vmatpush1.bf16.msra.mxu0 0
        %830 = vmatprep.subr.bf16.mxu0 0
        %831 = vmatpush1.bf16.msra.mxu0 0
        %832 = vmatprep.mubr.bf16.mxu0 0
        %833 = vmatmul.mubr.bf16.gmra.mrb[0].mxu0 %v447
        %v834 = vpop.f32.mrb[0].mxu0
        %v835 = vadd.f32 %v626, %v834
        %v836 = vpop.f32.mrb[0].mxu0
        %v837 = vpop.f32.mrb[0].mxu0
        %v838 = vadd.f32 %v629, %v837
        %v839 = vpop.f32.mrb[0].mxu0
        %840 = vmatprep.mubr.bf16.mxu0 0
        %841 = vmatmul.mubr.bf16.gmra.mrb[0].mxu0 %v448
        %v842 = vpop.f32.mrb[0].mxu0
        %v843 = vadd.f32 %v634, %v842
        %v844 = vpop.f32.mrb[0].mxu0
        %v845 = vpop.f32.mrb[0].mxu0
        %v846 = vadd.f32 %v637, %v845
        %v847 = vpop.f32.mrb[0].mxu0
        %848 = vmatprep.mubr.bf16.mxu0 0
        %849 = vmatmul.mubr.bf16.gmra.mrb[0].mxu0 %v449
        %v850 = vpop.f32.mrb[0].mxu0
        %v851 = vadd.f32 %v642, %v850
        %v852 = vpop.f32.mrb[0].mxu0
        %v853 = vpop.f32.mrb[0].mxu0
        %v854 = vadd.f32 %v645, %v853
        %v855 = vpop.f32.mrb[0].mxu0
        %856 = vmatprep.mubr.bf16.mxu0 0
        %857 = vmatmul.mubr.bf16.gmra.mrb[0].mxu0 %v450
        %v858 = vpop.f32.mrb[0].mxu0
        %v859 = vadd.f32 %v650, %v858
        %v860 = vpop.f32.mrb[0].mxu0
        %v861 = vpop.f32.mrb[0].mxu0
        %v862 = vadd.f32 %v653, %v861
        %v863 = vpop.f32.mrb[0].mxu0
        %864 = vmatprep.mubr.bf16.mxu0 0
        %865 = vmatmul.mubr.bf16.gmra.mrb[0].mxu0 %v451
        %v866 = vpop.f32.mrb[0].mxu0
        %v867 = vadd.f32 %v658, %v866
        %v868 = vpop.f32.mrb[0].mxu0
        %v869 = vpop.f32.mrb[0].mxu0
        %v870 = vadd.f32 %v661, %v869
        %v871 = vpop.f32.mrb[0].mxu0
        %872 = vmatprep.mubr.bf16.mxu0 0
        %873 = vmatmul.mubr.bf16.gmra.mrb[0].mxu0 %v452
        %v874 = vpop.f32.mrb[0].mxu0
        %v875 = vadd.f32 %v666, %v874
        %v876 = vpop.f32.mrb[0].mxu0
        %v877 = vpop.f32.mrb[0].mxu0
        %v878 = vadd.f32 %v669, %v877
        %v879 = vpop.f32.mrb[0].mxu0
        %880 = vmatprep.mubr.bf16.mxu0 0
        %881 = vmatmul.mubr.bf16.gmra.mrb[0].mxu0 %v453
        %v882 = vpop.f32.mrb[0].mxu0
        %v883 = vadd.f32 %v674, %v882
        %v884 = vpop.f32.mrb[0].mxu0
        %v885 = vpop.f32.mrb[0].mxu0
        %v886 = vadd.f32 %v677, %v885
        %v887 = vpop.f32.mrb[0].mxu0
        %888 = vmatprep.mubr.bf16.mxu0 0
        %889 = vmatmul.mubr.bf16.gmra.mrb[0].mxu0 %v454
        %v890 = vpop.f32.mrb[0].mxu0
        %v891 = vadd.f32 %v682, %v890
        %v892 = vpop.f32.mrb[0].mxu0
        %v893 = vpop.f32.mrb[0].mxu0
        %v894 = vadd.f32 %v685, %v893
        %v895 = vpop.f32.mrb[0].mxu0
        %896 = vmatprep.mubr.bf16.mxu0 0
        %897 = vmatmul.mubr.bf16.gmra.mrb[0].mxu0 %v455
        %v898 = vpop.f32.mrb[0].mxu0
        %v899 = vadd.f32 %v690, %v898
        %v900 = vpop.f32.mrb[0].mxu0
        %v901 = vpop.f32.mrb[0].mxu0
        %v902 = vadd.f32 %v693, %v901
        %v903 = vpop.f32.mrb[0].mxu0
        %904 = vmatprep.mubr.bf16.mxu0 0
        %905 = vmatmul.mubr.bf16.gmra.mrb[0].mxu0 %v456
        %v906 = vpop.f32.mrb[0].mxu0
        %v907 = vadd.f32 %v698, %v906
        %v908 = vpop.f32.mrb[0].mxu0
        %v909 = vpop.f32.mrb[0].mxu0
        %v910 = vadd.f32 %v701, %v909
        %v911 = vpop.f32.mrb[0].mxu0
        %912 = vmatprep.mubr.bf16.mxu0 0
        %913 = vmatmul.mubr.bf16.gmra.mrb[0].mxu0 %v457
        %v914 = vpop.f32.mrb[0].mxu0
        %v915 = vadd.f32 %v706, %v914
        %v916 = vpop.f32.mrb[0].mxu0
        %v917 = vpop.f32.mrb[0].mxu0
        %v918 = vadd.f32 %v709, %v917
        %v919 = vpop.f32.mrb[0].mxu0
        %920 = vmatprep.mubr.bf16.mxu0 0
        %921 = vmatmul.mubr.bf16.gmra.mrb[0].mxu0 %v458
        %v922 = vpop.f32.mrb[0].mxu0
        %v923 = vadd.f32 %v714, %v922
        %v924 = vpop.f32.mrb[0].mxu0
        %v925 = vpop.f32.mrb[0].mxu0
        %v926 = vadd.f32 %v717, %v925
        %v927 = vpop.f32.mrb[0].mxu0
        %928 = vmatprep.mubr.bf16.mxu0 0
        %929 = vmatmul.mubr.bf16.gmra.mrb[0].mxu0 %v459
        %v930 = vpop.f32.mrb[0].mxu0
        %v931 = vadd.f32 %v722, %v930
        %v932 = vpop.f32.mrb[0].mxu0
        %v933 = vpop.f32.mrb[0].mxu0
        %v934 = vadd.f32 %v725, %v933
        %v935 = vpop.f32.mrb[0].mxu0
        %936 = vmatprep.mubr.bf16.mxu0 0
        %937 = vmatmul.mubr.bf16.gmra.mrb[0].mxu0 %v460
        %v938 = vpop.f32.mrb[0].mxu0
        %v939 = vadd.f32 %v730, %v938
        %v940 = vpop.f32.mrb[0].mxu0
        %v941 = vpop.f32.mrb[0].mxu0
        %v942 = vadd.f32 %v733, %v941
        %v943 = vpop.f32.mrb[0].mxu0
        %944 = vmatprep.mubr.bf16.mxu0 0
        %945 = vmatmul.mubr.bf16.gmra.mrb[0].mxu0 %v461
        %v946 = vpop.f32.mrb[0].mxu0
        %v947 = vadd.f32 %v738, %v946
        %v948 = vpop.f32.mrb[0].mxu0
        %v949 = vpop.f32.mrb[0].mxu0
        %v950 = vadd.f32 %v741, %v949
        %v951 = vpop.f32.mrb[0].mxu0
        %952 = vmatprep.mubr.bf16.mxu0 0
        %953 = vmatmul.mubr.bf16.gmra.mrb[0].mxu0 %v462
        %v954 = vpop.f32.mrb[0].mxu0
        %v955 = vadd.f32 %v746, %v954
        %v956 = vpop.f32.mrb[0].mxu0
        %v957 = vpop.f32.mrb[0].mxu0
        %v958 = vadd.f32 %v749, %v957
        %v959 = vpop.f32.mrb[0].mxu0
        %960 = vdwg.mxu0
        %v961 = vld [vmem:[#allocation2 + $0x2] sm:$0xff]
        %v962 = vld [vmem:[#allocation2 + $0xa] sm:$0xff]
        %v963 = vld [vmem:[#allocation2 + $0x1a] sm:$0xff]
        %v964 = vld [vmem:[#allocation2 + $0x22] sm:$0xff]
        %v965 = vld [vmem:[#allocation2 + $0x32] sm:$0xff]
        %v966 = vld [vmem:[#allocation2 + $0x3a] sm:$0xff]
        %v967 = vld [vmem:[#allocation2 + $0x4a] sm:$0xff]
        %v968 = vld [vmem:[#allocation2 + $0x52] sm:$0xff]
        %v969 = vld [vmem:[#allocation2 + $0x62] sm:$0xff]
        %v970 = vld [vmem:[#allocation2 + $0x6a] sm:$0xff]
        %v971 = vld [vmem:[#allocation2 + $0x7a] sm:$0xff]
        %v972 = vld [vmem:[#allocation2 + $0x82] sm:$0xff]
        %v973 = vld [vmem:[#allocation2 + $0x92] sm:$0xff]
        %v974 = vld [vmem:[#allocation2 + $0x9a] sm:$0xff]
        %v975 = vld [vmem:[#allocation2 + $0xaa] sm:$0xff]
        %v976 = vld [vmem:[#allocation2 + $0xb2] sm:$0xff]
        %v977 = vld [vmem:[#allocation2 + $0xc2] sm:$0xff]
        %v978 = vld [vmem:[#allocation2 + $0xca] sm:$0xff]
        %v979 = vld [vmem:[#allocation2 + $0xda] sm:$0xff]
        %v980 = vld [vmem:[#allocation2 + $0xe2] sm:$0xff]
        %v981 = vld [vmem:[#allocation2 + $0xf2] sm:$0xff]
        %v982 = vld [vmem:[#allocation2 + $0xfa] sm:$0xff]
        %v983 = vld [vmem:[#allocation2 + $0x10a] sm:$0xff]
        %v984 = vld [vmem:[#allocation2 + $0x112] sm:$0xff]
        %v985 = vld [vmem:[#allocation2 + $0x122] sm:$0xff]
        %v986 = vld [vmem:[#allocation2 + $0x12a] sm:$0xff]
        %v987 = vld [vmem:[#allocation2 + $0x13a] sm:$0xff]
        %v988 = vld [vmem:[#allocation2 + $0x142] sm:$0xff]
        %v989 = vld [vmem:[#allocation2 + $0x152] sm:$0xff]
        %v990 = vld [vmem:[#allocation2 + $0x15a] sm:$0xff]
        %v991 = vld [vmem:[#allocation2 + $0x16a] sm:$0xff]
        %v992 = vld [vmem:[#allocation2 + $0x172] sm:$0xff]
        %v993 = vpack.c.bf16 %v962, %v961
        %v994 = vpack.c.bf16 %v964, %v963
        %v995 = vpack.c.bf16 %v966, %v965
        %v996 = vpack.c.bf16 %v968, %v967
        %v997 = vpack.c.bf16 %v970, %v969
        %v998 = vpack.c.bf16 %v972, %v971
        %v999 = vpack.c.bf16 %v974, %v973
        %v1000 = vpack.c.bf16 %v976, %v975
        %v1001 = vpack.c.bf16 %v978, %v977
        %v1002 = vpack.c.bf16 %v980, %v979
        %v1003 = vpack.c.bf16 %v982, %v981
        %v1004 = vpack.c.bf16 %v984, %v983
        %v1005 = vpack.c.bf16 %v986, %v985
        %v1006 = vpack.c.bf16 %v988, %v987
        %v1007 = vpack.c.bf16 %v990, %v989
        %v1008 = vpack.c.bf16 %v992, %v991
        %v1009 = vld [vmem:[%s1 + $0x80] sm:$0xf]
        %v1010 = vld [vmem:[%s1 + $0x84] sm:$0xf]
        %v1011 = vld [vmem:[%s1 + $0x88] sm:$0xf]
        %v1012 = vld [vmem:[%s1 + $0x8c] sm:$0xf]
        %v1013 = vld [vmem:[%s1 + $0x90] sm:$0xf]
        %v1014 = vld [vmem:[%s1 + $0x94] sm:$0xf]
        %v1015 = vld [vmem:[%s1 + $0x98] sm:$0xf]
        %v1016 = vld [vmem:[%s1 + $0x9c] sm:$0xf]
        %v1017 = vld [vmem:[%s1 + $0xa0] sm:$0xf]
        %v1018 = vld [vmem:[%s1 + $0xa4] sm:$0xf]
        %v1019 = vld [vmem:[%s1 + $0xa8] sm:$0xf]
        %v1020 = vld [vmem:[%s1 + $0xac] sm:$0xf]
        %v1021 = vld [vmem:[%s1 + $0xb0] sm:$0xf]
        %v1022 = vld [vmem:[%s1 + $0xb4] sm:$0xf]
        %v1023 = vld [vmem:[%s1 + $0xb8] sm:$0xf]
        %v1024 = vld [vmem:[%s1 + $0xbc] sm:$0xf]
        %v1041 = vunpack.c.l.b16 %v1009
        %v1042 = vunpack.c.l.b16 %v1010
        %v1043 = vunpack.c.l.b16 %v1011
        %v1044 = vunpack.c.l.b16 %v1012
        %v1045 = vunpack.c.l.b16 %v1013
        %v1046 = vunpack.c.l.b16 %v1014
        %v1047 = vunpack.c.l.b16 %v1015
        %v1048 = vunpack.c.l.b16 %v1016
        %v1049 = vunpack.c.l.b16 %v1017
        %v1050 = vunpack.c.l.b16 %v1018
        %v1051 = vunpack.c.l.b16 %v1019
        %v1052 = vunpack.c.l.b16 %v1020
        %v1053 = vunpack.c.l.b16 %v1021
        %v1054 = vunpack.c.l.b16 %v1022
        %v1055 = vunpack.c.l.b16 %v1023
        %v1056 = vunpack.c.l.b16 %v1024
        %v1057 = vpack.c.b16 %v1042, %v1041
        %v1058 = vpack.c.b16 %v1044, %v1043
        %v1059 = vpack.c.b16 %v1046, %v1045
        %v1060 = vpack.c.b16 %v1048, %v1047
        %v1061 = vpack.c.b16 %v1050, %v1049
        %v1062 = vpack.c.b16 %v1052, %v1051
        %v1063 = vpack.c.b16 %v1054, %v1053
        %v1064 = vpack.c.b16 %v1056, %v1055
        %1073 = vmatprep.subr.bf16.mxu0 0
        %1074 = vmatpush1.bf16.msra.mxu0 %v1057
        %1075 = vmatprep.subr.bf16.mxu0 0
        %1076 = vmatpush1.bf16.msra.mxu0 %v1058
        %1077 = vmatprep.subr.bf16.mxu0 0
        %1078 = vmatpush1.bf16.msra.mxu0 %v1059
        %1079 = vmatprep.subr.bf16.mxu0 0
        %1080 = vmatpush1.bf16.msra.mxu0 %v1060
        %1081 = vmatprep.subr.bf16.mxu0 0
        %1082 = vmatpush1.bf16.msra.mxu0 %v1061
        %1083 = vmatprep.subr.bf16.mxu0 0
        %1084 = vmatpush1.bf16.msra.mxu0 %v1062
        %1085 = vmatprep.subr.bf16.mxu0 0
        %1086 = vmatpush1.bf16.msra.mxu0 %v1063
        %1087 = vmatprep.subr.bf16.mxu0 0
        %1088 = vmatpush1.bf16.msra.mxu0 %v1064
        %1089 = vmatprep.subr.bf16.mxu0 0
        %1090 = vmatpush1.bf16.msra.mxu0 0
        %1091 = vmatprep.subr.bf16.mxu0 0
        %1092 = vmatpush1.bf16.msra.mxu0 0
        %1093 = vmatprep.subr.bf16.mxu0 0
        %1094 = vmatpush1.bf16.msra.mxu0 0
        %1095 = vmatprep.subr.bf16.mxu0 0
        %1096 = vmatpush1.bf16.msra.mxu0 0
        %1097 = vmatprep.subr.bf16.mxu0 0
        %1098 = vmatpush1.bf16.msra.mxu0 0
        %1099 = vmatprep.subr.bf16.mxu0 0
        %1100 = vmatpush1.bf16.msra.mxu0 0
        %1101 = vmatprep.subr.bf16.mxu0 0
        %1102 = vmatpush1.bf16.msra.mxu0 0
        %1103 = vmatprep.subr.bf16.mxu0 0
        %1104 = vmatpush1.bf16.msra.mxu0 0
        %1105 = vmatprep.mubr.bf16.mxu0 0
        %1106 = vmatmul.mubr.bf16.gmra.mrb[0].mxu0 %v993
        %v1107 = vpop.f32.mrb[0].mxu0
        %v1108 = vadd.f32 0.0, %v1107
        %v1109 = vpop.f32.mrb[0].mxu0
        %v1110 = vpop.f32.mrb[0].mxu0
        %v1111 = vadd.f32 0.0, %v1110
        %v1112 = vpop.f32.mrb[0].mxu0
        %1113 = vmatprep.mubr.bf16.mxu0 0
        %1114 = vmatmul.mubr.bf16.gmra.mrb[0].mxu0 %v994
        %v1115 = vpop.f32.mrb[0].mxu0
        %v1116 = vadd.f32 0.0, %v1115
        %v1117 = vpop.f32.mrb[0].mxu0
        %v1118 = vpop.f32.mrb[0].mxu0
        %v1119 = vadd.f32 0.0, %v1118
        %v1120 = vpop.f32.mrb[0].mxu0
        %1121 = vmatprep.mubr.bf16.mxu0 0
        %1122 = vmatmul.mubr.bf16.gmra.mrb[0].mxu0 %v995
        %v1123 = vpop.f32.mrb[0].mxu0
        %v1124 = vadd.f32 0.0, %v1123
        %v1125 = vpop.f32.mrb[0].mxu0
        %v1126 = vpop.f32.mrb[0].mxu0
        %v1127 = vadd.f32 0.0, %v1126
        %v1128 = vpop.f32.mrb[0].mxu0
        %1129 = vmatprep.mubr.bf16.mxu0 0
        %1130 = vmatmul.mubr.bf16.gmra.mrb[0].mxu0 %v996
        %v1131 = vpop.f32.mrb[0].mxu0
        %v1132 = vadd.f32 0.0, %v1131
        %v1133 = vpop.f32.mrb[0].mxu0
        %v1134 = vpop.f32.mrb[0].mxu0
        %v1135 = vadd.f32 0.0, %v1134
        %v1136 = vpop.f32.mrb[0].mxu0
        %1137 = vmatprep.mubr.bf16.mxu0 0
        %1138 = vmatmul.mubr.bf16.gmra.mrb[0].mxu0 %v997
        %v1139 = vpop.f32.mrb[0].mxu0
        %v1140 = vadd.f32 0.0, %v1139
        %v1141 = vpop.f32.mrb[0].mxu0
        %v1142 = vpop.f32.mrb[0].mxu0
        %v1143 = vadd.f32 0.0, %v1142
        %v1144 = vpop.f32.mrb[0].mxu0
        %1145 = vmatprep.mubr.bf16.mxu0 0
        %1146 = vmatmul.mubr.bf16.gmra.mrb[0].mxu0 %v998
        %v1147 = vpop.f32.mrb[0].mxu0
        %v1148 = vadd.f32 0.0, %v1147
        %v1149 = vpop.f32.mrb[0].mxu0
        %v1150 = vpop.f32.mrb[0].mxu0
        %v1151 = vadd.f32 0.0, %v1150
        %v1152 = vpop.f32.mrb[0].mxu0
        %1153 = vmatprep.mubr.bf16.mxu0 0
        %1154 = vmatmul.mubr.bf16.gmra.mrb[0].mxu0 %v999
        %v1155 = vpop.f32.mrb[0].mxu0
        %v1156 = vadd.f32 0.0, %v1155
        %v1157 = vpop.f32.mrb[0].mxu0
        %v1158 = vpop.f32.mrb[0].mxu0
        %v1159 = vadd.f32 0.0, %v1158
        %v1160 = vpop.f32.mrb[0].mxu0
        %1161 = vmatprep.mubr.bf16.mxu0 0
        %1162 = vmatmul.mubr.bf16.gmra.mrb[0].mxu0 %v1000
        %v1163 = vpop.f32.mrb[0].mxu0
        %v1164 = vadd.f32 0.0, %v1163
        %v1165 = vpop.f32.mrb[0].mxu0
        %v1166 = vpop.f32.mrb[0].mxu0
        %v1167 = vadd.f32 0.0, %v1166
        %v1168 = vpop.f32.mrb[0].mxu0
        %1169 = vmatprep.mubr.bf16.mxu0 0
        %1170 = vmatmul.mubr.bf16.gmra.mrb[0].mxu0 %v1001
        %v1171 = vpop.f32.mrb[0].mxu0
        %v1172 = vadd.f32 0.0, %v1171
        %v1173 = vpop.f32.mrb[0].mxu0
        %v1174 = vpop.f32.mrb[0].mxu0
        %v1175 = vadd.f32 0.0, %v1174
        %v1176 = vpop.f32.mrb[0].mxu0
        %1177 = vmatprep.mubr.bf16.mxu0 0
        %1178 = vmatmul.mubr.bf16.gmra.mrb[0].mxu0 %v1002
        %v1179 = vpop.f32.mrb[0].mxu0
        %v1180 = vadd.f32 0.0, %v1179
        %v1181 = vpop.f32.mrb[0].mxu0
        %v1182 = vpop.f32.mrb[0].mxu0
        %v1183 = vadd.f32 0.0, %v1182
        %v1184 = vpop.f32.mrb[0].mxu0
        %1185 = vmatprep.mubr.bf16.mxu0 0
        %1186 = vmatmul.mubr.bf16.gmra.mrb[0].mxu0 %v1003
        %v1187 = vpop.f32.mrb[0].mxu0
        %v1188 = vadd.f32 0.0, %v1187
        %v1189 = vpop.f32.mrb[0].mxu0
        %v1190 = vpop.f32.mrb[0].mxu0
        %v1191 = vadd.f32 0.0, %v1190
        %v1192 = vpop.f32.mrb[0].mxu0
        %1193 = vmatprep.mubr.bf16.mxu0 0
        %1194 = vmatmul.mubr.bf16.gmra.mrb[0].mxu0 %v1004
        %v1195 = vpop.f32.mrb[0].mxu0
        %v1196 = vadd.f32 0.0, %v1195
        %v1197 = vpop.f32.mrb[0].mxu0
        %v1198 = vpop.f32.mrb[0].mxu0
        %v1199 = vadd.f32 0.0, %v1198
        %v1200 = vpop.f32.mrb[0].mxu0
        %1201 = vmatprep.mubr.bf16.mxu0 0
        %1202 = vmatmul.mubr.bf16.gmra.mrb[0].mxu0 %v1005
        %v1203 = vpop.f32.mrb[0].mxu0
        %v1204 = vadd.f32 0.0, %v1203
        %v1205 = vpop.f32.mrb[0].mxu0
        %v1206 = vpop.f32.mrb[0].mxu0
        %v1207 = vadd.f32 0.0, %v1206
        %v1208 = vpop.f32.mrb[0].mxu0
        %1209 = vmatprep.mubr.bf16.mxu0 0
        %1210 = vmatmul.mubr.bf16.gmra.mrb[0].mxu0 %v1006
        %v1211 = vpop.f32.mrb[0].mxu0
        %v1212 = vadd.f32 0.0, %v1211
        %v1213 = vpop.f32.mrb[0].mxu0
        %v1214 = vpop.f32.mrb[0].mxu0
        %v1215 = vadd.f32 0.0, %v1214
        %v1216 = vpop.f32.mrb[0].mxu0
        %1217 = vmatprep.mubr.bf16.mxu0 0
        %1218 = vmatmul.mubr.bf16.gmra.mrb[0].mxu0 %v1007
        %v1219 = vpop.f32.mrb[0].mxu0
        %v1220 = vadd.f32 0.0, %v1219
        %v1221 = vpop.f32.mrb[0].mxu0
        %v1222 = vpop.f32.mrb[0].mxu0
        %v1223 = vadd.f32 0.0, %v1222
        %v1224 = vpop.f32.mrb[0].mxu0
        %1225 = vmatprep.mubr.bf16.mxu0 0
        %1226 = vmatmul.mubr.bf16.gmra.mrb[0].mxu0 %v1008
        %v1227 = vpop.f32.mrb[0].mxu0
        %v1228 = vadd.f32 0.0, %v1227
        %v1229 = vpop.f32.mrb[0].mxu0
        %v1230 = vpop.f32.mrb[0].mxu0
        %v1231 = vadd.f32 0.0, %v1230
        %v1232 = vpop.f32.mrb[0].mxu0
        %1233 = vdwg.mxu0
        %v1234 = vadd.f32 %v835, %v1108
        %v1235 = vadd.f32 %v838, %v1111
        %v1236 = vadd.f32 %v843, %v1116
        %v1237 = vadd.f32 %v846, %v1119
        %v1238 = vadd.f32 %v851, %v1124
        %v1239 = vadd.f32 %v854, %v1127
        %v1240 = vadd.f32 %v859, %v1132
        %v1241 = vadd.f32 %v862, %v1135
        %v1242 = vadd.f32 %v867, %v1140
        %v1243 = vadd.f32 %v870, %v1143
        %v1244 = vadd.f32 %v875, %v1148
        %v1245 = vadd.f32 %v878, %v1151
        %v1246 = vadd.f32 %v883, %v1156
        %v1247 = vadd.f32 %v886, %v1159
        %v1248 = vadd.f32 %v891, %v1164
        %v1249 = vadd.f32 %v894, %v1167
        %v1250 = vadd.f32 %v899, %v1172
        %v1251 = vadd.f32 %v902, %v1175
        %v1252 = vadd.f32 %v907, %v1180
        %v1253 = vadd.f32 %v910, %v1183
        %v1254 = vadd.f32 %v915, %v1188
        %v1255 = vadd.f32 %v918, %v1191
        %v1256 = vadd.f32 %v923, %v1196
        %v1257 = vadd.f32 %v926, %v1199
        %v1258 = vadd.f32 %v931, %v1204
        %v1259 = vadd.f32 %v934, %v1207
        %v1260 = vadd.f32 %v939, %v1212
        %v1261 = vadd.f32 %v942, %v1215
        %v1262 = vadd.f32 %v947, %v1220
        %v1263 = vadd.f32 %v950, %v1223
        %v1264 = vadd.f32 %v955, %v1228
        %v1265 = vadd.f32 %v958, %v1231
        %v1266 = vld [vmem:[%s381] sm:$0xff]
        %v1267 = vld [vmem:[%s381 + $0x8] sm:$0xff]
        %v1268 = vld [vmem:[%s381 + $0x18] sm:$0xff]
        %v1269 = vld [vmem:[%s381 + $0x20] sm:$0xff]
        %v1270 = vld [vmem:[%s381 + $0x30] sm:$0xff]
        %v1271 = vld [vmem:[%s381 + $0x38] sm:$0xff]
        %v1272 = vld [vmem:[%s381 + $0x48] sm:$0xff]
        %v1273 = vld [vmem:[%s381 + $0x50] sm:$0xff]
        %v1274 = vld [vmem:[%s381 + $0x60] sm:$0xff]
        %v1275 = vld [vmem:[%s381 + $0x68] sm:$0xff]
        %v1276 = vld [vmem:[%s381 + $0x78] sm:$0xff]
        %v1277 = vld [vmem:[%s381 + $0x80] sm:$0xff]
        %v1278 = vld [vmem:[%s381 + $0x90] sm:$0xff]
        %v1279 = vld [vmem:[%s381 + $0x98] sm:$0xff]
        %v1280 = vld [vmem:[%s381 + $0xa8] sm:$0xff]
        %v1281 = vld [vmem:[%s381 + $0xb0] sm:$0xff]
        %v1282 = vld [vmem:[%s381 + $0xc0] sm:$0xff]
        %v1283 = vld [vmem:[%s381 + $0xc8] sm:$0xff]
        %v1284 = vld [vmem:[%s381 + $0xd8] sm:$0xff]
        %v1285 = vld [vmem:[%s381 + $0xe0] sm:$0xff]
        %v1286 = vld [vmem:[%s381 + $0xf0] sm:$0xff]
        %v1287 = vld [vmem:[%s381 + $0xf8] sm:$0xff]
        %v1288 = vld [vmem:[%s381 + $0x108] sm:$0xff]
        %v1289 = vld [vmem:[%s381 + $0x110] sm:$0xff]
        %v1290 = vld [vmem:[%s381 + $0x120] sm:$0xff]
        %v1291 = vld [vmem:[%s381 + $0x128] sm:$0xff]
        %v1292 = vld [vmem:[%s381 + $0x138] sm:$0xff]
        %v1293 = vld [vmem:[%s381 + $0x140] sm:$0xff]
        %v1294 = vld [vmem:[%s381 + $0x150] sm:$0xff]
        %v1295 = vld [vmem:[%s381 + $0x158] sm:$0xff]
        %v1296 = vld [vmem:[%s381 + $0x168] sm:$0xff]
        %v1297 = vld [vmem:[%s381 + $0x170] sm:$0xff]
        %v1298 = vpack.c.bf16 %v1267, %v1266
        %v1299 = vpack.c.bf16 %v1269, %v1268
        %v1300 = vpack.c.bf16 %v1271, %v1270
        %v1301 = vpack.c.bf16 %v1273, %v1272
        %v1302 = vpack.c.bf16 %v1275, %v1274
        %v1303 = vpack.c.bf16 %v1277, %v1276
        %v1304 = vpack.c.bf16 %v1279, %v1278
        %v1305 = vpack.c.bf16 %v1281, %v1280
        %v1306 = vpack.c.bf16 %v1283, %v1282
        %v1307 = vpack.c.bf16 %v1285, %v1284
        %v1308 = vpack.c.bf16 %v1287, %v1286
        %v1309 = vpack.c.bf16 %v1289, %v1288
        %v1310 = vpack.c.bf16 %v1291, %v1290
        %v1311 = vpack.c.bf16 %v1293, %v1292
        %v1312 = vpack.c.bf16 %v1295, %v1294
        %v1313 = vpack.c.bf16 %v1297, %v1296
        %v1314 = vld [vmem:[%s1 + $0xc0] sm:$0xf]
        %v1315 = vld [vmem:[%s1 + $0xc4] sm:$0xf]
        %v1316 = vld [vmem:[%s1 + $0xc8] sm:$0xf]
        %v1317 = vld [vmem:[%s1 + $0xcc] sm:$0xf]
        %v1318 = vld [vmem:[%s1 + $0xd0] sm:$0xf]
        %v1319 = vld [vmem:[%s1 + $0xd4] sm:$0xf]
        %v1320 = vld [vmem:[%s1 + $0xd8] sm:$0xf]
        %v1321 = vld [vmem:[%s1 + $0xdc] sm:$0xf]
        %v1322 = vld [vmem:[%s1 + $0xe0] sm:$0xf]
        %v1323 = vld [vmem:[%s1 + $0xe4] sm:$0xf]
        %v1324 = vld [vmem:[%s1 + $0xe8] sm:$0xf]
        %v1325 = vld [vmem:[%s1 + $0xec] sm:$0xf]
        %v1326 = vld [vmem:[%s1 + $0xf0] sm:$0xf]
        %v1327 = vld [vmem:[%s1 + $0xf4] sm:$0xf]
        %v1328 = vld [vmem:[%s1 + $0xf8] sm:$0xf]
        %v1329 = vld [vmem:[%s1 + $0xfc] sm:$0xf]
        %v1346 = vunpack.c.l.b16 %v1314
        %v1347 = vunpack.c.l.b16 %v1315
        %v1348 = vunpack.c.l.b16 %v1316
        %v1349 = vunpack.c.l.b16 %v1317
        %v1350 = vunpack.c.l.b16 %v1318
        %v1351 = vunpack.c.l.b16 %v1319
        %v1352 = vunpack.c.l.b16 %v1320
        %v1353 = vunpack.c.l.b16 %v1321
        %v1354 = vunpack.c.l.b16 %v1322
        %v1355 = vunpack.c.l.b16 %v1323
        %v1356 = vunpack.c.l.b16 %v1324
        %v1357 = vunpack.c.l.b16 %v1325
        %v1358 = vunpack.c.l.b16 %v1326
        %v1359 = vunpack.c.l.b16 %v1327
        %v1360 = vunpack.c.l.b16 %v1328
        %v1361 = vunpack.c.l.b16 %v1329
        %v1362 = vpack.c.b16 %v1347, %v1346
        %v1363 = vpack.c.b16 %v1349, %v1348
        %v1364 = vpack.c.b16 %v1351, %v1350
        %v1365 = vpack.c.b16 %v1353, %v1352
        %v1366 = vpack.c.b16 %v1355, %v1354
        %v1367 = vpack.c.b16 %v1357, %v1356
        %v1368 = vpack.c.b16 %v1359, %v1358
        %v1369 = vpack.c.b16 %v1361, %v1360
        %1378 = vmatprep.subr.bf16.mxu0 0
        %1379 = vmatpush1.bf16.msra.mxu0 %v1362
        %1380 = vmatprep.subr.bf16.mxu0 0
        %1381 = vmatpush1.bf16.msra.mxu0 %v1363
        %1382 = vmatprep.subr.bf16.mxu0 0
        %1383 = vmatpush1.bf16.msra.mxu0 %v1364
        %1384 = vmatprep.subr.bf16.mxu0 0
        %1385 = vmatpush1.bf16.msra.mxu0 %v1365
        %1386 = vmatprep.subr.bf16.mxu0 0
        %1387 = vmatpush1.bf16.msra.mxu0 %v1366
        %1388 = vmatprep.subr.bf16.mxu0 0
        %1389 = vmatpush1.bf16.msra.mxu0 %v1367
        %1390 = vmatprep.subr.bf16.mxu0 0
        %1391 = vmatpush1.bf16.msra.mxu0 %v1368
        %1392 = vmatprep.subr.bf16.mxu0 0
        %1393 = vmatpush1.bf16.msra.mxu0 %v1369
        %1394 = vmatprep.subr.bf16.mxu0 0
        %1395 = vmatpush1.bf16.msra.mxu0 0
        %1396 = vmatprep.subr.bf16.mxu0 0
        %1397 = vmatpush1.bf16.msra.mxu0 0
        %1398 = vmatprep.subr.bf16.mxu0 0
        %1399 = vmatpush1.bf16.msra.mxu0 0
        %1400 = vmatprep.subr.bf16.mxu0 0
        %1401 = vmatpush1.bf16.msra.mxu0 0
        %1402 = vmatprep.subr.bf16.mxu0 0
        %1403 = vmatpush1.bf16.msra.mxu0 0
        %1404 = vmatprep.subr.bf16.mxu0 0
        %1405 = vmatpush1.bf16.msra.mxu0 0
        %1406 = vmatprep.subr.bf16.mxu0 0
        %1407 = vmatpush1.bf16.msra.mxu0 0
        %1408 = vmatprep.subr.bf16.mxu0 0
        %1409 = vmatpush1.bf16.msra.mxu0 0
        %1410 = vmatprep.mubr.bf16.mxu0 0
        %1411 = vmatmul.mubr.bf16.gmra.mrb[0].mxu0 %v1298
        %v1412 = vpop.f32.mrb[0].mxu0
        %v1413 = vadd.f32 0.0, %v1412
        %v1414 = vpop.f32.mrb[0].mxu0
        %v1415 = vpop.f32.mrb[0].mxu0
        %v1416 = vadd.f32 0.0, %v1415
        %v1417 = vpop.f32.mrb[0].mxu0
        %1418 = vmatprep.mubr.bf16.mxu0 0
        %1419 = vmatmul.mubr.bf16.gmra.mrb[0].mxu0 %v1299
        %v1420 = vpop.f32.mrb[0].mxu0
        %v1421 = vadd.f32 0.0, %v1420
        %v1422 = vpop.f32.mrb[0].mxu0
        %v1423 = vpop.f32.mrb[0].mxu0
        %v1424 = vadd.f32 0.0, %v1423
        %v1425 = vpop.f32.mrb[0].mxu0
        %1426 = vmatprep.mubr.bf16.mxu0 0
        %1427 = vmatmul.mubr.bf16.gmra.mrb[0].mxu0 %v1300
        %v1428 = vpop.f32.mrb[0].mxu0
        %v1429 = vadd.f32 0.0, %v1428
        %v1430 = vpop.f32.mrb[0].mxu0
        %v1431 = vpop.f32.mrb[0].mxu0
        %v1432 = vadd.f32 0.0, %v1431
        %v1433 = vpop.f32.mrb[0].mxu0
        %1434 = vmatprep.mubr.bf16.mxu0 0
        %1435 = vmatmul.mubr.bf16.gmra.mrb[0].mxu0 %v1301
        %v1436 = vpop.f32.mrb[0].mxu0
        %v1437 = vadd.f32 0.0, %v1436
        %v1438 = vpop.f32.mrb[0].mxu0
        %v1439 = vpop.f32.mrb[0].mxu0
        %v1440 = vadd.f32 0.0, %v1439
        %v1441 = vpop.f32.mrb[0].mxu0
        %1442 = vmatprep.mubr.bf16.mxu0 0
        %1443 = vmatmul.mubr.bf16.gmra.mrb[0].mxu0 %v1302
        %v1444 = vpop.f32.mrb[0].mxu0
        %v1445 = vadd.f32 0.0, %v1444
        %v1446 = vpop.f32.mrb[0].mxu0
        %v1447 = vpop.f32.mrb[0].mxu0
        %v1448 = vadd.f32 0.0, %v1447
        %v1449 = vpop.f32.mrb[0].mxu0
        %1450 = vmatprep.mubr.bf16.mxu0 0
        %1451 = vmatmul.mubr.bf16.gmra.mrb[0].mxu0 %v1303
        %v1452 = vpop.f32.mrb[0].mxu0
        %v1453 = vadd.f32 0.0, %v1452
        %v1454 = vpop.f32.mrb[0].mxu0
        %v1455 = vpop.f32.mrb[0].mxu0
        %v1456 = vadd.f32 0.0, %v1455
        %v1457 = vpop.f32.mrb[0].mxu0
        %1458 = vmatprep.mubr.bf16.mxu0 0
        %1459 = vmatmul.mubr.bf16.gmra.mrb[0].mxu0 %v1304
        %v1460 = vpop.f32.mrb[0].mxu0
        %v1461 = vadd.f32 0.0, %v1460
        %v1462 = vpop.f32.mrb[0].mxu0
        %v1463 = vpop.f32.mrb[0].mxu0
        %v1464 = vadd.f32 0.0, %v1463
        %v1465 = vpop.f32.mrb[0].mxu0
        %1466 = vmatprep.mubr.bf16.mxu0 0
        %1467 = vmatmul.mubr.bf16.gmra.mrb[0].mxu0 %v1305
        %v1468 = vpop.f32.mrb[0].mxu0
        %v1469 = vadd.f32 0.0, %v1468
        %v1470 = vpop.f32.mrb[0].mxu0
        %v1471 = vpop.f32.mrb[0].mxu0
        %v1472 = vadd.f32 0.0, %v1471
        %v1473 = vpop.f32.mrb[0].mxu0
        %1474 = vmatprep.mubr.bf16.mxu0 0
        %1475 = vmatmul.mubr.bf16.gmra.mrb[0].mxu0 %v1306
        %v1476 = vpop.f32.mrb[0].mxu0
        %v1477 = vadd.f32 0.0, %v1476
        %v1478 = vpop.f32.mrb[0].mxu0
        %v1479 = vpop.f32.mrb[0].mxu0
        %v1480 = vadd.f32 0.0, %v1479
        %v1481 = vpop.f32.mrb[0].mxu0
        %1482 = vmatprep.mubr.bf16.mxu0 0
        %1483 = vmatmul.mubr.bf16.gmra.mrb[0].mxu0 %v1307
        %v1484 = vpop.f32.mrb[0].mxu0
        %v1485 = vadd.f32 0.0, %v1484
        %v1486 = vpop.f32.mrb[0].mxu0
        %v1487 = vpop.f32.mrb[0].mxu0
        %v1488 = vadd.f32 0.0, %v1487
        %v1489 = vpop.f32.mrb[0].mxu0
        %1490 = vmatprep.mubr.bf16.mxu0 0
        %1491 = vmatmul.mubr.bf16.gmra.mrb[0].mxu0 %v1308
        %v1492 = vpop.f32.mrb[0].mxu0
        %v1493 = vadd.f32 0.0, %v1492
        %v1494 = vpop.f32.mrb[0].mxu0
        %v1495 = vpop.f32.mrb[0].mxu0
        %v1496 = vadd.f32 0.0, %v1495
        %v1497 = vpop.f32.mrb[0].mxu0
        %1498 = vmatprep.mubr.bf16.mxu0 0
        %1499 = vmatmul.mubr.bf16.gmra.mrb[0].mxu0 %v1309
        %v1500 = vpop.f32.mrb[0].mxu0
        %v1501 = vadd.f32 0.0, %v1500
        %v1502 = vpop.f32.mrb[0].mxu0
        %v1503 = vpop.f32.mrb[0].mxu0
        %v1504 = vadd.f32 0.0, %v1503
        %v1505 = vpop.f32.mrb[0].mxu0
        %1506 = vmatprep.mubr.bf16.mxu0 0
        %1507 = vmatmul.mubr.bf16.gmra.mrb[0].mxu0 %v1310
        %v1508 = vpop.f32.mrb[0].mxu0
        %v1509 = vadd.f32 0.0, %v1508
        %v1510 = vpop.f32.mrb[0].mxu0
        %v1511 = vpop.f32.mrb[0].mxu0
        %v1512 = vadd.f32 0.0, %v1511
        %v1513 = vpop.f32.mrb[0].mxu0
        %1514 = vmatprep.mubr.bf16.mxu0 0
        %1515 = vmatmul.mubr.bf16.gmra.mrb[0].mxu0 %v1311
        %v1516 = vpop.f32.mrb[0].mxu0
        %v1517 = vadd.f32 0.0, %v1516
        %v1518 = vpop.f32.mrb[0].mxu0
        %v1519 = vpop.f32.mrb[0].mxu0
        %v1520 = vadd.f32 0.0, %v1519
        %v1521 = vpop.f32.mrb[0].mxu0
        %1522 = vmatprep.mubr.bf16.mxu0 0
        %1523 = vmatmul.mubr.bf16.gmra.mrb[0].mxu0 %v1312
        %v1524 = vpop.f32.mrb[0].mxu0
        %v1525 = vadd.f32 0.0, %v1524
        %v1526 = vpop.f32.mrb[0].mxu0
        %v1527 = vpop.f32.mrb[0].mxu0
        %v1528 = vadd.f32 0.0, %v1527
        %v1529 = vpop.f32.mrb[0].mxu0
        %1530 = vmatprep.mubr.bf16.mxu0 0
        %1531 = vmatmul.mubr.bf16.gmra.mrb[0].mxu0 %v1313
        %v1532 = vpop.f32.mrb[0].mxu0
        %v1533 = vadd.f32 0.0, %v1532
        %v1534 = vpop.f32.mrb[0].mxu0
        %v1535 = vpop.f32.mrb[0].mxu0
        %v1536 = vadd.f32 0.0, %v1535
        %v1537 = vpop.f32.mrb[0].mxu0
        %1538 = vdwg.mxu0
        %v1539 = vadd.f32 %v1234, %v1413
        %v1540 = vadd.f32 %v1235, %v1416
        %v1541 = vadd.f32 %v1236, %v1421
        %v1542 = vadd.f32 %v1237, %v1424
        %v1543 = vadd.f32 %v1238, %v1429
        %v1544 = vadd.f32 %v1239, %v1432
        %v1545 = vadd.f32 %v1240, %v1437
        %v1546 = vadd.f32 %v1241, %v1440
        %v1547 = vadd.f32 %v1242, %v1445
        %v1548 = vadd.f32 %v1243, %v1448
        %v1549 = vadd.f32 %v1244, %v1453
        %v1550 = vadd.f32 %v1245, %v1456
        %v1551 = vadd.f32 %v1246, %v1461
        %v1552 = vadd.f32 %v1247, %v1464
        %v1553 = vadd.f32 %v1248, %v1469
        %v1554 = vadd.f32 %v1249, %v1472
        %v1555 = vadd.f32 %v1250, %v1477
        %v1556 = vadd.f32 %v1251, %v1480
        %v1557 = vadd.f32 %v1252, %v1485
        %v1558 = vadd.f32 %v1253, %v1488
        %v1559 = vadd.f32 %v1254, %v1493
        %v1560 = vadd.f32 %v1255, %v1496
        %v1561 = vadd.f32 %v1256, %v1501
        %v1562 = vadd.f32 %v1257, %v1504
        %v1563 = vadd.f32 %v1258, %v1509
        %v1564 = vadd.f32 %v1259, %v1512
        %v1565 = vadd.f32 %v1260, %v1517
        %v1566 = vadd.f32 %v1261, %v1520
        %v1567 = vadd.f32 %v1262, %v1525
        %v1568 = vadd.f32 %v1263, %v1528
        %v1569 = vadd.f32 %v1264, %v1533
        %v1570 = vadd.f32 %v1265, %v1536
        %v1571 = vld [vmem:[%s381 + $0x1] sm:$0xff]
        %v1572 = vld [vmem:[%s381 + $0x9] sm:$0xff]
        %v1573 = vld [vmem:[%s381 + $0x19] sm:$0xff]
        %v1574 = vld [vmem:[%s381 + $0x21] sm:$0xff]
        %v1575 = vld [vmem:[%s381 + $0x31] sm:$0xff]
        %v1576 = vld [vmem:[%s381 + $0x39] sm:$0xff]
        %v1577 = vld [vmem:[%s381 + $0x49] sm:$0xff]
        %v1578 = vld [vmem:[%s381 + $0x51] sm:$0xff]
        %v1579 = vld [vmem:[%s381 + $0x61] sm:$0xff]
        %v1580 = vld [vmem:[%s381 + $0x69] sm:$0xff]
        %v1581 = vld [vmem:[%s381 + $0x79] sm:$0xff]
        %v1582 = vld [vmem:[%s381 + $0x81] sm:$0xff]
        %v1583 = vld [vmem:[%s381 + $0x91] sm:$0xff]
        %v1584 = vld [vmem:[%s381 + $0x99] sm:$0xff]
        %v1585 = vld [vmem:[%s381 + $0xa9] sm:$0xff]
        %v1586 = vld [vmem:[%s381 + $0xb1] sm:$0xff]
        %v1587 = vld [vmem:[%s381 + $0xc1] sm:$0xff]
        %v1588 = vld [vmem:[%s381 + $0xc9] sm:$0xff]
        %v1589 = vld [vmem:[%s381 + $0xd9] sm:$0xff]
        %v1590 = vld [vmem:[%s381 + $0xe1] sm:$0xff]
        %v1591 = vld [vmem:[%s381 + $0xf1] sm:$0xff]
        %v1592 = vld [vmem:[%s381 + $0xf9] sm:$0xff]
        %v1593 = vld [vmem:[%s381 + $0x109] sm:$0xff]
        %v1594 = vld [vmem:[%s381 + $0x111] sm:$0xff]
        %v1595 = vld [vmem:[%s381 + $0x121] sm:$0xff]
        %v1596 = vld [vmem:[%s381 + $0x129] sm:$0xff]
        %v1597 = vld [vmem:[%s381 + $0x139] sm:$0xff]
        %v1598 = vld [vmem:[%s381 + $0x141] sm:$0xff]
        %v1599 = vld [vmem:[%s381 + $0x151] sm:$0xff]
        %v1600 = vld [vmem:[%s381 + $0x159] sm:$0xff]
        %v1601 = vld [vmem:[%s381 + $0x169] sm:$0xff]
        %v1602 = vld [vmem:[%s381 + $0x171] sm:$0xff]
        %v1603 = vpack.c.bf16 %v1572, %v1571
        %v1604 = vpack.c.bf16 %v1574, %v1573
        %v1605 = vpack.c.bf16 %v1576, %v1575
        %v1606 = vpack.c.bf16 %v1578, %v1577
        %v1607 = vpack.c.bf16 %v1580, %v1579
        %v1608 = vpack.c.bf16 %v1582, %v1581
        %v1609 = vpack.c.bf16 %v1584, %v1583
        %v1610 = vpack.c.bf16 %v1586, %v1585
        %v1611 = vpack.c.bf16 %v1588, %v1587
        %v1612 = vpack.c.bf16 %v1590, %v1589
        %v1613 = vpack.c.bf16 %v1592, %v1591
        %v1614 = vpack.c.bf16 %v1594, %v1593
        %v1615 = vpack.c.bf16 %v1596, %v1595
        %v1616 = vpack.c.bf16 %v1598, %v1597
        %v1617 = vpack.c.bf16 %v1600, %v1599
        %v1618 = vpack.c.bf16 %v1602, %v1601
        %v1619 = vld [vmem:[%s1 + $0x100] sm:$0xf]
        %v1620 = vld [vmem:[%s1 + $0x104] sm:$0xf]
        %v1621 = vld [vmem:[%s1 + $0x108] sm:$0xf]
        %v1622 = vld [vmem:[%s1 + $0x10c] sm:$0xf]
        %v1623 = vld [vmem:[%s1 + $0x110] sm:$0xf]
        %v1624 = vld [vmem:[%s1 + $0x114] sm:$0xf]
        %v1625 = vld [vmem:[%s1 + $0x118] sm:$0xf]
        %v1626 = vld [vmem:[%s1 + $0x11c] sm:$0xf]
        %v1627 = vld [vmem:[%s1 + $0x120] sm:$0xf]
        %v1628 = vld [vmem:[%s1 + $0x124] sm:$0xf]
        %v1629 = vld [vmem:[%s1 + $0x128] sm:$0xf]
        %v1630 = vld [vmem:[%s1 + $0x12c] sm:$0xf]
        %v1631 = vld [vmem:[%s1 + $0x130] sm:$0xf]
        %v1632 = vld [vmem:[%s1 + $0x134] sm:$0xf]
        %v1633 = vld [vmem:[%s1 + $0x138] sm:$0xf]
        %v1634 = vld [vmem:[%s1 + $0x13c] sm:$0xf]
        %v1651 = vunpack.c.l.b16 %v1619
        %v1652 = vunpack.c.l.b16 %v1620
        %v1653 = vunpack.c.l.b16 %v1621
        %v1654 = vunpack.c.l.b16 %v1622
        %v1655 = vunpack.c.l.b16 %v1623
        %v1656 = vunpack.c.l.b16 %v1624
        %v1657 = vunpack.c.l.b16 %v1625
        %v1658 = vunpack.c.l.b16 %v1626
        %v1659 = vunpack.c.l.b16 %v1627
        %v1660 = vunpack.c.l.b16 %v1628
        %v1661 = vunpack.c.l.b16 %v1629
        %v1662 = vunpack.c.l.b16 %v1630
        %v1663 = vunpack.c.l.b16 %v1631
        %v1664 = vunpack.c.l.b16 %v1632
        %v1665 = vunpack.c.l.b16 %v1633
        %v1666 = vunpack.c.l.b16 %v1634
        %v1667 = vpack.c.b16 %v1652, %v1651
        %v1668 = vpack.c.b16 %v1654, %v1653
        %v1669 = vpack.c.b16 %v1656, %v1655
        %v1670 = vpack.c.b16 %v1658, %v1657
        %v1671 = vpack.c.b16 %v1660, %v1659
        %v1672 = vpack.c.b16 %v1662, %v1661
        %v1673 = vpack.c.b16 %v1664, %v1663
        %v1674 = vpack.c.b16 %v1666, %v1665
        %1683 = vmatprep.subr.bf16.mxu0 0
        %1684 = vmatpush1.bf16.msra.mxu0 %v1667
        %1685 = vmatprep.subr.bf16.mxu0 0
        %1686 = vmatpush1.bf16.msra.mxu0 %v1668
        %1687 = vmatprep.subr.bf16.mxu0 0
        %1688 = vmatpush1.bf16.msra.mxu0 %v1669
        %1689 = vmatprep.subr.bf16.mxu0 0
        %1690 = vmatpush1.bf16.msra.mxu0 %v1670
        %1691 = vmatprep.subr.bf16.mxu0 0
        %1692 = vmatpush1.bf16.msra.mxu0 %v1671
        %1693 = vmatprep.subr.bf16.mxu0 0
        %1694 = vmatpush1.bf16.msra.mxu0 %v1672
        %1695 = vmatprep.subr.bf16.mxu0 0
        %1696 = vmatpush1.bf16.msra.mxu0 %v1673
        %1697 = vmatprep.subr.bf16.mxu0 0
        %1698 = vmatpush1.bf16.msra.mxu0 %v1674
        %1699 = vmatprep.subr.bf16.mxu0 0
        %1700 = vmatpush1.bf16.msra.mxu0 0
        %1701 = vmatprep.subr.bf16.mxu0 0
        %1702 = vmatpush1.bf16.msra.mxu0 0
        %1703 = vmatprep.subr.bf16.mxu0 0
        %1704 = vmatpush1.bf16.msra.mxu0 0
        %1705 = vmatprep.subr.bf16.mxu0 0
        %1706 = vmatpush1.bf16.msra.mxu0 0
        %1707 = vmatprep.subr.bf16.mxu0 0
        %1708 = vmatpush1.bf16.msra.mxu0 0
        %1709 = vmatprep.subr.bf16.mxu0 0
        %1710 = vmatpush1.bf16.msra.mxu0 0
        %1711 = vmatprep.subr.bf16.mxu0 0
        %1712 = vmatpush1.bf16.msra.mxu0 0
        %1713 = vmatprep.subr.bf16.mxu0 0
        %1714 = vmatpush1.bf16.msra.mxu0 0
        %1715 = vmatprep.mubr.bf16.mxu0 0
        %1716 = vmatmul.mubr.bf16.gmra.mrb[0].mxu0 %v1603
        %v1717 = vpop.f32.mrb[0].mxu0
        %v1718 = vadd.f32 0.0, %v1717
        %v1719 = vpop.f32.mrb[0].mxu0
        %v1720 = vpop.f32.mrb[0].mxu0
        %v1721 = vadd.f32 0.0, %v1720
        %v1722 = vpop.f32.mrb[0].mxu0
        %1723 = vmatprep.mubr.bf16.mxu0 0
        %1724 = vmatmul.mubr.bf16.gmra.mrb[0].mxu0 %v1604
        %v1725 = vpop.f32.mrb[0].mxu0
        %v1726 = vadd.f32 0.0, %v1725
        %v1727 = vpop.f32.mrb[0].mxu0
        %v1728 = vpop.f32.mrb[0].mxu0
        %v1729 = vadd.f32 0.0, %v1728
        %v1730 = vpop.f32.mrb[0].mxu0
        %1731 = vmatprep.mubr.bf16.mxu0 0
        %1732 = vmatmul.mubr.bf16.gmra.mrb[0].mxu0 %v1605
        %v1733 = vpop.f32.mrb[0].mxu0
        %v1734 = vadd.f32 0.0, %v1733
        %v1735 = vpop.f32.mrb[0].mxu0
        %v1736 = vpop.f32.mrb[0].mxu0
        %v1737 = vadd.f32 0.0, %v1736
        %v1738 = vpop.f32.mrb[0].mxu0
        %1739 = vmatprep.mubr.bf16.mxu0 0
        %1740 = vmatmul.mubr.bf16.gmra.mrb[0].mxu0 %v1606
        %v1741 = vpop.f32.mrb[0].mxu0
        %v1742 = vadd.f32 0.0, %v1741
        %v1743 = vpop.f32.mrb[0].mxu0
        %v1744 = vpop.f32.mrb[0].mxu0
        %v1745 = vadd.f32 0.0, %v1744
        %v1746 = vpop.f32.mrb[0].mxu0
        %1747 = vmatprep.mubr.bf16.mxu0 0
        %1748 = vmatmul.mubr.bf16.gmra.mrb[0].mxu0 %v1607
        %v1749 = vpop.f32.mrb[0].mxu0
        %v1750 = vadd.f32 0.0, %v1749
        %v1751 = vpop.f32.mrb[0].mxu0
        %v1752 = vpop.f32.mrb[0].mxu0
        %v1753 = vadd.f32 0.0, %v1752
        %v1754 = vpop.f32.mrb[0].mxu0
        %1755 = vmatprep.mubr.bf16.mxu0 0
        %1756 = vmatmul.mubr.bf16.gmra.mrb[0].mxu0 %v1608
        %v1757 = vpop.f32.mrb[0].mxu0
        %v1758 = vadd.f32 0.0, %v1757
        %v1759 = vpop.f32.mrb[0].mxu0
        %v1760 = vpop.f32.mrb[0].mxu0
        %v1761 = vadd.f32 0.0, %v1760
        %v1762 = vpop.f32.mrb[0].mxu0
        %1763 = vmatprep.mubr.bf16.mxu0 0
        %1764 = vmatmul.mubr.bf16.gmra.mrb[0].mxu0 %v1609
        %v1765 = vpop.f32.mrb[0].mxu0
        %v1766 = vadd.f32 0.0, %v1765
        %v1767 = vpop.f32.mrb[0].mxu0
        %v1768 = vpop.f32.mrb[0].mxu0
        %v1769 = vadd.f32 0.0, %v1768
        %v1770 = vpop.f32.mrb[0].mxu0
        %1771 = vmatprep.mubr.bf16.mxu0 0
        %1772 = vmatmul.mubr.bf16.gmra.mrb[0].mxu0 %v1610
        %v1773 = vpop.f32.mrb[0].mxu0
        %v1774 = vadd.f32 0.0, %v1773
        %v1775 = vpop.f32.mrb[0].mxu0
        %v1776 = vpop.f32.mrb[0].mxu0
        %v1777 = vadd.f32 0.0, %v1776
        %v1778 = vpop.f32.mrb[0].mxu0
        %1779 = vmatprep.mubr.bf16.mxu0 0
        %1780 = vmatmul.mubr.bf16.gmra.mrb[0].mxu0 %v1611
        %v1781 = vpop.f32.mrb[0].mxu0
        %v1782 = vadd.f32 0.0, %v1781
        %v1783 = vpop.f32.mrb[0].mxu0
        %v1784 = vpop.f32.mrb[0].mxu0
        %v1785 = vadd.f32 0.0, %v1784
        %v1786 = vpop.f32.mrb[0].mxu0
        %1787 = vmatprep.mubr.bf16.mxu0 0
        %1788 = vmatmul.mubr.bf16.gmra.mrb[0].mxu0 %v1612
        %v1789 = vpop.f32.mrb[0].mxu0
        %v1790 = vadd.f32 0.0, %v1789
        %v1791 = vpop.f32.mrb[0].mxu0
        %v1792 = vpop.f32.mrb[0].mxu0
        %v1793 = vadd.f32 0.0, %v1792
        %v1794 = vpop.f32.mrb[0].mxu0
        %1795 = vmatprep.mubr.bf16.mxu0 0
        %1796 = vmatmul.mubr.bf16.gmra.mrb[0].mxu0 %v1613
        %v1797 = vpop.f32.mrb[0].mxu0
        %v1798 = vadd.f32 0.0, %v1797
        %v1799 = vpop.f32.mrb[0].mxu0
        %v1800 = vpop.f32.mrb[0].mxu0
        %v1801 = vadd.f32 0.0, %v1800
        %v1802 = vpop.f32.mrb[0].mxu0
        %1803 = vmatprep.mubr.bf16.mxu0 0
        %1804 = vmatmul.mubr.bf16.gmra.mrb[0].mxu0 %v1614
        %v1805 = vpop.f32.mrb[0].mxu0
        %v1806 = vadd.f32 0.0, %v1805
        %v1807 = vpop.f32.mrb[0].mxu0
        %v1808 = vpop.f32.mrb[0].mxu0
        %v1809 = vadd.f32 0.0, %v1808
        %v1810 = vpop.f32.mrb[0].mxu0
        %1811 = vmatprep.mubr.bf16.mxu0 0
        %1812 = vmatmul.mubr.bf16.gmra.mrb[0].mxu0 %v1615
        %v1813 = vpop.f32.mrb[0].mxu0
        %v1814 = vadd.f32 0.0, %v1813
        %v1815 = vpop.f32.mrb[0].mxu0
        %v1816 = vpop.f32.mrb[0].mxu0
        %v1817 = vadd.f32 0.0, %v1816
        %v1818 = vpop.f32.mrb[0].mxu0
        %1819 = vmatprep.mubr.bf16.mxu0 0
        %1820 = vmatmul.mubr.bf16.gmra.mrb[0].mxu0 %v1616
        %v1821 = vpop.f32.mrb[0].mxu0
        %v1822 = vadd.f32 0.0, %v1821
        %v1823 = vpop.f32.mrb[0].mxu0
        %v1824 = vpop.f32.mrb[0].mxu0
        %v1825 = vadd.f32 0.0, %v1824
        %v1826 = vpop.f32.mrb[0].mxu0
        %1827 = vmatprep.mubr.bf16.mxu0 0
        %1828 = vmatmul.mubr.bf16.gmra.mrb[0].mxu0 %v1617
        %v1829 = vpop.f32.mrb[0].mxu0
        %v1830 = vadd.f32 0.0, %v1829
        %v1831 = vpop.f32.mrb[0].mxu0
        %v1832 = vpop.f32.mrb[0].mxu0
        %v1833 = vadd.f32 0.0, %v1832
        %v1834 = vpop.f32.mrb[0].mxu0
        %1835 = vmatprep.mubr.bf16.mxu0 0
        %1836 = vmatmul.mubr.bf16.gmra.mrb[0].mxu0 %v1618
        %v1837 = vpop.f32.mrb[0].mxu0
        %v1838 = vadd.f32 0.0, %v1837
        %v1839 = vpop.f32.mrb[0].mxu0
        %v1840 = vpop.f32.mrb[0].mxu0
        %v1841 = vadd.f32 0.0, %v1840
        %v1842 = vpop.f32.mrb[0].mxu0
        %1843 = vdwg.mxu0
        %v1844 = vadd.f32 %v1539, %v1718
        %v1845 = vadd.f32 %v1540, %v1721
        %v1846 = vadd.f32 %v1541, %v1726
        %v1847 = vadd.f32 %v1542, %v1729
        %v1848 = vadd.f32 %v1543, %v1734
        %v1849 = vadd.f32 %v1544, %v1737
        %v1850 = vadd.f32 %v1545, %v1742
        %v1851 = vadd.f32 %v1546, %v1745
        %v1852 = vadd.f32 %v1547, %v1750
        %v1853 = vadd.f32 %v1548, %v1753
        %v1854 = vadd.f32 %v1549, %v1758
        %v1855 = vadd.f32 %v1550, %v1761
        %v1856 = vadd.f32 %v1551, %v1766
        %v1857 = vadd.f32 %v1552, %v1769
        %v1858 = vadd.f32 %v1553, %v1774
        %v1859 = vadd.f32 %v1554, %v1777
        %v1860 = vadd.f32 %v1555, %v1782
        %v1861 = vadd.f32 %v1556, %v1785
        %v1862 = vadd.f32 %v1557, %v1790
        %v1863 = vadd.f32 %v1558, %v1793
        %v1864 = vadd.f32 %v1559, %v1798
        %v1865 = vadd.f32 %v1560, %v1801
        %v1866 = vadd.f32 %v1561, %v1806
        %v1867 = vadd.f32 %v1562, %v1809
        %v1868 = vadd.f32 %v1563, %v1814
        %v1869 = vadd.f32 %v1564, %v1817
        %v1870 = vadd.f32 %v1565, %v1822
        %v1871 = vadd.f32 %v1566, %v1825
        %v1872 = vadd.f32 %v1567, %v1830
        %v1873 = vadd.f32 %v1568, %v1833
        %v1874 = vadd.f32 %v1569, %v1838
        %v1875 = vadd.f32 %v1570, %v1841
        %v1876 = vld [vmem:[%s381 + $0x2] sm:$0xff]
        %v1877 = vld [vmem:[%s381 + $0xa] sm:$0xff]
        %v1878 = vld [vmem:[%s381 + $0x1a] sm:$0xff]
        %v1879 = vld [vmem:[%s381 + $0x22] sm:$0xff]
        %v1880 = vld [vmem:[%s381 + $0x32] sm:$0xff]
        %v1881 = vld [vmem:[%s381 + $0x3a] sm:$0xff]
        %v1882 = vld [vmem:[%s381 + $0x4a] sm:$0xff]
        %v1883 = vld [vmem:[%s381 + $0x52] sm:$0xff]
        %v1884 = vld [vmem:[%s381 + $0x62] sm:$0xff]
        %v1885 = vld [vmem:[%s381 + $0x6a] sm:$0xff]
        %v1886 = vld [vmem:[%s381 + $0x7a] sm:$0xff]
        %v1887 = vld [vmem:[%s381 + $0x82] sm:$0xff]
        %v1888 = vld [vmem:[%s381 + $0x92] sm:$0xff]
        %v1889 = vld [vmem:[%s381 + $0x9a] sm:$0xff]
        %v1890 = vld [vmem:[%s381 + $0xaa] sm:$0xff]
        %v1891 = vld [vmem:[%s381 + $0xb2] sm:$0xff]
        %v1892 = vld [vmem:[%s381 + $0xc2] sm:$0xff]
        %v1893 = vld [vmem:[%s381 + $0xca] sm:$0xff]
        %v1894 = vld [vmem:[%s381 + $0xda] sm:$0xff]
        %v1895 = vld [vmem:[%s381 + $0xe2] sm:$0xff]
        %v1896 = vld [vmem:[%s381 + $0xf2] sm:$0xff]
        %v1897 = vld [vmem:[%s381 + $0xfa] sm:$0xff]
        %v1898 = vld [vmem:[%s381 + $0x10a] sm:$0xff]
        %v1899 = vld [vmem:[%s381 + $0x112] sm:$0xff]
        %v1900 = vld [vmem:[%s381 + $0x122] sm:$0xff]
        %v1901 = vld [vmem:[%s381 + $0x12a] sm:$0xff]
        %v1902 = vld [vmem:[%s381 + $0x13a] sm:$0xff]
        %v1903 = vld [vmem:[%s381 + $0x142] sm:$0xff]
        %v1904 = vld [vmem:[%s381 + $0x152] sm:$0xff]
        %v1905 = vld [vmem:[%s381 + $0x15a] sm:$0xff]
        %v1906 = vld [vmem:[%s381 + $0x16a] sm:$0xff]
        %v1907 = vld [vmem:[%s381 + $0x172] sm:$0xff]
        %v1908 = vpack.c.bf16 %v1877, %v1876
        %v1909 = vpack.c.bf16 %v1879, %v1878
        %v1910 = vpack.c.bf16 %v1881, %v1880
        %v1911 = vpack.c.bf16 %v1883, %v1882
        %v1912 = vpack.c.bf16 %v1885, %v1884
        %v1913 = vpack.c.bf16 %v1887, %v1886
        %v1914 = vpack.c.bf16 %v1889, %v1888
        %v1915 = vpack.c.bf16 %v1891, %v1890
        %v1916 = vpack.c.bf16 %v1893, %v1892
        %v1917 = vpack.c.bf16 %v1895, %v1894
        %v1918 = vpack.c.bf16 %v1897, %v1896
        %v1919 = vpack.c.bf16 %v1899, %v1898
        %v1920 = vpack.c.bf16 %v1901, %v1900
        %v1921 = vpack.c.bf16 %v1903, %v1902
        %v1922 = vpack.c.bf16 %v1905, %v1904
        %v1923 = vpack.c.bf16 %v1907, %v1906
        %v1924 = vld [vmem:[%s1 + $0x140] sm:$0xf]
        %v1925 = vld [vmem:[%s1 + $0x144] sm:$0xf]
        %v1926 = vld [vmem:[%s1 + $0x148] sm:$0xf]
        %v1927 = vld [vmem:[%s1 + $0x14c] sm:$0xf]
        %v1928 = vld [vmem:[%s1 + $0x150] sm:$0xf]
        %v1929 = vld [vmem:[%s1 + $0x154] sm:$0xf]
        %v1930 = vld [vmem:[%s1 + $0x158] sm:$0xf]
        %v1931 = vld [vmem:[%s1 + $0x15c] sm:$0xf]
        %v1932 = vld [vmem:[%s1 + $0x160] sm:$0xf]
        %v1933 = vld [vmem:[%s1 + $0x164] sm:$0xf]
        %v1934 = vld [vmem:[%s1 + $0x168] sm:$0xf]
        %v1935 = vld [vmem:[%s1 + $0x16c] sm:$0xf]
        %v1936 = vld [vmem:[%s1 + $0x170] sm:$0xf]
        %v1937 = vld [vmem:[%s1 + $0x174] sm:$0xf]
        %v1938 = vld [vmem:[%s1 + $0x178] sm:$0xf]
        %v1939 = vld [vmem:[%s1 + $0x17c] sm:$0xf]
        %v1956 = vunpack.c.l.b16 %v1924
        %v1957 = vunpack.c.l.b16 %v1925
        %v1958 = vunpack.c.l.b16 %v1926
        %v1959 = vunpack.c.l.b16 %v1927
        %v1960 = vunpack.c.l.b16 %v1928
        %v1961 = vunpack.c.l.b16 %v1929
        %v1962 = vunpack.c.l.b16 %v1930
        %v1963 = vunpack.c.l.b16 %v1931
        %v1964 = vunpack.c.l.b16 %v1932
        %v1965 = vunpack.c.l.b16 %v1933
        %v1966 = vunpack.c.l.b16 %v1934
        %v1967 = vunpack.c.l.b16 %v1935
        %v1968 = vunpack.c.l.b16 %v1936
        %v1969 = vunpack.c.l.b16 %v1937
        %v1970 = vunpack.c.l.b16 %v1938
        %v1971 = vunpack.c.l.b16 %v1939
        %v1972 = vpack.c.b16 %v1957, %v1956
        %v1973 = vpack.c.b16 %v1959, %v1958
        %v1974 = vpack.c.b16 %v1961, %v1960
        %v1975 = vpack.c.b16 %v1963, %v1962
        %v1976 = vpack.c.b16 %v1965, %v1964
        %v1977 = vpack.c.b16 %v1967, %v1966
        %v1978 = vpack.c.b16 %v1969, %v1968
        %v1979 = vpack.c.b16 %v1971, %v1970
        %1988 = vmatprep.subr.bf16.mxu0 0
        %1989 = vmatpush1.bf16.msra.mxu0 %v1972
        %1990 = vmatprep.subr.bf16.mxu0 0
        %1991 = vmatpush1.bf16.msra.mxu0 %v1973
        %1992 = vmatprep.subr.bf16.mxu0 0
        %1993 = vmatpush1.bf16.msra.mxu0 %v1974
        %1994 = vmatprep.subr.bf16.mxu0 0
        %1995 = vmatpush1.bf16.msra.mxu0 %v1975
        %1996 = vmatprep.subr.bf16.mxu0 0
        %1997 = vmatpush1.bf16.msra.mxu0 %v1976
        %1998 = vmatprep.subr.bf16.mxu0 0
        %1999 = vmatpush1.bf16.msra.mxu0 %v1977
        %2000 = vmatprep.subr.bf16.mxu0 0
        %2001 = vmatpush1.bf16.msra.mxu0 %v1978
        %2002 = vmatprep.subr.bf16.mxu0 0
        %2003 = vmatpush1.bf16.msra.mxu0 %v1979
        %2004 = vmatprep.subr.bf16.mxu0 0
        %2005 = vmatpush1.bf16.msra.mxu0 0
        %2006 = vmatprep.subr.bf16.mxu0 0
        %2007 = vmatpush1.bf16.msra.mxu0 0
        %2008 = vmatprep.subr.bf16.mxu0 0
        %2009 = vmatpush1.bf16.msra.mxu0 0
        %2010 = vmatprep.subr.bf16.mxu0 0
        %2011 = vmatpush1.bf16.msra.mxu0 0
        %2012 = vmatprep.subr.bf16.mxu0 0
        %2013 = vmatpush1.bf16.msra.mxu0 0
        %2014 = vmatprep.subr.bf16.mxu0 0
        %2015 = vmatpush1.bf16.msra.mxu0 0
        %2016 = vmatprep.subr.bf16.mxu0 0
        %2017 = vmatpush1.bf16.msra.mxu0 0
        %2018 = vmatprep.subr.bf16.mxu0 0
        %2019 = vmatpush1.bf16.msra.mxu0 0
        %2020 = vmatprep.mubr.bf16.mxu0 0
        %2021 = vmatmul.mubr.bf16.gmra.mrb[0].mxu0 %v1908
        %v2022 = vpop.f32.mrb[0].mxu0
        %v2023 = vadd.f32 0.0, %v2022
        %v2024 = vpop.f32.mrb[0].mxu0
        %v2025 = vpop.f32.mrb[0].mxu0
        %v2026 = vadd.f32 0.0, %v2025
        %v2027 = vpop.f32.mrb[0].mxu0
        %2028 = vmatprep.mubr.bf16.mxu0 0
        %2029 = vmatmul.mubr.bf16.gmra.mrb[0].mxu0 %v1909
        %v2030 = vpop.f32.mrb[0].mxu0
        %v2031 = vadd.f32 0.0, %v2030
        %v2032 = vpop.f32.mrb[0].mxu0
        %v2033 = vpop.f32.mrb[0].mxu0
        %v2034 = vadd.f32 0.0, %v2033
        %v2035 = vpop.f32.mrb[0].mxu0
        %2036 = vmatprep.mubr.bf16.mxu0 0
        %2037 = vmatmul.mubr.bf16.gmra.mrb[0].mxu0 %v1910
        %v2038 = vpop.f32.mrb[0].mxu0
        %v2039 = vadd.f32 0.0, %v2038
        %v2040 = vpop.f32.mrb[0].mxu0
        %v2041 = vpop.f32.mrb[0].mxu0
        %v2042 = vadd.f32 0.0, %v2041
        %v2043 = vpop.f32.mrb[0].mxu0
        %2044 = vmatprep.mubr.bf16.mxu0 0
        %2045 = vmatmul.mubr.bf16.gmra.mrb[0].mxu0 %v1911
        %v2046 = vpop.f32.mrb[0].mxu0
        %v2047 = vadd.f32 0.0, %v2046
        %v2048 = vpop.f32.mrb[0].mxu0
        %v2049 = vpop.f32.mrb[0].mxu0
        %v2050 = vadd.f32 0.0, %v2049
        %v2051 = vpop.f32.mrb[0].mxu0
        %2052 = vmatprep.mubr.bf16.mxu0 0
        %2053 = vmatmul.mubr.bf16.gmra.mrb[0].mxu0 %v1912
        %v2054 = vpop.f32.mrb[0].mxu0
        %v2055 = vadd.f32 0.0, %v2054
        %v2056 = vpop.f32.mrb[0].mxu0
        %v2057 = vpop.f32.mrb[0].mxu0
        %v2058 = vadd.f32 0.0, %v2057
        %v2059 = vpop.f32.mrb[0].mxu0
        %2060 = vmatprep.mubr.bf16.mxu0 0
        %2061 = vmatmul.mubr.bf16.gmra.mrb[0].mxu0 %v1913
        %v2062 = vpop.f32.mrb[0].mxu0
        %v2063 = vadd.f32 0.0, %v2062
        %v2064 = vpop.f32.mrb[0].mxu0
        %v2065 = vpop.f32.mrb[0].mxu0
        %v2066 = vadd.f32 0.0, %v2065
        %v2067 = vpop.f32.mrb[0].mxu0
        %2068 = vmatprep.mubr.bf16.mxu0 0
        %2069 = vmatmul.mubr.bf16.gmra.mrb[0].mxu0 %v1914
        %v2070 = vpop.f32.mrb[0].mxu0
        %v2071 = vadd.f32 0.0, %v2070
        %v2072 = vpop.f32.mrb[0].mxu0
        %v2073 = vpop.f32.mrb[0].mxu0
        %v2074 = vadd.f32 0.0, %v2073
        %v2075 = vpop.f32.mrb[0].mxu0
        %2076 = vmatprep.mubr.bf16.mxu0 0
        %2077 = vmatmul.mubr.bf16.gmra.mrb[0].mxu0 %v1915
        %v2078 = vpop.f32.mrb[0].mxu0
        %v2079 = vadd.f32 0.0, %v2078
        %v2080 = vpop.f32.mrb[0].mxu0
        %v2081 = vpop.f32.mrb[0].mxu0
        %v2082 = vadd.f32 0.0, %v2081
        %v2083 = vpop.f32.mrb[0].mxu0
        %2084 = vmatprep.mubr.bf16.mxu0 0
        %2085 = vmatmul.mubr.bf16.gmra.mrb[0].mxu0 %v1916
        %v2086 = vpop.f32.mrb[0].mxu0
        %v2087 = vadd.f32 0.0, %v2086
        %v2088 = vpop.f32.mrb[0].mxu0
        %v2089 = vpop.f32.mrb[0].mxu0
        %v2090 = vadd.f32 0.0, %v2089
        %v2091 = vpop.f32.mrb[0].mxu0
        %2092 = vmatprep.mubr.bf16.mxu0 0
        %2093 = vmatmul.mubr.bf16.gmra.mrb[0].mxu0 %v1917
        %v2094 = vpop.f32.mrb[0].mxu0
        %v2095 = vadd.f32 0.0, %v2094
        %v2096 = vpop.f32.mrb[0].mxu0
        %v2097 = vpop.f32.mrb[0].mxu0
        %v2098 = vadd.f32 0.0, %v2097
        %v2099 = vpop.f32.mrb[0].mxu0
        %2100 = vmatprep.mubr.bf16.mxu0 0
        %2101 = vmatmul.mubr.bf16.gmra.mrb[0].mxu0 %v1918
        %v2102 = vpop.f32.mrb[0].mxu0
        %v2103 = vadd.f32 0.0, %v2102
        %v2104 = vpop.f32.mrb[0].mxu0
        %v2105 = vpop.f32.mrb[0].mxu0
        %v2106 = vadd.f32 0.0, %v2105
        %v2107 = vpop.f32.mrb[0].mxu0
        %2108 = vmatprep.mubr.bf16.mxu0 0
        %2109 = vmatmul.mubr.bf16.gmra.mrb[0].mxu0 %v1919
        %v2110 = vpop.f32.mrb[0].mxu0
        %v2111 = vadd.f32 0.0, %v2110
        %v2112 = vpop.f32.mrb[0].mxu0
        %v2113 = vpop.f32.mrb[0].mxu0
        %v2114 = vadd.f32 0.0, %v2113
        %v2115 = vpop.f32.mrb[0].mxu0
        %2116 = vmatprep.mubr.bf16.mxu0 0
        %2117 = vmatmul.mubr.bf16.gmra.mrb[0].mxu0 %v1920
        %v2118 = vpop.f32.mrb[0].mxu0
        %v2119 = vadd.f32 0.0, %v2118
        %v2120 = vpop.f32.mrb[0].mxu0
        %v2121 = vpop.f32.mrb[0].mxu0
        %v2122 = vadd.f32 0.0, %v2121
        %v2123 = vpop.f32.mrb[0].mxu0
        %2124 = vmatprep.mubr.bf16.mxu0 0
        %2125 = vmatmul.mubr.bf16.gmra.mrb[0].mxu0 %v1921
        %v2126 = vpop.f32.mrb[0].mxu0
        %v2127 = vadd.f32 0.0, %v2126
        %v2128 = vpop.f32.mrb[0].mxu0
        %v2129 = vpop.f32.mrb[0].mxu0
        %v2130 = vadd.f32 0.0, %v2129
        %v2131 = vpop.f32.mrb[0].mxu0
        %2132 = vmatprep.mubr.bf16.mxu0 0
        %2133 = vmatmul.mubr.bf16.gmra.mrb[0].mxu0 %v1922
        %v2134 = vpop.f32.mrb[0].mxu0
        %v2135 = vadd.f32 0.0, %v2134
        %v2136 = vpop.f32.mrb[0].mxu0
        %v2137 = vpop.f32.mrb[0].mxu0
        %v2138 = vadd.f32 0.0, %v2137
        %v2139 = vpop.f32.mrb[0].mxu0
        %2140 = vmatprep.mubr.bf16.mxu0 0
        %2141 = vmatmul.mubr.bf16.gmra.mrb[0].mxu0 %v1923
        %v2142 = vpop.f32.mrb[0].mxu0
        %v2143 = vadd.f32 0.0, %v2142
        %v2144 = vpop.f32.mrb[0].mxu0
        %v2145 = vpop.f32.mrb[0].mxu0
        %v2146 = vadd.f32 0.0, %v2145
        %v2147 = vpop.f32.mrb[0].mxu0
        %2148 = vdwg.mxu0
        %v2149 = vadd.f32 %v1844, %v2023
        %v2150 = vadd.f32 %v1845, %v2026
        %v2151 = vadd.f32 %v1846, %v2031
        %v2152 = vadd.f32 %v1847, %v2034
        %v2153 = vadd.f32 %v1848, %v2039
        %v2154 = vadd.f32 %v1849, %v2042
        %v2155 = vadd.f32 %v1850, %v2047
        %v2156 = vadd.f32 %v1851, %v2050
        %v2157 = vadd.f32 %v1852, %v2055
        %v2158 = vadd.f32 %v1853, %v2058
        %v2159 = vadd.f32 %v1854, %v2063
        %v2160 = vadd.f32 %v1855, %v2066
        %v2161 = vadd.f32 %v1856, %v2071
        %v2162 = vadd.f32 %v1857, %v2074
        %v2163 = vadd.f32 %v1858, %v2079
        %v2164 = vadd.f32 %v1859, %v2082
        %v2165 = vadd.f32 %v1860, %v2087
        %v2166 = vadd.f32 %v1861, %v2090
        %v2167 = vadd.f32 %v1862, %v2095
        %v2168 = vadd.f32 %v1863, %v2098
        %v2169 = vadd.f32 %v1864, %v2103
        %v2170 = vadd.f32 %v1865, %v2106
        %v2171 = vadd.f32 %v1866, %v2111
        %v2172 = vadd.f32 %v1867, %v2114
        %v2173 = vadd.f32 %v1868, %v2119
        %v2174 = vadd.f32 %v1869, %v2122
        %v2175 = vadd.f32 %v1870, %v2127
        %v2176 = vadd.f32 %v1871, %v2130
        %v2177 = vadd.f32 %v1872, %v2135
        %v2178 = vadd.f32 %v1873, %v2138
        %v2179 = vadd.f32 %v1874, %v2143
        %v2180 = vadd.f32 %v1875, %v2146
        %s2181 = scalar_lea.vmem [#allocation2], 48
        %v2182 = vld [vmem:[%s2181] sm:$0xff]
        %v2183 = vld [vmem:[%s2181 + $0x8] sm:$0xff]
        %v2184 = vld [vmem:[%s2181 + $0x18] sm:$0xff]
        %v2185 = vld [vmem:[%s2181 + $0x20] sm:$0xff]
        %v2186 = vld [vmem:[%s2181 + $0x30] sm:$0xff]
        %v2187 = vld [vmem:[%s2181 + $0x38] sm:$0xff]
        %v2188 = vld [vmem:[%s2181 + $0x48] sm:$0xff]
        %v2189 = vld [vmem:[%s2181 + $0x50] sm:$0xff]
        %v2190 = vld [vmem:[%s2181 + $0x60] sm:$0xff]
        %v2191 = vld [vmem:[%s2181 + $0x68] sm:$0xff]
        %v2192 = vld [vmem:[%s2181 + $0x78] sm:$0xff]
        %v2193 = vld [vmem:[%s2181 + $0x80] sm:$0xff]
        %v2194 = vld [vmem:[%s2181 + $0x90] sm:$0xff]
        %v2195 = vld [vmem:[%s2181 + $0x98] sm:$0xff]
        %v2196 = vld [vmem:[%s2181 + $0xa8] sm:$0xff]
        %v2197 = vld [vmem:[%s2181 + $0xb0] sm:$0xff]
        %v2198 = vld [vmem:[%s2181 + $0xc0] sm:$0xff]
        %v2199 = vld [vmem:[%s2181 + $0xc8] sm:$0xff]
        %v2200 = vld [vmem:[%s2181 + $0xd8] sm:$0xff]
        %v2201 = vld [vmem:[%s2181 + $0xe0] sm:$0xff]
        %v2202 = vld [vmem:[%s2181 + $0xf0] sm:$0xff]
        %v2203 = vld [vmem:[%s2181 + $0xf8] sm:$0xff]
        %v2204 = vld [vmem:[%s2181 + $0x108] sm:$0xff]
        %v2205 = vld [vmem:[%s2181 + $0x110] sm:$0xff]
        %v2206 = vld [vmem:[%s2181 + $0x120] sm:$0xff]
        %v2207 = vld [vmem:[%s2181 + $0x128] sm:$0xff]
        %v2208 = vld [vmem:[%s2181 + $0x138] sm:$0xff]
        %v2209 = vld [vmem:[%s2181 + $0x140] sm:$0xff]
        %v2210 = vld [vmem:[%s2181 + $0x150] sm:$0xff]
        %v2211 = vld [vmem:[%s2181 + $0x158] sm:$0xff]
        %v2212 = vld [vmem:[%s2181 + $0x168] sm:$0xff]
        %v2213 = vld [vmem:[%s2181 + $0x170] sm:$0xff]
        %v2214 = vpack.c.bf16 %v2183, %v2182
        %v2215 = vpack.c.bf16 %v2185, %v2184
        %v2216 = vpack.c.bf16 %v2187, %v2186
        %v2217 = vpack.c.bf16 %v2189, %v2188
        %v2218 = vpack.c.bf16 %v2191, %v2190
        %v2219 = vpack.c.bf16 %v2193, %v2192
        %v2220 = vpack.c.bf16 %v2195, %v2194
        %v2221 = vpack.c.bf16 %v2197, %v2196
        %v2222 = vpack.c.bf16 %v2199, %v2198
        %v2223 = vpack.c.bf16 %v2201, %v2200
        %v2224 = vpack.c.bf16 %v2203, %v2202
        %v2225 = vpack.c.bf16 %v2205, %v2204
        %v2226 = vpack.c.bf16 %v2207, %v2206
        %v2227 = vpack.c.bf16 %v2209, %v2208
        %v2228 = vpack.c.bf16 %v2211, %v2210
        %v2229 = vpack.c.bf16 %v2213, %v2212
        %v2230 = vld [vmem:[%s1 + $0x180] sm:$0xf]
        %v2231 = vld [vmem:[%s1 + $0x184] sm:$0xf]
        %v2232 = vld [vmem:[%s1 + $0x188] sm:$0xf]
        %v2233 = vld [vmem:[%s1 + $0x18c] sm:$0xf]
        %v2234 = vld [vmem:[%s1 + $0x190] sm:$0xf]
        %v2235 = vld [vmem:[%s1 + $0x194] sm:$0xf]
        %v2236 = vld [vmem:[%s1 + $0x198] sm:$0xf]
        %v2237 = vld [vmem:[%s1 + $0x19c] sm:$0xf]
        %v2238 = vld [vmem:[%s1 + $0x1a0] sm:$0xf]
        %v2239 = vld [vmem:[%s1 + $0x1a4] sm:$0xf]
        %v2240 = vld [vmem:[%s1 + $0x1a8] sm:$0xf]
        %v2241 = vld [vmem:[%s1 + $0x1ac] sm:$0xf]
        %v2242 = vld [vmem:[%s1 + $0x1b0] sm:$0xf]
        %v2243 = vld [vmem:[%s1 + $0x1b4] sm:$0xf]
        %v2244 = vld [vmem:[%s1 + $0x1b8] sm:$0xf]
        %v2245 = vld [vmem:[%s1 + $0x1bc] sm:$0xf]
        %v2262 = vunpack.c.l.b16 %v2230
        %v2263 = vunpack.c.l.b16 %v2231
        %v2264 = vunpack.c.l.b16 %v2232
        %v2265 = vunpack.c.l.b16 %v2233
        %v2266 = vunpack.c.l.b16 %v2234
        %v2267 = vunpack.c.l.b16 %v2235
        %v2268 = vunpack.c.l.b16 %v2236
        %v2269 = vunpack.c.l.b16 %v2237
        %v2270 = vunpack.c.l.b16 %v2238
        %v2271 = vunpack.c.l.b16 %v2239
        %v2272 = vunpack.c.l.b16 %v2240
        %v2273 = vunpack.c.l.b16 %v2241
        %v2274 = vunpack.c.l.b16 %v2242
        %v2275 = vunpack.c.l.b16 %v2243
        %v2276 = vunpack.c.l.b16 %v2244
        %v2277 = vunpack.c.l.b16 %v2245
        %v2278 = vpack.c.b16 %v2263, %v2262
        %v2279 = vpack.c.b16 %v2265, %v2264
        %v2280 = vpack.c.b16 %v2267, %v2266
        %v2281 = vpack.c.b16 %v2269, %v2268
        %v2282 = vpack.c.b16 %v2271, %v2270
        %v2283 = vpack.c.b16 %v2273, %v2272
        %v2284 = vpack.c.b16 %v2275, %v2274
        %v2285 = vpack.c.b16 %v2277, %v2276
        %2294 = vmatprep.subr.bf16.mxu0 0
        %2295 = vmatpush1.bf16.msra.mxu0 %v2278
        %2296 = vmatprep.subr.bf16.mxu0 0
        %2297 = vmatpush1.bf16.msra.mxu0 %v2279
        %2298 = vmatprep.subr.bf16.mxu0 0
        %2299 = vmatpush1.bf16.msra.mxu0 %v2280
        %2300 = vmatprep.subr.bf16.mxu0 0
        %2301 = vmatpush1.bf16.msra.mxu0 %v2281
        %2302 = vmatprep.subr.bf16.mxu0 0
        %2303 = vmatpush1.bf16.msra.mxu0 %v2282
        %2304 = vmatprep.subr.bf16.mxu0 0
        %2305 = vmatpush1.bf16.msra.mxu0 %v2283
        %2306 = vmatprep.subr.bf16.mxu0 0
        %2307 = vmatpush1.bf16.msra.mxu0 %v2284
        %2308 = vmatprep.subr.bf16.mxu0 0
        %2309 = vmatpush1.bf16.msra.mxu0 %v2285
        %2310 = vmatprep.subr.bf16.mxu0 0
        %2311 = vmatpush1.bf16.msra.mxu0 0
        %2312 = vmatprep.subr.bf16.mxu0 0
        %2313 = vmatpush1.bf16.msra.mxu0 0
        %2314 = vmatprep.subr.bf16.mxu0 0
        %2315 = vmatpush1.bf16.msra.mxu0 0
        %2316 = vmatprep.subr.bf16.mxu0 0
        %2317 = vmatpush1.bf16.msra.mxu0 0
        %2318 = vmatprep.subr.bf16.mxu0 0
        %2319 = vmatpush1.bf16.msra.mxu0 0
        %2320 = vmatprep.subr.bf16.mxu0 0
        %2321 = vmatpush1.bf16.msra.mxu0 0
        %2322 = vmatprep.subr.bf16.mxu0 0
        %2323 = vmatpush1.bf16.msra.mxu0 0
        %2324 = vmatprep.subr.bf16.mxu0 0
        %2325 = vmatpush1.bf16.msra.mxu0 0
        %2326 = vmatprep.mubr.bf16.mxu0 0
        %2327 = vmatmul.mubr.bf16.gmra.mrb[0].mxu0 %v2214
        %v2328 = vpop.f32.mrb[0].mxu0
        %v2329 = vadd.f32 0.0, %v2328
        %v2330 = vpop.f32.mrb[0].mxu0
        %v2331 = vpop.f32.mrb[0].mxu0
        %v2332 = vadd.f32 0.0, %v2331
        %v2333 = vpop.f32.mrb[0].mxu0
        %2334 = vmatprep.mubr.bf16.mxu0 0
        %2335 = vmatmul.mubr.bf16.gmra.mrb[0].mxu0 %v2215
        %v2336 = vpop.f32.mrb[0].mxu0
        %v2337 = vadd.f32 0.0, %v2336
        %v2338 = vpop.f32.mrb[0].mxu0
        %v2339 = vpop.f32.mrb[0].mxu0
        %v2340 = vadd.f32 0.0, %v2339
        %v2341 = vpop.f32.mrb[0].mxu0
        %2342 = vmatprep.mubr.bf16.mxu0 0
        %2343 = vmatmul.mubr.bf16.gmra.mrb[0].mxu0 %v2216
        %v2344 = vpop.f32.mrb[0].mxu0
        %v2345 = vadd.f32 0.0, %v2344
        %v2346 = vpop.f32.mrb[0].mxu0
        %v2347 = vpop.f32.mrb[0].mxu0
        %v2348 = vadd.f32 0.0, %v2347
        %v2349 = vpop.f32.mrb[0].mxu0
        %2350 = vmatprep.mubr.bf16.mxu0 0
        %2351 = vmatmul.mubr.bf16.gmra.mrb[0].mxu0 %v2217
        %v2352 = vpop.f32.mrb[0].mxu0
        %v2353 = vadd.f32 0.0, %v2352
        %v2354 = vpop.f32.mrb[0].mxu0
        %v2355 = vpop.f32.mrb[0].mxu0
        %v2356 = vadd.f32 0.0, %v2355
        %v2357 = vpop.f32.mrb[0].mxu0
        %2358 = vmatprep.mubr.bf16.mxu0 0
        %2359 = vmatmul.mubr.bf16.gmra.mrb[0].mxu0 %v2218
        %v2360 = vpop.f32.mrb[0].mxu0
        %v2361 = vadd.f32 0.0, %v2360
        %v2362 = vpop.f32.mrb[0].mxu0
        %v2363 = vpop.f32.mrb[0].mxu0
        %v2364 = vadd.f32 0.0, %v2363
        %v2365 = vpop.f32.mrb[0].mxu0
        %2366 = vmatprep.mubr.bf16.mxu0 0
        %2367 = vmatmul.mubr.bf16.gmra.mrb[0].mxu0 %v2219
        %v2368 = vpop.f32.mrb[0].mxu0
        %v2369 = vadd.f32 0.0, %v2368
        %v2370 = vpop.f32.mrb[0].mxu0
        %v2371 = vpop.f32.mrb[0].mxu0
        %v2372 = vadd.f32 0.0, %v2371
        %v2373 = vpop.f32.mrb[0].mxu0
        %2374 = vmatprep.mubr.bf16.mxu0 0
        %2375 = vmatmul.mubr.bf16.gmra.mrb[0].mxu0 %v2220
        %v2376 = vpop.f32.mrb[0].mxu0
        %v2377 = vadd.f32 0.0, %v2376
        %v2378 = vpop.f32.mrb[0].mxu0
        %v2379 = vpop.f32.mrb[0].mxu0
        %v2380 = vadd.f32 0.0, %v2379
        %v2381 = vpop.f32.mrb[0].mxu0
        %2382 = vmatprep.mubr.bf16.mxu0 0
        %2383 = vmatmul.mubr.bf16.gmra.mrb[0].mxu0 %v2221
        %v2384 = vpop.f32.mrb[0].mxu0
        %v2385 = vadd.f32 0.0, %v2384
        %v2386 = vpop.f32.mrb[0].mxu0
        %v2387 = vpop.f32.mrb[0].mxu0
        %v2388 = vadd.f32 0.0, %v2387
        %v2389 = vpop.f32.mrb[0].mxu0
        %2390 = vmatprep.mubr.bf16.mxu0 0
        %2391 = vmatmul.mubr.bf16.gmra.mrb[0].mxu0 %v2222
        %v2392 = vpop.f32.mrb[0].mxu0
        %v2393 = vadd.f32 0.0, %v2392
        %v2394 = vpop.f32.mrb[0].mxu0
        %v2395 = vpop.f32.mrb[0].mxu0
        %v2396 = vadd.f32 0.0, %v2395
        %v2397 = vpop.f32.mrb[0].mxu0
        %2398 = vmatprep.mubr.bf16.mxu0 0
        %2399 = vmatmul.mubr.bf16.gmra.mrb[0].mxu0 %v2223
        %v2400 = vpop.f32.mrb[0].mxu0
        %v2401 = vadd.f32 0.0, %v2400
        %v2402 = vpop.f32.mrb[0].mxu0
        %v2403 = vpop.f32.mrb[0].mxu0
        %v2404 = vadd.f32 0.0, %v2403
        %v2405 = vpop.f32.mrb[0].mxu0
        %2406 = vmatprep.mubr.bf16.mxu0 0
        %2407 = vmatmul.mubr.bf16.gmra.mrb[0].mxu0 %v2224
        %v2408 = vpop.f32.mrb[0].mxu0
        %v2409 = vadd.f32 0.0, %v2408
        %v2410 = vpop.f32.mrb[0].mxu0
        %v2411 = vpop.f32.mrb[0].mxu0
        %v2412 = vadd.f32 0.0, %v2411
        %v2413 = vpop.f32.mrb[0].mxu0
        %2414 = vmatprep.mubr.bf16.mxu0 0
        %2415 = vmatmul.mubr.bf16.gmra.mrb[0].mxu0 %v2225
        %v2416 = vpop.f32.mrb[0].mxu0
        %v2417 = vadd.f32 0.0, %v2416
        %v2418 = vpop.f32.mrb[0].mxu0
        %v2419 = vpop.f32.mrb[0].mxu0
        %v2420 = vadd.f32 0.0, %v2419
        %v2421 = vpop.f32.mrb[0].mxu0
        %2422 = vmatprep.mubr.bf16.mxu0 0
        %2423 = vmatmul.mubr.bf16.gmra.mrb[0].mxu0 %v2226
        %v2424 = vpop.f32.mrb[0].mxu0
        %v2425 = vadd.f32 0.0, %v2424
        %v2426 = vpop.f32.mrb[0].mxu0
        %v2427 = vpop.f32.mrb[0].mxu0
        %v2428 = vadd.f32 0.0, %v2427
        %v2429 = vpop.f32.mrb[0].mxu0
        %2430 = vmatprep.mubr.bf16.mxu0 0
        %2431 = vmatmul.mubr.bf16.gmra.mrb[0].mxu0 %v2227
        %v2432 = vpop.f32.mrb[0].mxu0
        %v2433 = vadd.f32 0.0, %v2432
        %v2434 = vpop.f32.mrb[0].mxu0
        %v2435 = vpop.f32.mrb[0].mxu0
        %v2436 = vadd.f32 0.0, %v2435
        %v2437 = vpop.f32.mrb[0].mxu0
        %2438 = vmatprep.mubr.bf16.mxu0 0
        %2439 = vmatmul.mubr.bf16.gmra.mrb[0].mxu0 %v2228
        %v2440 = vpop.f32.mrb[0].mxu0
        %v2441 = vadd.f32 0.0, %v2440
        %v2442 = vpop.f32.mrb[0].mxu0
        %v2443 = vpop.f32.mrb[0].mxu0
        %v2444 = vadd.f32 0.0, %v2443
        %v2445 = vpop.f32.mrb[0].mxu0
        %2446 = vmatprep.mubr.bf16.mxu0 0
        %2447 = vmatmul.mubr.bf16.gmra.mrb[0].mxu0 %v2229
        %v2448 = vpop.f32.mrb[0].mxu0
        %v2449 = vadd.f32 0.0, %v2448
        %v2450 = vpop.f32.mrb[0].mxu0
        %v2451 = vpop.f32.mrb[0].mxu0
        %v2452 = vadd.f32 0.0, %v2451
        %v2453 = vpop.f32.mrb[0].mxu0
        %2454 = vdwg.mxu0
        %v2455 = vadd.f32 %v2149, %v2329
        %v2456 = vadd.f32 %v2150, %v2332
        %v2457 = vadd.f32 %v2151, %v2337
        %v2458 = vadd.f32 %v2152, %v2340
        %v2459 = vadd.f32 %v2153, %v2345
        %v2460 = vadd.f32 %v2154, %v2348
        %v2461 = vadd.f32 %v2155, %v2353
        %v2462 = vadd.f32 %v2156, %v2356
        %v2463 = vadd.f32 %v2157, %v2361
        %v2464 = vadd.f32 %v2158, %v2364
        %v2465 = vadd.f32 %v2159, %v2369
        %v2466 = vadd.f32 %v2160, %v2372
        %v2467 = vadd.f32 %v2161, %v2377
        %v2468 = vadd.f32 %v2162, %v2380
        %v2469 = vadd.f32 %v2163, %v2385
        %v2470 = vadd.f32 %v2164, %v2388
        %v2471 = vadd.f32 %v2165, %v2393
        %v2472 = vadd.f32 %v2166, %v2396
        %v2473 = vadd.f32 %v2167, %v2401
        %v2474 = vadd.f32 %v2168, %v2404
        %v2475 = vadd.f32 %v2169, %v2409
        %v2476 = vadd.f32 %v2170, %v2412
        %v2477 = vadd.f32 %v2171, %v2417
        %v2478 = vadd.f32 %v2172, %v2420
        %v2479 = vadd.f32 %v2173, %v2425
        %v2480 = vadd.f32 %v2174, %v2428
        %v2481 = vadd.f32 %v2175, %v2433
        %v2482 = vadd.f32 %v2176, %v2436
        %v2483 = vadd.f32 %v2177, %v2441
        %v2484 = vadd.f32 %v2178, %v2444
        %v2485 = vadd.f32 %v2179, %v2449
        %v2486 = vadd.f32 %v2180, %v2452
        %v2487 = vld [vmem:[%s2181 + $0x1] sm:$0xff]
        %v2488 = vld [vmem:[%s2181 + $0x9] sm:$0xff]
        %v2489 = vld [vmem:[%s2181 + $0x19] sm:$0xff]
        %v2490 = vld [vmem:[%s2181 + $0x21] sm:$0xff]
        %v2491 = vld [vmem:[%s2181 + $0x31] sm:$0xff]
        %v2492 = vld [vmem:[%s2181 + $0x39] sm:$0xff]
        %v2493 = vld [vmem:[%s2181 + $0x49] sm:$0xff]
        %v2494 = vld [vmem:[%s2181 + $0x51] sm:$0xff]
        %v2495 = vld [vmem:[%s2181 + $0x61] sm:$0xff]
        %v2496 = vld [vmem:[%s2181 + $0x69] sm:$0xff]
        %v2497 = vld [vmem:[%s2181 + $0x79] sm:$0xff]
        %v2498 = vld [vmem:[%s2181 + $0x81] sm:$0xff]
        %v2499 = vld [vmem:[%s2181 + $0x91] sm:$0xff]
        %v2500 = vld [vmem:[%s2181 + $0x99] sm:$0xff]
        %v2501 = vld [vmem:[%s2181 + $0xa9] sm:$0xff]
        %v2502 = vld [vmem:[%s2181 + $0xb1] sm:$0xff]
        %v2503 = vld [vmem:[%s2181 + $0xc1] sm:$0xff]
        %v2504 = vld [vmem:[%s2181 + $0xc9] sm:$0xff]
        %v2505 = vld [vmem:[%s2181 + $0xd9] sm:$0xff]
        %v2506 = vld [vmem:[%s2181 + $0xe1] sm:$0xff]
        %v2507 = vld [vmem:[%s2181 + $0xf1] sm:$0xff]
        %v2508 = vld [vmem:[%s2181 + $0xf9] sm:$0xff]
        %v2509 = vld [vmem:[%s2181 + $0x109] sm:$0xff]
        %v2510 = vld [vmem:[%s2181 + $0x111] sm:$0xff]
        %v2511 = vld [vmem:[%s2181 + $0x121] sm:$0xff]
        %v2512 = vld [vmem:[%s2181 + $0x129] sm:$0xff]
        %v2513 = vld [vmem:[%s2181 + $0x139] sm:$0xff]
        %v2514 = vld [vmem:[%s2181 + $0x141] sm:$0xff]
        %v2515 = vld [vmem:[%s2181 + $0x151] sm:$0xff]
        %v2516 = vld [vmem:[%s2181 + $0x159] sm:$0xff]
        %v2517 = vld [vmem:[%s2181 + $0x169] sm:$0xff]
        %v2518 = vld [vmem:[%s2181 + $0x171] sm:$0xff]
        %v2519 = vpack.c.bf16 %v2488, %v2487
        %v2520 = vpack.c.bf16 %v2490, %v2489
        %v2521 = vpack.c.bf16 %v2492, %v2491
        %v2522 = vpack.c.bf16 %v2494, %v2493
        %v2523 = vpack.c.bf16 %v2496, %v2495
        %v2524 = vpack.c.bf16 %v2498, %v2497
        %v2525 = vpack.c.bf16 %v2500, %v2499
        %v2526 = vpack.c.bf16 %v2502, %v2501
        %v2527 = vpack.c.bf16 %v2504, %v2503
        %v2528 = vpack.c.bf16 %v2506, %v2505
        %v2529 = vpack.c.bf16 %v2508, %v2507
        %v2530 = vpack.c.bf16 %v2510, %v2509
        %v2531 = vpack.c.bf16 %v2512, %v2511
        %v2532 = vpack.c.bf16 %v2514, %v2513
        %v2533 = vpack.c.bf16 %v2516, %v2515
        %v2534 = vpack.c.bf16 %v2518, %v2517
        %v2535 = vld [vmem:[%s1 + $0x1c0] sm:$0xf]
        %v2536 = vld [vmem:[%s1 + $0x1c4] sm:$0xf]
        %v2537 = vld [vmem:[%s1 + $0x1c8] sm:$0xf]
        %v2538 = vld [vmem:[%s1 + $0x1cc] sm:$0xf]
        %v2539 = vld [vmem:[%s1 + $0x1d0] sm:$0xf]
        %v2540 = vld [vmem:[%s1 + $0x1d4] sm:$0xf]
        %v2541 = vld [vmem:[%s1 + $0x1d8] sm:$0xf]
        %v2542 = vld [vmem:[%s1 + $0x1dc] sm:$0xf]
        %v2543 = vld [vmem:[%s1 + $0x1e0] sm:$0xf]
        %v2544 = vld [vmem:[%s1 + $0x1e4] sm:$0xf]
        %v2545 = vld [vmem:[%s1 + $0x1e8] sm:$0xf]
        %v2546 = vld [vmem:[%s1 + $0x1ec] sm:$0xf]
        %v2547 = vld [vmem:[%s1 + $0x1f0] sm:$0xf]
        %v2548 = vld [vmem:[%s1 + $0x1f4] sm:$0xf]
        %v2549 = vld [vmem:[%s1 + $0x1f8] sm:$0xf]
        %v2550 = vld [vmem:[%s1 + $0x1fc] sm:$0xf]
        %v2567 = vunpack.c.l.b16 %v2535
        %v2568 = vunpack.c.l.b16 %v2536
        %v2569 = vunpack.c.l.b16 %v2537
        %v2570 = vunpack.c.l.b16 %v2538
        %v2571 = vunpack.c.l.b16 %v2539
        %v2572 = vunpack.c.l.b16 %v2540
        %v2573 = vunpack.c.l.b16 %v2541
        %v2574 = vunpack.c.l.b16 %v2542
        %v2575 = vunpack.c.l.b16 %v2543
        %v2576 = vunpack.c.l.b16 %v2544
        %v2577 = vunpack.c.l.b16 %v2545
        %v2578 = vunpack.c.l.b16 %v2546
        %v2579 = vunpack.c.l.b16 %v2547
        %v2580 = vunpack.c.l.b16 %v2548
        %v2581 = vunpack.c.l.b16 %v2549
        %v2582 = vunpack.c.l.b16 %v2550
        %v2583 = vpack.c.b16 %v2568, %v2567
        %v2584 = vpack.c.b16 %v2570, %v2569
        %v2585 = vpack.c.b16 %v2572, %v2571
        %v2586 = vpack.c.b16 %v2574, %v2573
        %v2587 = vpack.c.b16 %v2576, %v2575
        %v2588 = vpack.c.b16 %v2578, %v2577
        %v2589 = vpack.c.b16 %v2580, %v2579
        %v2590 = vpack.c.b16 %v2582, %v2581
        %2599 = vmatprep.subr.bf16.mxu0 0
        %2600 = vmatpush1.bf16.msra.mxu0 %v2583
        %2601 = vmatprep.subr.bf16.mxu0 0
        %2602 = vmatpush1.bf16.msra.mxu0 %v2584
        %2603 = vmatprep.subr.bf16.mxu0 0
        %2604 = vmatpush1.bf16.msra.mxu0 %v2585
        %2605 = vmatprep.subr.bf16.mxu0 0
        %2606 = vmatpush1.bf16.msra.mxu0 %v2586
        %2607 = vmatprep.subr.bf16.mxu0 0
        %2608 = vmatpush1.bf16.msra.mxu0 %v2587
        %2609 = vmatprep.subr.bf16.mxu0 0
        %2610 = vmatpush1.bf16.msra.mxu0 %v2588
        %2611 = vmatprep.subr.bf16.mxu0 0
        %2612 = vmatpush1.bf16.msra.mxu0 %v2589
        %2613 = vmatprep.subr.bf16.mxu0 0
        %2614 = vmatpush1.bf16.msra.mxu0 %v2590
        %2615 = vmatprep.subr.bf16.mxu0 0
        %2616 = vmatpush1.bf16.msra.mxu0 0
        %2617 = vmatprep.subr.bf16.mxu0 0
        %2618 = vmatpush1.bf16.msra.mxu0 0
        %2619 = vmatprep.subr.bf16.mxu0 0
        %2620 = vmatpush1.bf16.msra.mxu0 0
        %2621 = vmatprep.subr.bf16.mxu0 0
        %2622 = vmatpush1.bf16.msra.mxu0 0
        %2623 = vmatprep.subr.bf16.mxu0 0
        %2624 = vmatpush1.bf16.msra.mxu0 0
        %2625 = vmatprep.subr.bf16.mxu0 0
        %2626 = vmatpush1.bf16.msra.mxu0 0
        %2627 = vmatprep.subr.bf16.mxu0 0
        %2628 = vmatpush1.bf16.msra.mxu0 0
        %2629 = vmatprep.subr.bf16.mxu0 0
        %2630 = vmatpush1.bf16.msra.mxu0 0
        %2631 = vmatprep.mubr.bf16.mxu0 0
        %2632 = vmatmul.mubr.bf16.gmra.mrb[0].mxu0 %v2519
        %v2633 = vpop.f32.mrb[0].mxu0
        %v2634 = vadd.f32 0.0, %v2633
        %v2635 = vpop.f32.mrb[0].mxu0
        %v2636 = vpop.f32.mrb[0].mxu0
        %v2637 = vadd.f32 0.0, %v2636
        %v2638 = vpop.f32.mrb[0].mxu0
        %2639 = vmatprep.mubr.bf16.mxu0 0
        %2640 = vmatmul.mubr.bf16.gmra.mrb[0].mxu0 %v2520
        %v2641 = vpop.f32.mrb[0].mxu0
        %v2642 = vadd.f32 0.0, %v2641
        %v2643 = vpop.f32.mrb[0].mxu0
        %v2644 = vpop.f32.mrb[0].mxu0
        %v2645 = vadd.f32 0.0, %v2644
        %v2646 = vpop.f32.mrb[0].mxu0
        %2647 = vmatprep.mubr.bf16.mxu0 0
        %2648 = vmatmul.mubr.bf16.gmra.mrb[0].mxu0 %v2521
        %v2649 = vpop.f32.mrb[0].mxu0
        %v2650 = vadd.f32 0.0, %v2649
        %v2651 = vpop.f32.mrb[0].mxu0
        %v2652 = vpop.f32.mrb[0].mxu0
        %v2653 = vadd.f32 0.0, %v2652
        %v2654 = vpop.f32.mrb[0].mxu0
        %2655 = vmatprep.mubr.bf16.mxu0 0
        %2656 = vmatmul.mubr.bf16.gmra.mrb[0].mxu0 %v2522
        %v2657 = vpop.f32.mrb[0].mxu0
        %v2658 = vadd.f32 0.0, %v2657
        %v2659 = vpop.f32.mrb[0].mxu0
        %v2660 = vpop.f32.mrb[0].mxu0
        %v2661 = vadd.f32 0.0, %v2660
        %v2662 = vpop.f32.mrb[0].mxu0
        %2663 = vmatprep.mubr.bf16.mxu0 0
        %2664 = vmatmul.mubr.bf16.gmra.mrb[0].mxu0 %v2523
        %v2665 = vpop.f32.mrb[0].mxu0
        %v2666 = vadd.f32 0.0, %v2665
        %v2667 = vpop.f32.mrb[0].mxu0
        %v2668 = vpop.f32.mrb[0].mxu0
        %v2669 = vadd.f32 0.0, %v2668
        %v2670 = vpop.f32.mrb[0].mxu0
        %2671 = vmatprep.mubr.bf16.mxu0 0
        %2672 = vmatmul.mubr.bf16.gmra.mrb[0].mxu0 %v2524
        %v2673 = vpop.f32.mrb[0].mxu0
        %v2674 = vadd.f32 0.0, %v2673
        %v2675 = vpop.f32.mrb[0].mxu0
        %v2676 = vpop.f32.mrb[0].mxu0
        %v2677 = vadd.f32 0.0, %v2676
        %v2678 = vpop.f32.mrb[0].mxu0
        %2679 = vmatprep.mubr.bf16.mxu0 0
        %2680 = vmatmul.mubr.bf16.gmra.mrb[0].mxu0 %v2525
        %v2681 = vpop.f32.mrb[0].mxu0
        %v2682 = vadd.f32 0.0, %v2681
        %v2683 = vpop.f32.mrb[0].mxu0
        %v2684 = vpop.f32.mrb[0].mxu0
        %v2685 = vadd.f32 0.0, %v2684
        %v2686 = vpop.f32.mrb[0].mxu0
        %2687 = vmatprep.mubr.bf16.mxu0 0
        %2688 = vmatmul.mubr.bf16.gmra.mrb[0].mxu0 %v2526
        %v2689 = vpop.f32.mrb[0].mxu0
        %v2690 = vadd.f32 0.0, %v2689
        %v2691 = vpop.f32.mrb[0].mxu0
        %v2692 = vpop.f32.mrb[0].mxu0
        %v2693 = vadd.f32 0.0, %v2692
        %v2694 = vpop.f32.mrb[0].mxu0
        %2695 = vmatprep.mubr.bf16.mxu0 0
        %2696 = vmatmul.mubr.bf16.gmra.mrb[0].mxu0 %v2527
        %v2697 = vpop.f32.mrb[0].mxu0
        %v2698 = vadd.f32 0.0, %v2697
        %v2699 = vpop.f32.mrb[0].mxu0
        %v2700 = vpop.f32.mrb[0].mxu0
        %v2701 = vadd.f32 0.0, %v2700
        %v2702 = vpop.f32.mrb[0].mxu0
        %2703 = vmatprep.mubr.bf16.mxu0 0
        %2704 = vmatmul.mubr.bf16.gmra.mrb[0].mxu0 %v2528
        %v2705 = vpop.f32.mrb[0].mxu0
        %v2706 = vadd.f32 0.0, %v2705
        %v2707 = vpop.f32.mrb[0].mxu0
        %v2708 = vpop.f32.mrb[0].mxu0
        %v2709 = vadd.f32 0.0, %v2708
        %v2710 = vpop.f32.mrb[0].mxu0
        %2711 = vmatprep.mubr.bf16.mxu0 0
        %2712 = vmatmul.mubr.bf16.gmra.mrb[0].mxu0 %v2529
        %v2713 = vpop.f32.mrb[0].mxu0
        %v2714 = vadd.f32 0.0, %v2713
        %v2715 = vpop.f32.mrb[0].mxu0
        %v2716 = vpop.f32.mrb[0].mxu0
        %v2717 = vadd.f32 0.0, %v2716
        %v2718 = vpop.f32.mrb[0].mxu0
        %2719 = vmatprep.mubr.bf16.mxu0 0
        %2720 = vmatmul.mubr.bf16.gmra.mrb[0].mxu0 %v2530
        %v2721 = vpop.f32.mrb[0].mxu0
        %v2722 = vadd.f32 0.0, %v2721
        %v2723 = vpop.f32.mrb[0].mxu0
        %v2724 = vpop.f32.mrb[0].mxu0
        %v2725 = vadd.f32 0.0, %v2724
        %v2726 = vpop.f32.mrb[0].mxu0
        %2727 = vmatprep.mubr.bf16.mxu0 0
        %2728 = vmatmul.mubr.bf16.gmra.mrb[0].mxu0 %v2531
        %v2729 = vpop.f32.mrb[0].mxu0
        %v2730 = vadd.f32 0.0, %v2729
        %v2731 = vpop.f32.mrb[0].mxu0
        %v2732 = vpop.f32.mrb[0].mxu0
        %v2733 = vadd.f32 0.0, %v2732
        %v2734 = vpop.f32.mrb[0].mxu0
        %2735 = vmatprep.mubr.bf16.mxu0 0
        %2736 = vmatmul.mubr.bf16.gmra.mrb[0].mxu0 %v2532
        %v2737 = vpop.f32.mrb[0].mxu0
        %v2738 = vadd.f32 0.0, %v2737
        %v2739 = vpop.f32.mrb[0].mxu0
        %v2740 = vpop.f32.mrb[0].mxu0
        %v2741 = vadd.f32 0.0, %v2740
        %v2742 = vpop.f32.mrb[0].mxu0
        %2743 = vmatprep.mubr.bf16.mxu0 0
        %2744 = vmatmul.mubr.bf16.gmra.mrb[0].mxu0 %v2533
        %v2745 = vpop.f32.mrb[0].mxu0
        %v2746 = vadd.f32 0.0, %v2745
        %v2747 = vpop.f32.mrb[0].mxu0
        %v2748 = vpop.f32.mrb[0].mxu0
        %v2749 = vadd.f32 0.0, %v2748
        %v2750 = vpop.f32.mrb[0].mxu0
        %2751 = vmatprep.mubr.bf16.mxu0 0
        %2752 = vmatmul.mubr.bf16.gmra.mrb[0].mxu0 %v2534
        %v2753 = vpop.f32.mrb[0].mxu0
        %v2754 = vadd.f32 0.0, %v2753
        %v2755 = vpop.f32.mrb[0].mxu0
        %v2756 = vpop.f32.mrb[0].mxu0
        %v2757 = vadd.f32 0.0, %v2756
        %v2758 = vpop.f32.mrb[0].mxu0
        %2759 = vdwg.mxu0
        %v2760 = vadd.f32 %v2455, %v2634
        %v2761 = vadd.f32 %v2456, %v2637
        %v2762 = vadd.f32 %v2457, %v2642
        %v2763 = vadd.f32 %v2458, %v2645
        %v2764 = vadd.f32 %v2459, %v2650
        %v2765 = vadd.f32 %v2460, %v2653
        %v2766 = vadd.f32 %v2461, %v2658
        %v2767 = vadd.f32 %v2462, %v2661
        %v2768 = vadd.f32 %v2463, %v2666
        %v2769 = vadd.f32 %v2464, %v2669
        %v2770 = vadd.f32 %v2465, %v2674
        %v2771 = vadd.f32 %v2466, %v2677
        %v2772 = vadd.f32 %v2467, %v2682
        %v2773 = vadd.f32 %v2468, %v2685
        %v2774 = vadd.f32 %v2469, %v2690
        %v2775 = vadd.f32 %v2470, %v2693
        %v2776 = vadd.f32 %v2471, %v2698
        %v2777 = vadd.f32 %v2472, %v2701
        %v2778 = vadd.f32 %v2473, %v2706
        %v2779 = vadd.f32 %v2474, %v2709
        %v2780 = vadd.f32 %v2475, %v2714
        %v2781 = vadd.f32 %v2476, %v2717
        %v2782 = vadd.f32 %v2477, %v2722
        %v2783 = vadd.f32 %v2478, %v2725
        %v2784 = vadd.f32 %v2479, %v2730
        %v2785 = vadd.f32 %v2480, %v2733
        %v2786 = vadd.f32 %v2481, %v2738
        %v2787 = vadd.f32 %v2482, %v2741
        %v2788 = vadd.f32 %v2483, %v2746
        %v2789 = vadd.f32 %v2484, %v2749
        %v2790 = vadd.f32 %v2485, %v2754
        %v2791 = vadd.f32 %v2486, %v2757
        %v2792 = vld [vmem:[%s2181 + $0x2] sm:$0xff]
        %v2793 = vld [vmem:[%s2181 + $0xa] sm:$0xff]
        %v2794 = vld [vmem:[%s2181 + $0x1a] sm:$0xff]
        %v2795 = vld [vmem:[%s2181 + $0x22] sm:$0xff]
        %v2796 = vld [vmem:[%s2181 + $0x32] sm:$0xff]
        %v2797 = vld [vmem:[%s2181 + $0x3a] sm:$0xff]
        %v2798 = vld [vmem:[%s2181 + $0x4a] sm:$0xff]
        %v2799 = vld [vmem:[%s2181 + $0x52] sm:$0xff]
        %v2800 = vld [vmem:[%s2181 + $0x62] sm:$0xff]
        %v2801 = vld [vmem:[%s2181 + $0x6a] sm:$0xff]
        %v2802 = vld [vmem:[%s2181 + $0x7a] sm:$0xff]
        %v2803 = vld [vmem:[%s2181 + $0x82] sm:$0xff]
        %v2804 = vld [vmem:[%s2181 + $0x92] sm:$0xff]
        %v2805 = vld [vmem:[%s2181 + $0x9a] sm:$0xff]
        %v2806 = vld [vmem:[%s2181 + $0xaa] sm:$0xff]
        %v2807 = vld [vmem:[%s2181 + $0xb2] sm:$0xff]
        %v2808 = vld [vmem:[%s2181 + $0xc2] sm:$0xff]
        %v2809 = vld [vmem:[%s2181 + $0xca] sm:$0xff]
        %v2810 = vld [vmem:[%s2181 + $0xda] sm:$0xff]
        %v2811 = vld [vmem:[%s2181 + $0xe2] sm:$0xff]
        %v2812 = vld [vmem:[%s2181 + $0xf2] sm:$0xff]
        %v2813 = vld [vmem:[%s2181 + $0xfa] sm:$0xff]
        %v2814 = vld [vmem:[%s2181 + $0x10a] sm:$0xff]
        %v2815 = vld [vmem:[%s2181 + $0x112] sm:$0xff]
        %v2816 = vld [vmem:[%s2181 + $0x122] sm:$0xff]
        %v2817 = vld [vmem:[%s2181 + $0x12a] sm:$0xff]
        %v2818 = vld [vmem:[%s2181 + $0x13a] sm:$0xff]
        %v2819 = vld [vmem:[%s2181 + $0x142] sm:$0xff]
        %v2820 = vld [vmem:[%s2181 + $0x152] sm:$0xff]
        %v2821 = vld [vmem:[%s2181 + $0x15a] sm:$0xff]
        %v2822 = vld [vmem:[%s2181 + $0x16a] sm:$0xff]
        %v2823 = vld [vmem:[%s2181 + $0x172] sm:$0xff]
        %v2824 = vpack.c.bf16 %v2793, %v2792
        %v2825 = vpack.c.bf16 %v2795, %v2794
        %v2826 = vpack.c.bf16 %v2797, %v2796
        %v2827 = vpack.c.bf16 %v2799, %v2798
        %v2828 = vpack.c.bf16 %v2801, %v2800
        %v2829 = vpack.c.bf16 %v2803, %v2802
        %v2830 = vpack.c.bf16 %v2805, %v2804
        %v2831 = vpack.c.bf16 %v2807, %v2806
        %v2832 = vpack.c.bf16 %v2809, %v2808
        %v2833 = vpack.c.bf16 %v2811, %v2810
        %v2834 = vpack.c.bf16 %v2813, %v2812
        %v2835 = vpack.c.bf16 %v2815, %v2814
        %v2836 = vpack.c.bf16 %v2817, %v2816
        %v2837 = vpack.c.bf16 %v2819, %v2818
        %v2838 = vpack.c.bf16 %v2821, %v2820
        %v2839 = vpack.c.bf16 %v2823, %v2822
        %v2840 = vld [vmem:[%s1 + $0x200] sm:$0xf]
        %v2841 = vld [vmem:[%s1 + $0x204] sm:$0xf]
        %v2842 = vld [vmem:[%s1 + $0x208] sm:$0xf]
        %v2843 = vld [vmem:[%s1 + $0x20c] sm:$0xf]
        %v2844 = vld [vmem:[%s1 + $0x210] sm:$0xf]
        %v2845 = vld [vmem:[%s1 + $0x214] sm:$0xf]
        %v2846 = vld [vmem:[%s1 + $0x218] sm:$0xf]
        %v2847 = vld [vmem:[%s1 + $0x21c] sm:$0xf]
        %v2848 = vld [vmem:[%s1 + $0x220] sm:$0xf]
        %v2849 = vld [vmem:[%s1 + $0x224] sm:$0xf]
        %v2850 = vld [vmem:[%s1 + $0x228] sm:$0xf]
        %v2851 = vld [vmem:[%s1 + $0x22c] sm:$0xf]
        %v2852 = vld [vmem:[%s1 + $0x230] sm:$0xf]
        %v2853 = vld [vmem:[%s1 + $0x234] sm:$0xf]
        %v2854 = vld [vmem:[%s1 + $0x238] sm:$0xf]
        %v2855 = vld [vmem:[%s1 + $0x23c] sm:$0xf]
        %v2872 = vunpack.c.l.b16 %v2840
        %v2873 = vunpack.c.l.b16 %v2841
        %v2874 = vunpack.c.l.b16 %v2842
        %v2875 = vunpack.c.l.b16 %v2843
        %v2876 = vunpack.c.l.b16 %v2844
        %v2877 = vunpack.c.l.b16 %v2845
        %v2878 = vunpack.c.l.b16 %v2846
        %v2879 = vunpack.c.l.b16 %v2847
        %v2880 = vunpack.c.l.b16 %v2848
        %v2881 = vunpack.c.l.b16 %v2849
        %v2882 = vunpack.c.l.b16 %v2850
        %v2883 = vunpack.c.l.b16 %v2851
        %v2884 = vunpack.c.l.b16 %v2852
        %v2885 = vunpack.c.l.b16 %v2853
        %v2886 = vunpack.c.l.b16 %v2854
        %v2887 = vunpack.c.l.b16 %v2855
        %v2888 = vpack.c.b16 %v2873, %v2872
        %v2889 = vpack.c.b16 %v2875, %v2874
        %v2890 = vpack.c.b16 %v2877, %v2876
        %v2891 = vpack.c.b16 %v2879, %v2878
        %v2892 = vpack.c.b16 %v2881, %v2880
        %v2893 = vpack.c.b16 %v2883, %v2882
        %v2894 = vpack.c.b16 %v2885, %v2884
        %v2895 = vpack.c.b16 %v2887, %v2886
        %2904 = vmatprep.subr.bf16.mxu0 0
        %2905 = vmatpush1.bf16.msra.mxu0 %v2888
        %2906 = vmatprep.subr.bf16.mxu0 0
        %2907 = vmatpush1.bf16.msra.mxu0 %v2889
        %2908 = vmatprep.subr.bf16.mxu0 0
        %2909 = vmatpush1.bf16.msra.mxu0 %v2890
        %2910 = vmatprep.subr.bf16.mxu0 0
        %2911 = vmatpush1.bf16.msra.mxu0 %v2891
        %2912 = vmatprep.subr.bf16.mxu0 0
        %2913 = vmatpush1.bf16.msra.mxu0 %v2892
        %2914 = vmatprep.subr.bf16.mxu0 0
        %2915 = vmatpush1.bf16.msra.mxu0 %v2893
        %2916 = vmatprep.subr.bf16.mxu0 0
        %2917 = vmatpush1.bf16.msra.mxu0 %v2894
        %2918 = vmatprep.subr.bf16.mxu0 0
        %2919 = vmatpush1.bf16.msra.mxu0 %v2895
        %2920 = vmatprep.subr.bf16.mxu0 0
        %2921 = vmatpush1.bf16.msra.mxu0 0
        %2922 = vmatprep.subr.bf16.mxu0 0
        %2923 = vmatpush1.bf16.msra.mxu0 0
        %2924 = vmatprep.subr.bf16.mxu0 0
        %2925 = vmatpush1.bf16.msra.mxu0 0
        %2926 = vmatprep.subr.bf16.mxu0 0
        %2927 = vmatpush1.bf16.msra.mxu0 0
        %2928 = vmatprep.subr.bf16.mxu0 0
        %2929 = vmatpush1.bf16.msra.mxu0 0
        %2930 = vmatprep.subr.bf16.mxu0 0
        %2931 = vmatpush1.bf16.msra.mxu0 0
        %2932 = vmatprep.subr.bf16.mxu0 0
        %2933 = vmatpush1.bf16.msra.mxu0 0
        %2934 = vmatprep.subr.bf16.mxu0 0
        %2935 = vmatpush1.bf16.msra.mxu0 0
        %2936 = vmatprep.mubr.bf16.mxu0 0
        %2937 = vmatmul.mubr.bf16.gmra.mrb[0].mxu0 %v2824
        %v2938 = vpop.f32.mrb[0].mxu0
        %v2939 = vadd.f32 0.0, %v2938
        %v2940 = vpop.f32.mrb[0].mxu0
        %v2941 = vpop.f32.mrb[0].mxu0
        %v2942 = vadd.f32 0.0, %v2941
        %v2943 = vpop.f32.mrb[0].mxu0
        %2944 = vmatprep.mubr.bf16.mxu0 0
        %2945 = vmatmul.mubr.bf16.gmra.mrb[0].mxu0 %v2825
        %v2946 = vpop.f32.mrb[0].mxu0
        %v2947 = vadd.f32 0.0, %v2946
        %v2948 = vpop.f32.mrb[0].mxu0
        %v2949 = vpop.f32.mrb[0].mxu0
        %v2950 = vadd.f32 0.0, %v2949
        %v2951 = vpop.f32.mrb[0].mxu0
        %2952 = vmatprep.mubr.bf16.mxu0 0
        %2953 = vmatmul.mubr.bf16.gmra.mrb[0].mxu0 %v2826
        %v2954 = vpop.f32.mrb[0].mxu0
        %v2955 = vadd.f32 0.0, %v2954
        %v2956 = vpop.f32.mrb[0].mxu0
        %v2957 = vpop.f32.mrb[0].mxu0
        %v2958 = vadd.f32 0.0, %v2957
        %v2959 = vpop.f32.mrb[0].mxu0
        %2960 = vmatprep.mubr.bf16.mxu0 0
        %2961 = vmatmul.mubr.bf16.gmra.mrb[0].mxu0 %v2827
        %v2962 = vpop.f32.mrb[0].mxu0
        %v2963 = vadd.f32 0.0, %v2962
        %v2964 = vpop.f32.mrb[0].mxu0
        %v2965 = vpop.f32.mrb[0].mxu0
        %v2966 = vadd.f32 0.0, %v2965
        %v2967 = vpop.f32.mrb[0].mxu0
        %2968 = vmatprep.mubr.bf16.mxu0 0
        %2969 = vmatmul.mubr.bf16.gmra.mrb[0].mxu0 %v2828
        %v2970 = vpop.f32.mrb[0].mxu0
        %v2971 = vadd.f32 0.0, %v2970
        %v2972 = vpop.f32.mrb[0].mxu0
        %v2973 = vpop.f32.mrb[0].mxu0
        %v2974 = vadd.f32 0.0, %v2973
        %v2975 = vpop.f32.mrb[0].mxu0
        %2976 = vmatprep.mubr.bf16.mxu0 0
        %2977 = vmatmul.mubr.bf16.gmra.mrb[0].mxu0 %v2829
        %v2978 = vpop.f32.mrb[0].mxu0
        %v2979 = vadd.f32 0.0, %v2978
        %v2980 = vpop.f32.mrb[0].mxu0
        %v2981 = vpop.f32.mrb[0].mxu0
        %v2982 = vadd.f32 0.0, %v2981
        %v2983 = vpop.f32.mrb[0].mxu0
        %2984 = vmatprep.mubr.bf16.mxu0 0
        %2985 = vmatmul.mubr.bf16.gmra.mrb[0].mxu0 %v2830
        %v2986 = vpop.f32.mrb[0].mxu0
        %v2987 = vadd.f32 0.0, %v2986
        %v2988 = vpop.f32.mrb[0].mxu0
        %v2989 = vpop.f32.mrb[0].mxu0
        %v2990 = vadd.f32 0.0, %v2989
        %v2991 = vpop.f32.mrb[0].mxu0
        %2992 = vmatprep.mubr.bf16.mxu0 0
        %2993 = vmatmul.mubr.bf16.gmra.mrb[0].mxu0 %v2831
        %v2994 = vpop.f32.mrb[0].mxu0
        %v2995 = vadd.f32 0.0, %v2994
        %v2996 = vpop.f32.mrb[0].mxu0
        %v2997 = vpop.f32.mrb[0].mxu0
        %v2998 = vadd.f32 0.0, %v2997
        %v2999 = vpop.f32.mrb[0].mxu0
        %3000 = vmatprep.mubr.bf16.mxu0 0
        %3001 = vmatmul.mubr.bf16.gmra.mrb[0].mxu0 %v2832
        %v3002 = vpop.f32.mrb[0].mxu0
        %v3003 = vadd.f32 0.0, %v3002
        %v3004 = vpop.f32.mrb[0].mxu0
        %v3005 = vpop.f32.mrb[0].mxu0
        %v3006 = vadd.f32 0.0, %v3005
        %v3007 = vpop.f32.mrb[0].mxu0
        %3008 = vmatprep.mubr.bf16.mxu0 0
        %3009 = vmatmul.mubr.bf16.gmra.mrb[0].mxu0 %v2833
        %v3010 = vpop.f32.mrb[0].mxu0
        %v3011 = vadd.f32 0.0, %v3010
        %v3012 = vpop.f32.mrb[0].mxu0
        %v3013 = vpop.f32.mrb[0].mxu0
        %v3014 = vadd.f32 0.0, %v3013
        %v3015 = vpop.f32.mrb[0].mxu0
        %3016 = vmatprep.mubr.bf16.mxu0 0
        %3017 = vmatmul.mubr.bf16.gmra.mrb[0].mxu0 %v2834
        %v3018 = vpop.f32.mrb[0].mxu0
        %v3019 = vadd.f32 0.0, %v3018
        %v3020 = vpop.f32.mrb[0].mxu0
        %v3021 = vpop.f32.mrb[0].mxu0
        %v3022 = vadd.f32 0.0, %v3021
        %v3023 = vpop.f32.mrb[0].mxu0
        %3024 = vmatprep.mubr.bf16.mxu0 0
        %3025 = vmatmul.mubr.bf16.gmra.mrb[0].mxu0 %v2835
        %v3026 = vpop.f32.mrb[0].mxu0
        %v3027 = vadd.f32 0.0, %v3026
        %v3028 = vpop.f32.mrb[0].mxu0
        %v3029 = vpop.f32.mrb[0].mxu0
        %v3030 = vadd.f32 0.0, %v3029
        %v3031 = vpop.f32.mrb[0].mxu0
        %3032 = vmatprep.mubr.bf16.mxu0 0
        %3033 = vmatmul.mubr.bf16.gmra.mrb[0].mxu0 %v2836
        %v3034 = vpop.f32.mrb[0].mxu0
        %v3035 = vadd.f32 0.0, %v3034
        %v3036 = vpop.f32.mrb[0].mxu0
        %v3037 = vpop.f32.mrb[0].mxu0
        %v3038 = vadd.f32 0.0, %v3037
        %v3039 = vpop.f32.mrb[0].mxu0
        %3040 = vmatprep.mubr.bf16.mxu0 0
        %3041 = vmatmul.mubr.bf16.gmra.mrb[0].mxu0 %v2837
        %v3042 = vpop.f32.mrb[0].mxu0
        %v3043 = vadd.f32 0.0, %v3042
        %v3044 = vpop.f32.mrb[0].mxu0
        %v3045 = vpop.f32.mrb[0].mxu0
        %v3046 = vadd.f32 0.0, %v3045
        %v3047 = vpop.f32.mrb[0].mxu0
        %3048 = vmatprep.mubr.bf16.mxu0 0
        %3049 = vmatmul.mubr.bf16.gmra.mrb[0].mxu0 %v2838
        %v3050 = vpop.f32.mrb[0].mxu0
        %v3051 = vadd.f32 0.0, %v3050
        %v3052 = vpop.f32.mrb[0].mxu0
        %v3053 = vpop.f32.mrb[0].mxu0
        %v3054 = vadd.f32 0.0, %v3053
        %v3055 = vpop.f32.mrb[0].mxu0
        %3056 = vmatprep.mubr.bf16.mxu0 0
        %3057 = vmatmul.mubr.bf16.gmra.mrb[0].mxu0 %v2839
        %v3058 = vpop.f32.mrb[0].mxu0
        %v3059 = vadd.f32 0.0, %v3058
        %v3060 = vpop.f32.mrb[0].mxu0
        %v3061 = vpop.f32.mrb[0].mxu0
        %v3062 = vadd.f32 0.0, %v3061
        %v3063 = vpop.f32.mrb[0].mxu0
        %3064 = vdwg.mxu0
        %v3065 = vadd.f32 %v2760, %v2939
        %v3066 = vadd.f32 %v2761, %v2942
        %v3067 = vadd.f32 %v2762, %v2947
        %v3068 = vadd.f32 %v2763, %v2950
        %v3069 = vadd.f32 %v2764, %v2955
        %v3070 = vadd.f32 %v2765, %v2958
        %v3071 = vadd.f32 %v2766, %v2963
        %v3072 = vadd.f32 %v2767, %v2966
        %v3073 = vadd.f32 %v2768, %v2971
        %v3074 = vadd.f32 %v2769, %v2974
        %v3075 = vadd.f32 %v2770, %v2979
        %v3076 = vadd.f32 %v2771, %v2982
        %v3077 = vadd.f32 %v2772, %v2987
        %v3078 = vadd.f32 %v2773, %v2990
        %v3079 = vadd.f32 %v2774, %v2995
        %v3080 = vadd.f32 %v2775, %v2998
        %v3081 = vadd.f32 %v2776, %v3003
        %v3082 = vadd.f32 %v2777, %v3006
        %v3083 = vadd.f32 %v2778, %v3011
        %v3084 = vadd.f32 %v2779, %v3014
        %v3085 = vadd.f32 %v2780, %v3019
        %v3086 = vadd.f32 %v2781, %v3022
        %v3087 = vadd.f32 %v2782, %v3027
        %v3088 = vadd.f32 %v2783, %v3030
        %v3089 = vadd.f32 %v2784, %v3035
        %v3090 = vadd.f32 %v2785, %v3038
        %v3091 = vadd.f32 %v2786, %v3043
        %v3092 = vadd.f32 %v2787, %v3046
        %v3093 = vadd.f32 %v2788, %v3051
        %v3094 = vadd.f32 %v2789, %v3054
        %v3095 = vadd.f32 %v2790, %v3059
        %v3096 = vadd.f32 %v2791, %v3062
        %v3097 = vadd.f32 %v3065, %v3066
        %v3098 = vadd.f32 %v3097, %v3067
        %v3099 = vadd.f32 %v3098, %v3068
        %v3100 = vadd.f32 %v3099, %v3069
        %v3101 = vadd.f32 %v3100, %v3070
        %v3102 = vadd.f32 %v3101, %v3071
        %v3103 = vadd.f32 %v3102, %v3072
        %v3104 = vadd.f32 %v3103, %v3073
        %v3105 = vadd.f32 %v3104, %v3074
        %v3106 = vadd.f32 %v3105, %v3075
        %v3107 = vadd.f32 %v3106, %v3076
        %v3108 = vadd.f32 %v3107, %v3077
        %v3109 = vadd.f32 %v3108, %v3078
        %v3110 = vadd.f32 %v3109, %v3079
        %v3111 = vadd.f32 %v3110, %v3080
        %v3112 = vadd.f32 %v3111, %v3081
        %v3113 = vadd.f32 %v3112, %v3082
        %v3114 = vadd.f32 %v3113, %v3083
        %v3115 = vadd.f32 %v3114, %v3084
        %v3116 = vadd.f32 %v3115, %v3085
        %v3117 = vadd.f32 %v3116, %v3086
        %v3118 = vadd.f32 %v3117, %v3087
        %v3119 = vadd.f32 %v3118, %v3088
        %v3120 = vadd.f32 %v3119, %v3089
        %v3121 = vadd.f32 %v3120, %v3090
        %v3122 = vadd.f32 %v3121, %v3091
        %v3123 = vadd.f32 %v3122, %v3092
        %v3124 = vadd.f32 %v3123, %v3093
        %v3125 = vadd.f32 %v3124, %v3094
        %v3126 = vadd.f32 %v3125, %v3095
        %v3127 = vadd.f32 %v3126, %v3096
        %v3128 = vrot.slane %v3127, 4
        %v3129 = vadd.f32 %v3127, %v3128
        %v3130 = vrot.slane %v3129, 2
        %v3131 = vadd.f32 %v3129, %v3130
        %v3132 = vrot.slane %v3131, 1
        %v3133 = vadd.f32 %v3131, %v3132
        %v3134 = vrcp.pop 256.0
        %v3135 = vmul.f32 %v3133, %v3134
        %v3136 = vmul.f32 %v3065, %v3065
        %v3137 = vmul.f32 %v3066, %v3066
        %v3138 = vmul.f32 %v3067, %v3067
        %v3139 = vmul.f32 %v3068, %v3068
        %v3140 = vmul.f32 %v3069, %v3069
        %v3141 = vmul.f32 %v3070, %v3070
        %v3142 = vmul.f32 %v3071, %v3071
        %v3143 = vmul.f32 %v3072, %v3072
        %v3144 = vmul.f32 %v3073, %v3073
        %v3145 = vmul.f32 %v3074, %v3074
        %v3146 = vmul.f32 %v3075, %v3075
        %v3147 = vmul.f32 %v3076, %v3076
        %v3148 = vmul.f32 %v3077, %v3077
        %v3149 = vmul.f32 %v3078, %v3078
        %v3150 = vmul.f32 %v3079, %v3079
        %v3151 = vmul.f32 %v3080, %v3080
        %v3152 = vmul.f32 %v3081, %v3081
        %v3153 = vmul.f32 %v3082, %v3082
        %v3154 = vmul.f32 %v3083, %v3083
        %v3155 = vmul.f32 %v3084, %v3084
        %v3156 = vmul.f32 %v3085, %v3085
        %v3157 = vmul.f32 %v3086, %v3086
        %v3158 = vmul.f32 %v3087, %v3087
        %v3159 = vmul.f32 %v3088, %v3088
        %v3160 = vmul.f32 %v3089, %v3089
        %v3161 = vmul.f32 %v3090, %v3090
        %v3162 = vmul.f32 %v3091, %v3091
        %v3163 = vmul.f32 %v3092, %v3092
        %v3164 = vmul.f32 %v3093, %v3093
        %v3165 = vmul.f32 %v3094, %v3094
        %v3166 = vmul.f32 %v3095, %v3095
        %v3167 = vmul.f32 %v3096, %v3096
        %v3168 = vadd.f32 %v3136, %v3137
        %v3169 = vadd.f32 %v3168, %v3138
        %v3170 = vadd.f32 %v3169, %v3139
        %v3171 = vadd.f32 %v3170, %v3140
        %v3172 = vadd.f32 %v3171, %v3141
        %v3173 = vadd.f32 %v3172, %v3142
        %v3174 = vadd.f32 %v3173, %v3143
        %v3175 = vadd.f32 %v3174, %v3144
        %v3176 = vadd.f32 %v3175, %v3145
        %v3177 = vadd.f32 %v3176, %v3146
        %v3178 = vadd.f32 %v3177, %v3147
        %v3179 = vadd.f32 %v3178, %v3148
        %v3180 = vadd.f32 %v3179, %v3149
        %v3181 = vadd.f32 %v3180, %v3150
        %v3182 = vadd.f32 %v3181, %v3151
        %v3183 = vadd.f32 %v3182, %v3152
        %v3184 = vadd.f32 %v3183, %v3153
        %v3185 = vadd.f32 %v3184, %v3154
        %v3186 = vadd.f32 %v3185, %v3155
        %v3187 = vadd.f32 %v3186, %v3156
        %v3188 = vadd.f32 %v3187, %v3157
        %v3189 = vadd.f32 %v3188, %v3158
        %v3190 = vadd.f32 %v3189, %v3159
        %v3191 = vadd.f32 %v3190, %v3160
        %v3192 = vadd.f32 %v3191, %v3161
        %v3193 = vadd.f32 %v3192, %v3162
        %v3194 = vadd.f32 %v3193, %v3163
        %v3195 = vadd.f32 %v3194, %v3164
        %v3196 = vadd.f32 %v3195, %v3165
        %v3197 = vadd.f32 %v3196, %v3166
        %v3198 = vadd.f32 %v3197, %v3167
        %v3199 = vrot.slane %v3198, 4
        %v3200 = vadd.f32 %v3198, %v3199
        %v3201 = vrot.slane %v3200, 2
        %v3202 = vadd.f32 %v3200, %v3201
        %v3203 = vrot.slane %v3202, 1
        %v3204 = vadd.f32 %v3202, %v3203
        %v3205 = vmul.f32 %v3204, %v3134
        %v3206 = vmul.f32 %v3135, %v3135
        %v3207 = vsub.f32 %v3205, %v3206
        %v3208 = vmax.f32 %v3207, 0.0
        %v3209 = vld [vmem:[%s2] sm:$0x1]
        %v3210 = vadd.f32 %v3208, 1e-05
        %v3211 = vrsqrt.pop %v3210
        %v3212 = vmul.f32 %v3209, %v3211
        %v3213 = vld [vmem:[%s3] sm:$0x1]
        %v3214 = vmul.f32 %v3135, %v3212
        %v3215 = vsub.f32 %v3213, %v3214
        %v3217 = vlaneseq
        %v3218 = vshrl.u32 %v3217, 7
        %v3219 = vsub.s32 0, %v3218
        %v3220 = vrot.slane %v3212, %v3219
        %v3222 = vmul.f32 %v3065, %v3220
        %v3223 = vmul.f32 %v3066, %v3220
        %v3224 = vmul.f32 %v3067, %v3220
        %v3225 = vmul.f32 %v3068, %v3220
        %v3226 = vmul.f32 %v3069, %v3220
        %v3227 = vmul.f32 %v3070, %v3220
        %v3228 = vmul.f32 %v3071, %v3220
        %v3229 = vmul.f32 %v3072, %v3220
        %v3230 = vmul.f32 %v3073, %v3220
        %v3231 = vmul.f32 %v3074, %v3220
        %v3232 = vmul.f32 %v3075, %v3220
        %v3233 = vmul.f32 %v3076, %v3220
        %v3234 = vmul.f32 %v3077, %v3220
        %v3235 = vmul.f32 %v3078, %v3220
        %v3236 = vmul.f32 %v3079, %v3220
        %v3237 = vmul.f32 %v3080, %v3220
        %v3238 = vmul.f32 %v3081, %v3220
        %v3239 = vmul.f32 %v3082, %v3220
        %v3240 = vmul.f32 %v3083, %v3220
        %v3241 = vmul.f32 %v3084, %v3220
        %v3242 = vmul.f32 %v3085, %v3220
        %v3243 = vmul.f32 %v3086, %v3220
        %v3244 = vmul.f32 %v3087, %v3220
        %v3245 = vmul.f32 %v3088, %v3220
        %v3246 = vmul.f32 %v3089, %v3220
        %v3247 = vmul.f32 %v3090, %v3220
        %v3248 = vmul.f32 %v3091, %v3220
        %v3249 = vmul.f32 %v3092, %v3220
        %v3250 = vmul.f32 %v3093, %v3220
        %v3251 = vmul.f32 %v3094, %v3220
        %v3252 = vmul.f32 %v3095, %v3220
        %v3253 = vmul.f32 %v3096, %v3220
        %v3255 = vlaneseq
        %v3256 = vshrl.u32 %v3255, 7
        %v3257 = vsub.s32 0, %v3256
        %v3258 = vrot.slane %v3215, %v3257
        %v3260 = vadd.f32 %v3222, %v3258
        %v3261 = vadd.f32 %v3223, %v3258
        %v3262 = vadd.f32 %v3224, %v3258
        %v3263 = vadd.f32 %v3225, %v3258
        %v3264 = vadd.f32 %v3226, %v3258
        %v3265 = vadd.f32 %v3227, %v3258
        %v3266 = vadd.f32 %v3228, %v3258
        %v3267 = vadd.f32 %v3229, %v3258
        %v3268 = vadd.f32 %v3230, %v3258
        %v3269 = vadd.f32 %v3231, %v3258
        %v3270 = vadd.f32 %v3232, %v3258
        %v3271 = vadd.f32 %v3233, %v3258
        %v3272 = vadd.f32 %v3234, %v3258
        %v3273 = vadd.f32 %v3235, %v3258
        %v3274 = vadd.f32 %v3236, %v3258
        %v3275 = vadd.f32 %v3237, %v3258
        %v3276 = vadd.f32 %v3238, %v3258
        %v3277 = vadd.f32 %v3239, %v3258
        %v3278 = vadd.f32 %v3240, %v3258
        %v3279 = vadd.f32 %v3241, %v3258
        %v3280 = vadd.f32 %v3242, %v3258
        %v3281 = vadd.f32 %v3243, %v3258
        %v3282 = vadd.f32 %v3244, %v3258
        %v3283 = vadd.f32 %v3245, %v3258
        %v3284 = vadd.f32 %v3246, %v3258
        %v3285 = vadd.f32 %v3247, %v3258
        %v3286 = vadd.f32 %v3248, %v3258
        %v3287 = vadd.f32 %v3249, %v3258
        %v3288 = vadd.f32 %v3250, %v3258
        %v3289 = vadd.f32 %v3251, %v3258
        %v3290 = vadd.f32 %v3252, %v3258
        %v3291 = vadd.f32 %v3253, %v3258
        %v3292 = vmax.f32 %v3260, 0.0
        %v3293 = vmax.f32 %v3261, 0.0
        %v3294 = vmax.f32 %v3262, 0.0
        %v3295 = vmax.f32 %v3263, 0.0
        %v3296 = vmax.f32 %v3264, 0.0
        %v3297 = vmax.f32 %v3265, 0.0
        %v3298 = vmax.f32 %v3266, 0.0
        %v3299 = vmax.f32 %v3267, 0.0
        %v3300 = vmax.f32 %v3268, 0.0
        %v3301 = vmax.f32 %v3269, 0.0
        %v3302 = vmax.f32 %v3270, 0.0
        %v3303 = vmax.f32 %v3271, 0.0
        %v3304 = vmax.f32 %v3272, 0.0
        %v3305 = vmax.f32 %v3273, 0.0
        %v3306 = vmax.f32 %v3274, 0.0
        %v3307 = vmax.f32 %v3275, 0.0
        %v3308 = vmax.f32 %v3276, 0.0
        %v3309 = vmax.f32 %v3277, 0.0
        %v3310 = vmax.f32 %v3278, 0.0
        %v3311 = vmax.f32 %v3279, 0.0
        %v3312 = vmax.f32 %v3280, 0.0
        %v3313 = vmax.f32 %v3281, 0.0
        %v3314 = vmax.f32 %v3282, 0.0
        %v3315 = vmax.f32 %v3283, 0.0
        %v3316 = vmax.f32 %v3284, 0.0
        %v3317 = vmax.f32 %v3285, 0.0
        %v3318 = vmax.f32 %v3286, 0.0
        %v3319 = vmax.f32 %v3287, 0.0
        %v3320 = vmax.f32 %v3288, 0.0
        %v3321 = vmax.f32 %v3289, 0.0
        %v3322 = vmax.f32 %v3290, 0.0
        %v3323 = vmax.f32 %v3291, 0.0
        %3324 = vst [vmem:[%s381 + $0x1] sm:$0xff] %v3292
        %3325 = vst [vmem:[%s381 + $0x9] sm:$0xff] %v3293
        %3326 = vst [vmem:[%s381 + $0x19] sm:$0xff] %v3294
        %3327 = vst [vmem:[%s381 + $0x21] sm:$0xff] %v3295
        %3328 = vst [vmem:[%s381 + $0x31] sm:$0xff] %v3296
        %3329 = vst [vmem:[%s381 + $0x39] sm:$0xff] %v3297
        %3330 = vst [vmem:[%s381 + $0x49] sm:$0xff] %v3298
        %3331 = vst [vmem:[%s381 + $0x51] sm:$0xff] %v3299
        %3332 = vst [vmem:[%s381 + $0x61] sm:$0xff] %v3300
        %3333 = vst [vmem:[%s381 + $0x69] sm:$0xff] %v3301
        %3334 = vst [vmem:[%s381 + $0x79] sm:$0xff] %v3302
        %3335 = vst [vmem:[%s381 + $0x81] sm:$0xff] %v3303
        %3336 = vst [vmem:[%s381 + $0x91] sm:$0xff] %v3304
        %3337 = vst [vmem:[%s381 + $0x99] sm:$0xff] %v3305
        %3338 = vst [vmem:[%s381 + $0xa9] sm:$0xff] %v3306
        %3339 = vst [vmem:[%s381 + $0xb1] sm:$0xff] %v3307
        %3340 = vst [vmem:[%s381 + $0xc1] sm:$0xff] %v3308
        %3341 = vst [vmem:[%s381 + $0xc9] sm:$0xff] %v3309
        %3342 = vst [vmem:[%s381 + $0xd9] sm:$0xff] %v3310
        %3343 = vst [vmem:[%s381 + $0xe1] sm:$0xff] %v3311
        %3344 = vst [vmem:[%s381 + $0xf1] sm:$0xff] %v3312
        %3345 = vst [vmem:[%s381 + $0xf9] sm:$0xff] %v3313
        %3346 = vst [vmem:[%s381 + $0x109] sm:$0xff] %v3314
        %3347 = vst [vmem:[%s381 + $0x111] sm:$0xff] %v3315
        %3348 = vst [vmem:[%s381 + $0x121] sm:$0xff] %v3316
        %3349 = vst [vmem:[%s381 + $0x129] sm:$0xff] %v3317
        %3350 = vst [vmem:[%s381 + $0x139] sm:$0xff] %v3318
        %3351 = vst [vmem:[%s381 + $0x141] sm:$0xff] %v3319
        %3352 = vst [vmem:[%s381 + $0x151] sm:$0xff] %v3320
        %3353 = vst [vmem:[%s381 + $0x159] sm:$0xff] %v3321
        %3354 = vst [vmem:[%s381 + $0x169] sm:$0xff] %v3322
        %3355 = vst [vmem:[%s381 + $0x171] sm:$0xff] %v3323
        %v3356 = vld [vmem:[#allocation2] sm:$0xff]
        %v3357 = vld [vmem:[#allocation2 + $0x8] sm:$0xff]
        %v3358 = vld [vmem:[#allocation2 + $0x18] sm:$0xff]
        %v3359 = vld [vmem:[#allocation2 + $0x20] sm:$0xff]
        %v3360 = vld [vmem:[#allocation2 + $0x30] sm:$0xff]
        %v3361 = vld [vmem:[#allocation2 + $0x38] sm:$0xff]
        %v3362 = vld [vmem:[#allocation2 + $0x48] sm:$0xff]
        %v3363 = vld [vmem:[#allocation2 + $0x50] sm:$0xff]
        %v3364 = vld [vmem:[#allocation2 + $0x60] sm:$0xff]
        %v3365 = vld [vmem:[#allocation2 + $0x68] sm:$0xff]
        %v3366 = vld [vmem:[#allocation2 + $0x78] sm:$0xff]
        %v3367 = vld [vmem:[#allocation2 + $0x80] sm:$0xff]
        %v3368 = vld [vmem:[#allocation2 + $0x90] sm:$0xff]
        %v3369 = vld [vmem:[#allocation2 + $0x98] sm:$0xff]
        %v3370 = vld [vmem:[#allocation2 + $0xa8] sm:$0xff]
        %v3371 = vld [vmem:[#allocation2 + $0xb0] sm:$0xff]
        %v3372 = vld [vmem:[#allocation2 + $0xc0] sm:$0xff]
        %v3373 = vld [vmem:[#allocation2 + $0xc8] sm:$0xff]
        %v3374 = vld [vmem:[#allocation2 + $0xd8] sm:$0xff]
        %v3375 = vld [vmem:[#allocation2 + $0xe0] sm:$0xff]
        %v3376 = vld [vmem:[#allocation2 + $0xf0] sm:$0xff]
        %v3377 = vld [vmem:[#allocation2 + $0xf8] sm:$0xff]
        %v3378 = vld [vmem:[#allocation2 + $0x108] sm:$0xff]
        %v3379 = vld [vmem:[#allocation2 + $0x110] sm:$0xff]
        %v3380 = vld [vmem:[#allocation2 + $0x120] sm:$0xff]
        %v3381 = vld [vmem:[#allocation2 + $0x128] sm:$0xff]
        %v3382 = vld [vmem:[#allocation2 + $0x138] sm:$0xff]
        %v3383 = vld [vmem:[#allocation2 + $0x140] sm:$0xff]
        %v3384 = vld [vmem:[#allocation2 + $0x150] sm:$0xff]
        %v3385 = vld [vmem:[#allocation2 + $0x158] sm:$0xff]
        %v3386 = vld [vmem:[#allocation2 + $0x168] sm:$0xff]
        %v3387 = vld [vmem:[#allocation2 + $0x170] sm:$0xff]
        %v3388 = vpack.c.bf16 %v3357, %v3356
        %v3389 = vpack.c.bf16 %v3359, %v3358
        %v3390 = vpack.c.bf16 %v3361, %v3360
        %v3391 = vpack.c.bf16 %v3363, %v3362
        %v3392 = vpack.c.bf16 %v3365, %v3364
        %v3393 = vpack.c.bf16 %v3367, %v3366
        %v3394 = vpack.c.bf16 %v3369, %v3368
        %v3395 = vpack.c.bf16 %v3371, %v3370
        %v3396 = vpack.c.bf16 %v3373, %v3372
        %v3397 = vpack.c.bf16 %v3375, %v3374
        %v3398 = vpack.c.bf16 %v3377, %v3376
        %v3399 = vpack.c.bf16 %v3379, %v3378
        %v3400 = vpack.c.bf16 %v3381, %v3380
        %v3401 = vpack.c.bf16 %v3383, %v3382
        %v3402 = vpack.c.bf16 %v3385, %v3384
        %v3403 = vpack.c.bf16 %v3387, %v3386
        %v3404 = vld [vmem:[#allocation3] sm:$0xf]
        %v3405 = vld [vmem:[#allocation3 + $0x4] sm:$0xf]
        %v3406 = vld [vmem:[#allocation3 + $0x8] sm:$0xf]
        %v3407 = vld [vmem:[#allocation3 + $0xc] sm:$0xf]
        %v3408 = vld [vmem:[#allocation3 + $0x10] sm:$0xf]
        %v3409 = vld [vmem:[#allocation3 + $0x14] sm:$0xf]
        %v3410 = vld [vmem:[#allocation3 + $0x18] sm:$0xf]
        %v3411 = vld [vmem:[#allocation3 + $0x1c] sm:$0xf]
        %v3412 = vld [vmem:[#allocation3 + $0x20] sm:$0xf]
        %v3413 = vld [vmem:[#allocation3 + $0x24] sm:$0xf]
        %v3414 = vld [vmem:[#allocation3 + $0x28] sm:$0xf]
        %v3415 = vld [vmem:[#allocation3 + $0x2c] sm:$0xf]
        %v3416 = vld [vmem:[#allocation3 + $0x30] sm:$0xf]
        %v3417 = vld [vmem:[#allocation3 + $0x34] sm:$0xf]
        %v3418 = vld [vmem:[#allocation3 + $0x38] sm:$0xf]
        %v3419 = vld [vmem:[#allocation3 + $0x3c] sm:$0xf]
        %v3420 = vld [vmem:[#allocation2 + $0x1] sm:$0xff]
        %v3421 = vld [vmem:[#allocation2 + $0x9] sm:$0xff]
        %v3422 = vld [vmem:[#allocation2 + $0x19] sm:$0xff]
        %v3423 = vld [vmem:[#allocation2 + $0x21] sm:$0xff]
        %v3424 = vld [vmem:[#allocation2 + $0x31] sm:$0xff]
        %v3425 = vld [vmem:[#allocation2 + $0x39] sm:$0xff]
        %v3426 = vld [vmem:[#allocation2 + $0x49] sm:$0xff]
        %v3427 = vld [vmem:[#allocation2 + $0x51] sm:$0xff]
        %v3428 = vld [vmem:[#allocation2 + $0x61] sm:$0xff]
        %v3429 = vld [vmem:[#allocation2 + $0x69] sm:$0xff]
        %v3430 = vld [vmem:[#allocation2 + $0x79] sm:$0xff]
        %v3431 = vld [vmem:[#allocation2 + $0x81] sm:$0xff]
        %v3432 = vld [vmem:[#allocation2 + $0x91] sm:$0xff]
        %v3433 = vld [vmem:[#allocation2 + $0x99] sm:$0xff]
        %v3434 = vld [vmem:[#allocation2 + $0xa9] sm:$0xff]
        %v3435 = vld [vmem:[#allocation2 + $0xb1] sm:$0xff]
        %v3436 = vld [vmem:[#allocation2 + $0xc1] sm:$0xff]
        %v3437 = vld [vmem:[#allocation2 + $0xc9] sm:$0xff]
        %v3438 = vld [vmem:[#allocation2 + $0xd9] sm:$0xff]
        %v3439 = vld [vmem:[#allocation2 + $0xe1] sm:$0xff]
        %v3440 = vld [vmem:[#allocation2 + $0xf1] sm:$0xff]
        %v3441 = vld [vmem:[#allocation2 + $0xf9] sm:$0xff]
        %v3442 = vld [vmem:[#allocation2 + $0x109] sm:$0xff]
        %v3443 = vld [vmem:[#allocation2 + $0x111] sm:$0xff]
        %v3444 = vld [vmem:[#allocation2 + $0x121] sm:$0xff]
        %v3445 = vld [vmem:[#allocation2 + $0x129] sm:$0xff]
        %v3446 = vld [vmem:[#allocation2 + $0x139] sm:$0xff]
        %v3447 = vld [vmem:[#allocation2 + $0x141] sm:$0xff]
        %v3448 = vld [vmem:[#allocation2 + $0x151] sm:$0xff]
        %v3449 = vld [vmem:[#allocation2 + $0x159] sm:$0xff]
        %v3450 = vld [vmem:[#allocation2 + $0x169] sm:$0xff]
        %v3451 = vld [vmem:[#allocation2 + $0x171] sm:$0xff]
        %v3452 = vpack.c.bf16 %v3421, %v3420
        %v3453 = vpack.c.bf16 %v3423, %v3422
        %v3454 = vpack.c.bf16 %v3425, %v3424
        %v3455 = vpack.c.bf16 %v3427, %v3426
        %v3456 = vpack.c.bf16 %v3429, %v3428
        %v3457 = vpack.c.bf16 %v3431, %v3430
        %v3458 = vpack.c.bf16 %v3433, %v3432
        %v3459 = vpack.c.bf16 %v3435, %v3434
        %v3460 = vpack.c.bf16 %v3437, %v3436
        %v3461 = vpack.c.bf16 %v3439, %v3438
        %v3462 = vpack.c.bf16 %v3441, %v3440
        %v3463 = vpack.c.bf16 %v3443, %v3442
        %v3464 = vpack.c.bf16 %v3445, %v3444
        %v3465 = vpack.c.bf16 %v3447, %v3446
        %v3466 = vpack.c.bf16 %v3449, %v3448
        %v3467 = vpack.c.bf16 %v3451, %v3450
        %v3468 = vld [vmem:[#allocation3 + $0x40] sm:$0xf]
        %v3469 = vld [vmem:[#allocation3 + $0x44] sm:$0xf]
        %v3470 = vld [vmem:[#allocation3 + $0x48] sm:$0xf]
        %v3471 = vld [vmem:[#allocation3 + $0x4c] sm:$0xf]
        %v3472 = vld [vmem:[#allocation3 + $0x50] sm:$0xf]
        %v3473 = vld [vmem:[#allocation3 + $0x54] sm:$0xf]
        %v3474 = vld [vmem:[#allocation3 + $0x58] sm:$0xf]
        %v3475 = vld [vmem:[#allocation3 + $0x5c] sm:$0xf]
        %v3476 = vld [vmem:[#allocation3 + $0x60] sm:$0xf]
        %v3477 = vld [vmem:[#allocation3 + $0x64] sm:$0xf]
        %v3478 = vld [vmem:[#allocation3 + $0x68] sm:$0xf]
        %v3479 = vld [vmem:[#allocation3 + $0x6c] sm:$0xf]
        %v3480 = vld [vmem:[#allocation3 + $0x70] sm:$0xf]
        %v3481 = vld [vmem:[#allocation3 + $0x74] sm:$0xf]
        %v3482 = vld [vmem:[#allocation3 + $0x78] sm:$0xf]
        %v3483 = vld [vmem:[#allocation3 + $0x7c] sm:$0xf]
        %v3500 = vunpack.c.l.b16 %v3468
        %v3501 = vunpack.c.l.b16 %v3469
        %v3502 = vunpack.c.l.b16 %v3470
        %v3503 = vunpack.c.l.b16 %v3471
        %v3504 = vunpack.c.l.b16 %v3472
        %v3505 = vunpack.c.l.b16 %v3473
        %v3506 = vunpack.c.l.b16 %v3474
        %v3507 = vunpack.c.l.b16 %v3475
        %v3508 = vunpack.c.l.b16 %v3476
        %v3509 = vunpack.c.l.b16 %v3477
        %v3510 = vunpack.c.l.b16 %v3478
        %v3511 = vunpack.c.l.b16 %v3479
        %v3512 = vunpack.c.l.b16 %v3480
        %v3513 = vunpack.c.l.b16 %v3481
        %v3514 = vunpack.c.l.b16 %v3482
        %v3515 = vunpack.c.l.b16 %v3483
        %v3516 = vpack.c.b16 %v3501, %v3500
        %v3517 = vpack.c.b16 %v3503, %v3502
        %v3518 = vpack.c.b16 %v3505, %v3504
        %v3519 = vpack.c.b16 %v3507, %v3506
        %v3520 = vpack.c.b16 %v3509, %v3508
        %v3521 = vpack.c.b16 %v3511, %v3510
        %v3522 = vpack.c.b16 %v3513, %v3512
        %v3523 = vpack.c.b16 %v3515, %v3514
        %3532 = vmatprep.subr.bf16.mxu0 0
        %3533 = vmatpush1.bf16.msra.mxu0 %v3516
        %3534 = vmatprep.subr.bf16.mxu0 0
        %3535 = vmatpush1.bf16.msra.mxu0 %v3517
        %3536 = vmatprep.subr.bf16.mxu0 0
        %3537 = vmatpush1.bf16.msra.mxu0 %v3518
        %3538 = vmatprep.subr.bf16.mxu0 0
        %3539 = vmatpush1.bf16.msra.mxu0 %v3519
        %3540 = vmatprep.subr.bf16.mxu0 0
        %3541 = vmatpush1.bf16.msra.mxu0 %v3520
        %3542 = vmatprep.subr.bf16.mxu0 0
        %3543 = vmatpush1.bf16.msra.mxu0 %v3521
        %3544 = vmatprep.subr.bf16.mxu0 0
        %3545 = vmatpush1.bf16.msra.mxu0 %v3522
        %3546 = vmatprep.subr.bf16.mxu0 0
        %3547 = vmatpush1.bf16.msra.mxu0 %v3523
        %3548 = vmatprep.subr.bf16.mxu0 0
        %3549 = vmatpush1.bf16.msra.mxu0 0
        %3550 = vmatprep.subr.bf16.mxu0 0
        %3551 = vmatpush1.bf16.msra.mxu0 0
        %3552 = vmatprep.subr.bf16.mxu0 0
        %3553 = vmatpush1.bf16.msra.mxu0 0
        %3554 = vmatprep.subr.bf16.mxu0 0
        %3555 = vmatpush1.bf16.msra.mxu0 0
        %3556 = vmatprep.subr.bf16.mxu0 0
        %3557 = vmatpush1.bf16.msra.mxu0 0
        %3558 = vmatprep.subr.bf16.mxu0 0
        %3559 = vmatpush1.bf16.msra.mxu0 0
        %3560 = vmatprep.subr.bf16.mxu0 0
        %3561 = vmatpush1.bf16.msra.mxu0 0
        %3562 = vmatprep.subr.bf16.mxu0 0
        %3563 = vmatpush1.bf16.msra.mxu0 0
        %3564 = vmatprep.mubr.bf16.mxu0 0
        %3565 = vmatmul.mubr.bf16.gmra.mrb[0].mxu0 %v3452
        %v3566 = vpop.f32.mrb[0].mxu0
        %v3567 = vadd.f32 0.0, %v3566
        %v3568 = vpop.f32.mrb[0].mxu0
        %v3569 = vpop.f32.mrb[0].mxu0
        %v3570 = vadd.f32 0.0, %v3569
        %v3571 = vpop.f32.mrb[0].mxu0
        %3572 = vmatprep.mubr.bf16.mxu0 0
        %3573 = vmatmul.mubr.bf16.gmra.mrb[0].mxu0 %v3453
        %v3574 = vpop.f32.mrb[0].mxu0
        %v3575 = vadd.f32 0.0, %v3574
        %v3576 = vpop.f32.mrb[0].mxu0
        %v3577 = vpop.f32.mrb[0].mxu0
        %v3578 = vadd.f32 0.0, %v3577
        %v3579 = vpop.f32.mrb[0].mxu0
        %3580 = vmatprep.mubr.bf16.mxu0 0
        %3581 = vmatmul.mubr.bf16.gmra.mrb[0].mxu0 %v3454
        %v3582 = vpop.f32.mrb[0].mxu0
        %v3583 = vadd.f32 0.0, %v3582
        %v3584 = vpop.f32.mrb[0].mxu0
        %v3585 = vpop.f32.mrb[0].mxu0
        %v3586 = vadd.f32 0.0, %v3585
        %v3587 = vpop.f32.mrb[0].mxu0
        %3588 = vmatprep.mubr.bf16.mxu0 0
        %3589 = vmatmul.mubr.bf16.gmra.mrb[0].mxu0 %v3455
        %v3590 = vpop.f32.mrb[0].mxu0
        %v3591 = vadd.f32 0.0, %v3590
        %v3592 = vpop.f32.mrb[0].mxu0
        %v3593 = vpop.f32.mrb[0].mxu0
        %v3594 = vadd.f32 0.0, %v3593
        %v3595 = vpop.f32.mrb[0].mxu0
        %3596 = vmatprep.mubr.bf16.mxu0 0
        %3597 = vmatmul.mubr.bf16.gmra.mrb[0].mxu0 %v3456
        %v3598 = vpop.f32.mrb[0].mxu0
        %v3599 = vadd.f32 0.0, %v3598
        %v3600 = vpop.f32.mrb[0].mxu0
        %v3601 = vpop.f32.mrb[0].mxu0
        %v3602 = vadd.f32 0.0, %v3601
        %v3603 = vpop.f32.mrb[0].mxu0
        %3604 = vmatprep.mubr.bf16.mxu0 0
        %3605 = vmatmul.mubr.bf16.gmra.mrb[0].mxu0 %v3457
        %v3606 = vpop.f32.mrb[0].mxu0
        %v3607 = vadd.f32 0.0, %v3606
        %v3608 = vpop.f32.mrb[0].mxu0
        %v3609 = vpop.f32.mrb[0].mxu0
        %v3610 = vadd.f32 0.0, %v3609
        %v3611 = vpop.f32.mrb[0].mxu0
        %3612 = vmatprep.mubr.bf16.mxu0 0
        %3613 = vmatmul.mubr.bf16.gmra.mrb[0].mxu0 %v3458
        %v3614 = vpop.f32.mrb[0].mxu0
        %v3615 = vadd.f32 0.0, %v3614
        %v3616 = vpop.f32.mrb[0].mxu0
        %v3617 = vpop.f32.mrb[0].mxu0
        %v3618 = vadd.f32 0.0, %v3617
        %v3619 = vpop.f32.mrb[0].mxu0
        %3620 = vmatprep.mubr.bf16.mxu0 0
        %3621 = vmatmul.mubr.bf16.gmra.mrb[0].mxu0 %v3459
        %v3622 = vpop.f32.mrb[0].mxu0
        %v3623 = vadd.f32 0.0, %v3622
        %v3624 = vpop.f32.mrb[0].mxu0
        %v3625 = vpop.f32.mrb[0].mxu0
        %v3626 = vadd.f32 0.0, %v3625
        %v3627 = vpop.f32.mrb[0].mxu0
        %3628 = vmatprep.mubr.bf16.mxu0 0
        %3629 = vmatmul.mubr.bf16.gmra.mrb[0].mxu0 %v3460
        %v3630 = vpop.f32.mrb[0].mxu0
        %v3631 = vadd.f32 0.0, %v3630
        %v3632 = vpop.f32.mrb[0].mxu0
        %v3633 = vpop.f32.mrb[0].mxu0
        %v3634 = vadd.f32 0.0, %v3633
        %v3635 = vpop.f32.mrb[0].mxu0
        %3636 = vmatprep.mubr.bf16.mxu0 0
        %3637 = vmatmul.mubr.bf16.gmra.mrb[0].mxu0 %v3461
        %v3638 = vpop.f32.mrb[0].mxu0
        %v3639 = vadd.f32 0.0, %v3638
        %v3640 = vpop.f32.mrb[0].mxu0
        %v3641 = vpop.f32.mrb[0].mxu0
        %v3642 = vadd.f32 0.0, %v3641
        %v3643 = vpop.f32.mrb[0].mxu0
        %3644 = vmatprep.mubr.bf16.mxu0 0
        %3645 = vmatmul.mubr.bf16.gmra.mrb[0].mxu0 %v3462
        %v3646 = vpop.f32.mrb[0].mxu0
        %v3647 = vadd.f32 0.0, %v3646
        %v3648 = vpop.f32.mrb[0].mxu0
        %v3649 = vpop.f32.mrb[0].mxu0
        %v3650 = vadd.f32 0.0, %v3649
        %v3651 = vpop.f32.mrb[0].mxu0
        %3652 = vmatprep.mubr.bf16.mxu0 0
        %3653 = vmatmul.mubr.bf16.gmra.mrb[0].mxu0 %v3463
        %v3654 = vpop.f32.mrb[0].mxu0
        %v3655 = vadd.f32 0.0, %v3654
        %v3656 = vpop.f32.mrb[0].mxu0
        %v3657 = vpop.f32.mrb[0].mxu0
        %v3658 = vadd.f32 0.0, %v3657
        %v3659 = vpop.f32.mrb[0].mxu0
        %3660 = vmatprep.mubr.bf16.mxu0 0
        %3661 = vmatmul.mubr.bf16.gmra.mrb[0].mxu0 %v3464
        %v3662 = vpop.f32.mrb[0].mxu0
        %v3663 = vadd.f32 0.0, %v3662
        %v3664 = vpop.f32.mrb[0].mxu0
        %v3665 = vpop.f32.mrb[0].mxu0
        %v3666 = vadd.f32 0.0, %v3665
        %v3667 = vpop.f32.mrb[0].mxu0
        %3668 = vmatprep.mubr.bf16.mxu0 0
        %3669 = vmatmul.mubr.bf16.gmra.mrb[0].mxu0 %v3465
        %v3670 = vpop.f32.mrb[0].mxu0
        %v3671 = vadd.f32 0.0, %v3670
        %v3672 = vpop.f32.mrb[0].mxu0
        %v3673 = vpop.f32.mrb[0].mxu0
        %v3674 = vadd.f32 0.0, %v3673
        %v3675 = vpop.f32.mrb[0].mxu0
        %3676 = vmatprep.mubr.bf16.mxu0 0
        %3677 = vmatmul.mubr.bf16.gmra.mrb[0].mxu0 %v3466
        %v3678 = vpop.f32.mrb[0].mxu0
        %v3679 = vadd.f32 0.0, %v3678
        %v3680 = vpop.f32.mrb[0].mxu0
        %v3681 = vpop.f32.mrb[0].mxu0
        %v3682 = vadd.f32 0.0, %v3681
        %v3683 = vpop.f32.mrb[0].mxu0
        %3684 = vmatprep.mubr.bf16.mxu0 0
        %3685 = vmatmul.mubr.bf16.gmra.mrb[0].mxu0 %v3467
        %v3686 = vpop.f32.mrb[0].mxu0
        %v3687 = vadd.f32 0.0, %v3686
        %v3688 = vpop.f32.mrb[0].mxu0
        %v3689 = vpop.f32.mrb[0].mxu0
        %v3690 = vadd.f32 0.0, %v3689
        %v3691 = vpop.f32.mrb[0].mxu0
        %3692 = vdwg.mxu0
        %v3709 = vunpack.c.l.b16 %v3404
        %v3710 = vunpack.c.l.b16 %v3405
        %v3711 = vunpack.c.l.b16 %v3406
        %v3712 = vunpack.c.l.b16 %v3407
        %v3713 = vunpack.c.l.b16 %v3408
        %v3714 = vunpack.c.l.b16 %v3409
        %v3715 = vunpack.c.l.b16 %v3410
        %v3716 = vunpack.c.l.b16 %v3411
        %v3717 = vunpack.c.l.b16 %v3412
        %v3718 = vunpack.c.l.b16 %v3413
        %v3719 = vunpack.c.l.b16 %v3414
        %v3720 = vunpack.c.l.b16 %v3415
        %v3721 = vunpack.c.l.b16 %v3416
        %v3722 = vunpack.c.l.b16 %v3417
        %v3723 = vunpack.c.l.b16 %v3418
        %v3724 = vunpack.c.l.b16 %v3419
        %v3725 = vpack.c.b16 %v3710, %v3709
        %v3726 = vpack.c.b16 %v3712, %v3711
        %v3727 = vpack.c.b16 %v3714, %v3713
        %v3728 = vpack.c.b16 %v3716, %v3715
        %v3729 = vpack.c.b16 %v3718, %v3717
        %v3730 = vpack.c.b16 %v3720, %v3719
        %v3731 = vpack.c.b16 %v3722, %v3721
        %v3732 = vpack.c.b16 %v3724, %v3723
        %3741 = vmatprep.subr.bf16.mxu0 0
        %3742 = vmatpush1.bf16.msra.mxu0 %v3725
        %3743 = vmatprep.subr.bf16.mxu0 0
        %3744 = vmatpush1.bf16.msra.mxu0 %v3726
        %3745 = vmatprep.subr.bf16.mxu0 0
        %3746 = vmatpush1.bf16.msra.mxu0 %v3727
        %3747 = vmatprep.subr.bf16.mxu0 0
        %3748 = vmatpush1.bf16.msra.mxu0 %v3728
        %3749 = vmatprep.subr.bf16.mxu0 0
        %3750 = vmatpush1.bf16.msra.mxu0 %v3729
        %3751 = vmatprep.subr.bf16.mxu0 0
        %3752 = vmatpush1.bf16.msra.mxu0 %v3730
        %3753 = vmatprep.subr.bf16.mxu0 0
        %3754 = vmatpush1.bf16.msra.mxu0 %v3731
        %3755 = vmatprep.subr.bf16.mxu0 0
        %3756 = vmatpush1.bf16.msra.mxu0 %v3732
        %3757 = vmatprep.subr.bf16.mxu0 0
        %3758 = vmatpush1.bf16.msra.mxu0 0
        %3759 = vmatprep.subr.bf16.mxu0 0
        %3760 = vmatpush1.bf16.msra.mxu0 0
        %3761 = vmatprep.subr.bf16.mxu0 0
        %3762 = vmatpush1.bf16.msra.mxu0 0
        %3763 = vmatprep.subr.bf16.mxu0 0
        %3764 = vmatpush1.bf16.msra.mxu0 0
        %3765 = vmatprep.subr.bf16.mxu0 0
        %3766 = vmatpush1.bf16.msra.mxu0 0
        %3767 = vmatprep.subr.bf16.mxu0 0
        %3768 = vmatpush1.bf16.msra.mxu0 0
        %3769 = vmatprep.subr.bf16.mxu0 0
        %3770 = vmatpush1.bf16.msra.mxu0 0
        %3771 = vmatprep.subr.bf16.mxu0 0
        %3772 = vmatpush1.bf16.msra.mxu0 0
        %3773 = vmatprep.mubr.bf16.mxu0 0
        %3774 = vmatmul.mubr.bf16.gmra.mrb[0].mxu0 %v3388
        %v3775 = vpop.f32.mrb[0].mxu0
        %v3776 = vadd.f32 %v3567, %v3775
        %v3777 = vpop.f32.mrb[0].mxu0
        %v3778 = vpop.f32.mrb[0].mxu0
        %v3779 = vadd.f32 %v3570, %v3778
        %v3780 = vpop.f32.mrb[0].mxu0
        %3781 = vmatprep.mubr.bf16.mxu0 0
        %3782 = vmatmul.mubr.bf16.gmra.mrb[0].mxu0 %v3389
        %v3783 = vpop.f32.mrb[0].mxu0
        %v3784 = vadd.f32 %v3575, %v3783
        %v3785 = vpop.f32.mrb[0].mxu0
        %v3786 = vpop.f32.mrb[0].mxu0
        %v3787 = vadd.f32 %v3578, %v3786
        %v3788 = vpop.f32.mrb[0].mxu0
        %3789 = vmatprep.mubr.bf16.mxu0 0
        %3790 = vmatmul.mubr.bf16.gmra.mrb[0].mxu0 %v3390
        %v3791 = vpop.f32.mrb[0].mxu0
        %v3792 = vadd.f32 %v3583, %v3791
        %v3793 = vpop.f32.mrb[0].mxu0
        %v3794 = vpop.f32.mrb[0].mxu0
        %v3795 = vadd.f32 %v3586, %v3794
        %v3796 = vpop.f32.mrb[0].mxu0
        %3797 = vmatprep.mubr.bf16.mxu0 0
        %3798 = vmatmul.mubr.bf16.gmra.mrb[0].mxu0 %v3391
        %v3799 = vpop.f32.mrb[0].mxu0
        %v3800 = vadd.f32 %v3591, %v3799
        %v3801 = vpop.f32.mrb[0].mxu0
        %v3802 = vpop.f32.mrb[0].mxu0
        %v3803 = vadd.f32 %v3594, %v3802
        %v3804 = vpop.f32.mrb[0].mxu0
        %3805 = vmatprep.mubr.bf16.mxu0 0
        %3806 = vmatmul.mubr.bf16.gmra.mrb[0].mxu0 %v3392
        %v3807 = vpop.f32.mrb[0].mxu0
        %v3808 = vadd.f32 %v3599, %v3807
        %v3809 = vpop.f32.mrb[0].mxu0
        %v3810 = vpop.f32.mrb[0].mxu0
        %v3811 = vadd.f32 %v3602, %v3810
        %v3812 = vpop.f32.mrb[0].mxu0
        %3813 = vmatprep.mubr.bf16.mxu0 0
        %3814 = vmatmul.mubr.bf16.gmra.mrb[0].mxu0 %v3393
        %v3815 = vpop.f32.mrb[0].mxu0
        %v3816 = vadd.f32 %v3607, %v3815
        %v3817 = vpop.f32.mrb[0].mxu0
        %v3818 = vpop.f32.mrb[0].mxu0
        %v3819 = vadd.f32 %v3610, %v3818
        %v3820 = vpop.f32.mrb[0].mxu0
        %3821 = vmatprep.mubr.bf16.mxu0 0
        %3822 = vmatmul.mubr.bf16.gmra.mrb[0].mxu0 %v3394
        %v3823 = vpop.f32.mrb[0].mxu0
        %v3824 = vadd.f32 %v3615, %v3823
        %v3825 = vpop.f32.mrb[0].mxu0
        %v3826 = vpop.f32.mrb[0].mxu0
        %v3827 = vadd.f32 %v3618, %v3826
        %v3828 = vpop.f32.mrb[0].mxu0
        %3829 = vmatprep.mubr.bf16.mxu0 0
        %3830 = vmatmul.mubr.bf16.gmra.mrb[0].mxu0 %v3395
        %v3831 = vpop.f32.mrb[0].mxu0
        %v3832 = vadd.f32 %v3623, %v3831
        %v3833 = vpop.f32.mrb[0].mxu0
        %v3834 = vpop.f32.mrb[0].mxu0
        %v3835 = vadd.f32 %v3626, %v3834
        %v3836 = vpop.f32.mrb[0].mxu0
        %3837 = vmatprep.mubr.bf16.mxu0 0
        %3838 = vmatmul.mubr.bf16.gmra.mrb[0].mxu0 %v3396
        %v3839 = vpop.f32.mrb[0].mxu0
        %v3840 = vadd.f32 %v3631, %v3839
        %v3841 = vpop.f32.mrb[0].mxu0
        %v3842 = vpop.f32.mrb[0].mxu0
        %v3843 = vadd.f32 %v3634, %v3842
        %v3844 = vpop.f32.mrb[0].mxu0
        %3845 = vmatprep.mubr.bf16.mxu0 0
        %3846 = vmatmul.mubr.bf16.gmra.mrb[0].mxu0 %v3397
        %v3847 = vpop.f32.mrb[0].mxu0
        %v3848 = vadd.f32 %v3639, %v3847
        %v3849 = vpop.f32.mrb[0].mxu0
        %v3850 = vpop.f32.mrb[0].mxu0
        %v3851 = vadd.f32 %v3642, %v3850
        %v3852 = vpop.f32.mrb[0].mxu0
        %3853 = vmatprep.mubr.bf16.mxu0 0
        %3854 = vmatmul.mubr.bf16.gmra.mrb[0].mxu0 %v3398
        %v3855 = vpop.f32.mrb[0].mxu0
        %v3856 = vadd.f32 %v3647, %v3855
        %v3857 = vpop.f32.mrb[0].mxu0
        %v3858 = vpop.f32.mrb[0].mxu0
        %v3859 = vadd.f32 %v3650, %v3858
        %v3860 = vpop.f32.mrb[0].mxu0
        %3861 = vmatprep.mubr.bf16.mxu0 0
        %3862 = vmatmul.mubr.bf16.gmra.mrb[0].mxu0 %v3399
        %v3863 = vpop.f32.mrb[0].mxu0
        %v3864 = vadd.f32 %v3655, %v3863
        %v3865 = vpop.f32.mrb[0].mxu0
        %v3866 = vpop.f32.mrb[0].mxu0
        %v3867 = vadd.f32 %v3658, %v3866
        %v3868 = vpop.f32.mrb[0].mxu0
        %3869 = vmatprep.mubr.bf16.mxu0 0
        %3870 = vmatmul.mubr.bf16.gmra.mrb[0].mxu0 %v3400
        %v3871 = vpop.f32.mrb[0].mxu0
        %v3872 = vadd.f32 %v3663, %v3871
        %v3873 = vpop.f32.mrb[0].mxu0
        %v3874 = vpop.f32.mrb[0].mxu0
        %v3875 = vadd.f32 %v3666, %v3874
        %v3876 = vpop.f32.mrb[0].mxu0
        %3877 = vmatprep.mubr.bf16.mxu0 0
        %3878 = vmatmul.mubr.bf16.gmra.mrb[0].mxu0 %v3401
        %v3879 = vpop.f32.mrb[0].mxu0
        %v3880 = vadd.f32 %v3671, %v3879
        %v3881 = vpop.f32.mrb[0].mxu0
        %v3882 = vpop.f32.mrb[0].mxu0
        %v3883 = vadd.f32 %v3674, %v3882
        %v3884 = vpop.f32.mrb[0].mxu0
        %3885 = vmatprep.mubr.bf16.mxu0 0
        %3886 = vmatmul.mubr.bf16.gmra.mrb[0].mxu0 %v3402
        %v3887 = vpop.f32.mrb[0].mxu0
        %v3888 = vadd.f32 %v3679, %v3887
        %v3889 = vpop.f32.mrb[0].mxu0
        %v3890 = vpop.f32.mrb[0].mxu0
        %v3891 = vadd.f32 %v3682, %v3890
        %v3892 = vpop.f32.mrb[0].mxu0
        %3893 = vmatprep.mubr.bf16.mxu0 0
        %3894 = vmatmul.mubr.bf16.gmra.mrb[0].mxu0 %v3403
        %v3895 = vpop.f32.mrb[0].mxu0
        %v3896 = vadd.f32 %v3687, %v3895
        %v3897 = vpop.f32.mrb[0].mxu0
        %v3898 = vpop.f32.mrb[0].mxu0
        %v3899 = vadd.f32 %v3690, %v3898
        %v3900 = vpop.f32.mrb[0].mxu0
        %3901 = vdwg.mxu0
        %v3902 = vld [vmem:[#allocation2 + $0x2] sm:$0xff]
        %v3903 = vld [vmem:[#allocation2 + $0xa] sm:$0xff]
        %v3904 = vld [vmem:[#allocation2 + $0x1a] sm:$0xff]
        %v3905 = vld [vmem:[#allocation2 + $0x22] sm:$0xff]
        %v3906 = vld [vmem:[#allocation2 + $0x32] sm:$0xff]
        %v3907 = vld [vmem:[#allocation2 + $0x3a] sm:$0xff]
        %v3908 = vld [vmem:[#allocation2 + $0x4a] sm:$0xff]
        %v3909 = vld [vmem:[#allocation2 + $0x52] sm:$0xff]
        %v3910 = vld [vmem:[#allocation2 + $0x62] sm:$0xff]
        %v3911 = vld [vmem:[#allocation2 + $0x6a] sm:$0xff]
        %v3912 = vld [vmem:[#allocation2 + $0x7a] sm:$0xff]
        %v3913 = vld [vmem:[#allocation2 + $0x82] sm:$0xff]
        %v3914 = vld [vmem:[#allocation2 + $0x92] sm:$0xff]
        %v3915 = vld [vmem:[#allocation2 + $0x9a] sm:$0xff]
        %v3916 = vld [vmem:[#allocation2 + $0xaa] sm:$0xff]
        %v3917 = vld [vmem:[#allocation2 + $0xb2] sm:$0xff]
        %v3918 = vld [vmem:[#allocation2 + $0xc2] sm:$0xff]
        %v3919 = vld [vmem:[#allocation2 + $0xca] sm:$0xff]
        %v3920 = vld [vmem:[#allocation2 + $0xda] sm:$0xff]
        %v3921 = vld [vmem:[#allocation2 + $0xe2] sm:$0xff]
        %v3922 = vld [vmem:[#allocation2 + $0xf2] sm:$0xff]
        %v3923 = vld [vmem:[#allocation2 + $0xfa] sm:$0xff]
        %v3924 = vld [vmem:[#allocation2 + $0x10a] sm:$0xff]
        %v3925 = vld [vmem:[#allocation2 + $0x112] sm:$0xff]
        %v3926 = vld [vmem:[#allocation2 + $0x122] sm:$0xff]
        %v3927 = vld [vmem:[#allocation2 + $0x12a] sm:$0xff]
        %v3928 = vld [vmem:[#allocation2 + $0x13a] sm:$0xff]
        %v3929 = vld [vmem:[#allocation2 + $0x142] sm:$0xff]
        %v3930 = vld [vmem:[#allocation2 + $0x152] sm:$0xff]
        %v3931 = vld [vmem:[#allocation2 + $0x15a] sm:$0xff]
        %v3932 = vld [vmem:[#allocation2 + $0x16a] sm:$0xff]
        %v3933 = vld [vmem:[#allocation2 + $0x172] sm:$0xff]
        %v3934 = vpack.c.bf16 %v3903, %v3902
        %v3935 = vpack.c.bf16 %v3905, %v3904
        %v3936 = vpack.c.bf16 %v3907, %v3906
        %v3937 = vpack.c.bf16 %v3909, %v3908
        %v3938 = vpack.c.bf16 %v3911, %v3910
        %v3939 = vpack.c.bf16 %v3913, %v3912
        %v3940 = vpack.c.bf16 %v3915, %v3914
        %v3941 = vpack.c.bf16 %v3917, %v3916
        %v3942 = vpack.c.bf16 %v3919, %v3918
        %v3943 = vpack.c.bf16 %v3921, %v3920
        %v3944 = vpack.c.bf16 %v3923, %v3922
        %v3945 = vpack.c.bf16 %v3925, %v3924
        %v3946 = vpack.c.bf16 %v3927, %v3926
        %v3947 = vpack.c.bf16 %v3929, %v3928
        %v3948 = vpack.c.bf16 %v3931, %v3930
        %v3949 = vpack.c.bf16 %v3933, %v3932
        %v3950 = vld [vmem:[#allocation3 + $0x80] sm:$0xf]
        %v3951 = vld [vmem:[#allocation3 + $0x84] sm:$0xf]
        %v3952 = vld [vmem:[#allocation3 + $0x88] sm:$0xf]
        %v3953 = vld [vmem:[#allocation3 + $0x8c] sm:$0xf]
        %v3954 = vld [vmem:[#allocation3 + $0x90] sm:$0xf]
        %v3955 = vld [vmem:[#allocation3 + $0x94] sm:$0xf]
        %v3956 = vld [vmem:[#allocation3 + $0x98] sm:$0xf]
        %v3957 = vld [vmem:[#allocation3 + $0x9c] sm:$0xf]
        %v3958 = vld [vmem:[#allocation3 + $0xa0] sm:$0xf]
        %v3959 = vld [vmem:[#allocation3 + $0xa4] sm:$0xf]
        %v3960 = vld [vmem:[#allocation3 + $0xa8] sm:$0xf]
        %v3961 = vld [vmem:[#allocation3 + $0xac] sm:$0xf]
        %v3962 = vld [vmem:[#allocation3 + $0xb0] sm:$0xf]
        %v3963 = vld [vmem:[#allocation3 + $0xb4] sm:$0xf]
        %v3964 = vld [vmem:[#allocation3 + $0xb8] sm:$0xf]
        %v3965 = vld [vmem:[#allocation3 + $0xbc] sm:$0xf]
        %v3982 = vunpack.c.l.b16 %v3950
        %v3983 = vunpack.c.l.b16 %v3951
        %v3984 = vunpack.c.l.b16 %v3952
        %v3985 = vunpack.c.l.b16 %v3953
        %v3986 = vunpack.c.l.b16 %v3954
        %v3987 = vunpack.c.l.b16 %v3955
        %v3988 = vunpack.c.l.b16 %v3956
        %v3989 = vunpack.c.l.b16 %v3957
        %v3990 = vunpack.c.l.b16 %v3958
        %v3991 = vunpack.c.l.b16 %v3959
        %v3992 = vunpack.c.l.b16 %v3960
        %v3993 = vunpack.c.l.b16 %v3961
        %v3994 = vunpack.c.l.b16 %v3962
        %v3995 = vunpack.c.l.b16 %v3963
        %v3996 = vunpack.c.l.b16 %v3964
        %v3997 = vunpack.c.l.b16 %v3965
        %v3998 = vpack.c.b16 %v3983, %v3982
        %v3999 = vpack.c.b16 %v3985, %v3984
        %v4000 = vpack.c.b16 %v3987, %v3986
        %v4001 = vpack.c.b16 %v3989, %v3988
        %v4002 = vpack.c.b16 %v3991, %v3990
        %v4003 = vpack.c.b16 %v3993, %v3992
        %v4004 = vpack.c.b16 %v3995, %v3994
        %v4005 = vpack.c.b16 %v3997, %v3996
        %4014 = vmatprep.subr.bf16.mxu0 0
        %4015 = vmatpush1.bf16.msra.mxu0 %v3998
        %4016 = vmatprep.subr.bf16.mxu0 0
        %4017 = vmatpush1.bf16.msra.mxu0 %v3999
        %4018 = vmatprep.subr.bf16.mxu0 0
        %4019 = vmatpush1.bf16.msra.mxu0 %v4000
        %4020 = vmatprep.subr.bf16.mxu0 0
        %4021 = vmatpush1.bf16.msra.mxu0 %v4001
        %4022 = vmatprep.subr.bf16.mxu0 0
        %4023 = vmatpush1.bf16.msra.mxu0 %v4002
        %4024 = vmatprep.subr.bf16.mxu0 0
        %4025 = vmatpush1.bf16.msra.mxu0 %v4003
        %4026 = vmatprep.subr.bf16.mxu0 0
        %4027 = vmatpush1.bf16.msra.mxu0 %v4004
        %4028 = vmatprep.subr.bf16.mxu0 0
        %4029 = vmatpush1.bf16.msra.mxu0 %v4005
        %4030 = vmatprep.subr.bf16.mxu0 0
        %4031 = vmatpush1.bf16.msra.mxu0 0
        %4032 = vmatprep.subr.bf16.mxu0 0
        %4033 = vmatpush1.bf16.msra.mxu0 0
        %4034 = vmatprep.subr.bf16.mxu0 0
        %4035 = vmatpush1.bf16.msra.mxu0 0
        %4036 = vmatprep.subr.bf16.mxu0 0
        %4037 = vmatpush1.bf16.msra.mxu0 0
        %4038 = vmatprep.subr.bf16.mxu0 0
        %4039 = vmatpush1.bf16.msra.mxu0 0
        %4040 = vmatprep.subr.bf16.mxu0 0
        %4041 = vmatpush1.bf16.msra.mxu0 0
        %4042 = vmatprep.subr.bf16.mxu0 0
        %4043 = vmatpush1.bf16.msra.mxu0 0
        %4044 = vmatprep.subr.bf16.mxu0 0
        %4045 = vmatpush1.bf16.msra.mxu0 0
        %4046 = vmatprep.mubr.bf16.mxu0 0
        %4047 = vmatmul.mubr.bf16.gmra.mrb[0].mxu0 %v3934
        %v4048 = vpop.f32.mrb[0].mxu0
        %v4049 = vadd.f32 0.0, %v4048
        %v4050 = vpop.f32.mrb[0].mxu0
        %v4051 = vpop.f32.mrb[0].mxu0
        %v4052 = vadd.f32 0.0, %v4051
        %v4053 = vpop.f32.mrb[0].mxu0
        %4054 = vmatprep.mubr.bf16.mxu0 0
        %4055 = vmatmul.mubr.bf16.gmra.mrb[0].mxu0 %v3935
        %v4056 = vpop.f32.mrb[0].mxu0
        %v4057 = vadd.f32 0.0, %v4056
        %v4058 = vpop.f32.mrb[0].mxu0
        %v4059 = vpop.f32.mrb[0].mxu0
        %v4060 = vadd.f32 0.0, %v4059
        %v4061 = vpop.f32.mrb[0].mxu0
        %4062 = vmatprep.mubr.bf16.mxu0 0
        %4063 = vmatmul.mubr.bf16.gmra.mrb[0].mxu0 %v3936
        %v4064 = vpop.f32.mrb[0].mxu0
        %v4065 = vadd.f32 0.0, %v4064
        %v4066 = vpop.f32.mrb[0].mxu0
        %v4067 = vpop.f32.mrb[0].mxu0
        %v4068 = vadd.f32 0.0, %v4067
        %v4069 = vpop.f32.mrb[0].mxu0
        %4070 = vmatprep.mubr.bf16.mxu0 0
        %4071 = vmatmul.mubr.bf16.gmra.mrb[0].mxu0 %v3937
        %v4072 = vpop.f32.mrb[0].mxu0
        %v4073 = vadd.f32 0.0, %v4072
        %v4074 = vpop.f32.mrb[0].mxu0
        %v4075 = vpop.f32.mrb[0].mxu0
        %v4076 = vadd.f32 0.0, %v4075
        %v4077 = vpop.f32.mrb[0].mxu0
        %4078 = vmatprep.mubr.bf16.mxu0 0
        %4079 = vmatmul.mubr.bf16.gmra.mrb[0].mxu0 %v3938
        %v4080 = vpop.f32.mrb[0].mxu0
        %v4081 = vadd.f32 0.0, %v4080
        %v4082 = vpop.f32.mrb[0].mxu0
        %v4083 = vpop.f32.mrb[0].mxu0
        %v4084 = vadd.f32 0.0, %v4083
        %v4085 = vpop.f32.mrb[0].mxu0
        %4086 = vmatprep.mubr.bf16.mxu0 0
        %4087 = vmatmul.mubr.bf16.gmra.mrb[0].mxu0 %v3939
        %v4088 = vpop.f32.mrb[0].mxu0
        %v4089 = vadd.f32 0.0, %v4088
        %v4090 = vpop.f32.mrb[0].mxu0
        %v4091 = vpop.f32.mrb[0].mxu0
        %v4092 = vadd.f32 0.0, %v4091
        %v4093 = vpop.f32.mrb[0].mxu0
        %4094 = vmatprep.mubr.bf16.mxu0 0
        %4095 = vmatmul.mubr.bf16.gmra.mrb[0].mxu0 %v3940
        %v4096 = vpop.f32.mrb[0].mxu0
        %v4097 = vadd.f32 0.0, %v4096
        %v4098 = vpop.f32.mrb[0].mxu0
        %v4099 = vpop.f32.mrb[0].mxu0
        %v4100 = vadd.f32 0.0, %v4099
        %v4101 = vpop.f32.mrb[0].mxu0
        %4102 = vmatprep.mubr.bf16.mxu0 0
        %4103 = vmatmul.mubr.bf16.gmra.mrb[0].mxu0 %v3941
        %v4104 = vpop.f32.mrb[0].mxu0
        %v4105 = vadd.f32 0.0, %v4104
        %v4106 = vpop.f32.mrb[0].mxu0
        %v4107 = vpop.f32.mrb[0].mxu0
        %v4108 = vadd.f32 0.0, %v4107
        %v4109 = vpop.f32.mrb[0].mxu0
        %4110 = vmatprep.mubr.bf16.mxu0 0
        %4111 = vmatmul.mubr.bf16.gmra.mrb[0].mxu0 %v3942
        %v4112 = vpop.f32.mrb[0].mxu0
        %v4113 = vadd.f32 0.0, %v4112
        %v4114 = vpop.f32.mrb[0].mxu0
        %v4115 = vpop.f32.mrb[0].mxu0
        %v4116 = vadd.f32 0.0, %v4115
        %v4117 = vpop.f32.mrb[0].mxu0
        %4118 = vmatprep.mubr.bf16.mxu0 0
        %4119 = vmatmul.mubr.bf16.gmra.mrb[0].mxu0 %v3943
        %v4120 = vpop.f32.mrb[0].mxu0
        %v4121 = vadd.f32 0.0, %v4120
        %v4122 = vpop.f32.mrb[0].mxu0
        %v4123 = vpop.f32.mrb[0].mxu0
        %v4124 = vadd.f32 0.0, %v4123
        %v4125 = vpop.f32.mrb[0].mxu0
        %4126 = vmatprep.mubr.bf16.mxu0 0
        %4127 = vmatmul.mubr.bf16.gmra.mrb[0].mxu0 %v3944
        %v4128 = vpop.f32.mrb[0].mxu0
        %v4129 = vadd.f32 0.0, %v4128
        %v4130 = vpop.f32.mrb[0].mxu0
        %v4131 = vpop.f32.mrb[0].mxu0
        %v4132 = vadd.f32 0.0, %v4131
        %v4133 = vpop.f32.mrb[0].mxu0
        %4134 = vmatprep.mubr.bf16.mxu0 0
        %4135 = vmatmul.mubr.bf16.gmra.mrb[0].mxu0 %v3945
        %v4136 = vpop.f32.mrb[0].mxu0
        %v4137 = vadd.f32 0.0, %v4136
        %v4138 = vpop.f32.mrb[0].mxu0
        %v4139 = vpop.f32.mrb[0].mxu0
        %v4140 = vadd.f32 0.0, %v4139
        %v4141 = vpop.f32.mrb[0].mxu0
        %4142 = vmatprep.mubr.bf16.mxu0 0
        %4143 = vmatmul.mubr.bf16.gmra.mrb[0].mxu0 %v3946
        %v4144 = vpop.f32.mrb[0].mxu0
        %v4145 = vadd.f32 0.0, %v4144
        %v4146 = vpop.f32.mrb[0].mxu0
        %v4147 = vpop.f32.mrb[0].mxu0
        %v4148 = vadd.f32 0.0, %v4147
        %v4149 = vpop.f32.mrb[0].mxu0
        %4150 = vmatprep.mubr.bf16.mxu0 0
        %4151 = vmatmul.mubr.bf16.gmra.mrb[0].mxu0 %v3947
        %v4152 = vpop.f32.mrb[0].mxu0
        %v4153 = vadd.f32 0.0, %v4152
        %v4154 = vpop.f32.mrb[0].mxu0
        %v4155 = vpop.f32.mrb[0].mxu0
        %v4156 = vadd.f32 0.0, %v4155
        %v4157 = vpop.f32.mrb[0].mxu0
        %4158 = vmatprep.mubr.bf16.mxu0 0
        %4159 = vmatmul.mubr.bf16.gmra.mrb[0].mxu0 %v3948
        %v4160 = vpop.f32.mrb[0].mxu0
        %v4161 = vadd.f32 0.0, %v4160
        %v4162 = vpop.f32.mrb[0].mxu0
        %v4163 = vpop.f32.mrb[0].mxu0
        %v4164 = vadd.f32 0.0, %v4163
        %v4165 = vpop.f32.mrb[0].mxu0
        %4166 = vmatprep.mubr.bf16.mxu0 0
        %4167 = vmatmul.mubr.bf16.gmra.mrb[0].mxu0 %v3949
        %v4168 = vpop.f32.mrb[0].mxu0
        %v4169 = vadd.f32 0.0, %v4168
        %v4170 = vpop.f32.mrb[0].mxu0
        %v4171 = vpop.f32.mrb[0].mxu0
        %v4172 = vadd.f32 0.0, %v4171
        %v4173 = vpop.f32.mrb[0].mxu0
        %4174 = vdwg.mxu0
        %v4175 = vadd.f32 %v3776, %v4049
        %v4176 = vadd.f32 %v3779, %v4052
        %v4177 = vadd.f32 %v3784, %v4057
        %v4178 = vadd.f32 %v3787, %v4060
        %v4179 = vadd.f32 %v3792, %v4065
        %v4180 = vadd.f32 %v3795, %v4068
        %v4181 = vadd.f32 %v3800, %v4073
        %v4182 = vadd.f32 %v3803, %v4076
        %v4183 = vadd.f32 %v3808, %v4081
        %v4184 = vadd.f32 %v3811, %v4084
        %v4185 = vadd.f32 %v3816, %v4089
        %v4186 = vadd.f32 %v3819, %v4092
        %v4187 = vadd.f32 %v3824, %v4097
        %v4188 = vadd.f32 %v3827, %v4100
        %v4189 = vadd.f32 %v3832, %v4105
        %v4190 = vadd.f32 %v3835, %v4108
        %v4191 = vadd.f32 %v3840, %v4113
        %v4192 = vadd.f32 %v3843, %v4116
        %v4193 = vadd.f32 %v3848, %v4121
        %v4194 = vadd.f32 %v3851, %v4124
        %v4195 = vadd.f32 %v3856, %v4129
        %v4196 = vadd.f32 %v3859, %v4132
        %v4197 = vadd.f32 %v3864, %v4137
        %v4198 = vadd.f32 %v3867, %v4140
        %v4199 = vadd.f32 %v3872, %v4145
        %v4200 = vadd.f32 %v3875, %v4148
        %v4201 = vadd.f32 %v3880, %v4153
        %v4202 = vadd.f32 %v3883, %v4156
        %v4203 = vadd.f32 %v3888, %v4161
        %v4204 = vadd.f32 %v3891, %v4164
        %v4205 = vadd.f32 %v3896, %v4169
        %v4206 = vadd.f32 %v3899, %v4172
        %v4207 = vld [vmem:[%s381] sm:$0xff]
        %v4208 = vld [vmem:[%s381 + $0x8] sm:$0xff]
        %v4209 = vld [vmem:[%s381 + $0x18] sm:$0xff]
        %v4210 = vld [vmem:[%s381 + $0x20] sm:$0xff]
        %v4211 = vld [vmem:[%s381 + $0x30] sm:$0xff]
        %v4212 = vld [vmem:[%s381 + $0x38] sm:$0xff]
        %v4213 = vld [vmem:[%s381 + $0x48] sm:$0xff]
        %v4214 = vld [vmem:[%s381 + $0x50] sm:$0xff]
        %v4215 = vld [vmem:[%s381 + $0x60] sm:$0xff]
        %v4216 = vld [vmem:[%s381 + $0x68] sm:$0xff]
        %v4217 = vld [vmem:[%s381 + $0x78] sm:$0xff]
        %v4218 = vld [vmem:[%s381 + $0x80] sm:$0xff]
        %v4219 = vld [vmem:[%s381 + $0x90] sm:$0xff]
        %v4220 = vld [vmem:[%s381 + $0x98] sm:$0xff]
        %v4221 = vld [vmem:[%s381 + $0xa8] sm:$0xff]
        %v4222 = vld [vmem:[%s381 + $0xb0] sm:$0xff]
        %v4223 = vld [vmem:[%s381 + $0xc0] sm:$0xff]
        %v4224 = vld [vmem:[%s381 + $0xc8] sm:$0xff]
        %v4225 = vld [vmem:[%s381 + $0xd8] sm:$0xff]
        %v4226 = vld [vmem:[%s381 + $0xe0] sm:$0xff]
        %v4227 = vld [vmem:[%s381 + $0xf0] sm:$0xff]
        %v4228 = vld [vmem:[%s381 + $0xf8] sm:$0xff]
        %v4229 = vld [vmem:[%s381 + $0x108] sm:$0xff]
        %v4230 = vld [vmem:[%s381 + $0x110] sm:$0xff]
        %v4231 = vld [vmem:[%s381 + $0x120] sm:$0xff]
        %v4232 = vld [vmem:[%s381 + $0x128] sm:$0xff]
        %v4233 = vld [vmem:[%s381 + $0x138] sm:$0xff]
        %v4234 = vld [vmem:[%s381 + $0x140] sm:$0xff]
        %v4235 = vld [vmem:[%s381 + $0x150] sm:$0xff]
        %v4236 = vld [vmem:[%s381 + $0x158] sm:$0xff]
        %v4237 = vld [vmem:[%s381 + $0x168] sm:$0xff]
        %v4238 = vld [vmem:[%s381 + $0x170] sm:$0xff]
        %v4239 = vpack.c.bf16 %v4208, %v4207
        %v4240 = vpack.c.bf16 %v4210, %v4209
        %v4241 = vpack.c.bf16 %v4212, %v4211
        %v4242 = vpack.c.bf16 %v4214, %v4213
        %v4243 = vpack.c.bf16 %v4216, %v4215
        %v4244 = vpack.c.bf16 %v4218, %v4217
        %v4245 = vpack.c.bf16 %v4220, %v4219
        %v4246 = vpack.c.bf16 %v4222, %v4221
        %v4247 = vpack.c.bf16 %v4224, %v4223
        %v4248 = vpack.c.bf16 %v4226, %v4225
        %v4249 = vpack.c.bf16 %v4228, %v4227
        %v4250 = vpack.c.bf16 %v4230, %v4229
        %v4251 = vpack.c.bf16 %v4232, %v4231
        %v4252 = vpack.c.bf16 %v4234, %v4233
        %v4253 = vpack.c.bf16 %v4236, %v4235
        %v4254 = vpack.c.bf16 %v4238, %v4237
        %v4255 = vld [vmem:[#allocation3 + $0xc0] sm:$0xf]
        %v4256 = vld [vmem:[#allocation3 + $0xc4] sm:$0xf]
        %v4257 = vld [vmem:[#allocation3 + $0xc8] sm:$0xf]
        %v4258 = vld [vmem:[#allocation3 + $0xcc] sm:$0xf]
        %v4259 = vld [vmem:[#allocation3 + $0xd0] sm:$0xf]
        %v4260 = vld [vmem:[#allocation3 + $0xd4] sm:$0xf]
        %v4261 = vld [vmem:[#allocation3 + $0xd8] sm:$0xf]
        %v4262 = vld [vmem:[#allocation3 + $0xdc] sm:$0xf]
        %v4263 = vld [vmem:[#allocation3 + $0xe0] sm:$0xf]
        %v4264 = vld [vmem:[#allocation3 + $0xe4] sm:$0xf]
        %v4265 = vld [vmem:[#allocation3 + $0xe8] sm:$0xf]
        %v4266 = vld [vmem:[#allocation3 + $0xec] sm:$0xf]
        %v4267 = vld [vmem:[#allocation3 + $0xf0] sm:$0xf]
        %v4268 = vld [vmem:[#allocation3 + $0xf4] sm:$0xf]
        %v4269 = vld [vmem:[#allocation3 + $0xf8] sm:$0xf]
        %v4270 = vld [vmem:[#allocation3 + $0xfc] sm:$0xf]
        %v4287 = vunpack.c.l.b16 %v4255
        %v4288 = vunpack.c.l.b16 %v4256
        %v4289 = vunpack.c.l.b16 %v4257
        %v4290 = vunpack.c.l.b16 %v4258
        %v4291 = vunpack.c.l.b16 %v4259
        %v4292 = vunpack.c.l.b16 %v4260
        %v4293 = vunpack.c.l.b16 %v4261
        %v4294 = vunpack.c.l.b16 %v4262
        %v4295 = vunpack.c.l.b16 %v4263
        %v4296 = vunpack.c.l.b16 %v4264
        %v4297 = vunpack.c.l.b16 %v4265
        %v4298 = vunpack.c.l.b16 %v4266
        %v4299 = vunpack.c.l.b16 %v4267
        %v4300 = vunpack.c.l.b16 %v4268
        %v4301 = vunpack.c.l.b16 %v4269
        %v4302 = vunpack.c.l.b16 %v4270
        %v4303 = vpack.c.b16 %v4288, %v4287
        %v4304 = vpack.c.b16 %v4290, %v4289
        %v4305 = vpack.c.b16 %v4292, %v4291
        %v4306 = vpack.c.b16 %v4294, %v4293
        %v4307 = vpack.c.b16 %v4296, %v4295
        %v4308 = vpack.c.b16 %v4298, %v4297
        %v4309 = vpack.c.b16 %v4300, %v4299
        %v4310 = vpack.c.b16 %v4302, %v4301
        %4319 = vmatprep.subr.bf16.mxu0 0
        %4320 = vmatpush1.bf16.msra.mxu0 %v4303
        %4321 = vmatprep.subr.bf16.mxu0 0
        %4322 = vmatpush1.bf16.msra.mxu0 %v4304
        %4323 = vmatprep.subr.bf16.mxu0 0
        %4324 = vmatpush1.bf16.msra.mxu0 %v4305
        %4325 = vmatprep.subr.bf16.mxu0 0
        %4326 = vmatpush1.bf16.msra.mxu0 %v4306
        %4327 = vmatprep.subr.bf16.mxu0 0
        %4328 = vmatpush1.bf16.msra.mxu0 %v4307
        %4329 = vmatprep.subr.bf16.mxu0 0
        %4330 = vmatpush1.bf16.msra.mxu0 %v4308
        %4331 = vmatprep.subr.bf16.mxu0 0
        %4332 = vmatpush1.bf16.msra.mxu0 %v4309
        %4333 = vmatprep.subr.bf16.mxu0 0
        %4334 = vmatpush1.bf16.msra.mxu0 %v4310
        %4335 = vmatprep.subr.bf16.mxu0 0
        %4336 = vmatpush1.bf16.msra.mxu0 0
        %4337 = vmatprep.subr.bf16.mxu0 0
        %4338 = vmatpush1.bf16.msra.mxu0 0
        %4339 = vmatprep.subr.bf16.mxu0 0
        %4340 = vmatpush1.bf16.msra.mxu0 0
        %4341 = vmatprep.subr.bf16.mxu0 0
        %4342 = vmatpush1.bf16.msra.mxu0 0
        %4343 = vmatprep.subr.bf16.mxu0 0
        %4344 = vmatpush1.bf16.msra.mxu0 0
        %4345 = vmatprep.subr.bf16.mxu0 0
        %4346 = vmatpush1.bf16.msra.mxu0 0
        %4347 = vmatprep.subr.bf16.mxu0 0
        %4348 = vmatpush1.bf16.msra.mxu0 0
        %4349 = vmatprep.subr.bf16.mxu0 0
        %4350 = vmatpush1.bf16.msra.mxu0 0
        %4351 = vmatprep.mubr.bf16.mxu0 0
        %4352 = vmatmul.mubr.bf16.gmra.mrb[0].mxu0 %v4239
        %v4353 = vpop.f32.mrb[0].mxu0
        %v4354 = vadd.f32 0.0, %v4353
        %v4355 = vpop.f32.mrb[0].mxu0
        %v4356 = vpop.f32.mrb[0].mxu0
        %v4357 = vadd.f32 0.0, %v4356
        %v4358 = vpop.f32.mrb[0].mxu0
        %4359 = vmatprep.mubr.bf16.mxu0 0
        %4360 = vmatmul.mubr.bf16.gmra.mrb[0].mxu0 %v4240
        %v4361 = vpop.f32.mrb[0].mxu0
        %v4362 = vadd.f32 0.0, %v4361
        %v4363 = vpop.f32.mrb[0].mxu0
        %v4364 = vpop.f32.mrb[0].mxu0
        %v4365 = vadd.f32 0.0, %v4364
        %v4366 = vpop.f32.mrb[0].mxu0
        %4367 = vmatprep.mubr.bf16.mxu0 0
        %4368 = vmatmul.mubr.bf16.gmra.mrb[0].mxu0 %v4241
        %v4369 = vpop.f32.mrb[0].mxu0
        %v4370 = vadd.f32 0.0, %v4369
        %v4371 = vpop.f32.mrb[0].mxu0
        %v4372 = vpop.f32.mrb[0].mxu0
        %v4373 = vadd.f32 0.0, %v4372
        %v4374 = vpop.f32.mrb[0].mxu0
        %4375 = vmatprep.mubr.bf16.mxu0 0
        %4376 = vmatmul.mubr.bf16.gmra.mrb[0].mxu0 %v4242
        %v4377 = vpop.f32.mrb[0].mxu0
        %v4378 = vadd.f32 0.0, %v4377
        %v4379 = vpop.f32.mrb[0].mxu0
        %v4380 = vpop.f32.mrb[0].mxu0
        %v4381 = vadd.f32 0.0, %v4380
        %v4382 = vpop.f32.mrb[0].mxu0
        %4383 = vmatprep.mubr.bf16.mxu0 0
        %4384 = vmatmul.mubr.bf16.gmra.mrb[0].mxu0 %v4243
        %v4385 = vpop.f32.mrb[0].mxu0
        %v4386 = vadd.f32 0.0, %v4385
        %v4387 = vpop.f32.mrb[0].mxu0
        %v4388 = vpop.f32.mrb[0].mxu0
        %v4389 = vadd.f32 0.0, %v4388
        %v4390 = vpop.f32.mrb[0].mxu0
        %4391 = vmatprep.mubr.bf16.mxu0 0
        %4392 = vmatmul.mubr.bf16.gmra.mrb[0].mxu0 %v4244
        %v4393 = vpop.f32.mrb[0].mxu0
        %v4394 = vadd.f32 0.0, %v4393
        %v4395 = vpop.f32.mrb[0].mxu0
        %v4396 = vpop.f32.mrb[0].mxu0
        %v4397 = vadd.f32 0.0, %v4396
        %v4398 = vpop.f32.mrb[0].mxu0
        %4399 = vmatprep.mubr.bf16.mxu0 0
        %4400 = vmatmul.mubr.bf16.gmra.mrb[0].mxu0 %v4245
        %v4401 = vpop.f32.mrb[0].mxu0
        %v4402 = vadd.f32 0.0, %v4401
        %v4403 = vpop.f32.mrb[0].mxu0
        %v4404 = vpop.f32.mrb[0].mxu0
        %v4405 = vadd.f32 0.0, %v4404
        %v4406 = vpop.f32.mrb[0].mxu0
        %4407 = vmatprep.mubr.bf16.mxu0 0
        %4408 = vmatmul.mubr.bf16.gmra.mrb[0].mxu0 %v4246
        %v4409 = vpop.f32.mrb[0].mxu0
        %v4410 = vadd.f32 0.0, %v4409
        %v4411 = vpop.f32.mrb[0].mxu0
        %v4412 = vpop.f32.mrb[0].mxu0
        %v4413 = vadd.f32 0.0, %v4412
        %v4414 = vpop.f32.mrb[0].mxu0
        %4415 = vmatprep.mubr.bf16.mxu0 0
        %4416 = vmatmul.mubr.bf16.gmra.mrb[0].mxu0 %v4247
        %v4417 = vpop.f32.mrb[0].mxu0
        %v4418 = vadd.f32 0.0, %v4417
        %v4419 = vpop.f32.mrb[0].mxu0
        %v4420 = vpop.f32.mrb[0].mxu0
        %v4421 = vadd.f32 0.0, %v4420
        %v4422 = vpop.f32.mrb[0].mxu0
        %4423 = vmatprep.mubr.bf16.mxu0 0
        %4424 = vmatmul.mubr.bf16.gmra.mrb[0].mxu0 %v4248
        %v4425 = vpop.f32.mrb[0].mxu0
        %v4426 = vadd.f32 0.0, %v4425
        %v4427 = vpop.f32.mrb[0].mxu0
        %v4428 = vpop.f32.mrb[0].mxu0
        %v4429 = vadd.f32 0.0, %v4428
        %v4430 = vpop.f32.mrb[0].mxu0
        %4431 = vmatprep.mubr.bf16.mxu0 0
        %4432 = vmatmul.mubr.bf16.gmra.mrb[0].mxu0 %v4249
        %v4433 = vpop.f32.mrb[0].mxu0
        %v4434 = vadd.f32 0.0, %v4433
        %v4435 = vpop.f32.mrb[0].mxu0
        %v4436 = vpop.f32.mrb[0].mxu0
        %v4437 = vadd.f32 0.0, %v4436
        %v4438 = vpop.f32.mrb[0].mxu0
        %4439 = vmatprep.mubr.bf16.mxu0 0
        %4440 = vmatmul.mubr.bf16.gmra.mrb[0].mxu0 %v4250
        %v4441 = vpop.f32.mrb[0].mxu0
        %v4442 = vadd.f32 0.0, %v4441
        %v4443 = vpop.f32.mrb[0].mxu0
        %v4444 = vpop.f32.mrb[0].mxu0
        %v4445 = vadd.f32 0.0, %v4444
        %v4446 = vpop.f32.mrb[0].mxu0
        %4447 = vmatprep.mubr.bf16.mxu0 0
        %4448 = vmatmul.mubr.bf16.gmra.mrb[0].mxu0 %v4251
        %v4449 = vpop.f32.mrb[0].mxu0
        %v4450 = vadd.f32 0.0, %v4449
        %v4451 = vpop.f32.mrb[0].mxu0
        %v4452 = vpop.f32.mrb[0].mxu0
        %v4453 = vadd.f32 0.0, %v4452
        %v4454 = vpop.f32.mrb[0].mxu0
        %4455 = vmatprep.mubr.bf16.mxu0 0
        %4456 = vmatmul.mubr.bf16.gmra.mrb[0].mxu0 %v4252
        %v4457 = vpop.f32.mrb[0].mxu0
        %v4458 = vadd.f32 0.0, %v4457
        %v4459 = vpop.f32.mrb[0].mxu0
        %v4460 = vpop.f32.mrb[0].mxu0
        %v4461 = vadd.f32 0.0, %v4460
        %v4462 = vpop.f32.mrb[0].mxu0
        %4463 = vmatprep.mubr.bf16.mxu0 0
        %4464 = vmatmul.mubr.bf16.gmra.mrb[0].mxu0 %v4253
        %v4465 = vpop.f32.mrb[0].mxu0
        %v4466 = vadd.f32 0.0, %v4465
        %v4467 = vpop.f32.mrb[0].mxu0
        %v4468 = vpop.f32.mrb[0].mxu0
        %v4469 = vadd.f32 0.0, %v4468
        %v4470 = vpop.f32.mrb[0].mxu0
        %4471 = vmatprep.mubr.bf16.mxu0 0
        %4472 = vmatmul.mubr.bf16.gmra.mrb[0].mxu0 %v4254
        %v4473 = vpop.f32.mrb[0].mxu0
        %v4474 = vadd.f32 0.0, %v4473
        %v4475 = vpop.f32.mrb[0].mxu0
        %v4476 = vpop.f32.mrb[0].mxu0
        %v4477 = vadd.f32 0.0, %v4476
        %v4478 = vpop.f32.mrb[0].mxu0
        %4479 = vdwg.mxu0
        %v4480 = vadd.f32 %v4175, %v4354
        %v4481 = vadd.f32 %v4176, %v4357
        %v4482 = vadd.f32 %v4177, %v4362
        %v4483 = vadd.f32 %v4178, %v4365
        %v4484 = vadd.f32 %v4179, %v4370
        %v4485 = vadd.f32 %v4180, %v4373
        %v4486 = vadd.f32 %v4181, %v4378
        %v4487 = vadd.f32 %v4182, %v4381
        %v4488 = vadd.f32 %v4183, %v4386
        %v4489 = vadd.f32 %v4184, %v4389
        %v4490 = vadd.f32 %v4185, %v4394
        %v4491 = vadd.f32 %v4186, %v4397
        %v4492 = vadd.f32 %v4187, %v4402
        %v4493 = vadd.f32 %v4188, %v4405
        %v4494 = vadd.f32 %v4189, %v4410
        %v4495 = vadd.f32 %v4190, %v4413
        %v4496 = vadd.f32 %v4191, %v4418
        %v4497 = vadd.f32 %v4192, %v4421
        %v4498 = vadd.f32 %v4193, %v4426
        %v4499 = vadd.f32 %v4194, %v4429
        %v4500 = vadd.f32 %v4195, %v4434
        %v4501 = vadd.f32 %v4196, %v4437
        %v4502 = vadd.f32 %v4197, %v4442
        %v4503 = vadd.f32 %v4198, %v4445
        %v4504 = vadd.f32 %v4199, %v4450
        %v4505 = vadd.f32 %v4200, %v4453
        %v4506 = vadd.f32 %v4201, %v4458
        %v4507 = vadd.f32 %v4202, %v4461
        %v4508 = vadd.f32 %v4203, %v4466
        %v4509 = vadd.f32 %v4204, %v4469
        %v4510 = vadd.f32 %v4205, %v4474
        %v4511 = vadd.f32 %v4206, %v4477
        %v4512 = vld [vmem:[%s381 + $0x1] sm:$0xff]
        %v4513 = vld [vmem:[%s381 + $0x9] sm:$0xff]
        %v4514 = vld [vmem:[%s381 + $0x19] sm:$0xff]
        %v4515 = vld [vmem:[%s381 + $0x21] sm:$0xff]
        %v4516 = vld [vmem:[%s381 + $0x31] sm:$0xff]
        %v4517 = vld [vmem:[%s381 + $0x39] sm:$0xff]
        %v4518 = vld [vmem:[%s381 + $0x49] sm:$0xff]
        %v4519 = vld [vmem:[%s381 + $0x51] sm:$0xff]
        %v4520 = vld [vmem:[%s381 + $0x61] sm:$0xff]
        %v4521 = vld [vmem:[%s381 + $0x69] sm:$0xff]
        %v4522 = vld [vmem:[%s381 + $0x79] sm:$0xff]
        %v4523 = vld [vmem:[%s381 + $0x81] sm:$0xff]
        %v4524 = vld [vmem:[%s381 + $0x91] sm:$0xff]
        %v4525 = vld [vmem:[%s381 + $0x99] sm:$0xff]
        %v4526 = vld [vmem:[%s381 + $0xa9] sm:$0xff]
        %v4527 = vld [vmem:[%s381 + $0xb1] sm:$0xff]
        %v4528 = vld [vmem:[%s381 + $0xc1] sm:$0xff]
        %v4529 = vld [vmem:[%s381 + $0xc9] sm:$0xff]
        %v4530 = vld [vmem:[%s381 + $0xd9] sm:$0xff]
        %v4531 = vld [vmem:[%s381 + $0xe1] sm:$0xff]
        %v4532 = vld [vmem:[%s381 + $0xf1] sm:$0xff]
        %v4533 = vld [vmem:[%s381 + $0xf9] sm:$0xff]
        %v4534 = vld [vmem:[%s381 + $0x109] sm:$0xff]
        %v4535 = vld [vmem:[%s381 + $0x111] sm:$0xff]
        %v4536 = vld [vmem:[%s381 + $0x121] sm:$0xff]
        %v4537 = vld [vmem:[%s381 + $0x129] sm:$0xff]
        %v4538 = vld [vmem:[%s381 + $0x139] sm:$0xff]
        %v4539 = vld [vmem:[%s381 + $0x141] sm:$0xff]
        %v4540 = vld [vmem:[%s381 + $0x151] sm:$0xff]
        %v4541 = vld [vmem:[%s381 + $0x159] sm:$0xff]
        %v4542 = vld [vmem:[%s381 + $0x169] sm:$0xff]
        %v4543 = vld [vmem:[%s381 + $0x171] sm:$0xff]
        %v4544 = vpack.c.bf16 %v4513, %v4512
        %v4545 = vpack.c.bf16 %v4515, %v4514
        %v4546 = vpack.c.bf16 %v4517, %v4516
        %v4547 = vpack.c.bf16 %v4519, %v4518
        %v4548 = vpack.c.bf16 %v4521, %v4520
        %v4549 = vpack.c.bf16 %v4523, %v4522
        %v4550 = vpack.c.bf16 %v4525, %v4524
        %v4551 = vpack.c.bf16 %v4527, %v4526
        %v4552 = vpack.c.bf16 %v4529, %v4528
        %v4553 = vpack.c.bf16 %v4531, %v4530
        %v4554 = vpack.c.bf16 %v4533, %v4532
        %v4555 = vpack.c.bf16 %v4535, %v4534
        %v4556 = vpack.c.bf16 %v4537, %v4536
        %v4557 = vpack.c.bf16 %v4539, %v4538
        %v4558 = vpack.c.bf16 %v4541, %v4540
        %v4559 = vpack.c.bf16 %v4543, %v4542
        %v4560 = vld [vmem:[#allocation3 + $0x100] sm:$0xf]
        %v4561 = vld [vmem:[#allocation3 + $0x104] sm:$0xf]
        %v4562 = vld [vmem:[#allocation3 + $0x108] sm:$0xf]
        %v4563 = vld [vmem:[#allocation3 + $0x10c] sm:$0xf]
        %v4564 = vld [vmem:[#allocation3 + $0x110] sm:$0xf]
        %v4565 = vld [vmem:[#allocation3 + $0x114] sm:$0xf]
        %v4566 = vld [vmem:[#allocation3 + $0x118] sm:$0xf]
        %v4567 = vld [vmem:[#allocation3 + $0x11c] sm:$0xf]
        %v4568 = vld [vmem:[#allocation3 + $0x120] sm:$0xf]
        %v4569 = vld [vmem:[#allocation3 + $0x124] sm:$0xf]
        %v4570 = vld [vmem:[#allocation3 + $0x128] sm:$0xf]
        %v4571 = vld [vmem:[#allocation3 + $0x12c] sm:$0xf]
        %v4572 = vld [vmem:[#allocation3 + $0x130] sm:$0xf]
        %v4573 = vld [vmem:[#allocation3 + $0x134] sm:$0xf]
        %v4574 = vld [vmem:[#allocation3 + $0x138] sm:$0xf]
        %v4575 = vld [vmem:[#allocation3 + $0x13c] sm:$0xf]
        %v4592 = vunpack.c.l.b16 %v4560
        %v4593 = vunpack.c.l.b16 %v4561
        %v4594 = vunpack.c.l.b16 %v4562
        %v4595 = vunpack.c.l.b16 %v4563
        %v4596 = vunpack.c.l.b16 %v4564
        %v4597 = vunpack.c.l.b16 %v4565
        %v4598 = vunpack.c.l.b16 %v4566
        %v4599 = vunpack.c.l.b16 %v4567
        %v4600 = vunpack.c.l.b16 %v4568
        %v4601 = vunpack.c.l.b16 %v4569
        %v4602 = vunpack.c.l.b16 %v4570
        %v4603 = vunpack.c.l.b16 %v4571
        %v4604 = vunpack.c.l.b16 %v4572
        %v4605 = vunpack.c.l.b16 %v4573
        %v4606 = vunpack.c.l.b16 %v4574
        %v4607 = vunpack.c.l.b16 %v4575
        %v4608 = vpack.c.b16 %v4593, %v4592
        %v4609 = vpack.c.b16 %v4595, %v4594
        %v4610 = vpack.c.b16 %v4597, %v4596
        %v4611 = vpack.c.b16 %v4599, %v4598
        %v4612 = vpack.c.b16 %v4601, %v4600
        %v4613 = vpack.c.b16 %v4603, %v4602
        %v4614 = vpack.c.b16 %v4605, %v4604
        %v4615 = vpack.c.b16 %v4607, %v4606
        %4624 = vmatprep.subr.bf16.mxu0 0
        %4625 = vmatpush1.bf16.msra.mxu0 %v4608
        %4626 = vmatprep.subr.bf16.mxu0 0
        %4627 = vmatpush1.bf16.msra.mxu0 %v4609
        %4628 = vmatprep.subr.bf16.mxu0 0
        %4629 = vmatpush1.bf16.msra.mxu0 %v4610
        %4630 = vmatprep.subr.bf16.mxu0 0
        %4631 = vmatpush1.bf16.msra.mxu0 %v4611
        %4632 = vmatprep.subr.bf16.mxu0 0
        %4633 = vmatpush1.bf16.msra.mxu0 %v4612
        %4634 = vmatprep.subr.bf16.mxu0 0
        %4635 = vmatpush1.bf16.msra.mxu0 %v4613
        %4636 = vmatprep.subr.bf16.mxu0 0
        %4637 = vmatpush1.bf16.msra.mxu0 %v4614
        %4638 = vmatprep.subr.bf16.mxu0 0
        %4639 = vmatpush1.bf16.msra.mxu0 %v4615
        %4640 = vmatprep.subr.bf16.mxu0 0
        %4641 = vmatpush1.bf16.msra.mxu0 0
        %4642 = vmatprep.subr.bf16.mxu0 0
        %4643 = vmatpush1.bf16.msra.mxu0 0
        %4644 = vmatprep.subr.bf16.mxu0 0
        %4645 = vmatpush1.bf16.msra.mxu0 0
        %4646 = vmatprep.subr.bf16.mxu0 0
        %4647 = vmatpush1.bf16.msra.mxu0 0
        %4648 = vmatprep.subr.bf16.mxu0 0
        %4649 = vmatpush1.bf16.msra.mxu0 0
        %4650 = vmatprep.subr.bf16.mxu0 0
        %4651 = vmatpush1.bf16.msra.mxu0 0
        %4652 = vmatprep.subr.bf16.mxu0 0
        %4653 = vmatpush1.bf16.msra.mxu0 0
        %4654 = vmatprep.subr.bf16.mxu0 0
        %4655 = vmatpush1.bf16.msra.mxu0 0
        %4656 = vmatprep.mubr.bf16.mxu0 0
        %4657 = vmatmul.mubr.bf16.gmra.mrb[0].mxu0 %v4544
        %v4658 = vpop.f32.mrb[0].mxu0
        %v4659 = vadd.f32 0.0, %v4658
        %v4660 = vpop.f32.mrb[0].mxu0
        %v4661 = vpop.f32.mrb[0].mxu0
        %v4662 = vadd.f32 0.0, %v4661
        %v4663 = vpop.f32.mrb[0].mxu0
        %4664 = vmatprep.mubr.bf16.mxu0 0
        %4665 = vmatmul.mubr.bf16.gmra.mrb[0].mxu0 %v4545
        %v4666 = vpop.f32.mrb[0].mxu0
        %v4667 = vadd.f32 0.0, %v4666
        %v4668 = vpop.f32.mrb[0].mxu0
        %v4669 = vpop.f32.mrb[0].mxu0
        %v4670 = vadd.f32 0.0, %v4669
        %v4671 = vpop.f32.mrb[0].mxu0
        %4672 = vmatprep.mubr.bf16.mxu0 0
        %4673 = vmatmul.mubr.bf16.gmra.mrb[0].mxu0 %v4546
        %v4674 = vpop.f32.mrb[0].mxu0
        %v4675 = vadd.f32 0.0, %v4674
        %v4676 = vpop.f32.mrb[0].mxu0
        %v4677 = vpop.f32.mrb[0].mxu0
        %v4678 = vadd.f32 0.0, %v4677
        %v4679 = vpop.f32.mrb[0].mxu0
        %4680 = vmatprep.mubr.bf16.mxu0 0
        %4681 = vmatmul.mubr.bf16.gmra.mrb[0].mxu0 %v4547
        %v4682 = vpop.f32.mrb[0].mxu0
        %v4683 = vadd.f32 0.0, %v4682
        %v4684 = vpop.f32.mrb[0].mxu0
        %v4685 = vpop.f32.mrb[0].mxu0
        %v4686 = vadd.f32 0.0, %v4685
        %v4687 = vpop.f32.mrb[0].mxu0
        %4688 = vmatprep.mubr.bf16.mxu0 0
        %4689 = vmatmul.mubr.bf16.gmra.mrb[0].mxu0 %v4548
        %v4690 = vpop.f32.mrb[0].mxu0
        %v4691 = vadd.f32 0.0, %v4690
        %v4692 = vpop.f32.mrb[0].mxu0
        %v4693 = vpop.f32.mrb[0].mxu0
        %v4694 = vadd.f32 0.0, %v4693
        %v4695 = vpop.f32.mrb[0].mxu0
        %4696 = vmatprep.mubr.bf16.mxu0 0
        %4697 = vmatmul.mubr.bf16.gmra.mrb[0].mxu0 %v4549
        %v4698 = vpop.f32.mrb[0].mxu0
        %v4699 = vadd.f32 0.0, %v4698
        %v4700 = vpop.f32.mrb[0].mxu0
        %v4701 = vpop.f32.mrb[0].mxu0
        %v4702 = vadd.f32 0.0, %v4701
        %v4703 = vpop.f32.mrb[0].mxu0
        %4704 = vmatprep.mubr.bf16.mxu0 0
        %4705 = vmatmul.mubr.bf16.gmra.mrb[0].mxu0 %v4550
        %v4706 = vpop.f32.mrb[0].mxu0
        %v4707 = vadd.f32 0.0, %v4706
        %v4708 = vpop.f32.mrb[0].mxu0
        %v4709 = vpop.f32.mrb[0].mxu0
        %v4710 = vadd.f32 0.0, %v4709
        %v4711 = vpop.f32.mrb[0].mxu0
        %4712 = vmatprep.mubr.bf16.mxu0 0
        %4713 = vmatmul.mubr.bf16.gmra.mrb[0].mxu0 %v4551
        %v4714 = vpop.f32.mrb[0].mxu0
        %v4715 = vadd.f32 0.0, %v4714
        %v4716 = vpop.f32.mrb[0].mxu0
        %v4717 = vpop.f32.mrb[0].mxu0
        %v4718 = vadd.f32 0.0, %v4717
        %v4719 = vpop.f32.mrb[0].mxu0
        %4720 = vmatprep.mubr.bf16.mxu0 0
        %4721 = vmatmul.mubr.bf16.gmra.mrb[0].mxu0 %v4552
        %v4722 = vpop.f32.mrb[0].mxu0
        %v4723 = vadd.f32 0.0, %v4722
        %v4724 = vpop.f32.mrb[0].mxu0
        %v4725 = vpop.f32.mrb[0].mxu0
        %v4726 = vadd.f32 0.0, %v4725
        %v4727 = vpop.f32.mrb[0].mxu0
        %4728 = vmatprep.mubr.bf16.mxu0 0
        %4729 = vmatmul.mubr.bf16.gmra.mrb[0].mxu0 %v4553
        %v4730 = vpop.f32.mrb[0].mxu0
        %v4731 = vadd.f32 0.0, %v4730
        %v4732 = vpop.f32.mrb[0].mxu0
        %v4733 = vpop.f32.mrb[0].mxu0
        %v4734 = vadd.f32 0.0, %v4733
        %v4735 = vpop.f32.mrb[0].mxu0
        %4736 = vmatprep.mubr.bf16.mxu0 0
        %4737 = vmatmul.mubr.bf16.gmra.mrb[0].mxu0 %v4554
        %v4738 = vpop.f32.mrb[0].mxu0
        %v4739 = vadd.f32 0.0, %v4738
        %v4740 = vpop.f32.mrb[0].mxu0
        %v4741 = vpop.f32.mrb[0].mxu0
        %v4742 = vadd.f32 0.0, %v4741
        %v4743 = vpop.f32.mrb[0].mxu0
        %4744 = vmatprep.mubr.bf16.mxu0 0
        %4745 = vmatmul.mubr.bf16.gmra.mrb[0].mxu0 %v4555
        %v4746 = vpop.f32.mrb[0].mxu0
        %v4747 = vadd.f32 0.0, %v4746
        %v4748 = vpop.f32.mrb[0].mxu0
        %v4749 = vpop.f32.mrb[0].mxu0
        %v4750 = vadd.f32 0.0, %v4749
        %v4751 = vpop.f32.mrb[0].mxu0
        %4752 = vmatprep.mubr.bf16.mxu0 0
        %4753 = vmatmul.mubr.bf16.gmra.mrb[0].mxu0 %v4556
        %v4754 = vpop.f32.mrb[0].mxu0
        %v4755 = vadd.f32 0.0, %v4754
        %v4756 = vpop.f32.mrb[0].mxu0
        %v4757 = vpop.f32.mrb[0].mxu0
        %v4758 = vadd.f32 0.0, %v4757
        %v4759 = vpop.f32.mrb[0].mxu0
        %4760 = vmatprep.mubr.bf16.mxu0 0
        %4761 = vmatmul.mubr.bf16.gmra.mrb[0].mxu0 %v4557
        %v4762 = vpop.f32.mrb[0].mxu0
        %v4763 = vadd.f32 0.0, %v4762
        %v4764 = vpop.f32.mrb[0].mxu0
        %v4765 = vpop.f32.mrb[0].mxu0
        %v4766 = vadd.f32 0.0, %v4765
        %v4767 = vpop.f32.mrb[0].mxu0
        %4768 = vmatprep.mubr.bf16.mxu0 0
        %4769 = vmatmul.mubr.bf16.gmra.mrb[0].mxu0 %v4558
        %v4770 = vpop.f32.mrb[0].mxu0
        %v4771 = vadd.f32 0.0, %v4770
        %v4772 = vpop.f32.mrb[0].mxu0
        %v4773 = vpop.f32.mrb[0].mxu0
        %v4774 = vadd.f32 0.0, %v4773
        %v4775 = vpop.f32.mrb[0].mxu0
        %4776 = vmatprep.mubr.bf16.mxu0 0
        %4777 = vmatmul.mubr.bf16.gmra.mrb[0].mxu0 %v4559
        %v4778 = vpop.f32.mrb[0].mxu0
        %v4779 = vadd.f32 0.0, %v4778
        %v4780 = vpop.f32.mrb[0].mxu0
        %v4781 = vpop.f32.mrb[0].mxu0
        %v4782 = vadd.f32 0.0, %v4781
        %v4783 = vpop.f32.mrb[0].mxu0
        %4784 = vdwg.mxu0
        %v4785 = vadd.f32 %v4480, %v4659
        %v4786 = vadd.f32 %v4481, %v4662
        %v4787 = vadd.f32 %v4482, %v4667
        %v4788 = vadd.f32 %v4483, %v4670
        %v4789 = vadd.f32 %v4484, %v4675
        %v4790 = vadd.f32 %v4485, %v4678
        %v4791 = vadd.f32 %v4486, %v4683
        %v4792 = vadd.f32 %v4487, %v4686
        %v4793 = vadd.f32 %v4488, %v4691
        %v4794 = vadd.f32 %v4489, %v4694
        %v4795 = vadd.f32 %v4490, %v4699
        %v4796 = vadd.f32 %v4491, %v4702
        %v4797 = vadd.f32 %v4492, %v4707
        %v4798 = vadd.f32 %v4493, %v4710
        %v4799 = vadd.f32 %v4494, %v4715
        %v4800 = vadd.f32 %v4495, %v4718
        %v4801 = vadd.f32 %v4496, %v4723
        %v4802 = vadd.f32 %v4497, %v4726
        %v4803 = vadd.f32 %v4498, %v4731
        %v4804 = vadd.f32 %v4499, %v4734
        %v4805 = vadd.f32 %v4500, %v4739
        %v4806 = vadd.f32 %v4501, %v4742
        %v4807 = vadd.f32 %v4502, %v4747
        %v4808 = vadd.f32 %v4503, %v4750
        %v4809 = vadd.f32 %v4504, %v4755
        %v4810 = vadd.f32 %v4505, %v4758
        %v4811 = vadd.f32 %v4506, %v4763
        %v4812 = vadd.f32 %v4507, %v4766
        %v4813 = vadd.f32 %v4508, %v4771
        %v4814 = vadd.f32 %v4509, %v4774
        %v4815 = vadd.f32 %v4510, %v4779
        %v4816 = vadd.f32 %v4511, %v4782
        %v4817 = vld [vmem:[%s381 + $0x2] sm:$0xff]
        %v4818 = vld [vmem:[%s381 + $0xa] sm:$0xff]
        %v4819 = vld [vmem:[%s381 + $0x1a] sm:$0xff]
        %v4820 = vld [vmem:[%s381 + $0x22] sm:$0xff]
        %v4821 = vld [vmem:[%s381 + $0x32] sm:$0xff]
        %v4822 = vld [vmem:[%s381 + $0x3a] sm:$0xff]
        %v4823 = vld [vmem:[%s381 + $0x4a] sm:$0xff]
        %v4824 = vld [vmem:[%s381 + $0x52] sm:$0xff]
        %v4825 = vld [vmem:[%s381 + $0x62] sm:$0xff]
        %v4826 = vld [vmem:[%s381 + $0x6a] sm:$0xff]
        %v4827 = vld [vmem:[%s381 + $0x7a] sm:$0xff]
        %v4828 = vld [vmem:[%s381 + $0x82] sm:$0xff]
        %v4829 = vld [vmem:[%s381 + $0x92] sm:$0xff]
        %v4830 = vld [vmem:[%s381 + $0x9a] sm:$0xff]
        %v4831 = vld [vmem:[%s381 + $0xaa] sm:$0xff]
        %v4832 = vld [vmem:[%s381 + $0xb2] sm:$0xff]
        %v4833 = vld [vmem:[%s381 + $0xc2] sm:$0xff]
        %v4834 = vld [vmem:[%s381 + $0xca] sm:$0xff]
        %v4835 = vld [vmem:[%s381 + $0xda] sm:$0xff]
        %v4836 = vld [vmem:[%s381 + $0xe2] sm:$0xff]
        %v4837 = vld [vmem:[%s381 + $0xf2] sm:$0xff]
        %v4838 = vld [vmem:[%s381 + $0xfa] sm:$0xff]
        %v4839 = vld [vmem:[%s381 + $0x10a] sm:$0xff]
        %v4840 = vld [vmem:[%s381 + $0x112] sm:$0xff]
        %v4841 = vld [vmem:[%s381 + $0x122] sm:$0xff]
        %v4842 = vld [vmem:[%s381 + $0x12a] sm:$0xff]
        %v4843 = vld [vmem:[%s381 + $0x13a] sm:$0xff]
        %v4844 = vld [vmem:[%s381 + $0x142] sm:$0xff]
        %v4845 = vld [vmem:[%s381 + $0x152] sm:$0xff]
        %v4846 = vld [vmem:[%s381 + $0x15a] sm:$0xff]
        %v4847 = vld [vmem:[%s381 + $0x16a] sm:$0xff]
        %v4848 = vld [vmem:[%s381 + $0x172] sm:$0xff]
        %v4849 = vpack.c.bf16 %v4818, %v4817
        %v4850 = vpack.c.bf16 %v4820, %v4819
        %v4851 = vpack.c.bf16 %v4822, %v4821
        %v4852 = vpack.c.bf16 %v4824, %v4823
        %v4853 = vpack.c.bf16 %v4826, %v4825
        %v4854 = vpack.c.bf16 %v4828, %v4827
        %v4855 = vpack.c.bf16 %v4830, %v4829
        %v4856 = vpack.c.bf16 %v4832, %v4831
        %v4857 = vpack.c.bf16 %v4834, %v4833
        %v4858 = vpack.c.bf16 %v4836, %v4835
        %v4859 = vpack.c.bf16 %v4838, %v4837
        %v4860 = vpack.c.bf16 %v4840, %v4839
        %v4861 = vpack.c.bf16 %v4842, %v4841
        %v4862 = vpack.c.bf16 %v4844, %v4843
        %v4863 = vpack.c.bf16 %v4846, %v4845
        %v4864 = vpack.c.bf16 %v4848, %v4847
        %v4865 = vld [vmem:[#allocation3 + $0x140] sm:$0xf]
        %v4866 = vld [vmem:[#allocation3 + $0x144] sm:$0xf]
        %v4867 = vld [vmem:[#allocation3 + $0x148] sm:$0xf]
        %v4868 = vld [vmem:[#allocation3 + $0x14c] sm:$0xf]
        %v4869 = vld [vmem:[#allocation3 + $0x150] sm:$0xf]
        %v4870 = vld [vmem:[#allocation3 + $0x154] sm:$0xf]
        %v4871 = vld [vmem:[#allocation3 + $0x158] sm:$0xf]
        %v4872 = vld [vmem:[#allocation3 + $0x15c] sm:$0xf]
        %v4873 = vld [vmem:[#allocation3 + $0x160] sm:$0xf]
        %v4874 = vld [vmem:[#allocation3 + $0x164] sm:$0xf]
        %v4875 = vld [vmem:[#allocation3 + $0x168] sm:$0xf]
        %v4876 = vld [vmem:[#allocation3 + $0x16c] sm:$0xf]
        %v4877 = vld [vmem:[#allocation3 + $0x170] sm:$0xf]
        %v4878 = vld [vmem:[#allocation3 + $0x174] sm:$0xf]
        %v4879 = vld [vmem:[#allocation3 + $0x178] sm:$0xf]
        %v4880 = vld [vmem:[#allocation3 + $0x17c] sm:$0xf]
        %v4897 = vunpack.c.l.b16 %v4865
        %v4898 = vunpack.c.l.b16 %v4866
        %v4899 = vunpack.c.l.b16 %v4867
        %v4900 = vunpack.c.l.b16 %v4868
        %v4901 = vunpack.c.l.b16 %v4869
        %v4902 = vunpack.c.l.b16 %v4870
        %v4903 = vunpack.c.l.b16 %v4871
        %v4904 = vunpack.c.l.b16 %v4872
        %v4905 = vunpack.c.l.b16 %v4873
        %v4906 = vunpack.c.l.b16 %v4874
        %v4907 = vunpack.c.l.b16 %v4875
        %v4908 = vunpack.c.l.b16 %v4876
        %v4909 = vunpack.c.l.b16 %v4877
        %v4910 = vunpack.c.l.b16 %v4878
        %v4911 = vunpack.c.l.b16 %v4879
        %v4912 = vunpack.c.l.b16 %v4880
        %v4913 = vpack.c.b16 %v4898, %v4897
        %v4914 = vpack.c.b16 %v4900, %v4899
        %v4915 = vpack.c.b16 %v4902, %v4901
        %v4916 = vpack.c.b16 %v4904, %v4903
        %v4917 = vpack.c.b16 %v4906, %v4905
        %v4918 = vpack.c.b16 %v4908, %v4907
        %v4919 = vpack.c.b16 %v4910, %v4909
        %v4920 = vpack.c.b16 %v4912, %v4911
        %4929 = vmatprep.subr.bf16.mxu0 0
        %4930 = vmatpush1.bf16.msra.mxu0 %v4913
        %4931 = vmatprep.subr.bf16.mxu0 0
        %4932 = vmatpush1.bf16.msra.mxu0 %v4914
        %4933 = vmatprep.subr.bf16.mxu0 0
        %4934 = vmatpush1.bf16.msra.mxu0 %v4915
        %4935 = vmatprep.subr.bf16.mxu0 0
        %4936 = vmatpush1.bf16.msra.mxu0 %v4916
        %4937 = vmatprep.subr.bf16.mxu0 0
        %4938 = vmatpush1.bf16.msra.mxu0 %v4917
        %4939 = vmatprep.subr.bf16.mxu0 0
        %4940 = vmatpush1.bf16.msra.mxu0 %v4918
        %4941 = vmatprep.subr.bf16.mxu0 0
        %4942 = vmatpush1.bf16.msra.mxu0 %v4919
        %4943 = vmatprep.subr.bf16.mxu0 0
        %4944 = vmatpush1.bf16.msra.mxu0 %v4920
        %4945 = vmatprep.subr.bf16.mxu0 0
        %4946 = vmatpush1.bf16.msra.mxu0 0
        %4947 = vmatprep.subr.bf16.mxu0 0
        %4948 = vmatpush1.bf16.msra.mxu0 0
        %4949 = vmatprep.subr.bf16.mxu0 0
        %4950 = vmatpush1.bf16.msra.mxu0 0
        %4951 = vmatprep.subr.bf16.mxu0 0
        %4952 = vmatpush1.bf16.msra.mxu0 0
        %4953 = vmatprep.subr.bf16.mxu0 0
        %4954 = vmatpush1.bf16.msra.mxu0 0
        %4955 = vmatprep.subr.bf16.mxu0 0
        %4956 = vmatpush1.bf16.msra.mxu0 0
        %4957 = vmatprep.subr.bf16.mxu0 0
        %4958 = vmatpush1.bf16.msra.mxu0 0
        %4959 = vmatprep.subr.bf16.mxu0 0
        %4960 = vmatpush1.bf16.msra.mxu0 0
        %4961 = vmatprep.mubr.bf16.mxu0 0
        %4962 = vmatmul.mubr.bf16.gmra.mrb[0].mxu0 %v4849
        %v4963 = vpop.f32.mrb[0].mxu0
        %v4964 = vadd.f32 0.0, %v4963
        %v4965 = vpop.f32.mrb[0].mxu0
        %v4966 = vpop.f32.mrb[0].mxu0
        %v4967 = vadd.f32 0.0, %v4966
        %v4968 = vpop.f32.mrb[0].mxu0
        %4969 = vmatprep.mubr.bf16.mxu0 0
        %4970 = vmatmul.mubr.bf16.gmra.mrb[0].mxu0 %v4850
        %v4971 = vpop.f32.mrb[0].mxu0
        %v4972 = vadd.f32 0.0, %v4971
        %v4973 = vpop.f32.mrb[0].mxu0
        %v4974 = vpop.f32.mrb[0].mxu0
        %v4975 = vadd.f32 0.0, %v4974
        %v4976 = vpop.f32.mrb[0].mxu0
        %4977 = vmatprep.mubr.bf16.mxu0 0
        %4978 = vmatmul.mubr.bf16.gmra.mrb[0].mxu0 %v4851
        %v4979 = vpop.f32.mrb[0].mxu0
        %v4980 = vadd.f32 0.0, %v4979
        %v4981 = vpop.f32.mrb[0].mxu0
        %v4982 = vpop.f32.mrb[0].mxu0
        %v4983 = vadd.f32 0.0, %v4982
        %v4984 = vpop.f32.mrb[0].mxu0
        %4985 = vmatprep.mubr.bf16.mxu0 0
        %4986 = vmatmul.mubr.bf16.gmra.mrb[0].mxu0 %v4852
        %v4987 = vpop.f32.mrb[0].mxu0
        %v4988 = vadd.f32 0.0, %v4987
        %v4989 = vpop.f32.mrb[0].mxu0
        %v4990 = vpop.f32.mrb[0].mxu0
        %v4991 = vadd.f32 0.0, %v4990
        %v4992 = vpop.f32.mrb[0].mxu0
        %4993 = vmatprep.mubr.bf16.mxu0 0
        %4994 = vmatmul.mubr.bf16.gmra.mrb[0].mxu0 %v4853
        %v4995 = vpop.f32.mrb[0].mxu0
        %v4996 = vadd.f32 0.0, %v4995
        %v4997 = vpop.f32.mrb[0].mxu0
        %v4998 = vpop.f32.mrb[0].mxu0
        %v4999 = vadd.f32 0.0, %v4998
        %v5000 = vpop.f32.mrb[0].mxu0
        %5001 = vmatprep.mubr.bf16.mxu0 0
        %5002 = vmatmul.mubr.bf16.gmra.mrb[0].mxu0 %v4854
        %v5003 = vpop.f32.mrb[0].mxu0
        %v5004 = vadd.f32 0.0, %v5003
        %v5005 = vpop.f32.mrb[0].mxu0
        %v5006 = vpop.f32.mrb[0].mxu0
        %v5007 = vadd.f32 0.0, %v5006
        %v5008 = vpop.f32.mrb[0].mxu0
        %5009 = vmatprep.mubr.bf16.mxu0 0
        %5010 = vmatmul.mubr.bf16.gmra.mrb[0].mxu0 %v4855
        %v5011 = vpop.f32.mrb[0].mxu0
        %v5012 = vadd.f32 0.0, %v5011
        %v5013 = vpop.f32.mrb[0].mxu0
        %v5014 = vpop.f32.mrb[0].mxu0
        %v5015 = vadd.f32 0.0, %v5014
        %v5016 = vpop.f32.mrb[0].mxu0
        %5017 = vmatprep.mubr.bf16.mxu0 0
        %5018 = vmatmul.mubr.bf16.gmra.mrb[0].mxu0 %v4856
        %v5019 = vpop.f32.mrb[0].mxu0
        %v5020 = vadd.f32 0.0, %v5019
        %v5021 = vpop.f32.mrb[0].mxu0
        %v5022 = vpop.f32.mrb[0].mxu0
        %v5023 = vadd.f32 0.0, %v5022
        %v5024 = vpop.f32.mrb[0].mxu0
        %5025 = vmatprep.mubr.bf16.mxu0 0
        %5026 = vmatmul.mubr.bf16.gmra.mrb[0].mxu0 %v4857
        %v5027 = vpop.f32.mrb[0].mxu0
        %v5028 = vadd.f32 0.0, %v5027
        %v5029 = vpop.f32.mrb[0].mxu0
        %v5030 = vpop.f32.mrb[0].mxu0
        %v5031 = vadd.f32 0.0, %v5030
        %v5032 = vpop.f32.mrb[0].mxu0
        %5033 = vmatprep.mubr.bf16.mxu0 0
        %5034 = vmatmul.mubr.bf16.gmra.mrb[0].mxu0 %v4858
        %v5035 = vpop.f32.mrb[0].mxu0
        %v5036 = vadd.f32 0.0, %v5035
        %v5037 = vpop.f32.mrb[0].mxu0
        %v5038 = vpop.f32.mrb[0].mxu0
        %v5039 = vadd.f32 0.0, %v5038
        %v5040 = vpop.f32.mrb[0].mxu0
        %5041 = vmatprep.mubr.bf16.mxu0 0
        %5042 = vmatmul.mubr.bf16.gmra.mrb[0].mxu0 %v4859
        %v5043 = vpop.f32.mrb[0].mxu0
        %v5044 = vadd.f32 0.0, %v5043
        %v5045 = vpop.f32.mrb[0].mxu0
        %v5046 = vpop.f32.mrb[0].mxu0
        %v5047 = vadd.f32 0.0, %v5046
        %v5048 = vpop.f32.mrb[0].mxu0
        %5049 = vmatprep.mubr.bf16.mxu0 0
        %5050 = vmatmul.mubr.bf16.gmra.mrb[0].mxu0 %v4860
        %v5051 = vpop.f32.mrb[0].mxu0
        %v5052 = vadd.f32 0.0, %v5051
        %v5053 = vpop.f32.mrb[0].mxu0
        %v5054 = vpop.f32.mrb[0].mxu0
        %v5055 = vadd.f32 0.0, %v5054
        %v5056 = vpop.f32.mrb[0].mxu0
        %5057 = vmatprep.mubr.bf16.mxu0 0
        %5058 = vmatmul.mubr.bf16.gmra.mrb[0].mxu0 %v4861
        %v5059 = vpop.f32.mrb[0].mxu0
        %v5060 = vadd.f32 0.0, %v5059
        %v5061 = vpop.f32.mrb[0].mxu0
        %v5062 = vpop.f32.mrb[0].mxu0
        %v5063 = vadd.f32 0.0, %v5062
        %v5064 = vpop.f32.mrb[0].mxu0
        %5065 = vmatprep.mubr.bf16.mxu0 0
        %5066 = vmatmul.mubr.bf16.gmra.mrb[0].mxu0 %v4862
        %v5067 = vpop.f32.mrb[0].mxu0
        %v5068 = vadd.f32 0.0, %v5067
        %v5069 = vpop.f32.mrb[0].mxu0
        %v5070 = vpop.f32.mrb[0].mxu0
        %v5071 = vadd.f32 0.0, %v5070
        %v5072 = vpop.f32.mrb[0].mxu0
        %5073 = vmatprep.mubr.bf16.mxu0 0
        %5074 = vmatmul.mubr.bf16.gmra.mrb[0].mxu0 %v4863
        %v5075 = vpop.f32.mrb[0].mxu0
        %v5076 = vadd.f32 0.0, %v5075
        %v5077 = vpop.f32.mrb[0].mxu0
        %v5078 = vpop.f32.mrb[0].mxu0
        %v5079 = vadd.f32 0.0, %v5078
        %v5080 = vpop.f32.mrb[0].mxu0
        %5081 = vmatprep.mubr.bf16.mxu0 0
        %5082 = vmatmul.mubr.bf16.gmra.mrb[0].mxu0 %v4864
        %v5083 = vpop.f32.mrb[0].mxu0
        %v5084 = vadd.f32 0.0, %v5083
        %v5085 = vpop.f32.mrb[0].mxu0
        %v5086 = vpop.f32.mrb[0].mxu0
        %v5087 = vadd.f32 0.0, %v5086
        %v5088 = vpop.f32.mrb[0].mxu0
        %5089 = vdwg.mxu0
        %v5090 = vadd.f32 %v4785, %v4964
        %v5091 = vadd.f32 %v4786, %v4967
        %v5092 = vadd.f32 %v4787, %v4972
        %v5093 = vadd.f32 %v4788, %v4975
        %v5094 = vadd.f32 %v4789, %v4980
        %v5095 = vadd.f32 %v4790, %v4983
        %v5096 = vadd.f32 %v4791, %v4988
        %v5097 = vadd.f32 %v4792, %v4991
        %v5098 = vadd.f32 %v4793, %v4996
        %v5099 = vadd.f32 %v4794, %v4999
        %v5100 = vadd.f32 %v4795, %v5004
        %v5101 = vadd.f32 %v4796, %v5007
        %v5102 = vadd.f32 %v4797, %v5012
        %v5103 = vadd.f32 %v4798, %v5015
        %v5104 = vadd.f32 %v4799, %v5020
        %v5105 = vadd.f32 %v4800, %v5023
        %v5106 = vadd.f32 %v4801, %v5028
        %v5107 = vadd.f32 %v4802, %v5031
        %v5108 = vadd.f32 %v4803, %v5036
        %v5109 = vadd.f32 %v4804, %v5039
        %v5110 = vadd.f32 %v4805, %v5044
        %v5111 = vadd.f32 %v4806, %v5047
        %v5112 = vadd.f32 %v4807, %v5052
        %v5113 = vadd.f32 %v4808, %v5055
        %v5114 = vadd.f32 %v4809, %v5060
        %v5115 = vadd.f32 %v4810, %v5063
        %v5116 = vadd.f32 %v4811, %v5068
        %v5117 = vadd.f32 %v4812, %v5071
        %v5118 = vadd.f32 %v4813, %v5076
        %v5119 = vadd.f32 %v4814, %v5079
        %v5120 = vadd.f32 %v4815, %v5084
        %v5121 = vadd.f32 %v4816, %v5087
        %v5122 = vld [vmem:[%s2181] sm:$0xff]
        %v5123 = vld [vmem:[%s2181 + $0x8] sm:$0xff]
        %v5124 = vld [vmem:[%s2181 + $0x18] sm:$0xff]
        %v5125 = vld [vmem:[%s2181 + $0x20] sm:$0xff]
        %v5126 = vld [vmem:[%s2181 + $0x30] sm:$0xff]
        %v5127 = vld [vmem:[%s2181 + $0x38] sm:$0xff]
        %v5128 = vld [vmem:[%s2181 + $0x48] sm:$0xff]
        %v5129 = vld [vmem:[%s2181 + $0x50] sm:$0xff]
        %v5130 = vld [vmem:[%s2181 + $0x60] sm:$0xff]
        %v5131 = vld [vmem:[%s2181 + $0x68] sm:$0xff]
        %v5132 = vld [vmem:[%s2181 + $0x78] sm:$0xff]
        %v5133 = vld [vmem:[%s2181 + $0x80] sm:$0xff]
        %v5134 = vld [vmem:[%s2181 + $0x90] sm:$0xff]
        %v5135 = vld [vmem:[%s2181 + $0x98] sm:$0xff]
        %v5136 = vld [vmem:[%s2181 + $0xa8] sm:$0xff]
        %v5137 = vld [vmem:[%s2181 + $0xb0] sm:$0xff]
        %v5138 = vld [vmem:[%s2181 + $0xc0] sm:$0xff]
        %v5139 = vld [vmem:[%s2181 + $0xc8] sm:$0xff]
        %v5140 = vld [vmem:[%s2181 + $0xd8] sm:$0xff]
        %v5141 = vld [vmem:[%s2181 + $0xe0] sm:$0xff]
        %v5142 = vld [vmem:[%s2181 + $0xf0] sm:$0xff]
        %v5143 = vld [vmem:[%s2181 + $0xf8] sm:$0xff]
        %v5144 = vld [vmem:[%s2181 + $0x108] sm:$0xff]
        %v5145 = vld [vmem:[%s2181 + $0x110] sm:$0xff]
        %v5146 = vld [vmem:[%s2181 + $0x120] sm:$0xff]
        %v5147 = vld [vmem:[%s2181 + $0x128] sm:$0xff]
        %v5148 = vld [vmem:[%s2181 + $0x138] sm:$0xff]
        %v5149 = vld [vmem:[%s2181 + $0x140] sm:$0xff]
        %v5150 = vld [vmem:[%s2181 + $0x150] sm:$0xff]
        %v5151 = vld [vmem:[%s2181 + $0x158] sm:$0xff]
        %v5152 = vld [vmem:[%s2181 + $0x168] sm:$0xff]
        %v5153 = vld [vmem:[%s2181 + $0x170] sm:$0xff]
        %v5154 = vpack.c.bf16 %v5123, %v5122
        %v5155 = vpack.c.bf16 %v5125, %v5124
        %v5156 = vpack.c.bf16 %v5127, %v5126
        %v5157 = vpack.c.bf16 %v5129, %v5128
        %v5158 = vpack.c.bf16 %v5131, %v5130
        %v5159 = vpack.c.bf16 %v5133, %v5132
        %v5160 = vpack.c.bf16 %v5135, %v5134
        %v5161 = vpack.c.bf16 %v5137, %v5136
        %v5162 = vpack.c.bf16 %v5139, %v5138
        %v5163 = vpack.c.bf16 %v5141, %v5140
        %v5164 = vpack.c.bf16 %v5143, %v5142
        %v5165 = vpack.c.bf16 %v5145, %v5144
        %v5166 = vpack.c.bf16 %v5147, %v5146
        %v5167 = vpack.c.bf16 %v5149, %v5148
        %v5168 = vpack.c.bf16 %v5151, %v5150
        %v5169 = vpack.c.bf16 %v5153, %v5152
        %v5170 = vld [vmem:[#allocation3 + $0x180] sm:$0xf]
        %v5171 = vld [vmem:[#allocation3 + $0x184] sm:$0xf]
        %v5172 = vld [vmem:[#allocation3 + $0x188] sm:$0xf]
        %v5173 = vld [vmem:[#allocation3 + $0x18c] sm:$0xf]
        %v5174 = vld [vmem:[#allocation3 + $0x190] sm:$0xf]
        %v5175 = vld [vmem:[#allocation3 + $0x194] sm:$0xf]
        %v5176 = vld [vmem:[#allocation3 + $0x198] sm:$0xf]
        %v5177 = vld [vmem:[#allocation3 + $0x19c] sm:$0xf]
        %v5178 = vld [vmem:[#allocation3 + $0x1a0] sm:$0xf]
        %v5179 = vld [vmem:[#allocation3 + $0x1a4] sm:$0xf]
        %v5180 = vld [vmem:[#allocation3 + $0x1a8] sm:$0xf]
        %v5181 = vld [vmem:[#allocation3 + $0x1ac] sm:$0xf]
        %v5182 = vld [vmem:[#allocation3 + $0x1b0] sm:$0xf]
        %v5183 = vld [vmem:[#allocation3 + $0x1b4] sm:$0xf]
        %v5184 = vld [vmem:[#allocation3 + $0x1b8] sm:$0xf]
        %v5185 = vld [vmem:[#allocation3 + $0x1bc] sm:$0xf]
        %v5202 = vunpack.c.l.b16 %v5170
        %v5203 = vunpack.c.l.b16 %v5171
        %v5204 = vunpack.c.l.b16 %v5172
        %v5205 = vunpack.c.l.b16 %v5173
        %v5206 = vunpack.c.l.b16 %v5174
        %v5207 = vunpack.c.l.b16 %v5175
        %v5208 = vunpack.c.l.b16 %v5176
        %v5209 = vunpack.c.l.b16 %v5177
        %v5210 = vunpack.c.l.b16 %v5178
        %v5211 = vunpack.c.l.b16 %v5179
        %v5212 = vunpack.c.l.b16 %v5180
        %v5213 = vunpack.c.l.b16 %v5181
        %v5214 = vunpack.c.l.b16 %v5182
        %v5215 = vunpack.c.l.b16 %v5183
        %v5216 = vunpack.c.l.b16 %v5184
        %v5217 = vunpack.c.l.b16 %v5185
        %v5218 = vpack.c.b16 %v5203, %v5202
        %v5219 = vpack.c.b16 %v5205, %v5204
        %v5220 = vpack.c.b16 %v5207, %v5206
        %v5221 = vpack.c.b16 %v5209, %v5208
        %v5222 = vpack.c.b16 %v5211, %v5210
        %v5223 = vpack.c.b16 %v5213, %v5212
        %v5224 = vpack.c.b16 %v5215, %v5214
        %v5225 = vpack.c.b16 %v5217, %v5216
        %5234 = vmatprep.subr.bf16.mxu0 0
        %5235 = vmatpush1.bf16.msra.mxu0 %v5218
        %5236 = vmatprep.subr.bf16.mxu0 0
        %5237 = vmatpush1.bf16.msra.mxu0 %v5219
        %5238 = vmatprep.subr.bf16.mxu0 0
        %5239 = vmatpush1.bf16.msra.mxu0 %v5220
        %5240 = vmatprep.subr.bf16.mxu0 0
        %5241 = vmatpush1.bf16.msra.mxu0 %v5221
        %5242 = vmatprep.subr.bf16.mxu0 0
        %5243 = vmatpush1.bf16.msra.mxu0 %v5222
        %5244 = vmatprep.subr.bf16.mxu0 0
        %5245 = vmatpush1.bf16.msra.mxu0 %v5223
        %5246 = vmatprep.subr.bf16.mxu0 0
        %5247 = vmatpush1.bf16.msra.mxu0 %v5224
        %5248 = vmatprep.subr.bf16.mxu0 0
        %5249 = vmatpush1.bf16.msra.mxu0 %v5225
        %5250 = vmatprep.subr.bf16.mxu0 0
        %5251 = vmatpush1.bf16.msra.mxu0 0
        %5252 = vmatprep.subr.bf16.mxu0 0
        %5253 = vmatpush1.bf16.msra.mxu0 0
        %5254 = vmatprep.subr.bf16.mxu0 0
        %5255 = vmatpush1.bf16.msra.mxu0 0
        %5256 = vmatprep.subr.bf16.mxu0 0
        %5257 = vmatpush1.bf16.msra.mxu0 0
        %5258 = vmatprep.subr.bf16.mxu0 0
        %5259 = vmatpush1.bf16.msra.mxu0 0
        %5260 = vmatprep.subr.bf16.mxu0 0
        %5261 = vmatpush1.bf16.msra.mxu0 0
        %5262 = vmatprep.subr.bf16.mxu0 0
        %5263 = vmatpush1.bf16.msra.mxu0 0
        %5264 = vmatprep.subr.bf16.mxu0 0
        %5265 = vmatpush1.bf16.msra.mxu0 0
        %5266 = vmatprep.mubr.bf16.mxu0 0
        %5267 = vmatmul.mubr.bf16.gmra.mrb[0].mxu0 %v5154
        %v5268 = vpop.f32.mrb[0].mxu0
        %v5269 = vadd.f32 0.0, %v5268
        %v5270 = vpop.f32.mrb[0].mxu0
        %v5271 = vpop.f32.mrb[0].mxu0
        %v5272 = vadd.f32 0.0, %v5271
        %v5273 = vpop.f32.mrb[0].mxu0
        %5274 = vmatprep.mubr.bf16.mxu0 0
        %5275 = vmatmul.mubr.bf16.gmra.mrb[0].mxu0 %v5155
        %v5276 = vpop.f32.mrb[0].mxu0
        %v5277 = vadd.f32 0.0, %v5276
        %v5278 = vpop.f32.mrb[0].mxu0
        %v5279 = vpop.f32.mrb[0].mxu0
        %v5280 = vadd.f32 0.0, %v5279
        %v5281 = vpop.f32.mrb[0].mxu0
        %5282 = vmatprep.mubr.bf16.mxu0 0
        %5283 = vmatmul.mubr.bf16.gmra.mrb[0].mxu0 %v5156
        %v5284 = vpop.f32.mrb[0].mxu0
        %v5285 = vadd.f32 0.0, %v5284
        %v5286 = vpop.f32.mrb[0].mxu0
        %v5287 = vpop.f32.mrb[0].mxu0
        %v5288 = vadd.f32 0.0, %v5287
        %v5289 = vpop.f32.mrb[0].mxu0
        %5290 = vmatprep.mubr.bf16.mxu0 0
        %5291 = vmatmul.mubr.bf16.gmra.mrb[0].mxu0 %v5157
        %v5292 = vpop.f32.mrb[0].mxu0
        %v5293 = vadd.f32 0.0, %v5292
        %v5294 = vpop.f32.mrb[0].mxu0
        %v5295 = vpop.f32.mrb[0].mxu0
        %v5296 = vadd.f32 0.0, %v5295
        %v5297 = vpop.f32.mrb[0].mxu0
        %5298 = vmatprep.mubr.bf16.mxu0 0
        %5299 = vmatmul.mubr.bf16.gmra.mrb[0].mxu0 %v5158
        %v5300 = vpop.f32.mrb[0].mxu0
        %v5301 = vadd.f32 0.0, %v5300
        %v5302 = vpop.f32.mrb[0].mxu0
        %v5303 = vpop.f32.mrb[0].mxu0
        %v5304 = vadd.f32 0.0, %v5303
        %v5305 = vpop.f32.mrb[0].mxu0
        %5306 = vmatprep.mubr.bf16.mxu0 0
        %5307 = vmatmul.mubr.bf16.gmra.mrb[0].mxu0 %v5159
        %v5308 = vpop.f32.mrb[0].mxu0
        %v5309 = vadd.f32 0.0, %v5308
        %v5310 = vpop.f32.mrb[0].mxu0
        %v5311 = vpop.f32.mrb[0].mxu0
        %v5312 = vadd.f32 0.0, %v5311
        %v5313 = vpop.f32.mrb[0].mxu0
        %5314 = vmatprep.mubr.bf16.mxu0 0
        %5315 = vmatmul.mubr.bf16.gmra.mrb[0].mxu0 %v5160
        %v5316 = vpop.f32.mrb[0].mxu0
        %v5317 = vadd.f32 0.0, %v5316
        %v5318 = vpop.f32.mrb[0].mxu0
        %v5319 = vpop.f32.mrb[0].mxu0
        %v5320 = vadd.f32 0.0, %v5319
        %v5321 = vpop.f32.mrb[0].mxu0
        %5322 = vmatprep.mubr.bf16.mxu0 0
        %5323 = vmatmul.mubr.bf16.gmra.mrb[0].mxu0 %v5161
        %v5324 = vpop.f32.mrb[0].mxu0
        %v5325 = vadd.f32 0.0, %v5324
        %v5326 = vpop.f32.mrb[0].mxu0
        %v5327 = vpop.f32.mrb[0].mxu0
        %v5328 = vadd.f32 0.0, %v5327
        %v5329 = vpop.f32.mrb[0].mxu0
        %5330 = vmatprep.mubr.bf16.mxu0 0
        %5331 = vmatmul.mubr.bf16.gmra.mrb[0].mxu0 %v5162
        %v5332 = vpop.f32.mrb[0].mxu0
        %v5333 = vadd.f32 0.0, %v5332
        %v5334 = vpop.f32.mrb[0].mxu0
        %v5335 = vpop.f32.mrb[0].mxu0
        %v5336 = vadd.f32 0.0, %v5335
        %v5337 = vpop.f32.mrb[0].mxu0
        %5338 = vmatprep.mubr.bf16.mxu0 0
        %5339 = vmatmul.mubr.bf16.gmra.mrb[0].mxu0 %v5163
        %v5340 = vpop.f32.mrb[0].mxu0
        %v5341 = vadd.f32 0.0, %v5340
        %v5342 = vpop.f32.mrb[0].mxu0
        %v5343 = vpop.f32.mrb[0].mxu0
        %v5344 = vadd.f32 0.0, %v5343
        %v5345 = vpop.f32.mrb[0].mxu0
        %5346 = vmatprep.mubr.bf16.mxu0 0
        %5347 = vmatmul.mubr.bf16.gmra.mrb[0].mxu0 %v5164
        %v5348 = vpop.f32.mrb[0].mxu0
        %v5349 = vadd.f32 0.0, %v5348
        %v5350 = vpop.f32.mrb[0].mxu0
        %v5351 = vpop.f32.mrb[0].mxu0
        %v5352 = vadd.f32 0.0, %v5351
        %v5353 = vpop.f32.mrb[0].mxu0
        %5354 = vmatprep.mubr.bf16.mxu0 0
        %5355 = vmatmul.mubr.bf16.gmra.mrb[0].mxu0 %v5165
        %v5356 = vpop.f32.mrb[0].mxu0
        %v5357 = vadd.f32 0.0, %v5356
        %v5358 = vpop.f32.mrb[0].mxu0
        %v5359 = vpop.f32.mrb[0].mxu0
        %v5360 = vadd.f32 0.0, %v5359
        %v5361 = vpop.f32.mrb[0].mxu0
        %5362 = vmatprep.mubr.bf16.mxu0 0
        %5363 = vmatmul.mubr.bf16.gmra.mrb[0].mxu0 %v5166
        %v5364 = vpop.f32.mrb[0].mxu0
        %v5365 = vadd.f32 0.0, %v5364
        %v5366 = vpop.f32.mrb[0].mxu0
        %v5367 = vpop.f32.mrb[0].mxu0
        %v5368 = vadd.f32 0.0, %v5367
        %v5369 = vpop.f32.mrb[0].mxu0
        %5370 = vmatprep.mubr.bf16.mxu0 0
        %5371 = vmatmul.mubr.bf16.gmra.mrb[0].mxu0 %v5167
        %v5372 = vpop.f32.mrb[0].mxu0
        %v5373 = vadd.f32 0.0, %v5372
        %v5374 = vpop.f32.mrb[0].mxu0
        %v5375 = vpop.f32.mrb[0].mxu0
        %v5376 = vadd.f32 0.0, %v5375
        %v5377 = vpop.f32.mrb[0].mxu0
        %5378 = vmatprep.mubr.bf16.mxu0 0
        %5379 = vmatmul.mubr.bf16.gmra.mrb[0].mxu0 %v5168
        %v5380 = vpop.f32.mrb[0].mxu0
        %v5381 = vadd.f32 0.0, %v5380
        %v5382 = vpop.f32.mrb[0].mxu0
        %v5383 = vpop.f32.mrb[0].mxu0
        %v5384 = vadd.f32 0.0, %v5383
        %v5385 = vpop.f32.mrb[0].mxu0
        %5386 = vmatprep.mubr.bf16.mxu0 0
        %5387 = vmatmul.mubr.bf16.gmra.mrb[0].mxu0 %v5169
        %v5388 = vpop.f32.mrb[0].mxu0
        %v5389 = vadd.f32 0.0, %v5388
        %v5390 = vpop.f32.mrb[0].mxu0
        %v5391 = vpop.f32.mrb[0].mxu0
        %v5392 = vadd.f32 0.0, %v5391
        %v5393 = vpop.f32.mrb[0].mxu0
        %5394 = vdwg.mxu0
        %v5395 = vadd.f32 %v5090, %v5269
        %v5396 = vadd.f32 %v5091, %v5272
        %v5397 = vadd.f32 %v5092, %v5277
        %v5398 = vadd.f32 %v5093, %v5280
        %v5399 = vadd.f32 %v5094, %v5285
        %v5400 = vadd.f32 %v5095, %v5288
        %v5401 = vadd.f32 %v5096, %v5293
        %v5402 = vadd.f32 %v5097, %v5296
        %v5403 = vadd.f32 %v5098, %v5301
        %v5404 = vadd.f32 %v5099, %v5304
        %v5405 = vadd.f32 %v5100, %v5309
        %v5406 = vadd.f32 %v5101, %v5312
        %v5407 = vadd.f32 %v5102, %v5317
        %v5408 = vadd.f32 %v5103, %v5320
        %v5409 = vadd.f32 %v5104, %v5325
        %v5410 = vadd.f32 %v5105, %v5328
        %v5411 = vadd.f32 %v5106, %v5333
        %v5412 = vadd.f32 %v5107, %v5336
        %v5413 = vadd.f32 %v5108, %v5341
        %v5414 = vadd.f32 %v5109, %v5344
        %v5415 = vadd.f32 %v5110, %v5349
        %v5416 = vadd.f32 %v5111, %v5352
        %v5417 = vadd.f32 %v5112, %v5357
        %v5418 = vadd.f32 %v5113, %v5360
        %v5419 = vadd.f32 %v5114, %v5365
        %v5420 = vadd.f32 %v5115, %v5368
        %v5421 = vadd.f32 %v5116, %v5373
        %v5422 = vadd.f32 %v5117, %v5376
        %v5423 = vadd.f32 %v5118, %v5381
        %v5424 = vadd.f32 %v5119, %v5384
        %v5425 = vadd.f32 %v5120, %v5389
        %v5426 = vadd.f32 %v5121, %v5392
        %v5427 = vld [vmem:[%s2181 + $0x1] sm:$0xff]
        %v5428 = vld [vmem:[%s2181 + $0x9] sm:$0xff]
        %v5429 = vld [vmem:[%s2181 + $0x19] sm:$0xff]
        %v5430 = vld [vmem:[%s2181 + $0x21] sm:$0xff]
        %v5431 = vld [vmem:[%s2181 + $0x31] sm:$0xff]
        %v5432 = vld [vmem:[%s2181 + $0x39] sm:$0xff]
        %v5433 = vld [vmem:[%s2181 + $0x49] sm:$0xff]
        %v5434 = vld [vmem:[%s2181 + $0x51] sm:$0xff]
        %v5435 = vld [vmem:[%s2181 + $0x61] sm:$0xff]
        %v5436 = vld [vmem:[%s2181 + $0x69] sm:$0xff]
        %v5437 = vld [vmem:[%s2181 + $0x79] sm:$0xff]
        %v5438 = vld [vmem:[%s2181 + $0x81] sm:$0xff]
        %v5439 = vld [vmem:[%s2181 + $0x91] sm:$0xff]
        %v5440 = vld [vmem:[%s2181 + $0x99] sm:$0xff]
        %v5441 = vld [vmem:[%s2181 + $0xa9] sm:$0xff]
        %v5442 = vld [vmem:[%s2181 + $0xb1] sm:$0xff]
        %v5443 = vld [vmem:[%s2181 + $0xc1] sm:$0xff]
        %v5444 = vld [vmem:[%s2181 + $0xc9] sm:$0xff]
        %v5445 = vld [vmem:[%s2181 + $0xd9] sm:$0xff]
        %v5446 = vld [vmem:[%s2181 + $0xe1] sm:$0xff]
        %v5447 = vld [vmem:[%s2181 + $0xf1] sm:$0xff]
        %v5448 = vld [vmem:[%s2181 + $0xf9] sm:$0xff]
        %v5449 = vld [vmem:[%s2181 + $0x109] sm:$0xff]
        %v5450 = vld [vmem:[%s2181 + $0x111] sm:$0xff]
        %v5451 = vld [vmem:[%s2181 + $0x121] sm:$0xff]
        %v5452 = vld [vmem:[%s2181 + $0x129] sm:$0xff]
        %v5453 = vld [vmem:[%s2181 + $0x139] sm:$0xff]
        %v5454 = vld [vmem:[%s2181 + $0x141] sm:$0xff]
        %v5455 = vld [vmem:[%s2181 + $0x151] sm:$0xff]
        %v5456 = vld [vmem:[%s2181 + $0x159] sm:$0xff]
        %v5457 = vld [vmem:[%s2181 + $0x169] sm:$0xff]
        %v5458 = vld [vmem:[%s2181 + $0x171] sm:$0xff]
        %v5459 = vpack.c.bf16 %v5428, %v5427
        %v5460 = vpack.c.bf16 %v5430, %v5429
        %v5461 = vpack.c.bf16 %v5432, %v5431
        %v5462 = vpack.c.bf16 %v5434, %v5433
        %v5463 = vpack.c.bf16 %v5436, %v5435
        %v5464 = vpack.c.bf16 %v5438, %v5437
        %v5465 = vpack.c.bf16 %v5440, %v5439
        %v5466 = vpack.c.bf16 %v5442, %v5441
        %v5467 = vpack.c.bf16 %v5444, %v5443
        %v5468 = vpack.c.bf16 %v5446, %v5445
        %v5469 = vpack.c.bf16 %v5448, %v5447
        %v5470 = vpack.c.bf16 %v5450, %v5449
        %v5471 = vpack.c.bf16 %v5452, %v5451
        %v5472 = vpack.c.bf16 %v5454, %v5453
        %v5473 = vpack.c.bf16 %v5456, %v5455
        %v5474 = vpack.c.bf16 %v5458, %v5457
        %v5475 = vld [vmem:[#allocation3 + $0x1c0] sm:$0xf]
        %v5476 = vld [vmem:[#allocation3 + $0x1c4] sm:$0xf]
        %v5477 = vld [vmem:[#allocation3 + $0x1c8] sm:$0xf]
        %v5478 = vld [vmem:[#allocation3 + $0x1cc] sm:$0xf]
        %v5479 = vld [vmem:[#allocation3 + $0x1d0] sm:$0xf]
        %v5480 = vld [vmem:[#allocation3 + $0x1d4] sm:$0xf]
        %v5481 = vld [vmem:[#allocation3 + $0x1d8] sm:$0xf]
        %v5482 = vld [vmem:[#allocation3 + $0x1dc] sm:$0xf]
        %v5483 = vld [vmem:[#allocation3 + $0x1e0] sm:$0xf]
        %v5484 = vld [vmem:[#allocation3 + $0x1e4] sm:$0xf]
        %v5485 = vld [vmem:[#allocation3 + $0x1e8] sm:$0xf]
        %v5486 = vld [vmem:[#allocation3 + $0x1ec] sm:$0xf]
        %v5487 = vld [vmem:[#allocation3 + $0x1f0] sm:$0xf]
        %v5488 = vld [vmem:[#allocation3 + $0x1f4] sm:$0xf]
        %v5489 = vld [vmem:[#allocation3 + $0x1f8] sm:$0xf]
        %v5490 = vld [vmem:[#allocation3 + $0x1fc] sm:$0xf]
        %v5507 = vunpack.c.l.b16 %v5475
        %v5508 = vunpack.c.l.b16 %v5476
        %v5509 = vunpack.c.l.b16 %v5477
        %v5510 = vunpack.c.l.b16 %v5478
        %v5511 = vunpack.c.l.b16 %v5479
        %v5512 = vunpack.c.l.b16 %v5480
        %v5513 = vunpack.c.l.b16 %v5481
        %v5514 = vunpack.c.l.b16 %v5482
        %v5515 = vunpack.c.l.b16 %v5483
        %v5516 = vunpack.c.l.b16 %v5484
        %v5517 = vunpack.c.l.b16 %v5485
        %v5518 = vunpack.c.l.b16 %v5486
        %v5519 = vunpack.c.l.b16 %v5487
        %v5520 = vunpack.c.l.b16 %v5488
        %v5521 = vunpack.c.l.b16 %v5489
        %v5522 = vunpack.c.l.b16 %v5490
        %v5523 = vpack.c.b16 %v5508, %v5507
        %v5524 = vpack.c.b16 %v5510, %v5509
        %v5525 = vpack.c.b16 %v5512, %v5511
        %v5526 = vpack.c.b16 %v5514, %v5513
        %v5527 = vpack.c.b16 %v5516, %v5515
        %v5528 = vpack.c.b16 %v5518, %v5517
        %v5529 = vpack.c.b16 %v5520, %v5519
        %v5530 = vpack.c.b16 %v5522, %v5521
        %5539 = vmatprep.subr.bf16.mxu0 0
        %5540 = vmatpush1.bf16.msra.mxu0 %v5523
        %5541 = vmatprep.subr.bf16.mxu0 0
        %5542 = vmatpush1.bf16.msra.mxu0 %v5524
        %5543 = vmatprep.subr.bf16.mxu0 0
        %5544 = vmatpush1.bf16.msra.mxu0 %v5525
        %5545 = vmatprep.subr.bf16.mxu0 0
        %5546 = vmatpush1.bf16.msra.mxu0 %v5526
        %5547 = vmatprep.subr.bf16.mxu0 0
        %5548 = vmatpush1.bf16.msra.mxu0 %v5527
        %5549 = vmatprep.subr.bf16.mxu0 0
        %5550 = vmatpush1.bf16.msra.mxu0 %v5528
        %5551 = vmatprep.subr.bf16.mxu0 0
        %5552 = vmatpush1.bf16.msra.mxu0 %v5529
        %5553 = vmatprep.subr.bf16.mxu0 0
        %5554 = vmatpush1.bf16.msra.mxu0 %v5530
        %5555 = vmatprep.subr.bf16.mxu0 0
        %5556 = vmatpush1.bf16.msra.mxu0 0
        %5557 = vmatprep.subr.bf16.mxu0 0
        %5558 = vmatpush1.bf16.msra.mxu0 0
        %5559 = vmatprep.subr.bf16.mxu0 0
        %5560 = vmatpush1.bf16.msra.mxu0 0
        %5561 = vmatprep.subr.bf16.mxu0 0
        %5562 = vmatpush1.bf16.msra.mxu0 0
        %5563 = vmatprep.subr.bf16.mxu0 0
        %5564 = vmatpush1.bf16.msra.mxu0 0
        %5565 = vmatprep.subr.bf16.mxu0 0
        %5566 = vmatpush1.bf16.msra.mxu0 0
        %5567 = vmatprep.subr.bf16.mxu0 0
        %5568 = vmatpush1.bf16.msra.mxu0 0
        %5569 = vmatprep.subr.bf16.mxu0 0
        %5570 = vmatpush1.bf16.msra.mxu0 0
        %5571 = vmatprep.mubr.bf16.mxu0 0
        %5572 = vmatmul.mubr.bf16.gmra.mrb[0].mxu0 %v5459
        %v5573 = vpop.f32.mrb[0].mxu0
        %v5574 = vadd.f32 0.0, %v5573
        %v5575 = vpop.f32.mrb[0].mxu0
        %v5576 = vpop.f32.mrb[0].mxu0
        %v5577 = vadd.f32 0.0, %v5576
        %v5578 = vpop.f32.mrb[0].mxu0
        %5579 = vmatprep.mubr.bf16.mxu0 0
        %5580 = vmatmul.mubr.bf16.gmra.mrb[0].mxu0 %v5460
        %v5581 = vpop.f32.mrb[0].mxu0
        %v5582 = vadd.f32 0.0, %v5581
        %v5583 = vpop.f32.mrb[0].mxu0
        %v5584 = vpop.f32.mrb[0].mxu0
        %v5585 = vadd.f32 0.0, %v5584
        %v5586 = vpop.f32.mrb[0].mxu0
        %5587 = vmatprep.mubr.bf16.mxu0 0
        %5588 = vmatmul.mubr.bf16.gmra.mrb[0].mxu0 %v5461
        %v5589 = vpop.f32.mrb[0].mxu0
        %v5590 = vadd.f32 0.0, %v5589
        %v5591 = vpop.f32.mrb[0].mxu0
        %v5592 = vpop.f32.mrb[0].mxu0
        %v5593 = vadd.f32 0.0, %v5592
        %v5594 = vpop.f32.mrb[0].mxu0
        %5595 = vmatprep.mubr.bf16.mxu0 0
        %5596 = vmatmul.mubr.bf16.gmra.mrb[0].mxu0 %v5462
        %v5597 = vpop.f32.mrb[0].mxu0
        %v5598 = vadd.f32 0.0, %v5597
        %v5599 = vpop.f32.mrb[0].mxu0
        %v5600 = vpop.f32.mrb[0].mxu0
        %v5601 = vadd.f32 0.0, %v5600
        %v5602 = vpop.f32.mrb[0].mxu0
        %5603 = vmatprep.mubr.bf16.mxu0 0
        %5604 = vmatmul.mubr.bf16.gmra.mrb[0].mxu0 %v5463
        %v5605 = vpop.f32.mrb[0].mxu0
        %v5606 = vadd.f32 0.0, %v5605
        %v5607 = vpop.f32.mrb[0].mxu0
        %v5608 = vpop.f32.mrb[0].mxu0
        %v5609 = vadd.f32 0.0, %v5608
        %v5610 = vpop.f32.mrb[0].mxu0
        %5611 = vmatprep.mubr.bf16.mxu0 0
        %5612 = vmatmul.mubr.bf16.gmra.mrb[0].mxu0 %v5464
        %v5613 = vpop.f32.mrb[0].mxu0
        %v5614 = vadd.f32 0.0, %v5613
        %v5615 = vpop.f32.mrb[0].mxu0
        %v5616 = vpop.f32.mrb[0].mxu0
        %v5617 = vadd.f32 0.0, %v5616
        %v5618 = vpop.f32.mrb[0].mxu0
        %5619 = vmatprep.mubr.bf16.mxu0 0
        %5620 = vmatmul.mubr.bf16.gmra.mrb[0].mxu0 %v5465
        %v5621 = vpop.f32.mrb[0].mxu0
        %v5622 = vadd.f32 0.0, %v5621
        %v5623 = vpop.f32.mrb[0].mxu0
        %v5624 = vpop.f32.mrb[0].mxu0
        %v5625 = vadd.f32 0.0, %v5624
        %v5626 = vpop.f32.mrb[0].mxu0
        %5627 = vmatprep.mubr.bf16.mxu0 0
        %5628 = vmatmul.mubr.bf16.gmra.mrb[0].mxu0 %v5466
        %v5629 = vpop.f32.mrb[0].mxu0
        %v5630 = vadd.f32 0.0, %v5629
        %v5631 = vpop.f32.mrb[0].mxu0
        %v5632 = vpop.f32.mrb[0].mxu0
        %v5633 = vadd.f32 0.0, %v5632
        %v5634 = vpop.f32.mrb[0].mxu0
        %5635 = vmatprep.mubr.bf16.mxu0 0
        %5636 = vmatmul.mubr.bf16.gmra.mrb[0].mxu0 %v5467
        %v5637 = vpop.f32.mrb[0].mxu0
        %v5638 = vadd.f32 0.0, %v5637
        %v5639 = vpop.f32.mrb[0].mxu0
        %v5640 = vpop.f32.mrb[0].mxu0
        %v5641 = vadd.f32 0.0, %v5640
        %v5642 = vpop.f32.mrb[0].mxu0
        %5643 = vmatprep.mubr.bf16.mxu0 0
        %5644 = vmatmul.mubr.bf16.gmra.mrb[0].mxu0 %v5468
        %v5645 = vpop.f32.mrb[0].mxu0
        %v5646 = vadd.f32 0.0, %v5645
        %v5647 = vpop.f32.mrb[0].mxu0
        %v5648 = vpop.f32.mrb[0].mxu0
        %v5649 = vadd.f32 0.0, %v5648
        %v5650 = vpop.f32.mrb[0].mxu0
        %5651 = vmatprep.mubr.bf16.mxu0 0
        %5652 = vmatmul.mubr.bf16.gmra.mrb[0].mxu0 %v5469
        %v5653 = vpop.f32.mrb[0].mxu0
        %v5654 = vadd.f32 0.0, %v5653
        %v5655 = vpop.f32.mrb[0].mxu0
        %v5656 = vpop.f32.mrb[0].mxu0
        %v5657 = vadd.f32 0.0, %v5656
        %v5658 = vpop.f32.mrb[0].mxu0
        %5659 = vmatprep.mubr.bf16.mxu0 0
        %5660 = vmatmul.mubr.bf16.gmra.mrb[0].mxu0 %v5470
        %v5661 = vpop.f32.mrb[0].mxu0
        %v5662 = vadd.f32 0.0, %v5661
        %v5663 = vpop.f32.mrb[0].mxu0
        %v5664 = vpop.f32.mrb[0].mxu0
        %v5665 = vadd.f32 0.0, %v5664
        %v5666 = vpop.f32.mrb[0].mxu0
        %5667 = vmatprep.mubr.bf16.mxu0 0
        %5668 = vmatmul.mubr.bf16.gmra.mrb[0].mxu0 %v5471
        %v5669 = vpop.f32.mrb[0].mxu0
        %v5670 = vadd.f32 0.0, %v5669
        %v5671 = vpop.f32.mrb[0].mxu0
        %v5672 = vpop.f32.mrb[0].mxu0
        %v5673 = vadd.f32 0.0, %v5672
        %v5674 = vpop.f32.mrb[0].mxu0
        %5675 = vmatprep.mubr.bf16.mxu0 0
        %5676 = vmatmul.mubr.bf16.gmra.mrb[0].mxu0 %v5472
        %v5677 = vpop.f32.mrb[0].mxu0
        %v5678 = vadd.f32 0.0, %v5677
        %v5679 = vpop.f32.mrb[0].mxu0
        %v5680 = vpop.f32.mrb[0].mxu0
        %v5681 = vadd.f32 0.0, %v5680
        %v5682 = vpop.f32.mrb[0].mxu0
        %5683 = vmatprep.mubr.bf16.mxu0 0
        %5684 = vmatmul.mubr.bf16.gmra.mrb[0].mxu0 %v5473
        %v5685 = vpop.f32.mrb[0].mxu0
        %v5686 = vadd.f32 0.0, %v5685
        %v5687 = vpop.f32.mrb[0].mxu0
        %v5688 = vpop.f32.mrb[0].mxu0
        %v5689 = vadd.f32 0.0, %v5688
        %v5690 = vpop.f32.mrb[0].mxu0
        %5691 = vmatprep.mubr.bf16.mxu0 0
        %5692 = vmatmul.mubr.bf16.gmra.mrb[0].mxu0 %v5474
        %v5693 = vpop.f32.mrb[0].mxu0
        %v5694 = vadd.f32 0.0, %v5693
        %v5695 = vpop.f32.mrb[0].mxu0
        %v5696 = vpop.f32.mrb[0].mxu0
        %v5697 = vadd.f32 0.0, %v5696
        %v5698 = vpop.f32.mrb[0].mxu0
        %5699 = vdwg.mxu0
        %v5700 = vadd.f32 %v5395, %v5574
        %v5701 = vadd.f32 %v5396, %v5577
        %v5702 = vadd.f32 %v5397, %v5582
        %v5703 = vadd.f32 %v5398, %v5585
        %v5704 = vadd.f32 %v5399, %v5590
        %v5705 = vadd.f32 %v5400, %v5593
        %v5706 = vadd.f32 %v5401, %v5598
        %v5707 = vadd.f32 %v5402, %v5601
        %v5708 = vadd.f32 %v5403, %v5606
        %v5709 = vadd.f32 %v5404, %v5609
        %v5710 = vadd.f32 %v5405, %v5614
        %v5711 = vadd.f32 %v5406, %v5617
        %v5712 = vadd.f32 %v5407, %v5622
        %v5713 = vadd.f32 %v5408, %v5625
        %v5714 = vadd.f32 %v5409, %v5630
        %v5715 = vadd.f32 %v5410, %v5633
        %v5716 = vadd.f32 %v5411, %v5638
        %v5717 = vadd.f32 %v5412, %v5641
        %v5718 = vadd.f32 %v5413, %v5646
        %v5719 = vadd.f32 %v5414, %v5649
        %v5720 = vadd.f32 %v5415, %v5654
        %v5721 = vadd.f32 %v5416, %v5657
        %v5722 = vadd.f32 %v5417, %v5662
        %v5723 = vadd.f32 %v5418, %v5665
        %v5724 = vadd.f32 %v5419, %v5670
        %v5725 = vadd.f32 %v5420, %v5673
        %v5726 = vadd.f32 %v5421, %v5678
        %v5727 = vadd.f32 %v5422, %v5681
        %v5728 = vadd.f32 %v5423, %v5686
        %v5729 = vadd.f32 %v5424, %v5689
        %v5730 = vadd.f32 %v5425, %v5694
        %v5731 = vadd.f32 %v5426, %v5697
        %v5732 = vld [vmem:[%s2181 + $0x2] sm:$0xff]
        %v5733 = vld [vmem:[%s2181 + $0xa] sm:$0xff]
        %v5734 = vld [vmem:[%s2181 + $0x1a] sm:$0xff]
        %v5735 = vld [vmem:[%s2181 + $0x22] sm:$0xff]
        %v5736 = vld [vmem:[%s2181 + $0x32] sm:$0xff]
        %v5737 = vld [vmem:[%s2181 + $0x3a] sm:$0xff]
        %v5738 = vld [vmem:[%s2181 + $0x4a] sm:$0xff]
        %v5739 = vld [vmem:[%s2181 + $0x52] sm:$0xff]
        %v5740 = vld [vmem:[%s2181 + $0x62] sm:$0xff]
        %v5741 = vld [vmem:[%s2181 + $0x6a] sm:$0xff]
        %v5742 = vld [vmem:[%s2181 + $0x7a] sm:$0xff]
        %v5743 = vld [vmem:[%s2181 + $0x82] sm:$0xff]
        %v5744 = vld [vmem:[%s2181 + $0x92] sm:$0xff]
        %v5745 = vld [vmem:[%s2181 + $0x9a] sm:$0xff]
        %v5746 = vld [vmem:[%s2181 + $0xaa] sm:$0xff]
        %v5747 = vld [vmem:[%s2181 + $0xb2] sm:$0xff]
        %v5748 = vld [vmem:[%s2181 + $0xc2] sm:$0xff]
        %v5749 = vld [vmem:[%s2181 + $0xca] sm:$0xff]
        %v5750 = vld [vmem:[%s2181 + $0xda] sm:$0xff]
        %v5751 = vld [vmem:[%s2181 + $0xe2] sm:$0xff]
        %v5752 = vld [vmem:[%s2181 + $0xf2] sm:$0xff]
        %v5753 = vld [vmem:[%s2181 + $0xfa] sm:$0xff]
        %v5754 = vld [vmem:[%s2181 + $0x10a] sm:$0xff]
        %v5755 = vld [vmem:[%s2181 + $0x112] sm:$0xff]
        %v5756 = vld [vmem:[%s2181 + $0x122] sm:$0xff]
        %v5757 = vld [vmem:[%s2181 + $0x12a] sm:$0xff]
        %v5758 = vld [vmem:[%s2181 + $0x13a] sm:$0xff]
        %v5759 = vld [vmem:[%s2181 + $0x142] sm:$0xff]
        %v5760 = vld [vmem:[%s2181 + $0x152] sm:$0xff]
        %v5761 = vld [vmem:[%s2181 + $0x15a] sm:$0xff]
        %v5762 = vld [vmem:[%s2181 + $0x16a] sm:$0xff]
        %v5763 = vld [vmem:[%s2181 + $0x172] sm:$0xff]
        %v5764 = vpack.c.bf16 %v5733, %v5732
        %v5765 = vpack.c.bf16 %v5735, %v5734
        %v5766 = vpack.c.bf16 %v5737, %v5736
        %v5767 = vpack.c.bf16 %v5739, %v5738
        %v5768 = vpack.c.bf16 %v5741, %v5740
        %v5769 = vpack.c.bf16 %v5743, %v5742
        %v5770 = vpack.c.bf16 %v5745, %v5744
        %v5771 = vpack.c.bf16 %v5747, %v5746
        %v5772 = vpack.c.bf16 %v5749, %v5748
        %v5773 = vpack.c.bf16 %v5751, %v5750
        %v5774 = vpack.c.bf16 %v5753, %v5752
        %v5775 = vpack.c.bf16 %v5755, %v5754
        %v5776 = vpack.c.bf16 %v5757, %v5756
        %v5777 = vpack.c.bf16 %v5759, %v5758
        %v5778 = vpack.c.bf16 %v5761, %v5760
        %v5779 = vpack.c.bf16 %v5763, %v5762
        %v5780 = vld [vmem:[#allocation3 + $0x200] sm:$0xf]
        %v5781 = vld [vmem:[#allocation3 + $0x204] sm:$0xf]
        %v5782 = vld [vmem:[#allocation3 + $0x208] sm:$0xf]
        %v5783 = vld [vmem:[#allocation3 + $0x20c] sm:$0xf]
        %v5784 = vld [vmem:[#allocation3 + $0x210] sm:$0xf]
        %v5785 = vld [vmem:[#allocation3 + $0x214] sm:$0xf]
        %v5786 = vld [vmem:[#allocation3 + $0x218] sm:$0xf]
        %v5787 = vld [vmem:[#allocation3 + $0x21c] sm:$0xf]
        %v5788 = vld [vmem:[#allocation3 + $0x220] sm:$0xf]
        %v5789 = vld [vmem:[#allocation3 + $0x224] sm:$0xf]
        %v5790 = vld [vmem:[#allocation3 + $0x228] sm:$0xf]
        %v5791 = vld [vmem:[#allocation3 + $0x22c] sm:$0xf]
        %v5792 = vld [vmem:[#allocation3 + $0x230] sm:$0xf]
        %v5793 = vld [vmem:[#allocation3 + $0x234] sm:$0xf]
        %v5794 = vld [vmem:[#allocation3 + $0x238] sm:$0xf]
        %v5795 = vld [vmem:[#allocation3 + $0x23c] sm:$0xf]
        %v5812 = vunpack.c.l.b16 %v5780
        %v5813 = vunpack.c.l.b16 %v5781
        %v5814 = vunpack.c.l.b16 %v5782
        %v5815 = vunpack.c.l.b16 %v5783
        %v5816 = vunpack.c.l.b16 %v5784
        %v5817 = vunpack.c.l.b16 %v5785
        %v5818 = vunpack.c.l.b16 %v5786
        %v5819 = vunpack.c.l.b16 %v5787
        %v5820 = vunpack.c.l.b16 %v5788
        %v5821 = vunpack.c.l.b16 %v5789
        %v5822 = vunpack.c.l.b16 %v5790
        %v5823 = vunpack.c.l.b16 %v5791
        %v5824 = vunpack.c.l.b16 %v5792
        %v5825 = vunpack.c.l.b16 %v5793
        %v5826 = vunpack.c.l.b16 %v5794
        %v5827 = vunpack.c.l.b16 %v5795
        %v5828 = vpack.c.b16 %v5813, %v5812
        %v5829 = vpack.c.b16 %v5815, %v5814
        %v5830 = vpack.c.b16 %v5817, %v5816
        %v5831 = vpack.c.b16 %v5819, %v5818
        %v5832 = vpack.c.b16 %v5821, %v5820
        %v5833 = vpack.c.b16 %v5823, %v5822
        %v5834 = vpack.c.b16 %v5825, %v5824
        %v5835 = vpack.c.b16 %v5827, %v5826
        %5844 = vmatprep.subr.bf16.mxu0 0
        %5845 = vmatpush1.bf16.msra.mxu0 %v5828
        %5846 = vmatprep.subr.bf16.mxu0 0
        %5847 = vmatpush1.bf16.msra.mxu0 %v5829
        %5848 = vmatprep.subr.bf16.mxu0 0
        %5849 = vmatpush1.bf16.msra.mxu0 %v5830
        %5850 = vmatprep.subr.bf16.mxu0 0
        %5851 = vmatpush1.bf16.msra.mxu0 %v5831
        %5852 = vmatprep.subr.bf16.mxu0 0
        %5853 = vmatpush1.bf16.msra.mxu0 %v5832
        %5854 = vmatprep.subr.bf16.mxu0 0
        %5855 = vmatpush1.bf16.msra.mxu0 %v5833
        %5856 = vmatprep.subr.bf16.mxu0 0
        %5857 = vmatpush1.bf16.msra.mxu0 %v5834
        %5858 = vmatprep.subr.bf16.mxu0 0
        %5859 = vmatpush1.bf16.msra.mxu0 %v5835
        %5860 = vmatprep.subr.bf16.mxu0 0
        %5861 = vmatpush1.bf16.msra.mxu0 0
        %5862 = vmatprep.subr.bf16.mxu0 0
        %5863 = vmatpush1.bf16.msra.mxu0 0
        %5864 = vmatprep.subr.bf16.mxu0 0
        %5865 = vmatpush1.bf16.msra.mxu0 0
        %5866 = vmatprep.subr.bf16.mxu0 0
        %5867 = vmatpush1.bf16.msra.mxu0 0
        %5868 = vmatprep.subr.bf16.mxu0 0
        %5869 = vmatpush1.bf16.msra.mxu0 0
        %5870 = vmatprep.subr.bf16.mxu0 0
        %5871 = vmatpush1.bf16.msra.mxu0 0
        %5872 = vmatprep.subr.bf16.mxu0 0
        %5873 = vmatpush1.bf16.msra.mxu0 0
        %5874 = vmatprep.subr.bf16.mxu0 0
        %5875 = vmatpush1.bf16.msra.mxu0 0
        %5876 = vmatprep.mubr.bf16.mxu0 0
        %5877 = vmatmul.mubr.bf16.gmra.mrb[0].mxu0 %v5764
        %v5878 = vpop.f32.mrb[0].mxu0
        %v5879 = vadd.f32 0.0, %v5878
        %v5880 = vpop.f32.mrb[0].mxu0
        %v5881 = vpop.f32.mrb[0].mxu0
        %v5882 = vadd.f32 0.0, %v5881
        %v5883 = vpop.f32.mrb[0].mxu0
        %5884 = vmatprep.mubr.bf16.mxu0 0
        %5885 = vmatmul.mubr.bf16.gmra.mrb[0].mxu0 %v5765
        %v5886 = vpop.f32.mrb[0].mxu0
        %v5887 = vadd.f32 0.0, %v5886
        %v5888 = vpop.f32.mrb[0].mxu0
        %v5889 = vpop.f32.mrb[0].mxu0
        %v5890 = vadd.f32 0.0, %v5889
        %v5891 = vpop.f32.mrb[0].mxu0
        %5892 = vmatprep.mubr.bf16.mxu0 0
        %5893 = vmatmul.mubr.bf16.gmra.mrb[0].mxu0 %v5766
        %v5894 = vpop.f32.mrb[0].mxu0
        %v5895 = vadd.f32 0.0, %v5894
        %v5896 = vpop.f32.mrb[0].mxu0
        %v5897 = vpop.f32.mrb[0].mxu0
        %v5898 = vadd.f32 0.0, %v5897
        %v5899 = vpop.f32.mrb[0].mxu0
        %5900 = vmatprep.mubr.bf16.mxu0 0
        %5901 = vmatmul.mubr.bf16.gmra.mrb[0].mxu0 %v5767
        %v5902 = vpop.f32.mrb[0].mxu0
        %v5903 = vadd.f32 0.0, %v5902
        %v5904 = vpop.f32.mrb[0].mxu0
        %v5905 = vpop.f32.mrb[0].mxu0
        %v5906 = vadd.f32 0.0, %v5905
        %v5907 = vpop.f32.mrb[0].mxu0
        %5908 = vmatprep.mubr.bf16.mxu0 0
        %5909 = vmatmul.mubr.bf16.gmra.mrb[0].mxu0 %v5768
        %v5910 = vpop.f32.mrb[0].mxu0
        %v5911 = vadd.f32 0.0, %v5910
        %v5912 = vpop.f32.mrb[0].mxu0
        %v5913 = vpop.f32.mrb[0].mxu0
        %v5914 = vadd.f32 0.0, %v5913
        %v5915 = vpop.f32.mrb[0].mxu0
        %5916 = vmatprep.mubr.bf16.mxu0 0
        %5917 = vmatmul.mubr.bf16.gmra.mrb[0].mxu0 %v5769
        %v5918 = vpop.f32.mrb[0].mxu0
        %v5919 = vadd.f32 0.0, %v5918
        %v5920 = vpop.f32.mrb[0].mxu0
        %v5921 = vpop.f32.mrb[0].mxu0
        %v5922 = vadd.f32 0.0, %v5921
        %v5923 = vpop.f32.mrb[0].mxu0
        %5924 = vmatprep.mubr.bf16.mxu0 0
        %5925 = vmatmul.mubr.bf16.gmra.mrb[0].mxu0 %v5770
        %v5926 = vpop.f32.mrb[0].mxu0
        %v5927 = vadd.f32 0.0, %v5926
        %v5928 = vpop.f32.mrb[0].mxu0
        %v5929 = vpop.f32.mrb[0].mxu0
        %v5930 = vadd.f32 0.0, %v5929
        %v5931 = vpop.f32.mrb[0].mxu0
        %5932 = vmatprep.mubr.bf16.mxu0 0
        %5933 = vmatmul.mubr.bf16.gmra.mrb[0].mxu0 %v5771
        %v5934 = vpop.f32.mrb[0].mxu0
        %v5935 = vadd.f32 0.0, %v5934
        %v5936 = vpop.f32.mrb[0].mxu0
        %v5937 = vpop.f32.mrb[0].mxu0
        %v5938 = vadd.f32 0.0, %v5937
        %v5939 = vpop.f32.mrb[0].mxu0
        %5940 = vmatprep.mubr.bf16.mxu0 0
        %5941 = vmatmul.mubr.bf16.gmra.mrb[0].mxu0 %v5772
        %v5942 = vpop.f32.mrb[0].mxu0
        %v5943 = vadd.f32 0.0, %v5942
        %v5944 = vpop.f32.mrb[0].mxu0
        %v5945 = vpop.f32.mrb[0].mxu0
        %v5946 = vadd.f32 0.0, %v5945
        %v5947 = vpop.f32.mrb[0].mxu0
        %5948 = vmatprep.mubr.bf16.mxu0 0
        %5949 = vmatmul.mubr.bf16.gmra.mrb[0].mxu0 %v5773
        %v5950 = vpop.f32.mrb[0].mxu0
        %v5951 = vadd.f32 0.0, %v5950
        %v5952 = vpop.f32.mrb[0].mxu0
        %v5953 = vpop.f32.mrb[0].mxu0
        %v5954 = vadd.f32 0.0, %v5953
        %v5955 = vpop.f32.mrb[0].mxu0
        %5956 = vmatprep.mubr.bf16.mxu0 0
        %5957 = vmatmul.mubr.bf16.gmra.mrb[0].mxu0 %v5774
        %v5958 = vpop.f32.mrb[0].mxu0
        %v5959 = vadd.f32 0.0, %v5958
        %v5960 = vpop.f32.mrb[0].mxu0
        %v5961 = vpop.f32.mrb[0].mxu0
        %v5962 = vadd.f32 0.0, %v5961
        %v5963 = vpop.f32.mrb[0].mxu0
        %5964 = vmatprep.mubr.bf16.mxu0 0
        %5965 = vmatmul.mubr.bf16.gmra.mrb[0].mxu0 %v5775
        %v5966 = vpop.f32.mrb[0].mxu0
        %v5967 = vadd.f32 0.0, %v5966
        %v5968 = vpop.f32.mrb[0].mxu0
        %v5969 = vpop.f32.mrb[0].mxu0
        %v5970 = vadd.f32 0.0, %v5969
        %v5971 = vpop.f32.mrb[0].mxu0
        %5972 = vmatprep.mubr.bf16.mxu0 0
        %5973 = vmatmul.mubr.bf16.gmra.mrb[0].mxu0 %v5776
        %v5974 = vpop.f32.mrb[0].mxu0
        %v5975 = vadd.f32 0.0, %v5974
        %v5976 = vpop.f32.mrb[0].mxu0
        %v5977 = vpop.f32.mrb[0].mxu0
        %v5978 = vadd.f32 0.0, %v5977
        %v5979 = vpop.f32.mrb[0].mxu0
        %5980 = vmatprep.mubr.bf16.mxu0 0
        %5981 = vmatmul.mubr.bf16.gmra.mrb[0].mxu0 %v5777
        %v5982 = vpop.f32.mrb[0].mxu0
        %v5983 = vadd.f32 0.0, %v5982
        %v5984 = vpop.f32.mrb[0].mxu0
        %v5985 = vpop.f32.mrb[0].mxu0
        %v5986 = vadd.f32 0.0, %v5985
        %v5987 = vpop.f32.mrb[0].mxu0
        %5988 = vmatprep.mubr.bf16.mxu0 0
        %5989 = vmatmul.mubr.bf16.gmra.mrb[0].mxu0 %v5778
        %v5990 = vpop.f32.mrb[0].mxu0
        %v5991 = vadd.f32 0.0, %v5990
        %v5992 = vpop.f32.mrb[0].mxu0
        %v5993 = vpop.f32.mrb[0].mxu0
        %v5994 = vadd.f32 0.0, %v5993
        %v5995 = vpop.f32.mrb[0].mxu0
        %5996 = vmatprep.mubr.bf16.mxu0 0
        %5997 = vmatmul.mubr.bf16.gmra.mrb[0].mxu0 %v5779
        %v5998 = vpop.f32.mrb[0].mxu0
        %v5999 = vadd.f32 0.0, %v5998
        %v6000 = vpop.f32.mrb[0].mxu0
        %v6001 = vpop.f32.mrb[0].mxu0
        %v6002 = vadd.f32 0.0, %v6001
        %v6003 = vpop.f32.mrb[0].mxu0
        %6004 = vdwg.mxu0
        %v6005 = vadd.f32 %v5700, %v5879
        %v6006 = vadd.f32 %v5701, %v5882
        %v6007 = vadd.f32 %v5702, %v5887
        %v6008 = vadd.f32 %v5703, %v5890
        %v6009 = vadd.f32 %v5704, %v5895
        %v6010 = vadd.f32 %v5705, %v5898
        %v6011 = vadd.f32 %v5706, %v5903
        %v6012 = vadd.f32 %v5707, %v5906
        %v6013 = vadd.f32 %v5708, %v5911
        %v6014 = vadd.f32 %v5709, %v5914
        %v6015 = vadd.f32 %v5710, %v5919
        %v6016 = vadd.f32 %v5711, %v5922
        %v6017 = vadd.f32 %v5712, %v5927
        %v6018 = vadd.f32 %v5713, %v5930
        %v6019 = vadd.f32 %v5714, %v5935
        %v6020 = vadd.f32 %v5715, %v5938
        %v6021 = vadd.f32 %v5716, %v5943
        %v6022 = vadd.f32 %v5717, %v5946
        %v6023 = vadd.f32 %v5718, %v5951
        %v6024 = vadd.f32 %v5719, %v5954
        %v6025 = vadd.f32 %v5720, %v5959
        %v6026 = vadd.f32 %v5721, %v5962
        %v6027 = vadd.f32 %v5722, %v5967
        %v6028 = vadd.f32 %v5723, %v5970
        %v6029 = vadd.f32 %v5724, %v5975
        %v6030 = vadd.f32 %v5725, %v5978
        %v6031 = vadd.f32 %v5726, %v5983
        %v6032 = vadd.f32 %v5727, %v5986
        %v6033 = vadd.f32 %v5728, %v5991
        %v6034 = vadd.f32 %v5729, %v5994
        %v6035 = vadd.f32 %v5730, %v5999
        %v6036 = vadd.f32 %v5731, %v6002
        %v6037 = vadd.f32 %v6005, %v6006
        %v6038 = vadd.f32 %v6037, %v6007
        %v6039 = vadd.f32 %v6038, %v6008
        %v6040 = vadd.f32 %v6039, %v6009
        %v6041 = vadd.f32 %v6040, %v6010
        %v6042 = vadd.f32 %v6041, %v6011
        %v6043 = vadd.f32 %v6042, %v6012
        %v6044 = vadd.f32 %v6043, %v6013
        %v6045 = vadd.f32 %v6044, %v6014
        %v6046 = vadd.f32 %v6045, %v6015
        %v6047 = vadd.f32 %v6046, %v6016
        %v6048 = vadd.f32 %v6047, %v6017
        %v6049 = vadd.f32 %v6048, %v6018
        %v6050 = vadd.f32 %v6049, %v6019
        %v6051 = vadd.f32 %v6050, %v6020
        %v6052 = vadd.f32 %v6051, %v6021
        %v6053 = vadd.f32 %v6052, %v6022
        %v6054 = vadd.f32 %v6053, %v6023
        %v6055 = vadd.f32 %v6054, %v6024
        %v6056 = vadd.f32 %v6055, %v6025
        %v6057 = vadd.f32 %v6056, %v6026
        %v6058 = vadd.f32 %v6057, %v6027
        %v6059 = vadd.f32 %v6058, %v6028
        %v6060 = vadd.f32 %v6059, %v6029
        %v6061 = vadd.f32 %v6060, %v6030
        %v6062 = vadd.f32 %v6061, %v6031
        %v6063 = vadd.f32 %v6062, %v6032
        %v6064 = vadd.f32 %v6063, %v6033
        %v6065 = vadd.f32 %v6064, %v6034
        %v6066 = vadd.f32 %v6065, %v6035
        %v6067 = vadd.f32 %v6066, %v6036
        %v6068 = vrot.slane %v6067, 4
        %v6069 = vadd.f32 %v6067, %v6068
        %v6070 = vrot.slane %v6069, 2
        %v6071 = vadd.f32 %v6069, %v6070
        %v6072 = vrot.slane %v6071, 1
        %v6073 = vadd.f32 %v6071, %v6072
        %v6074 = vmul.f32 %v6073, %v3134
        %v6075 = vmul.f32 %v6005, %v6005
        %v6076 = vmul.f32 %v6006, %v6006
        %v6077 = vmul.f32 %v6007, %v6007
        %v6078 = vmul.f32 %v6008, %v6008
        %v6079 = vmul.f32 %v6009, %v6009
        %v6080 = vmul.f32 %v6010, %v6010
        %v6081 = vmul.f32 %v6011, %v6011
        %v6082 = vmul.f32 %v6012, %v6012
        %v6083 = vmul.f32 %v6013, %v6013
        %v6084 = vmul.f32 %v6014, %v6014
        %v6085 = vmul.f32 %v6015, %v6015
        %v6086 = vmul.f32 %v6016, %v6016
        %v6087 = vmul.f32 %v6017, %v6017
        %v6088 = vmul.f32 %v6018, %v6018
        %v6089 = vmul.f32 %v6019, %v6019
        %v6090 = vmul.f32 %v6020, %v6020
        %v6091 = vmul.f32 %v6021, %v6021
        %v6092 = vmul.f32 %v6022, %v6022
        %v6093 = vmul.f32 %v6023, %v6023
        %v6094 = vmul.f32 %v6024, %v6024
        %v6095 = vmul.f32 %v6025, %v6025
        %v6096 = vmul.f32 %v6026, %v6026
        %v6097 = vmul.f32 %v6027, %v6027
        %v6098 = vmul.f32 %v6028, %v6028
        %v6099 = vmul.f32 %v6029, %v6029
        %v6100 = vmul.f32 %v6030, %v6030
        %v6101 = vmul.f32 %v6031, %v6031
        %v6102 = vmul.f32 %v6032, %v6032
        %v6103 = vmul.f32 %v6033, %v6033
        %v6104 = vmul.f32 %v6034, %v6034
        %v6105 = vmul.f32 %v6035, %v6035
        %v6106 = vmul.f32 %v6036, %v6036
        %v6107 = vadd.f32 %v6075, %v6076
        %v6108 = vadd.f32 %v6107, %v6077
        %v6109 = vadd.f32 %v6108, %v6078
        %v6110 = vadd.f32 %v6109, %v6079
        %v6111 = vadd.f32 %v6110, %v6080
        %v6112 = vadd.f32 %v6111, %v6081
        %v6113 = vadd.f32 %v6112, %v6082
        %v6114 = vadd.f32 %v6113, %v6083
        %v6115 = vadd.f32 %v6114, %v6084
        %v6116 = vadd.f32 %v6115, %v6085
        %v6117 = vadd.f32 %v6116, %v6086
        %v6118 = vadd.f32 %v6117, %v6087
        %v6119 = vadd.f32 %v6118, %v6088
        %v6120 = vadd.f32 %v6119, %v6089
        %v6121 = vadd.f32 %v6120, %v6090
        %v6122 = vadd.f32 %v6121, %v6091
        %v6123 = vadd.f32 %v6122, %v6092
        %v6124 = vadd.f32 %v6123, %v6093
        %v6125 = vadd.f32 %v6124, %v6094
        %v6126 = vadd.f32 %v6125, %v6095
        %v6127 = vadd.f32 %v6126, %v6096
        %v6128 = vadd.f32 %v6127, %v6097
        %v6129 = vadd.f32 %v6128, %v6098
        %v6130 = vadd.f32 %v6129, %v6099
        %v6131 = vadd.f32 %v6130, %v6100
        %v6132 = vadd.f32 %v6131, %v6101
        %v6133 = vadd.f32 %v6132, %v6102
        %v6134 = vadd.f32 %v6133, %v6103
        %v6135 = vadd.f32 %v6134, %v6104
        %v6136 = vadd.f32 %v6135, %v6105
        %v6137 = vadd.f32 %v6136, %v6106
        %v6138 = vrot.slane %v6137, 4
        %v6139 = vadd.f32 %v6137, %v6138
        %v6140 = vrot.slane %v6139, 2
        %v6141 = vadd.f32 %v6139, %v6140
        %v6142 = vrot.slane %v6141, 1
        %v6143 = vadd.f32 %v6141, %v6142
        %v6144 = vmul.f32 %v6143, %v3134
        %v6145 = vmul.f32 %v6074, %v6074
        %v6146 = vsub.f32 %v6144, %v6145
        %v6147 = vmax.f32 %v6146, 0.0
        %v6148 = vld [vmem:[%s5] sm:$0x1]
        %v6149 = vadd.f32 %v6147, 1e-05
        %v6150 = vrsqrt.pop %v6149
        %v6151 = vmul.f32 %v6148, %v6150
        %v6152 = vld [vmem:[%s6] sm:$0x1]
        %v6153 = vmul.f32 %v6074, %v6151
        %v6154 = vsub.f32 %v6152, %v6153
        %v6156 = vlaneseq
        %v6157 = vshrl.u32 %v6156, 7
        %v6158 = vsub.s32 0, %v6157
        %v6159 = vrot.slane %v6151, %v6158
        %v6161 = vmul.f32 %v6005, %v6159
        %v6162 = vmul.f32 %v6006, %v6159
        %v6163 = vmul.f32 %v6007, %v6159
        %v6164 = vmul.f32 %v6008, %v6159
        %v6165 = vmul.f32 %v6009, %v6159
        %v6166 = vmul.f32 %v6010, %v6159
        %v6167 = vmul.f32 %v6011, %v6159
        %v6168 = vmul.f32 %v6012, %v6159
        %v6169 = vmul.f32 %v6013, %v6159
        %v6170 = vmul.f32 %v6014, %v6159
        %v6171 = vmul.f32 %v6015, %v6159
        %v6172 = vmul.f32 %v6016, %v6159
        %v6173 = vmul.f32 %v6017, %v6159
        %v6174 = vmul.f32 %v6018, %v6159
        %v6175 = vmul.f32 %v6019, %v6159
        %v6176 = vmul.f32 %v6020, %v6159
        %v6177 = vmul.f32 %v6021, %v6159
        %v6178 = vmul.f32 %v6022, %v6159
        %v6179 = vmul.f32 %v6023, %v6159
        %v6180 = vmul.f32 %v6024, %v6159
        %v6181 = vmul.f32 %v6025, %v6159
        %v6182 = vmul.f32 %v6026, %v6159
        %v6183 = vmul.f32 %v6027, %v6159
        %v6184 = vmul.f32 %v6028, %v6159
        %v6185 = vmul.f32 %v6029, %v6159
        %v6186 = vmul.f32 %v6030, %v6159
        %v6187 = vmul.f32 %v6031, %v6159
        %v6188 = vmul.f32 %v6032, %v6159
        %v6189 = vmul.f32 %v6033, %v6159
        %v6190 = vmul.f32 %v6034, %v6159
        %v6191 = vmul.f32 %v6035, %v6159
        %v6192 = vmul.f32 %v6036, %v6159
        %v6194 = vlaneseq
        %v6195 = vshrl.u32 %v6194, 7
        %v6196 = vsub.s32 0, %v6195
        %v6197 = vrot.slane %v6154, %v6196
        %v6199 = vadd.f32 %v6161, %v6197
        %v6200 = vadd.f32 %v6162, %v6197
        %v6201 = vadd.f32 %v6163, %v6197
        %v6202 = vadd.f32 %v6164, %v6197
        %v6203 = vadd.f32 %v6165, %v6197
        %v6204 = vadd.f32 %v6166, %v6197
        %v6205 = vadd.f32 %v6167, %v6197
        %v6206 = vadd.f32 %v6168, %v6197
        %v6207 = vadd.f32 %v6169, %v6197
        %v6208 = vadd.f32 %v6170, %v6197
        %v6209 = vadd.f32 %v6171, %v6197
        %v6210 = vadd.f32 %v6172, %v6197
        %v6211 = vadd.f32 %v6173, %v6197
        %v6212 = vadd.f32 %v6174, %v6197
        %v6213 = vadd.f32 %v6175, %v6197
        %v6214 = vadd.f32 %v6176, %v6197
        %v6215 = vadd.f32 %v6177, %v6197
        %v6216 = vadd.f32 %v6178, %v6197
        %v6217 = vadd.f32 %v6179, %v6197
        %v6218 = vadd.f32 %v6180, %v6197
        %v6219 = vadd.f32 %v6181, %v6197
        %v6220 = vadd.f32 %v6182, %v6197
        %v6221 = vadd.f32 %v6183, %v6197
        %v6222 = vadd.f32 %v6184, %v6197
        %v6223 = vadd.f32 %v6185, %v6197
        %v6224 = vadd.f32 %v6186, %v6197
        %v6225 = vadd.f32 %v6187, %v6197
        %v6226 = vadd.f32 %v6188, %v6197
        %v6227 = vadd.f32 %v6189, %v6197
        %v6228 = vadd.f32 %v6190, %v6197
        %v6229 = vadd.f32 %v6191, %v6197
        %v6230 = vadd.f32 %v6192, %v6197
        %v6231 = vld [vmem:[%s288] sm:$0xff]
        %v6232 = vld [vmem:[%s288 + $0x8] sm:$0xff]
        %v6233 = vld [vmem:[%s288 + $0x10] sm:$0xff]
        %v6234 = vld [vmem:[%s288 + $0x18] sm:$0xff]
        %v6235 = vld [vmem:[%s288 + $0x20] sm:$0xff]
        %v6236 = vld [vmem:[%s288 + $0x28] sm:$0xff]
        %v6237 = vld [vmem:[%s288 + $0x30] sm:$0xff]
        %v6238 = vld [vmem:[%s288 + $0x38] sm:$0xff]
        %v6239 = vld [vmem:[%s288 + $0x40] sm:$0xff]
        %v6240 = vld [vmem:[%s288 + $0x48] sm:$0xff]
        %v6241 = vld [vmem:[%s288 + $0x50] sm:$0xff]
        %v6242 = vld [vmem:[%s288 + $0x58] sm:$0xff]
        %v6243 = vld [vmem:[%s288 + $0x60] sm:$0xff]
        %v6244 = vld [vmem:[%s288 + $0x68] sm:$0xff]
        %v6245 = vld [vmem:[%s288 + $0x70] sm:$0xff]
        %v6246 = vld [vmem:[%s288 + $0x78] sm:$0xff]
        %v6247 = vld [vmem:[%s288 + $0x80] sm:$0xff]
        %v6248 = vld [vmem:[%s288 + $0x88] sm:$0xff]
        %v6249 = vld [vmem:[%s288 + $0x90] sm:$0xff]
        %v6250 = vld [vmem:[%s288 + $0x98] sm:$0xff]
        %v6251 = vld [vmem:[%s288 + $0xa0] sm:$0xff]
        %v6252 = vld [vmem:[%s288 + $0xa8] sm:$0xff]
        %v6253 = vld [vmem:[%s288 + $0xb0] sm:$0xff]
        %v6254 = vld [vmem:[%s288 + $0xb8] sm:$0xff]
        %v6255 = vld [vmem:[%s288 + $0xc0] sm:$0xff]
        %v6256 = vld [vmem:[%s288 + $0xc8] sm:$0xff]
        %v6257 = vld [vmem:[%s288 + $0xd0] sm:$0xff]
        %v6258 = vld [vmem:[%s288 + $0xd8] sm:$0xff]
        %v6259 = vld [vmem:[%s288 + $0xe0] sm:$0xff]
        %v6260 = vld [vmem:[%s288 + $0xe8] sm:$0xff]
        %v6261 = vld [vmem:[%s288 + $0xf0] sm:$0xff]
        %v6262 = vld [vmem:[%s288 + $0xf8] sm:$0xff]
        %v6263 = vadd.f32 %v6199, %v6231
        %v6264 = vadd.f32 %v6200, %v6232
        %v6265 = vadd.f32 %v6201, %v6233
        %v6266 = vadd.f32 %v6202, %v6234
        %v6267 = vadd.f32 %v6203, %v6235
        %v6268 = vadd.f32 %v6204, %v6236
        %v6269 = vadd.f32 %v6205, %v6237
        %v6270 = vadd.f32 %v6206, %v6238
        %v6271 = vadd.f32 %v6207, %v6239
        %v6272 = vadd.f32 %v6208, %v6240
        %v6273 = vadd.f32 %v6209, %v6241
        %v6274 = vadd.f32 %v6210, %v6242
        %v6275 = vadd.f32 %v6211, %v6243
        %v6276 = vadd.f32 %v6212, %v6244
        %v6277 = vadd.f32 %v6213, %v6245
        %v6278 = vadd.f32 %v6214, %v6246
        %v6279 = vadd.f32 %v6215, %v6247
        %v6280 = vadd.f32 %v6216, %v6248
        %v6281 = vadd.f32 %v6217, %v6249
        %v6282 = vadd.f32 %v6218, %v6250
        %v6283 = vadd.f32 %v6219, %v6251
        %v6284 = vadd.f32 %v6220, %v6252
        %v6285 = vadd.f32 %v6221, %v6253
        %v6286 = vadd.f32 %v6222, %v6254
        %v6287 = vadd.f32 %v6223, %v6255
        %v6288 = vadd.f32 %v6224, %v6256
        %v6289 = vadd.f32 %v6225, %v6257
        %v6290 = vadd.f32 %v6226, %v6258
        %v6291 = vadd.f32 %v6227, %v6259
        %v6292 = vadd.f32 %v6228, %v6260
        %v6293 = vadd.f32 %v6229, %v6261
        %v6294 = vadd.f32 %v6230, %v6262
        %v6295 = vmax.f32 %v6263, 0.0
        %v6296 = vmax.f32 %v6264, 0.0
        %v6297 = vmax.f32 %v6265, 0.0
        %v6298 = vmax.f32 %v6266, 0.0
        %v6299 = vmax.f32 %v6267, 0.0
        %v6300 = vmax.f32 %v6268, 0.0
        %v6301 = vmax.f32 %v6269, 0.0
        %v6302 = vmax.f32 %v6270, 0.0
        %v6303 = vmax.f32 %v6271, 0.0
        %v6304 = vmax.f32 %v6272, 0.0
        %v6305 = vmax.f32 %v6273, 0.0
        %v6306 = vmax.f32 %v6274, 0.0
        %v6307 = vmax.f32 %v6275, 0.0
        %v6308 = vmax.f32 %v6276, 0.0
        %v6309 = vmax.f32 %v6277, 0.0
        %v6310 = vmax.f32 %v6278, 0.0
        %v6311 = vmax.f32 %v6279, 0.0
        %v6312 = vmax.f32 %v6280, 0.0
        %v6313 = vmax.f32 %v6281, 0.0
        %v6314 = vmax.f32 %v6282, 0.0
        %v6315 = vmax.f32 %v6283, 0.0
        %v6316 = vmax.f32 %v6284, 0.0
        %v6317 = vmax.f32 %v6285, 0.0
        %v6318 = vmax.f32 %v6286, 0.0
        %v6319 = vmax.f32 %v6287, 0.0
        %v6320 = vmax.f32 %v6288, 0.0
        %v6321 = vmax.f32 %v6289, 0.0
        %v6322 = vmax.f32 %v6290, 0.0
        %v6323 = vmax.f32 %v6291, 0.0
        %v6324 = vmax.f32 %v6292, 0.0
        %v6325 = vmax.f32 %v6293, 0.0
        %v6326 = vmax.f32 %v6294, 0.0
        %6327 = vst.msk [vmem:[%s293] sm:$0xff] %vm382, %v6295
        %6328 = vst.msk [vmem:[%s293 + $0x8] sm:$0xff] %vm382, %v6296
        %6329 = vst.msk [vmem:[%s293 + $0x10] sm:$0xff] %vm382, %v6297
        %6330 = vst.msk [vmem:[%s293 + $0x18] sm:$0xff] %vm382, %v6298
        %6331 = vst.msk [vmem:[%s293 + $0x20] sm:$0xff] %vm382, %v6299
        %6332 = vst.msk [vmem:[%s293 + $0x28] sm:$0xff] %vm382, %v6300
        %6333 = vst.msk [vmem:[%s293 + $0x30] sm:$0xff] %vm382, %v6301
        %6334 = vst.msk [vmem:[%s293 + $0x38] sm:$0xff] %vm382, %v6302
        %6335 = vst.msk [vmem:[%s293 + $0x40] sm:$0xff] %vm382, %v6303
        %6336 = vst.msk [vmem:[%s293 + $0x48] sm:$0xff] %vm382, %v6304
        %6337 = vst.msk [vmem:[%s293 + $0x50] sm:$0xff] %vm382, %v6305
        %6338 = vst.msk [vmem:[%s293 + $0x58] sm:$0xff] %vm382, %v6306
        %6339 = vst.msk [vmem:[%s293 + $0x60] sm:$0xff] %vm382, %v6307
        %6340 = vst.msk [vmem:[%s293 + $0x68] sm:$0xff] %vm382, %v6308
        %6341 = vst.msk [vmem:[%s293 + $0x70] sm:$0xff] %vm382, %v6309
        %6342 = vst.msk [vmem:[%s293 + $0x78] sm:$0xff] %vm382, %v6310
        %6343 = vst.msk [vmem:[%s293 + $0x80] sm:$0xff] %vm382, %v6311
        %6344 = vst.msk [vmem:[%s293 + $0x88] sm:$0xff] %vm382, %v6312
        %6345 = vst.msk [vmem:[%s293 + $0x90] sm:$0xff] %vm382, %v6313
        %6346 = vst.msk [vmem:[%s293 + $0x98] sm:$0xff] %vm382, %v6314
        %6347 = vst.msk [vmem:[%s293 + $0xa0] sm:$0xff] %vm382, %v6315
        %6348 = vst.msk [vmem:[%s293 + $0xa8] sm:$0xff] %vm382, %v6316
        %6349 = vst.msk [vmem:[%s293 + $0xb0] sm:$0xff] %vm382, %v6317
        %6350 = vst.msk [vmem:[%s293 + $0xb8] sm:$0xff] %vm382, %v6318
        %6351 = vst.msk [vmem:[%s293 + $0xc0] sm:$0xff] %vm382, %v6319
        %6352 = vst.msk [vmem:[%s293 + $0xc8] sm:$0xff] %vm382, %v6320
        %6353 = vst.msk [vmem:[%s293 + $0xd0] sm:$0xff] %vm382, %v6321
        %6354 = vst.msk [vmem:[%s293 + $0xd8] sm:$0xff] %vm382, %v6322
        %6355 = vst.msk [vmem:[%s293 + $0xe0] sm:$0xff] %vm382, %v6323
        %6356 = vst.msk [vmem:[%s293 + $0xe8] sm:$0xff] %vm382, %v6324
        %6357 = vst.msk [vmem:[%s293 + $0xf0] sm:$0xff] %vm382, %v6325
        %6358 = vst.msk [vmem:[%s293 + $0xf8] sm:$0xff] %vm382, %v6326
        %p6359 = scmp.lt.s32.totalorder %s19, 1
        %s6360 = scalar_select %p6359, %s19, 1
        %s6361 = smul.addr %s6360, 32
        %s6362 = smul.addr %s6361, 8
        %s6363 = scalar_lea.vmem %s7, %s6362
        // Predicated region
        $region53: #{tpu_custom_call.1} parent=47 // pred_check
          %p6364 = pneg %p189
        $region54: #{tpu_custom_call.1} parent=47 // pred_check_branch
          %6366 = sbr.rel (%p6364) target = $region56
        $region55: #{tpu_custom_call.1} parent=47 // pred_region
          _
        $region56: #{tpu_custom_call.1} parent=47 // pred_fallthru
          _
      $region48: #{tpu_custom_call.1} parent=5 // pred_fallthru
        _
      %p6367 = scmp.le.s32.totalorder 2, %s14
      // Predicated region
      $region57: #{tpu_custom_call.1} parent=5 // pred_check
        %p6368 = pneg %p6367
      $region58: #{tpu_custom_call.1} parent=5 // pred_check_branch
        %6370 = sbr.rel (%p6368) target = $region60
      $region59: #{tpu_custom_call.1} parent=5 // pred_region
        %s6371 = ssub.s32 %s14, 2
        // Predicated region
        $region61: #{tpu_custom_call.1} parent=59 // pred_check
          %p6372 = pneg %p195
        $region62: #{tpu_custom_call.1} parent=59 // pred_check_branch
          %6374 = sbr.rel (%p6372) target = $region64
        $region63: #{tpu_custom_call.1} parent=59 // pred_region
          %p6375 = scmp.lt.s32.totalorder %s20, 1
          %s6376 = scalar_select %p6375, %s20, 1
          %s6377 = smul.addr %s6376, 32
          %s6378 = smul.addr %s6377, 8
          %s6379 = scalar_lea.vmem %s7, %s6378
        $region64: #{tpu_custom_call.1} parent=59 // pred_fallthru
          _
      $region60: #{tpu_custom_call.1} parent=5 // pred_fallthru
        _
    $region6: #{tpu_custom_call.1} parent=1 // loop_footer
      %s18 = sadd.s32 1, %s14
    $region7: #{tpu_custom_call.1} parent=1 // loop_footer_branch
      %13 = sbr.rel target = $region3
    $region8: #{tpu_custom_call.1} parent=1 // loop_exit
      _
    %6380 = vsyncpa [#allocation4], 1
    %s6381 = scalar_lea.sflag [#allocation4], 1
    %6382 = vsyncpa %s6381, 1

</llo_original>
